<compile_context>
chip_gen: v7x
topology: tpu7x:2x2x1
jax: 0.10.0
libtpu: 0.0.40
codegen_flags: <defaults>
</compile_context>

<pallas_src>
import functools
import math

import jax
import jax.numpy as jnp
from jax.experimental import pallas as pl
from jax.experimental.pallas import tpu as pltpu


# ----------------------------- helpers -----------------------------

def _row_block(rows, target=256):
    """Largest multiple-of-8 divisor of `rows` that is <= target and < rows
    (so the row grid has >= 2 parallel steps when possible)."""
    if rows <= 8:
        return rows
    divisors = [d for d in range(8, rows, 8) if rows % d == 0]
    if not divisors:
        return rows
    le = [d for d in divisors if d <= target]
    return max(le) if le else min(divisors)


def _ln(y, g, b, eps):
    mu = jnp.mean(y, axis=-1, keepdims=True)
    yc = y - mu
    var = jnp.mean(yc * yc, axis=-1, keepdims=True)
    return yc * jax.lax.rsqrt(var + eps) * g + b


def _softmax_rows(scores):
    m = jnp.max(scores, axis=-1, keepdims=True)
    p = jnp.exp(scores - m)
    return p * pl.reciprocal(jnp.sum(p, axis=-1, keepdims=True), approx=True)


# ----------------------------- fused linear + LayerNorm -----------------------------

def _linear_ln_kernel(x_ref, w_ref, b_ref, g_ref, beta_ref, o_ref, *, eps):
    y = jnp.dot(x_ref[...], w_ref[...],
                preferred_element_type=jnp.float32) + b_ref[...]
    o_ref[...] = _ln(y, g_ref[...], beta_ref[...], eps)


def linear_layernorm(x, w, b, g, beta, *, eps=1e-5, block_target=256):
    lead = x.shape[:-1]
    K = x.shape[-1]
    N = w.shape[-1]
    x2 = x.reshape(-1, K)
    rows = x2.shape[0]
    bm = _row_block(rows, block_target)
    out = pl.pallas_call(
        functools.partial(_linear_ln_kernel, eps=eps),
        out_shape=jax.ShapeDtypeStruct((rows, N), jnp.float32),
        grid=(rows // bm,),
        in_specs=[
            pl.BlockSpec((bm, K), lambda i: (i, 0)),
            pl.BlockSpec((K, N), lambda i: (0, 0)),
            pl.BlockSpec((1, N), lambda i: (0, 0)),
            pl.BlockSpec((1, N), lambda i: (0, 0)),
            pl.BlockSpec((1, N), lambda i: (0, 0)),
        ],
        out_specs=pl.BlockSpec((bm, N), lambda i: (i, 0)),
        compiler_params=pltpu.CompilerParams(
            dimension_semantics=("parallel",)),
    )(x2, w, b.reshape(1, N), g.reshape(1, N), beta.reshape(1, N))
    return out.reshape(*lead, N)


# ----------------------------- co-attention mega-kernel -----------------------------

def _co_attention_kernel(sx_ref, mx_ref,
                         qksv_w_ref, qksv_b_ref, mv_w_ref, mv_b_ref,
                         so_w_ref, so_b_ref, mo_w_ref, mo_b_ref,
                         sln_g_ref, sln_b_ref, mln_g_ref, mln_b_ref,
                         s_out_ref, m_out_ref,
                         *, num_heads, single_dim, multi_dim, eps):
    H = num_heads
    S = single_dim
    M = multi_dim
    hs = S // H
    hm = M // H
    C = mx_ref.shape[1]
    scale = 1.0 / math.sqrt(hs)

    sx = sx_ref[0]                                           # (F, S)
    qksv = jnp.dot(sx, qksv_w_ref[...],
                   preferred_element_type=jnp.float32) + qksv_b_ref[...]
    q = qksv[:, :S]
    k = qksv[:, S:2 * S]
    sv = qksv[:, 2 * S:]

    mx = mx_ref[0]                                           # (C, F, M)
    mv = [jnp.dot(mx[c], mv_w_ref[...],
                  preferred_element_type=jnp.float32) + mv_b_ref[...]
          for c in range(C)]                                 # each (F, M)

    s_heads = []
    m_heads = [[] for _ in range(C)]
    for h in range(H):
        qh = q[:, h * hs:(h + 1) * hs]
        kh = k[:, h * hs:(h + 1) * hs]
        scores = jax.lax.dot_general(
            qh, kh, (((1,), (1,)), ((), ())),
            preferred_element_type=jnp.float32) * scale       # (F, F)
        p = _softmax_rows(scores)                             # shared over channels
        s_heads.append(jnp.dot(p, sv[:, h * hs:(h + 1) * hs],
                               preferred_element_type=jnp.float32))
        for c in range(C):
            m_heads[c].append(jnp.dot(p, mv[c][:, h * hm:(h + 1) * hm],
                                      preferred_element_type=jnp.float32))

    # single: out-proj + residual + LN
    s_att = jnp.concatenate(s_heads, axis=-1)                 # (F, S)
    s_y = jnp.dot(s_att, so_w_ref[...],
                  preferred_element_type=jnp.float32) + so_b_ref[...]
    s_out_ref[0] = _ln(s_y + sx, sln_g_ref[...], sln_b_ref[...], eps)

    # multi: per channel out-proj + residual + LN
    for c in range(C):
        m_att = jnp.concatenate(m_heads[c], axis=-1)          # (F, M)
        m_y = jnp.dot(m_att, mo_w_ref[...],
                      preferred_element_type=jnp.float32) + mo_b_ref[...]
        m_out_ref[0, c] = _ln(m_y + mx[c], mln_g_ref[...], mln_b_ref[...], eps)


def co_attention_mca(p, single_x, multi_x, num_heads, eps=1e-5):
    # single_x: (B, F, S), multi_x: (B, C, F, M)
    B, F, S = single_x.shape
    C, M = multi_x.shape[1], multi_x.shape[3]
    kern = functools.partial(_co_attention_kernel, num_heads=num_heads,
                             single_dim=S, multi_dim=M, eps=eps)
    w = lambda shape: pl.BlockSpec(shape, lambda b: (0, 0))
    s_out, m_out = pl.pallas_call(
        kern,
        out_shape=(jax.ShapeDtypeStruct((B, F, S), jnp.float32),
                   jax.ShapeDtypeStruct((B, C, F, M), jnp.float32)),
        grid=(B,),
        in_specs=[
            pl.BlockSpec((1, F, S), lambda b: (b, 0, 0)),
            pl.BlockSpec((1, C, F, M), lambda b: (b, 0, 0, 0)),
            w((S, 3 * S)), w((1, 3 * S)),
            w((M, M)), w((1, M)),
            w((S, S)), w((1, S)),
            w((M, M)), w((1, M)),
            w((1, S)), w((1, S)),
            w((1, M)), w((1, M)),
        ],
        out_specs=(pl.BlockSpec((1, F, S), lambda b: (b, 0, 0)),
                   pl.BlockSpec((1, C, F, M), lambda b: (b, 0, 0, 0))),
        compiler_params=pltpu.CompilerParams(
            dimension_semantics=("parallel",)),
    )(single_x, multi_x,
      p['qksv_w'], p['qksv_b'].reshape(1, -1),
      p['mv_w'], p['mv_b'].reshape(1, -1),
      p['so_w'], p['so_b'].reshape(1, -1),
      p['mo_w'], p['mo_b'].reshape(1, -1),
      p['sln_g'].reshape(1, -1), p['sln_b'].reshape(1, -1),
      p['mln_g'].reshape(1, -1), p['mln_b'].reshape(1, -1))
    return s_out, m_out


# ----------------------------- cross-frame MHA mega-kernel -----------------------------

def _cross_frame_mha_kernel(x_ref, in_w_ref, in_b_ref, ow_ref, ob_ref,
                            g_ref, b_ref, o_ref, *, num_heads, single_dim, eps):
    H = num_heads
    S = single_dim
    hd = S // H
    scale = 1.0 / math.sqrt(hd)

    x = x_ref[0]                                              # (F, S)
    qkv = jnp.dot(x, in_w_ref[...],
                  preferred_element_type=jnp.float32) + in_b_ref[...]
    q = qkv[:, :S]
    k = qkv[:, S:2 * S]
    v = qkv[:, 2 * S:]

    heads = []
    for h in range(H):
        qh = q[:, h * hd:(h + 1) * hd]
        kh = k[:, h * hd:(h + 1) * hd]
        vh = v[:, h * hd:(h + 1) * hd]
        scores = jax.lax.dot_general(
            qh, kh, (((1,), (1,)), ((), ())),
            preferred_element_type=jnp.float32) * scale
        p = _softmax_rows(scores)
        heads.append(jnp.dot(p, vh, preferred_element_type=jnp.float32))
    att = jnp.concatenate(heads, axis=-1)                     # (F, S)

    y = jnp.dot(att, ow_ref[...],
                preferred_element_type=jnp.float32) + ob_ref[...]
    o_ref[0] = _ln(y + x, g_ref[...], b_ref[...], eps)


def cross_frame_mha(p, single_x, num_heads, eps=1e-5):
    B, F, S = single_x.shape
    kern = functools.partial(_cross_frame_mha_kernel, num_heads=num_heads,
                             single_dim=S, eps=eps)
    w = lambda shape: pl.BlockSpec(shape, lambda b: (0, 0))
    return pl.pallas_call(
        kern,
        out_shape=jax.ShapeDtypeStruct((B, F, S), jnp.float32),
        grid=(B,),
        in_specs=[
            pl.BlockSpec((1, F, S), lambda b: (b, 0, 0)),
            w((S, 3 * S)), w((1, 3 * S)),
            w((S, S)), w((1, S)),
            w((1, S)), w((1, S)),
        ],
        out_specs=pl.BlockSpec((1, F, S), lambda b: (b, 0, 0)),
        compiler_params=pltpu.CompilerParams(
            dimension_semantics=("parallel",)),
    )(single_x, p['in_w'], p['in_b'].reshape(1, -1),
      p['out_w'], p['out_b'].reshape(1, -1),
      p['ln_g'].reshape(1, -1), p['ln_b'].reshape(1, -1))


# ----------------------------- cat projection (split weight, no concat) -----------------------------

def _cat_proj_kernel(sx_ref, mx_ref, x_ref, ws_ref, wm_ref, b_ref, o_ref):
    # sx: (1,F,S), mx: (1,C,F,M), x: (1,C,F,E) -> o: (1,C,F,E)
    sp = jnp.dot(sx_ref[0], ws_ref[...],
                 preferred_element_type=jnp.float32) + b_ref[...]   # (F, E)
    C = mx_ref.shape[1]
    for c in range(C):
        mp = jnp.dot(mx_ref[0, c], wm_ref[...],
                     preferred_element_type=jnp.float32)            # (F, E)
        o_ref[0, c] = mp + sp + x_ref[0, c]


def cat_projection(p, single_x, multi_x, x_resid):
    B, C, F, E = x_resid.shape
    S = single_x.shape[-1]
    M = multi_x.shape[-1]
    w = lambda shape: pl.BlockSpec(shape, lambda b: (0, 0))
    return pl.pallas_call(
        _cat_proj_kernel,
        out_shape=jax.ShapeDtypeStruct((B, C, F, E), jnp.float32),
        grid=(B,),
        in_specs=[
            pl.BlockSpec((1, F, S), lambda b: (b, 0, 0)),
            pl.BlockSpec((1, C, F, M), lambda b: (b, 0, 0, 0)),
            pl.BlockSpec((1, C, F, E), lambda b: (b, 0, 0, 0)),
            w((S, E)), w((M, E)), w((1, E)),
        ],
        out_specs=pl.BlockSpec((1, C, F, E), lambda b: (b, 0, 0, 0)),
        compiler_params=pltpu.CompilerParams(
            dimension_semantics=("parallel",)),
    )(single_x, multi_x, x_resid, p['cat_ws'], p['cat_wm'],
      p['cat_b'].reshape(1, -1))


# ----------------------------- layer / model glue -----------------------------

def co_attention_layer(p, x, active_channels, num_heads):
    # x: (B, C, F, D)
    B, C, F, D = x.shape

    # Per-group mean over active channels (tiny data-dependent-mask reduction
    # kept in XLA glue).
    # TODO(synk): torch drops zero-sized groups from the batch (data-dependent
    # shape); here we assume all groups are non-empty, as the rest of the
    # forward requires for shape consistency.
    mask = (jnp.arange(C)[None, :] < active_channels[:, None]).astype(x.dtype)  # (B, C)
    counts = jnp.maximum(active_channels.astype(x.dtype), 1.0)
    single_in = jnp.einsum('bcfd,bc->bfd', x, mask) / counts[:, None, None]

    single_x = linear_layernorm(single_in, p['in_single_w'], p['in_single_b'],
                                p['in_single_ln_g'], p['in_single_ln_b'])       # (B, F, S)
    multi_x = linear_layernorm(x, p['in_multi_w'], p['in_multi_b'],
                               p['in_multi_ln_g'], p['in_multi_ln_b'])          # (B, C, F, M)

    single_x, multi_x = co_attention_mca(p['mca'], single_x, multi_x, num_heads)
    single_x = cross_frame_mha(p['mha'], single_x, num_heads)

    return cat_projection(p, single_x, multi_x, x)            # includes +x residual


def interaction_forward(params, hidden_states, per_group_sizes, max_spk, num_heads):
    orig_shape = hidden_states.shape                           # (B*C, F, D)
    F, D = orig_shape[1], orig_shape[2]
    x = hidden_states.reshape(-1, max_spk, F, D)               # (B, C, F, D)
    for p in params:
        x = co_attention_layer(p, x, per_group_sizes, num_heads)
    return x.reshape(orig_shape)


# ----------------------------- parameter init -----------------------------

def _lin_init(k, i, o, scale=0.02):
    return (scale * jax.random.normal(k, (i, o), jnp.float32),
            jnp.zeros((o,), jnp.float32))


def init_co_attention_params(key, embed_dim, single_dim, multi_dim):
    ks = jax.random.split(key, 10)
    ones = lambda d: jnp.ones((d,), jnp.float32)
    zeros = lambda d: jnp.zeros((d,), jnp.float32)
    in_single_w, in_single_b = _lin_init(ks[0], embed_dim, single_dim)
    in_multi_w, in_multi_b = _lin_init(ks[1], embed_dim, multi_dim)
    qksv_w, qksv_b = _lin_init(ks[2], single_dim, 3 * single_dim)   # fused q|k|sv
    mv_w, mv_b = _lin_init(ks[3], multi_dim, multi_dim)
    so_w, so_b = _lin_init(ks[4], single_dim, single_dim)
    mo_w, mo_b = _lin_init(ks[5], multi_dim, multi_dim)
    mha_in_w, mha_in_b = _lin_init(ks[6], single_dim, 3 * single_dim)
    mha_out_w, mha_out_b = _lin_init(ks[7], single_dim, single_dim)
    cat_ws, cat_b = _lin_init(ks[8], single_dim, embed_dim)          # cat_proj split
    cat_wm, _ = _lin_init(ks[9], multi_dim, embed_dim)
    return {
        'in_single_w': in_single_w, 'in_single_b': in_single_b,
        'in_single_ln_g': ones(single_dim), 'in_single_ln_b': zeros(single_dim),
        'in_multi_w': in_multi_w, 'in_multi_b': in_multi_b,
        'in_multi_ln_g': ones(multi_dim), 'in_multi_ln_b': zeros(multi_dim),
        'mca': {
            'qksv_w': qksv_w, 'qksv_b': qksv_b,
            'mv_w': mv_w, 'mv_b': mv_b,
            'so_w': so_w, 'so_b': so_b,
            'mo_w': mo_w, 'mo_b': mo_b,
            'sln_g': ones(single_dim), 'sln_b': zeros(single_dim),
            'mln_g': ones(multi_dim), 'mln_b': zeros(multi_dim),
        },
        'mha': {
            'in_w': mha_in_w, 'in_b': mha_in_b,
            'out_w': mha_out_w, 'out_b': mha_out_b,
            'ln_g': ones(single_dim), 'ln_b': zeros(single_dim),
        },
        'cat_ws': cat_ws, 'cat_wm': cat_wm, 'cat_b': cat_b,
    }


# ----------------------------- main -----------------------------

if __name__ == "__main__":
    d_model = 128            # config.d_model
    n_heads = 8              # config.encoder_attention_heads
    num_layers = 2
    frames = 16              # time frames
    n_groups = 2             # batch groups
    max_spk = 2              # channels (speakers) per group

    key = jax.random.PRNGKey(0)
    k_params, k_x = jax.random.split(key)
    layer_keys = jax.random.split(k_params, num_layers)
    params = [init_co_attention_params(k, d_model, d_model, d_model // 2)
              for k in layer_keys]

    hidden_states = jax.random.normal(
        k_x, (n_groups * max_spk, frames, d_model), jnp.float32)
    per_group_sizes = jnp.array([max_spk, max_spk], dtype=jnp.int32)

    fwd = jax.jit(interaction_forward, static_argnums=(3, 4))
    out = fwd(params, hidden_states, per_group_sizes, max_spk, n_heads)
    out = jax.block_until_ready(out)

    assert out.shape == hidden_states.shape
    assert bool(jnp.all(jnp.isfinite(out)))
    print("KERNEL_OK")
</pallas_src>

<mosaic_0001>
module attributes {stable_mosaic.version = 11 : i64} {
  func.func @_linear_ln_kernel(%arg0: i32, %arg1: memref<16x128xf32, #tpu.memory_space<vmem>>, %arg2: memref<128x128xf32, #tpu.memory_space<vmem>>, %arg3: memref<1x128xf32, #tpu.memory_space<vmem>>, %arg4: memref<1x128xf32, #tpu.memory_space<vmem>>, %arg5: memref<1x128xf32, #tpu.memory_space<vmem>>, %arg6: memref<16x128xf32, #tpu.memory_space<vmem>>) attributes {dimension_semantics = [#tpu.dimension_semantics<parallel>], iteration_bounds = array<i64: 2>, scalar_prefetch = 0 : i64, scratch_operands = 0 : i64, tpu.core_type = #tpu.core_type<tc>, window_params = [{transform_indices = @transform_0, window_bounds = array<i64: 16, 128>}, {pipeline_mode = #tpu.pipeline_mode<synchronous>, transform_indices = @transform_1, window_bounds = array<i64: 128, 128>}, {pipeline_mode = #tpu.pipeline_mode<synchronous>, transform_indices = @transform_2, window_bounds = array<i64: 1, 128>}, {pipeline_mode = #tpu.pipeline_mode<synchronous>, transform_indices = @transform_3, window_bounds = array<i64: 1, 128>}, {pipeline_mode = #tpu.pipeline_mode<synchronous>, transform_indices = @transform_4, window_bounds = array<i64: 1, 128>}, {transform_indices = @transform_5, window_bounds = array<i64: 16, 128>}]} {
    %c0 = arith.constant 0 : index
    %c0_0 = arith.constant 0 : index
    %0 = vector.load %arg1[%c0, %c0_0] : memref<16x128xf32, #tpu.memory_space<vmem>>, vector<16x128xf32>
    %c0_1 = arith.constant 0 : index
    %c0_2 = arith.constant 0 : index
    %1 = vector.load %arg2[%c0_1, %c0_2] : memref<128x128xf32, #tpu.memory_space<vmem>>, vector<128x128xf32>
    %cst = arith.constant dense<0.000000e+00> : vector<16x128xf32>
    %2 = tpu.matmul %0, %1, %cst {dimension_numbers = #tpu.dot_dimension_numbers<[1], [0], [0], [1], [0, 0, 1, 1], [], []>} : vector<16x128xf32>, vector<128x128xf32>, vector<16x128xf32> -> vector<16x128xf32>
    %c0_3 = arith.constant 0 : index
    %c0_4 = arith.constant 0 : index
    %3 = vector.load %arg3[%c0_3, %c0_4] : memref<1x128xf32, #tpu.memory_space<vmem>>, vector<1x128xf32>
    %4 = vector.broadcast %3 : vector<1x128xf32> to vector<16x128xf32>
    %5 = arith.addf %2, %4 : vector<16x128xf32>
    %c0_5 = arith.constant 0 : index
    %c0_6 = arith.constant 0 : index
    %6 = vector.load %arg4[%c0_5, %c0_6] : memref<1x128xf32, #tpu.memory_space<vmem>>, vector<1x128xf32>
    %c0_7 = arith.constant 0 : index
    %c0_8 = arith.constant 0 : index
    %7 = vector.load %arg5[%c0_7, %c0_8] : memref<1x128xf32, #tpu.memory_space<vmem>>, vector<1x128xf32>
    %cst_9 = arith.constant dense<0.000000e+00> : vector<16xf32>
    %8 = vector.multi_reduction <add>, %5, %cst_9 [1] : vector<16x128xf32> to vector<16xf32>
    %9 = vector.shape_cast %8 : vector<16xf32> to vector<16x1xf32>
    %cst_10 = arith.constant 1.280000e+02 : f32
    %10 = vector.broadcast %cst_10 : f32 to vector<16x1xf32>
    %11 = arith.divf %9, %10 : vector<16x1xf32>
    %12 = vector.broadcast %11 : vector<16x1xf32> to vector<16x128xf32>
    %13 = arith.subf %5, %12 : vector<16x128xf32>
    %14 = arith.mulf %13, %13 : vector<16x128xf32>
    %cst_11 = arith.constant dense<0.000000e+00> : vector<16xf32>
    %15 = vector.multi_reduction <add>, %14, %cst_11 [1] : vector<16x128xf32> to vector<16xf32>
    %16 = vector.shape_cast %15 : vector<16xf32> to vector<16x1xf32>
    %cst_12 = arith.constant 1.280000e+02 : f32
    %17 = vector.broadcast %cst_12 : f32 to vector<16x1xf32>
    %18 = arith.divf %16, %17 : vector<16x1xf32>
    %cst_13 = arith.constant 9.99999974E-6 : f32
    %19 = vector.broadcast %cst_13 : f32 to vector<16x1xf32>
    %20 = arith.addf %18, %19 : vector<16x1xf32>
    %21 = math.rsqrt %20 : vector<16x1xf32>
    %22 = vector.broadcast %21 : vector<16x1xf32> to vector<16x128xf32>
    %23 = arith.mulf %13, %22 : vector<16x128xf32>
    %24 = vector.broadcast %6 : vector<1x128xf32> to vector<16x128xf32>
    %25 = arith.mulf %23, %24 : vector<16x128xf32>
    %26 = vector.broadcast %7 : vector<1x128xf32> to vector<16x128xf32>
    %27 = arith.addf %25, %26 : vector<16x128xf32>
    %c0_14 = arith.constant 0 : index
    %c0_15 = arith.constant 0 : index
    %28 = vector.load %arg6[%c0_14, %c0_15] : memref<16x128xf32, #tpu.memory_space<vmem>>, vector<16x128xf32>
    tpu.vector_store %arg6[%c0_14, %c0_15], %27 {strides = array<i32>} : memref<16x128xf32, #tpu.memory_space<vmem>>, vector<16x128xf32>,
    return
  }
  func.func @transform_0(%arg0: i32) -> (i32, i32) {
    %c0_i32 = arith.constant 0 : i32
    %c0_i32_0 = arith.constant 0 : i32
    return %arg0, %c0_i32 : i32, i32
  }
  func.func @transform_1(%arg0: i32) -> (i32, i32) {
    %c0_i32 = arith.constant 0 : i32
    %c0_i32_0 = arith.constant 0 : i32
    %c0_i32_1 = arith.constant 0 : i32
    return %c0_i32, %c0_i32_0 : i32, i32
  }
  func.func @transform_2(%arg0: i32) -> (i32, i32) {
    %c0_i32 = arith.constant 0 : i32
    %c0_i32_0 = arith.constant 0 : i32
    %c0_i32_1 = arith.constant 0 : i32
    return %c0_i32, %c0_i32_0 : i32, i32
  }
  func.func @transform_3(%arg0: i32) -> (i32, i32) {
    %c0_i32 = arith.constant 0 : i32
    %c0_i32_0 = arith.constant 0 : i32
    %c0_i32_1 = arith.constant 0 : i32
    return %c0_i32, %c0_i32_0 : i32, i32
  }
  func.func @transform_4(%arg0: i32) -> (i32, i32) {
    %c0_i32 = arith.constant 0 : i32
    %c0_i32_0 = arith.constant 0 : i32
    %c0_i32_1 = arith.constant 0 : i32
    return %c0_i32, %c0_i32_0 : i32, i32
  }
  func.func @transform_5(%arg0: i32) -> (i32, i32) {
    %c0_i32 = arith.constant 0 : i32
    %c0_i32_0 = arith.constant 0 : i32
    return %arg0, %c0_i32 : i32, i32
  }
}

module attributes {stable_mosaic.version = 11 : i64} {
  func.func @_linear_ln_kernel(%arg0: i32, %arg1: memref<32x128xf32, #tpu.memory_space<vmem>>, %arg2: memref<128x64xf32, #tpu.memory_space<vmem>>, %arg3: memref<1x64xf32, #tpu.memory_space<vmem>>, %arg4: memref<1x64xf32, #tpu.memory_space<vmem>>, %arg5: memref<1x64xf32, #tpu.memory_space<vmem>>, %arg6: memref<32x64xf32, #tpu.memory_space<vmem>>) attributes {dimension_semantics = [#tpu.dimension_semantics<parallel>], iteration_bounds = array<i64: 2>, scalar_prefetch = 0 : i64, scratch_operands = 0 : i64, tpu.core_type = #tpu.core_type<tc>, window_params = [{transform_indices = @transform_0, window_bounds = array<i64: 32, 128>}, {pipeline_mode = #tpu.pipeline_mode<synchronous>, transform_indices = @transform_1, window_bounds = array<i64: 128, 64>}, {pipeline_mode = #tpu.pipeline_mode<synchronous>, transform_indices = @transform_2, window_bounds = array<i64: 1, 64>}, {pipeline_mode = #tpu.pipeline_mode<synchronous>, transform_indices = @transform_3, window_bounds = array<i64: 1, 64>}, {pipeline_mode = #tpu.pipeline_mode<synchronous>, transform_indices = @transform_4, window_bounds = array<i64: 1, 64>}, {transform_indices = @transform_5, window_bounds = array<i64: 32, 64>}]} {
    %c0 = arith.constant 0 : index
    %c0_0 = arith.constant 0 : index
    %0 = vector.load %arg1[%c0, %c0_0] : memref<32x128xf32, #tpu.memory_space<vmem>>, vector<32x128xf32>
    %c0_1 = arith.constant 0 : index
    %c0_2 = arith.constant 0 : index
    %1 = vector.load %arg2[%c0_1, %c0_2] : memref<128x64xf32, #tpu.memory_space<vmem>>, vector<128x64xf32>
    %cst = arith.constant dense<0.000000e+00> : vector<32x64xf32>
    %2 = tpu.matmul %0, %1, %cst {dimension_numbers = #tpu.dot_dimension_numbers<[1], [0], [0], [1], [0, 0, 1, 1], [], []>} : vector<32x128xf32>, vector<128x64xf32>, vector<32x64xf32> -> vector<32x64xf32>
    %c0_3 = arith.constant 0 : index
    %c0_4 = arith.constant 0 : index
    %3 = vector.load %arg3[%c0_3, %c0_4] : memref<1x64xf32, #tpu.memory_space<vmem>>, vector<1x64xf32>
    %4 = vector.broadcast %3 : vector<1x64xf32> to vector<32x64xf32>
    %5 = arith.addf %2, %4 : vector<32x64xf32>
    %c0_5 = arith.constant 0 : index
    %c0_6 = arith.constant 0 : index
    %6 = vector.load %arg4[%c0_5, %c0_6] : memref<1x64xf32, #tpu.memory_space<vmem>>, vector<1x64xf32>
    %c0_7 = arith.constant 0 : index
    %c0_8 = arith.constant 0 : index
    %7 = vector.load %arg5[%c0_7, %c0_8] : memref<1x64xf32, #tpu.memory_space<vmem>>, vector<1x64xf32>
    %cst_9 = arith.constant dense<0.000000e+00> : vector<32xf32>
    %8 = vector.multi_reduction <add>, %5, %cst_9 [1] : vector<32x64xf32> to vector<32xf32>
    %9 = vector.shape_cast %8 : vector<32xf32> to vector<32x1xf32>
    %cst_10 = arith.constant 6.400000e+01 : f32
    %10 = vector.broadcast %cst_10 : f32 to vector<32x1xf32>
    %11 = arith.divf %9, %10 : vector<32x1xf32>
    %12 = vector.broadcast %11 : vector<32x1xf32> to vector<32x64xf32>
    %13 = arith.subf %5, %12 : vector<32x64xf32>
    %14 = arith.mulf %13, %13 : vector<32x64xf32>
    %cst_11 = arith.constant dense<0.000000e+00> : vector<32xf32>
    %15 = vector.multi_reduction <add>, %14, %cst_11 [1] : vector<32x64xf32> to vector<32xf32>
    %16 = vector.shape_cast %15 : vector<32xf32> to vector<32x1xf32>
    %cst_12 = arith.constant 6.400000e+01 : f32
    %17 = vector.broadcast %cst_12 : f32 to vector<32x1xf32>
    %18 = arith.divf %16, %17 : vector<32x1xf32>
    %cst_13 = arith.constant 9.99999974E-6 : f32
    %19 = vector.broadcast %cst_13 : f32 to vector<32x1xf32>
    %20 = arith.addf %18, %19 : vector<32x1xf32>
    %21 = math.rsqrt %20 : vector<32x1xf32>
    %22 = vector.broadcast %21 : vector<32x1xf32> to vector<32x64xf32>
    %23 = arith.mulf %13, %22 : vector<32x64xf32>
    %24 = vector.broadcast %6 : vector<1x64xf32> to vector<32x64xf32>
    %25 = arith.mulf %23, %24 : vector<32x64xf32>
    %26 = vector.broadcast %7 : vector<1x64xf32> to vector<32x64xf32>
    %27 = arith.addf %25, %26 : vector<32x64xf32>
    %c0_14 = arith.constant 0 : index
    %c0_15 = arith.constant 0 : index
    %28 = vector.load %arg6[%c0_14, %c0_15] : memref<32x64xf32, #tpu.memory_space<vmem>>, vector<32x64xf32>
    tpu.vector_store %arg6[%c0_14, %c0_15], %27 {strides = array<i32>} : memref<32x64xf32, #tpu.memory_space<vmem>>, vector<32x64xf32>,
    return
  }
  func.func @transform_0(%arg0: i32) -> (i32, i32) {
    %c0_i32 = arith.constant 0 : i32
    %c0_i32_0 = arith.constant 0 : i32
    return %arg0, %c0_i32 : i32, i32
  }
  func.func @transform_1(%arg0: i32) -> (i32, i32) {
    %c0_i32 = arith.constant 0 : i32
    %c0_i32_0 = arith.constant 0 : i32
    %c0_i32_1 = arith.constant 0 : i32
    return %c0_i32, %c0_i32_0 : i32, i32
  }
  func.func @transform_2(%arg0: i32) -> (i32, i32) {
    %c0_i32 = arith.constant 0 : i32
    %c0_i32_0 = arith.constant 0 : i32
    %c0_i32_1 = arith.constant 0 : i32
    return %c0_i32, %c0_i32_0 : i32, i32
  }
  func.func @transform_3(%arg0: i32) -> (i32, i32) {
    %c0_i32 = arith.constant 0 : i32
    %c0_i32_0 = arith.constant 0 : i32
    %c0_i32_1 = arith.constant 0 : i32
    return %c0_i32, %c0_i32_0 : i32, i32
  }
  func.func @transform_4(%arg0: i32) -> (i32, i32) {
    %c0_i32 = arith.constant 0 : i32
    %c0_i32_0 = arith.constant 0 : i32
    %c0_i32_1 = arith.constant 0 : i32
    return %c0_i32, %c0_i32_0 : i32, i32
  }
  func.func @transform_5(%arg0: i32) -> (i32, i32) {
    %c0_i32 = arith.constant 0 : i32
    %c0_i32_0 = arith.constant 0 : i32
    return %arg0, %c0_i32 : i32, i32
  }
}

module attributes {stable_mosaic.version = 11 : i64} {
  func.func @_cross_frame_mha_kernel(%arg0: i32, %arg1: memref<1x16x128xf32, #tpu.memory_space<vmem>>, %arg2: memref<128x384xf32, #tpu.memory_space<vmem>>, %arg3: memref<1x384xf32, #tpu.memory_space<vmem>>, %arg4: memref<128x128xf32, #tpu.memory_space<vmem>>, %arg5: memref<1x128xf32, #tpu.memory_space<vmem>>, %arg6: memref<1x128xf32, #tpu.memory_space<vmem>>, %arg7: memref<1x128xf32, #tpu.memory_space<vmem>>, %arg8: memref<1x16x128xf32, #tpu.memory_space<vmem>>) attributes {dimension_semantics = [#tpu.dimension_semantics<parallel>], iteration_bounds = array<i64: 2>, scalar_prefetch = 0 : i64, scratch_operands = 0 : i64, tpu.core_type = #tpu.core_type<tc>, window_params = [{transform_indices = @transform_0, window_bounds = array<i64: 1, 16, 128>}, {pipeline_mode = #tpu.pipeline_mode<synchronous>, transform_indices = @transform_1, window_bounds = array<i64: 128, 384>}, {pipeline_mode = #tpu.pipeline_mode<synchronous>, transform_indices = @transform_2, window_bounds = array<i64: 1, 384>}, {pipeline_mode = #tpu.pipeline_mode<synchronous>, transform_indices = @transform_3, window_bounds = array<i64: 128, 128>}, {pipeline_mode = #tpu.pipeline_mode<synchronous>, transform_indices = @transform_4, window_bounds = array<i64: 1, 128>}, {pipeline_mode = #tpu.pipeline_mode<synchronous>, transform_indices = @transform_5, window_bounds = array<i64: 1, 128>}, {pipeline_mode = #tpu.pipeline_mode<synchronous>, transform_indices = @transform_6, window_bounds = array<i64: 1, 128>}, {transform_indices = @transform_7, window_bounds = array<i64: 1, 16, 128>}]} {
    %c0 = arith.constant 0 : index
    %c0_0 = arith.constant 0 : index
    %c0_1 = arith.constant 0 : index
    %0 = vector.load %arg1[%c0, %c0_0, %c0_1] : memref<1x16x128xf32, #tpu.memory_space<vmem>>, vector<1x16x128xf32>
    %1 = vector.shape_cast %0 : vector<1x16x128xf32> to vector<16x128xf32>
    %c0_2 = arith.constant 0 : index
    %c0_3 = arith.constant 0 : index
    %2 = vector.load %arg2[%c0_2, %c0_3] : memref<128x384xf32, #tpu.memory_space<vmem>>, vector<128x384xf32>
    %cst = arith.constant dense<0.000000e+00> : vector<16x384xf32>
    %3 = tpu.matmul %1, %2, %cst {dimension_numbers = #tpu.dot_dimension_numbers<[1], [0], [0], [1], [0, 0, 1, 1], [], []>} : vector<16x128xf32>, vector<128x384xf32>, vector<16x384xf32> -> vector<16x384xf32>
    %c0_4 = arith.constant 0 : index
    %c0_5 = arith.constant 0 : index
    %4 = vector.load %arg3[%c0_4, %c0_5] : memref<1x384xf32, #tpu.memory_space<vmem>>, vector<1x384xf32>
    %5 = vector.broadcast %4 : vector<1x384xf32> to vector<16x384xf32>
    %6 = arith.addf %3, %5 : vector<16x384xf32>
    %7 = vector.extract_strided_slice %6 {offsets = [0, 0], sizes = [16, 128], strides = [1, 1]} : vector<16x384xf32> to vector<16x128xf32>
    %8 = vector.extract_strided_slice %6 {offsets = [0, 128], sizes = [16, 128], strides = [1, 1]} : vector<16x384xf32> to vector<16x128xf32>
    %9 = vector.extract_strided_slice %6 {offsets = [0, 256], sizes = [16, 128], strides = [1, 1]} : vector<16x384xf32> to vector<16x128xf32>
    %10 = vector.extract_strided_slice %7 {offsets = [0, 0], sizes = [16, 16], strides = [1, 1]} : vector<16x128xf32> to vector<16x16xf32>
    %11 = vector.extract_strided_slice %8 {offsets = [0, 0], sizes = [16, 16], strides = [1, 1]} : vector<16x128xf32> to vector<16x16xf32>
    %12 = vector.extract_strided_slice %9 {offsets = [0, 0], sizes = [16, 16], strides = [1, 1]} : vector<16x128xf32> to vector<16x16xf32>
    %cst_6 = arith.constant dense<0.000000e+00> : vector<16x16xf32>
    %13 = tpu.matmul %10, %11, %cst_6 {dimension_numbers = #tpu.dot_dimension_numbers<[1], [1], [0], [0], [0, 0, 1, 0], [], []>} : vector<16x16xf32>, vector<16x16xf32>, vector<16x16xf32> -> vector<16x16xf32>
    %cst_7 = arith.constant 2.500000e-01 : f32
    %14 = vector.broadcast %cst_7 : f32 to vector<16x16xf32>
    %15 = arith.mulf %13, %14 : vector<16x16xf32>
    %cst_8 = arith.constant dense<0xFF800000> : vector<16xf32>
    %16 = vector.multi_reduction <maximumf>, %15, %cst_8 [1] : vector<16x16xf32> to vector<16xf32>
    %17 = vector.shape_cast %16 : vector<16xf32> to vector<16x1xf32>
    %18 = vector.broadcast %17 : vector<16x1xf32> to vector<16x16xf32>
    %19 = arith.subf %15, %18 : vector<16x16xf32>
    %20 = math.exp %19 : vector<16x16xf32>
    %cst_9 = arith.constant dense<0.000000e+00> : vector<16xf32>
    %21 = vector.multi_reduction <add>, %20, %cst_9 [1] : vector<16x16xf32> to vector<16xf32>
    %22 = vector.shape_cast %21 : vector<16xf32> to vector<16x1xf32>
    %23 = tpu.reciprocal %22 {approx = true} : vector<16x1xf32> -> vector<16x1xf32>
    %24 = vector.broadcast %23 : vector<16x1xf32> to vector<16x16xf32>
    %25 = arith.mulf %20, %24 : vector<16x16xf32>
    %cst_10 = arith.constant dense<0.000000e+00> : vector<16x16xf32>
    %26 = tpu.matmul %25, %12, %cst_10 {dimension_numbers = #tpu.dot_dimension_numbers<[1], [0], [0], [1], [0, 0, 1, 1], [], []>} : vector<16x16xf32>, vector<16x16xf32>, vector<16x16xf32> -> vector<16x16xf32>
    %27 = vector.extract_strided_slice %7 {offsets = [0, 16], sizes = [16, 16], strides = [1, 1]} : vector<16x128xf32> to vector<16x16xf32>
    %28 = vector.extract_strided_slice %8 {offsets = [0, 16], sizes = [16, 16], strides = [1, 1]} : vector<16x128xf32> to vector<16x16xf32>
    %29 = vector.extract_strided_slice %9 {offsets = [0, 16], sizes = [16, 16], strides = [1, 1]} : vector<16x128xf32> to vector<16x16xf32>
    %cst_11 = arith.constant dense<0.000000e+00> : vector<16x16xf32>
    %30 = tpu.matmul %27, %28, %cst_11 {dimension_numbers = #tpu.dot_dimension_numbers<[1], [1], [0], [0], [0, 0, 1, 0], [], []>} : vector<16x16xf32>, vector<16x16xf32>, vector<16x16xf32> -> vector<16x16xf32>
    %cst_12 = arith.constant 2.500000e-01 : f32
    %31 = vector.broadcast %cst_12 : f32 to vector<16x16xf32>
    %32 = arith.mulf %30, %31 : vector<16x16xf32>
    %cst_13 = arith.constant dense<0xFF800000> : vector<16xf32>
    %33 = vector.multi_reduction <maximumf>, %32, %cst_13 [1] : vector<16x16xf32> to vector<16xf32>
    %34 = vector.shape_cast %33 : vector<16xf32> to vector<16x1xf32>
    %35 = vector.broadcast %34 : vector<16x1xf32> to vector<16x16xf32>
    %36 = arith.subf %32, %35 : vector<16x16xf32>
    %37 = math.exp %36 : vector<16x16xf32>
    %cst_14 = arith.constant dense<0.000000e+00> : vector<16xf32>
    %38 = vector.multi_reduction <add>, %37, %cst_14 [1] : vector<16x16xf32> to vector<16xf32>
    %39 = vector.shape_cast %38 : vector<16xf32> to vector<16x1xf32>
    %40 = tpu.reciprocal %39 {approx = true} : vector<16x1xf32> -> vector<16x1xf32>
    %41 = vector.broadcast %40 : vector<16x1xf32> to vector<16x16xf32>
    %42 = arith.mulf %37, %41 : vector<16x16xf32>
    %cst_15 = arith.constant dense<0.000000e+00> : vector<16x16xf32>
    %43 = tpu.matmul %42, %29, %cst_15 {dimension_numbers = #tpu.dot_dimension_numbers<[1], [0], [0], [1], [0, 0, 1, 1], [], []>} : vector<16x16xf32>, vector<16x16xf32>, vector<16x16xf32> -> vector<16x16xf32>
    %44 = vector.extract_strided_slice %7 {offsets = [0, 32], sizes = [16, 16], strides = [1, 1]} : vector<16x128xf32> to vector<16x16xf32>
    %45 = vector.extract_strided_slice %8 {offsets = [0, 32], sizes = [16, 16], strides = [1, 1]} : vector<16x128xf32> to vector<16x16xf32>
    %46 = vector.extract_strided_slice %9 {offsets = [0, 32], sizes = [16, 16], strides = [1, 1]} : vector<16x128xf32> to vector<16x16xf32>
    %cst_16 = arith.constant dense<0.000000e+00> : vector<16x16xf32>
    %47 = tpu.matmul %44, %45, %cst_16 {dimension_numbers = #tpu.dot_dimension_numbers<[1], [1], [0], [0], [0, 0, 1, 0], [], []>} : vector<16x16xf32>, vector<16x16xf32>, vector<16x16xf32> -> vector<16x16xf32>
    %cst_17 = arith.constant 2.500000e-01 : f32
    %48 = vector.broadcast %cst_17 : f32 to vector<16x16xf32>
    %49 = arith.mulf %47, %48 : vector<16x16xf32>
    %cst_18 = arith.constant dense<0xFF800000> : vector<16xf32>
    %50 = vector.multi_reduction <maximumf>, %49, %cst_18 [1] : vector<16x16xf32> to vector<16xf32>
    %51 = vector.shape_cast %50 : vector<16xf32> to vector<16x1xf32>
    %52 = vector.broadcast %51 : vector<16x1xf32> to vector<16x16xf32>
    %53 = arith.subf %49, %52 : vector<16x16xf32>
    %54 = math.exp %53 : vector<16x16xf32>
    %cst_19 = arith.constant dense<0.000000e+00> : vector<16xf32>
    %55 = vector.multi_reduction <add>, %54, %cst_19 [1] : vector<16x16xf32> to vector<16xf32>
    %56 = vector.shape_cast %55 : vector<16xf32> to vector<16x1xf32>
    %57 = tpu.reciprocal %56 {approx = true} : vector<16x1xf32> -> vector<16x1xf32>
    %58 = vector.broadcast %57 : vector<16x1xf32> to vector<16x16xf32>
    %59 = arith.mulf %54, %58 : vector<16x16xf32>
    %cst_20 = arith.constant dense<0.000000e+00> : vector<16x16xf32>
    %60 = tpu.matmul %59, %46, %cst_20 {dimension_numbers = #tpu.dot_dimension_numbers<[1], [0], [0], [1], [0, 0, 1, 1], [], []>} : vector<16x16xf32>, vector<16x16xf32>, vector<16x16xf32> -> vector<16x16xf32>
    %61 = vector.extract_strided_slice %7 {offsets = [0, 48], sizes = [16, 16], strides = [1, 1]} : vector<16x128xf32> to vector<16x16xf32>
    %62 = vector.extract_strided_slice %8 {offsets = [0, 48], sizes = [16, 16], strides = [1, 1]} : vector<16x128xf32> to vector<16x16xf32>
    %63 = vector.extract_strided_slice %9 {offsets = [0, 48], sizes = [16, 16], strides = [1, 1]} : vector<16x128xf32> to vector<16x16xf32>
    %cst_21 = arith.constant dense<0.000000e+00> : vector<16x16xf32>
    %64 = tpu.matmul %61, %62, %cst_21 {dimension_numbers = #tpu.dot_dimension_numbers<[1], [1], [0], [0], [0, 0, 1, 0], [], []>} : vector<16x16xf32>, vector<16x16xf32>, vector<16x16xf32> -> vector<16x16xf32>
    %cst_22 = arith.constant 2.500000e-01 : f32
    %65 = vector.broadcast %cst_22 : f32 to vector<16x16xf32>
    %66 = arith.mulf %64, %65 : vector<16x16xf32>
    %cst_23 = arith.constant dense<0xFF800000> : vector<16xf32>
    %67 = vector.multi_reduction <maximumf>, %66, %cst_23 [1] : vector<16x16xf32> to vector<16xf32>
    %68 = vector.shape_cast %67 : vector<16xf32> to vector<16x1xf32>
    %69 = vector.broadcast %68 : vector<16x1xf32> to vector<16x16xf32>
    %70 = arith.subf %66, %69 : vector<16x16xf32>
    %71 = math.exp %70 : vector<16x16xf32>
    %cst_24 = arith.constant dense<0.000000e+00> : vector<16xf32>
    %72 = vector.multi_reduction <add>, %71, %cst_24 [1] : vector<16x16xf32> to vector<16xf32>
    %73 = vector.shape_cast %72 : vector<16xf32> to vector<16x1xf32>
    %74 = tpu.reciprocal %73 {approx = true} : vector<16x1xf32> -> vector<16x1xf32>
    %75 = vector.broadcast %74 : vector<16x1xf32> to vector<16x16xf32>
    %76 = arith.mulf %71, %75 : vector<16x16xf32>
    %cst_25 = arith.constant dense<0.000000e+00> : vector<16x16xf32>
    %77 = tpu.matmul %76, %63, %cst_25 {dimension_numbers = #tpu.dot_dimension_numbers<[1], [0], [0], [1], [0, 0, 1, 1], [], []>} : vector<16x16xf32>, vector<16x16xf32>, vector<16x16xf32> -> vector<16x16xf32>
    %78 = vector.extract_strided_slice %7 {offsets = [0, 64], sizes = [16, 16], strides = [1, 1]} : vector<16x128xf32> to vector<16x16xf32>
    %79 = vector.extract_strided_slice %8 {offsets = [0, 64], sizes = [16, 16], strides = [1, 1]} : vector<16x128xf32> to vector<16x16xf32>
    %80 = vector.extract_strided_slice %9 {offsets = [0, 64], sizes = [16, 16], strides = [1, 1]} : vector<16x128xf32> to vector<16x16xf32>
    %cst_26 = arith.constant dense<0.000000e+00> : vector<16x16xf32>
    %81 = tpu.matmul %78, %79, %cst_26 {dimension_numbers = #tpu.dot_dimension_numbers<[1], [1], [0], [0], [0, 0, 1, 0], [], []>} : vector<16x16xf32>, vector<16x16xf32>, vector<16x16xf32> -> vector<16x16xf32>
    %cst_27 = arith.constant 2.500000e-01 : f32
    %82 = vector.broadcast %cst_27 : f32 to vector<16x16xf32>
    %83 = arith.mulf %81, %82 : vector<16x16xf32>
    %cst_28 = arith.constant dense<0xFF800000> : vector<16xf32>
    %84 = vector.multi_reduction <maximumf>, %83, %cst_28 [1] : vector<16x16xf32> to vector<16xf32>
    %85 = vector.shape_cast %84 : vector<16xf32> to vector<16x1xf32>
    %86 = vector.broadcast %85 : vector<16x1xf32> to vector<16x16xf32>
    %87 = arith.subf %83, %86 : vector<16x16xf32>
    %88 = math.exp %87 : vector<16x16xf32>
    %cst_29 = arith.constant dense<0.000000e+00> : vector<16xf32>
    %89 = vector.multi_reduction <add>, %88, %cst_29 [1] : vector<16x16xf32> to vector<16xf32>
    %90 = vector.shape_cast %89 : vector<16xf32> to vector<16x1xf32>
    %91 = tpu.reciprocal %90 {approx = true} : vector<16x1xf32> -> vector<16x1xf32>
    %92 = vector.broadcast %91 : vector<16x1xf32> to vector<16x16xf32>
    %93 = arith.mulf %88, %92 : vector<16x16xf32>
    %cst_30 = arith.constant dense<0.000000e+00> : vector<16x16xf32>
    %94 = tpu.matmul %93, %80, %cst_30 {dimension_numbers = #tpu.dot_dimension_numbers<[1], [0], [0], [1], [0, 0, 1, 1], [], []>} : vector<16x16xf32>, vector<16x16xf32>, vector<16x16xf32> -> vector<16x16xf32>
    %95 = vector.extract_strided_slice %7 {offsets = [0, 80], sizes = [16, 16], strides = [1, 1]} : vector<16x128xf32> to vector<16x16xf32>
    %96 = vector.extract_strided_slice %8 {offsets = [0, 80], sizes = [16, 16], strides = [1, 1]} : vector<16x128xf32> to vector<16x16xf32>
    %97 = vector.extract_strided_slice %9 {offsets = [0, 80], sizes = [16, 16], strides = [1, 1]} : vector<16x128xf32> to vector<16x16xf32>
    %cst_31 = arith.constant dense<0.000000e+00> : vector<16x16xf32>
    %98 = tpu.matmul %95, %96, %cst_31 {dimension_numbers = #tpu.dot_dimension_numbers<[1], [1], [0], [0], [0, 0, 1, 0], [], []>} : vector<16x16xf32>, vector<16x16xf32>, vector<16x16xf32> -> vector<16x16xf32>
    %cst_32 = arith.constant 2.500000e-01 : f32
    %99 = vector.broadcast %cst_32 : f32 to vector<16x16xf32>
    %100 = arith.mulf %98, %99 : vector<16x16xf32>
    %cst_33 = arith.constant dense<0xFF800000> : vector<16xf32>
    %101 = vector.multi_reduction <maximumf>, %100, %cst_33 [1] : vector<16x16xf32> to vector<16xf32>
    %102 = vector.shape_cast %101 : vector<16xf32> to vector<16x1xf32>
    %103 = vector.broadcast %102 : vector<16x1xf32> to vector<16x16xf32>
    %104 = arith.subf %100, %103 : vector<16x16xf32>
    %105 = math.exp %104 : vector<16x16xf32>
    %cst_34 = arith.constant dense<0.000000e+00> : vector<16xf32>
    %106 = vector.multi_reduction <add>, %105, %cst_34 [1] : vector<16x16xf32> to vector<16xf32>
    %107 = vector.shape_cast %106 : vector<16xf32> to vector<16x1xf32>
    %108 = tpu.reciprocal %107 {approx = true} : vector<16x1xf32> -> vector<16x1xf32>
    %109 = vector.broadcast %108 : vector<16x1xf32> to vector<16x16xf32>
    %110 = arith.mulf %105, %109 : vector<16x16xf32>
    %cst_35 = arith.constant dense<0.000000e+00> : vector<16x16xf32>
    %111 = tpu.matmul %110, %97, %cst_35 {dimension_numbers = #tpu.dot_dimension_numbers<[1], [0], [0], [1], [0, 0, 1, 1], [], []>} : vector<16x16xf32>, vector<16x16xf32>, vector<16x16xf32> -> vector<16x16xf32>
    %112 = vector.extract_strided_slice %7 {offsets = [0, 96], sizes = [16, 16], strides = [1, 1]} : vector<16x128xf32> to vector<16x16xf32>
    %113 = vector.extract_strided_slice %8 {offsets = [0, 96], sizes = [16, 16], strides = [1, 1]} : vector<16x128xf32> to vector<16x16xf32>
    %114 = vector.extract_strided_slice %9 {offsets = [0, 96], sizes = [16, 16], strides = [1, 1]} : vector<16x128xf32> to vector<16x16xf32>
    %cst_36 = arith.constant dense<0.000000e+00> : vector<16x16xf32>
    %115 = tpu.matmul %112, %113, %cst_36 {dimension_numbers = #tpu.dot_dimension_numbers<[1], [1], [0], [0], [0, 0, 1, 0], [], []>} : vector<16x16xf32>, vector<16x16xf32>, vector<16x16xf32> -> vector<16x16xf32>
    %cst_37 = arith.constant 2.500000e-01 : f32
    %116 = vector.broadcast %cst_37 : f32 to vector<16x16xf32>
    %117 = arith.mulf %115, %116 : vector<16x16xf32>
    %cst_38 = arith.constant dense<0xFF800000> : vector<16xf32>
    %118 = vector.multi_reduction <maximumf>, %117, %cst_38 [1] : vector<16x16xf32> to vector<16xf32>
    %119 = vector.shape_cast %118 : vector<16xf32> to vector<16x1xf32>
    %120 = vector.broadcast %119 : vector<16x1xf32> to vector<16x16xf32>
    %121 = arith.subf %117, %120 : vector<16x16xf32>
    %122 = math.exp %121 : vector<16x16xf32>
    %cst_39 = arith.constant dense<0.000000e+00> : vector<16xf32>
    %123 = vector.multi_reduction <add>, %122, %cst_39 [1] : vector<16x16xf32> to vector<16xf32>
    %124 = vector.shape_cast %123 : vector<16xf32> to vector<16x1xf32>
    %125 = tpu.reciprocal %124 {approx = true} : vector<16x1xf32> -> vector<16x1xf32>
    %126 = vector.broadcast %125 : vector<16x1xf32> to vector<16x16xf32>
    %127 = arith.mulf %122, %126 : vector<16x16xf32>
    %cst_40 = arith.constant dense<0.000000e+00> : vector<16x16xf32>
    %128 = tpu.matmul %127, %114, %cst_40 {dimension_numbers = #tpu.dot_dimension_numbers<[1], [0], [0], [1], [0, 0, 1, 1], [], []>} : vector<16x16xf32>, vector<16x16xf32>, vector<16x16xf32> -> vector<16x16xf32>
    %129 = vector.extract_strided_slice %7 {offsets = [0, 112], sizes = [16, 16], strides = [1, 1]} : vector<16x128xf32> to vector<16x16xf32>
    %130 = vector.extract_strided_slice %8 {offsets = [0, 112], sizes = [16, 16], strides = [1, 1]} : vector<16x128xf32> to vector<16x16xf32>
    %131 = vector.extract_strided_slice %9 {offsets = [0, 112], sizes = [16, 16], strides = [1, 1]} : vector<16x128xf32> to vector<16x16xf32>
    %cst_41 = arith.constant dense<0.000000e+00> : vector<16x16xf32>
    %132 = tpu.matmul %129, %130, %cst_41 {dimension_numbers = #tpu.dot_dimension_numbers<[1], [1], [0], [0], [0, 0, 1, 0], [], []>} : vector<16x16xf32>, vector<16x16xf32>, vector<16x16xf32> -> vector<16x16xf32>
    %cst_42 = arith.constant 2.500000e-01 : f32
    %133 = vector.broadcast %cst_42 : f32 to vector<16x16xf32>
    %134 = arith.mulf %132, %133 : vector<16x16xf32>
    %cst_43 = arith.constant dense<0xFF800000> : vector<16xf32>
    %135 = vector.multi_reduction <maximumf>, %134, %cst_43 [1] : vector<16x16xf32> to vector<16xf32>
    %136 = vector.shape_cast %135 : vector<16xf32> to vector<16x1xf32>
    %137 = vector.broadcast %136 : vector<16x1xf32> to vector<16x16xf32>
    %138 = arith.subf %134, %137 : vector<16x16xf32>
    %139 = math.exp %138 : vector<16x16xf32>
    %cst_44 = arith.constant dense<0.000000e+00> : vector<16xf32>
    %140 = vector.multi_reduction <add>, %139, %cst_44 [1] : vector<16x16xf32> to vector<16xf32>
    %141 = vector.shape_cast %140 : vector<16xf32> to vector<16x1xf32>
    %142 = tpu.reciprocal %141 {approx = true} : vector<16x1xf32> -> vector<16x1xf32>
    %143 = vector.broadcast %142 : vector<16x1xf32> to vector<16x16xf32>
    %144 = arith.mulf %139, %143 : vector<16x16xf32>
    %cst_45 = arith.constant dense<0.000000e+00> : vector<16x16xf32>
    %145 = tpu.matmul %144, %131, %cst_45 {dimension_numbers = #tpu.dot_dimension_numbers<[1], [0], [0], [1], [0, 0, 1, 1], [], []>} : vector<16x16xf32>, vector<16x16xf32>, vector<16x16xf32> -> vector<16x16xf32>
    %146 = tpu.concatenate %26, %43, %60, %77, %94, %111, %128, %145 in 1 : vector<16x16xf32>, vector<16x16xf32>, vector<16x16xf32>, vector<16x16xf32>, vector<16x16xf32>, vector<16x16xf32>, vector<16x16xf32>, vector<16x16xf32> -> vector<16x128xf32>
    %c0_46 = arith.constant 0 : index
    %c0_47 = arith.constant 0 : index
    %147 = vector.load %arg4[%c0_46, %c0_47] : memref<128x128xf32, #tpu.memory_space<vmem>>, vector<128x128xf32>
    %cst_48 = arith.constant dense<0.000000e+00> : vector<16x128xf32>
    %148 = tpu.matmul %146, %147, %cst_48 {dimension_numbers = #tpu.dot_dimension_numbers<[1], [0], [0], [1], [0, 0, 1, 1], [], []>} : vector<16x128xf32>, vector<128x128xf32>, vector<16x128xf32> -> vector<16x128xf32>
    %c0_49 = arith.constant 0 : index
    %c0_50 = arith.constant 0 : index
    %149 = vector.load %arg5[%c0_49, %c0_50] : memref<1x128xf32, #tpu.memory_space<vmem>>, vector<1x128xf32>
    %150 = vector.broadcast %149 : vector<1x128xf32> to vector<16x128xf32>
    %151 = arith.addf %148, %150 : vector<16x128xf32>
    %152 = arith.addf %151, %1 : vector<16x128xf32>
    %c0_51 = arith.constant 0 : index
    %c0_52 = arith.constant 0 : index
    %153 = vector.load %arg6[%c0_51, %c0_52] : memref<1x128xf32, #tpu.memory_space<vmem>>, vector<1x128xf32>
    %c0_53 = arith.constant 0 : index
    %c0_54 = arith.constant 0 : index
    %154 = vector.load %arg7[%c0_53, %c0_54] : memref<1x128xf32, #tpu.memory_space<vmem>>, vector<1x128xf32>
    %cst_55 = arith.constant dense<0.000000e+00> : vector<16xf32>
    %155 = vector.multi_reduction <add>, %152, %cst_55 [1] : vector<16x128xf32> to vector<16xf32>
    %156 = vector.shape_cast %155 : vector<16xf32> to vector<16x1xf32>
    %cst_56 = arith.constant 1.280000e+02 : f32
    %157 = vector.broadcast %cst_56 : f32 to vector<16x1xf32>
    %158 = arith.divf %156, %157 : vector<16x1xf32>
    %159 = vector.broadcast %158 : vector<16x1xf32> to vector<16x128xf32>
    %160 = arith.subf %152, %159 : vector<16x128xf32>
    %161 = arith.mulf %160, %160 : vector<16x128xf32>
    %cst_57 = arith.constant dense<0.000000e+00> : vector<16xf32>
    %162 = vector.multi_reduction <add>, %161, %cst_57 [1] : vector<16x128xf32> to vector<16xf32>
    %163 = vector.shape_cast %162 : vector<16xf32> to vector<16x1xf32>
    %cst_58 = arith.constant 1.280000e+02 : f32
    %164 = vector.broadcast %cst_58 : f32 to vector<16x1xf32>
    %165 = arith.divf %163, %164 : vector<16x1xf32>
    %cst_59 = arith.constant 9.99999974E-6 : f32
    %166 = vector.broadcast %cst_59 : f32 to vector<16x1xf32>
    %167 = arith.addf %165, %166 : vector<16x1xf32>
    %168 = math.rsqrt %167 : vector<16x1xf32>
    %169 = vector.broadcast %168 : vector<16x1xf32> to vector<16x128xf32>
    %170 = arith.mulf %160, %169 : vector<16x128xf32>
    %171 = vector.broadcast %153 : vector<1x128xf32> to vector<16x128xf32>
    %172 = arith.mulf %170, %171 : vector<16x128xf32>
    %173 = vector.broadcast %154 : vector<1x128xf32> to vector<16x128xf32>
    %174 = arith.addf %172, %173 : vector<16x128xf32>
    %c0_60 = arith.constant 0 : index
    %c0_61 = arith.constant 0 : index
    %c0_62 = arith.constant 0 : index
    %175 = vector.load %arg8[%c0_60, %c0_61, %c0_62] : memref<1x16x128xf32, #tpu.memory_space<vmem>>, vector<1x16x128xf32>
    %176 = vector.shape_cast %175 : vector<1x16x128xf32> to vector<16x128xf32>
    %177 = vector.shape_cast %174 : vector<16x128xf32> to vector<1x16x128xf32>
    tpu.vector_store %arg8[%c0_60, %c0_61, %c0_62], %177 {strides = array<i32>} : memref<1x16x128xf32, #tpu.memory_space<vmem>>, vector<1x16x128xf32>,
    return
  }
  func.func @transform_0(%arg0: i32) -> (i32, i32, i32) {
    %c0_i32 = arith.constant 0 : i32
    %c0_i32_0 = arith.constant 0 : i32
    %c0_i32_1 = arith.constant 0 : i32
    return %arg0, %c0_i32, %c0_i32_0 : i32, i32, i32
  }
  func.func @transform_1(%arg0: i32) -> (i32, i32) {
    %c0_i32 = arith.constant 0 : i32
    %c0_i32_0 = arith.constant 0 : i32
    %c0_i32_1 = arith.constant 0 : i32
    return %c0_i32, %c0_i32_0 : i32, i32
  }
  func.func @transform_2(%arg0: i32) -> (i32, i32) {
    %c0_i32 = arith.constant 0 : i32
    %c0_i32_0 = arith.constant 0 : i32
    %c0_i32_1 = arith.constant 0 : i32
    return %c0_i32, %c0_i32_0 : i32, i32
  }
  func.func @transform_3(%arg0: i32) -> (i32, i32) {
    %c0_i32 = arith.constant 0 : i32
    %c0_i32_0 = arith.constant 0 : i32
    %c0_i32_1 = arith.constant 0 : i32
    return %c0_i32, %c0_i32_0 : i32, i32
  }
  func.func @transform_4(%arg0: i32) -> (i32, i32) {
    %c0_i32 = arith.constant 0 : i32
    %c0_i32_0 = arith.constant 0 : i32
    %c0_i32_1 = arith.constant 0 : i32
    return %c0_i32, %c0_i32_0 : i32, i32
  }
  func.func @transform_5(%arg0: i32) -> (i32, i32) {
    %c0_i32 = arith.constant 0 : i32
    %c0_i32_0 = arith.constant 0 : i32
    %c0_i32_1 = arith.constant 0 : i32
    return %c0_i32, %c0_i32_0 : i32, i32
  }
  func.func @transform_6(%arg0: i32) -> (i32, i32) {
    %c0_i32 = arith.constant 0 : i32
    %c0_i32_0 = arith.constant 0 : i32
    %c0_i32_1 = arith.constant 0 : i32
    return %c0_i32, %c0_i32_0 : i32, i32
  }
  func.func @transform_7(%arg0: i32) -> (i32, i32, i32) {
    %c0_i32 = arith.constant 0 : i32
    %c0_i32_0 = arith.constant 0 : i32
    %c0_i32_1 = arith.constant 0 : i32
    return %arg0, %c0_i32, %c0_i32_0 : i32, i32, i32
  }
}

module attributes {stable_mosaic.version = 11 : i64} {
  func.func @_co_attention_kernel(%arg0: i32, %arg1: memref<1x16x128xf32, #tpu.memory_space<vmem>>, %arg2: memref<1x2x16x64xf32, #tpu.memory_space<vmem>>, %arg3: memref<128x384xf32, #tpu.memory_space<vmem>>, %arg4: memref<1x384xf32, #tpu.memory_space<vmem>>, %arg5: memref<64x64xf32, #tpu.memory_space<vmem>>, %arg6: memref<1x64xf32, #tpu.memory_space<vmem>>, %arg7: memref<128x128xf32, #tpu.memory_space<vmem>>, %arg8: memref<1x128xf32, #tpu.memory_space<vmem>>, %arg9: memref<64x64xf32, #tpu.memory_space<vmem>>, %arg10: memref<1x64xf32, #tpu.memory_space<vmem>>, %arg11: memref<1x128xf32, #tpu.memory_space<vmem>>, %arg12: memref<1x128xf32, #tpu.memory_space<vmem>>, %arg13: memref<1x64xf32, #tpu.memory_space<vmem>>, %arg14: memref<1x64xf32, #tpu.memory_space<vmem>>, %arg15: memref<1x16x128xf32, #tpu.memory_space<vmem>>, %arg16: memref<1x2x16x64xf32, #tpu.memory_space<vmem>>) attributes {dimension_semantics = [#tpu.dimension_semantics<parallel>], iteration_bounds = array<i64: 2>, scalar_prefetch = 0 : i64, scratch_operands = 0 : i64, tpu.core_type = #tpu.core_type<tc>, window_params = [{transform_indices = @transform_0, window_bounds = array<i64: 1, 16, 128>}, {transform_indices = @transform_1, window_bounds = array<i64: 1, 2, 16, 64>}, {pipeline_mode = #tpu.pipeline_mode<synchronous>, transform_indices = @transform_2, window_bounds = array<i64: 128, 384>}, {pipeline_mode = #tpu.pipeline_mode<synchronous>, transform_indices = @transform_3, window_bounds = array<i64: 1, 384>}, {pipeline_mode = #tpu.pipeline_mode<synchronous>, transform_indices = @transform_4, window_bounds = array<i64: 64, 64>}, {pipeline_mode = #tpu.pipeline_mode<synchronous>, transform_indices = @transform_5, window_bounds = array<i64: 1, 64>}, {pipeline_mode = #tpu.pipeline_mode<synchronous>, transform_indices = @transform_6, window_bounds = array<i64: 128, 128>}, {pipeline_mode = #tpu.pipeline_mode<synchronous>, transform_indices = @transform_7, window_bounds = array<i64: 1, 128>}, {pipeline_mode = #tpu.pipeline_mode<synchronous>, transform_indices = @transform_8, window_bounds = array<i64: 64, 64>}, {pipeline_mode = #tpu.pipeline_mode<synchronous>, transform_indices = @transform_9, window_bounds = array<i64: 1, 64>}, {pipeline_mode = #tpu.pipeline_mode<synchronous>, transform_indices = @transform_10, window_bounds = array<i64: 1, 128>}, {pipeline_mode = #tpu.pipeline_mode<synchronous>, transform_indices = @transform_11, window_bounds = array<i64: 1, 128>}, {pipeline_mode = #tpu.pipeline_mode<synchronous>, transform_indices = @transform_12, window_bounds = array<i64: 1, 64>}, {pipeline_mode = #tpu.pipeline_mode<synchronous>, transform_indices = @transform_13, window_bounds = array<i64: 1, 64>}, {transform_indices = @transform_14, window_bounds = array<i64: 1, 16, 128>}, {transform_indices = @transform_15, window_bounds = array<i64: 1, 2, 16, 64>}]} {
    %c0 = arith.constant 0 : index
    %c0_0 = arith.constant 0 : index
    %c0_1 = arith.constant 0 : index
    %0 = vector.load %arg1[%c0, %c0_0, %c0_1] : memref<1x16x128xf32, #tpu.memory_space<vmem>>, vector<1x16x128xf32>
    %1 = vector.shape_cast %0 : vector<1x16x128xf32> to vector<16x128xf32>
    %c0_2 = arith.constant 0 : index
    %c0_3 = arith.constant 0 : index
    %2 = vector.load %arg3[%c0_2, %c0_3] : memref<128x384xf32, #tpu.memory_space<vmem>>, vector<128x384xf32>
    %cst = arith.constant dense<0.000000e+00> : vector<16x384xf32>
    %3 = tpu.matmul %1, %2, %cst {dimension_numbers = #tpu.dot_dimension_numbers<[1], [0], [0], [1], [0, 0, 1, 1], [], []>} : vector<16x128xf32>, vector<128x384xf32>, vector<16x384xf32> -> vector<16x384xf32>
    %c0_4 = arith.constant 0 : index
    %c0_5 = arith.constant 0 : index
    %4 = vector.load %arg4[%c0_4, %c0_5] : memref<1x384xf32, #tpu.memory_space<vmem>>, vector<1x384xf32>
    %5 = vector.broadcast %4 : vector<1x384xf32> to vector<16x384xf32>
    %6 = arith.addf %3, %5 : vector<16x384xf32>
    %7 = vector.extract_strided_slice %6 {offsets = [0, 0], sizes = [16, 128], strides = [1, 1]} : vector<16x384xf32> to vector<16x128xf32>
    %8 = vector.extract_strided_slice %6 {offsets = [0, 128], sizes = [16, 128], strides = [1, 1]} : vector<16x384xf32> to vector<16x128xf32>
    %9 = vector.extract_strided_slice %6 {offsets = [0, 256], sizes = [16, 128], strides = [1, 1]} : vector<16x384xf32> to vector<16x128xf32>
    %c0_6 = arith.constant 0 : index
    %c0_7 = arith.constant 0 : index
    %c0_8 = arith.constant 0 : index
    %c0_9 = arith.constant 0 : index
    %10 = vector.load %arg2[%c0_6, %c0_7, %c0_8, %c0_9] : memref<1x2x16x64xf32, #tpu.memory_space<vmem>>, vector<1x2x16x64xf32>
    %11 = vector.shape_cast %10 : vector<1x2x16x64xf32> to vector<2x16x64xf32>
    %12 = vector.extract_strided_slice %11 {offsets = [0, 0, 0], sizes = [1, 16, 64], strides = [1, 1, 1]} : vector<2x16x64xf32> to vector<1x16x64xf32>
    %13 = vector.shape_cast %12 : vector<1x16x64xf32> to vector<16x64xf32>
    %c0_10 = arith.constant 0 : index
    %c0_11 = arith.constant 0 : index
    %14 = vector.load %arg5[%c0_10, %c0_11] : memref<64x64xf32, #tpu.memory_space<vmem>>, vector<64x64xf32>
    %cst_12 = arith.constant dense<0.000000e+00> : vector<16x64xf32>
    %15 = tpu.matmul %13, %14, %cst_12 {dimension_numbers = #tpu.dot_dimension_numbers<[1], [0], [0], [1], [0, 0, 1, 1], [], []>} : vector<16x64xf32>, vector<64x64xf32>, vector<16x64xf32> -> vector<16x64xf32>
    %c0_13 = arith.constant 0 : index
    %c0_14 = arith.constant 0 : index
    %16 = vector.load %arg6[%c0_13, %c0_14] : memref<1x64xf32, #tpu.memory_space<vmem>>, vector<1x64xf32>
    %17 = vector.broadcast %16 : vector<1x64xf32> to vector<16x64xf32>
    %18 = arith.addf %15, %17 : vector<16x64xf32>
    %19 = vector.extract_strided_slice %11 {offsets = [1, 0, 0], sizes = [1, 16, 64], strides = [1, 1, 1]} : vector<2x16x64xf32> to vector<1x16x64xf32>
    %20 = vector.shape_cast %19 : vector<1x16x64xf32> to vector<16x64xf32>
    %c0_15 = arith.constant 0 : index
    %c0_16 = arith.constant 0 : index
    %21 = vector.load %arg5[%c0_15, %c0_16] : memref<64x64xf32, #tpu.memory_space<vmem>>, vector<64x64xf32>
    %cst_17 = arith.constant dense<0.000000e+00> : vector<16x64xf32>
    %22 = tpu.matmul %20, %21, %cst_17 {dimension_numbers = #tpu.dot_dimension_numbers<[1], [0], [0], [1], [0, 0, 1, 1], [], []>} : vector<16x64xf32>, vector<64x64xf32>, vector<16x64xf32> -> vector<16x64xf32>
    %c0_18 = arith.constant 0 : index
    %c0_19 = arith.constant 0 : index
    %23 = vector.load %arg6[%c0_18, %c0_19] : memref<1x64xf32, #tpu.memory_space<vmem>>, vector<1x64xf32>
    %24 = vector.broadcast %23 : vector<1x64xf32> to vector<16x64xf32>
    %25 = arith.addf %22, %24 : vector<16x64xf32>
    %26 = vector.extract_strided_slice %7 {offsets = [0, 0], sizes = [16, 16], strides = [1, 1]} : vector<16x128xf32> to vector<16x16xf32>
    %27 = vector.extract_strided_slice %8 {offsets = [0, 0], sizes = [16, 16], strides = [1, 1]} : vector<16x128xf32> to vector<16x16xf32>
    %cst_20 = arith.constant dense<0.000000e+00> : vector<16x16xf32>
    %28 = tpu.matmul %26, %27, %cst_20 {dimension_numbers = #tpu.dot_dimension_numbers<[1], [1], [0], [0], [0, 0, 1, 0], [], []>} : vector<16x16xf32>, vector<16x16xf32>, vector<16x16xf32> -> vector<16x16xf32>
    %cst_21 = arith.constant 2.500000e-01 : f32
    %29 = vector.broadcast %cst_21 : f32 to vector<16x16xf32>
    %30 = arith.mulf %28, %29 : vector<16x16xf32>
    %cst_22 = arith.constant dense<0xFF800000> : vector<16xf32>
    %31 = vector.multi_reduction <maximumf>, %30, %cst_22 [1] : vector<16x16xf32> to vector<16xf32>
    %32 = vector.shape_cast %31 : vector<16xf32> to vector<16x1xf32>
    %33 = vector.broadcast %32 : vector<16x1xf32> to vector<16x16xf32>
    %34 = arith.subf %30, %33 : vector<16x16xf32>
    %35 = math.exp %34 : vector<16x16xf32>
    %cst_23 = arith.constant dense<0.000000e+00> : vector<16xf32>
    %36 = vector.multi_reduction <add>, %35, %cst_23 [1] : vector<16x16xf32> to vector<16xf32>
    %37 = vector.shape_cast %36 : vector<16xf32> to vector<16x1xf32>
    %38 = tpu.reciprocal %37 {approx = true} : vector<16x1xf32> -> vector<16x1xf32>
    %39 = vector.broadcast %38 : vector<16x1xf32> to vector<16x16xf32>
    %40 = arith.mulf %35, %39 : vector<16x16xf32>
    %41 = vector.extract_strided_slice %9 {offsets = [0, 0], sizes = [16, 16], strides = [1, 1]} : vector<16x128xf32> to vector<16x16xf32>
    %cst_24 = arith.constant dense<0.000000e+00> : vector<16x16xf32>
    %42 = tpu.matmul %40, %41, %cst_24 {dimension_numbers = #tpu.dot_dimension_numbers<[1], [0], [0], [1], [0, 0, 1, 1], [], []>} : vector<16x16xf32>, vector<16x16xf32>, vector<16x16xf32> -> vector<16x16xf32>
    %43 = vector.extract_strided_slice %18 {offsets = [0, 0], sizes = [16, 8], strides = [1, 1]} : vector<16x64xf32> to vector<16x8xf32>
    %cst_25 = arith.constant dense<0.000000e+00> : vector<16x8xf32>
    %44 = tpu.matmul %40, %43, %cst_25 {dimension_numbers = #tpu.dot_dimension_numbers<[1], [0], [0], [1], [0, 0, 1, 1], [], []>} : vector<16x16xf32>, vector<16x8xf32>, vector<16x8xf32> -> vector<16x8xf32>
    %45 = vector.extract_strided_slice %25 {offsets = [0, 0], sizes = [16, 8], strides = [1, 1]} : vector<16x64xf32> to vector<16x8xf32>
    %cst_26 = arith.constant dense<0.000000e+00> : vector<16x8xf32>
    %46 = tpu.matmul %40, %45, %cst_26 {dimension_numbers = #tpu.dot_dimension_numbers<[1], [0], [0], [1], [0, 0, 1, 1], [], []>} : vector<16x16xf32>, vector<16x8xf32>, vector<16x8xf32> -> vector<16x8xf32>
    %47 = vector.extract_strided_slice %7 {offsets = [0, 16], sizes = [16, 16], strides = [1, 1]} : vector<16x128xf32> to vector<16x16xf32>
    %48 = vector.extract_strided_slice %8 {offsets = [0, 16], sizes = [16, 16], strides = [1, 1]} : vector<16x128xf32> to vector<16x16xf32>
    %cst_27 = arith.constant dense<0.000000e+00> : vector<16x16xf32>
    %49 = tpu.matmul %47, %48, %cst_27 {dimension_numbers = #tpu.dot_dimension_numbers<[1], [1], [0], [0], [0, 0, 1, 0], [], []>} : vector<16x16xf32>, vector<16x16xf32>, vector<16x16xf32> -> vector<16x16xf32>
    %cst_28 = arith.constant 2.500000e-01 : f32
    %50 = vector.broadcast %cst_28 : f32 to vector<16x16xf32>
    %51 = arith.mulf %49, %50 : vector<16x16xf32>
    %cst_29 = arith.constant dense<0xFF800000> : vector<16xf32>
    %52 = vector.multi_reduction <maximumf>, %51, %cst_29 [1] : vector<16x16xf32> to vector<16xf32>
    %53 = vector.shape_cast %52 : vector<16xf32> to vector<16x1xf32>
    %54 = vector.broadcast %53 : vector<16x1xf32> to vector<16x16xf32>
    %55 = arith.subf %51, %54 : vector<16x16xf32>
    %56 = math.exp %55 : vector<16x16xf32>
    %cst_30 = arith.constant dense<0.000000e+00> : vector<16xf32>
    %57 = vector.multi_reduction <add>, %56, %cst_30 [1] : vector<16x16xf32> to vector<16xf32>
    %58 = vector.shape_cast %57 : vector<16xf32> to vector<16x1xf32>
    %59 = tpu.reciprocal %58 {approx = true} : vector<16x1xf32> -> vector<16x1xf32>
    %60 = vector.broadcast %59 : vector<16x1xf32> to vector<16x16xf32>
    %61 = arith.mulf %56, %60 : vector<16x16xf32>
    %62 = vector.extract_strided_slice %9 {offsets = [0, 16], sizes = [16, 16], strides = [1, 1]} : vector<16x128xf32> to vector<16x16xf32>
    %cst_31 = arith.constant dense<0.000000e+00> : vector<16x16xf32>
    %63 = tpu.matmul %61, %62, %cst_31 {dimension_numbers = #tpu.dot_dimension_numbers<[1], [0], [0], [1], [0, 0, 1, 1], [], []>} : vector<16x16xf32>, vector<16x16xf32>, vector<16x16xf32> -> vector<16x16xf32>
    %64 = vector.extract_strided_slice %18 {offsets = [0, 8], sizes = [16, 8], strides = [1, 1]} : vector<16x64xf32> to vector<16x8xf32>
    %cst_32 = arith.constant dense<0.000000e+00> : vector<16x8xf32>
    %65 = tpu.matmul %61, %64, %cst_32 {dimension_numbers = #tpu.dot_dimension_numbers<[1], [0], [0], [1], [0, 0, 1, 1], [], []>} : vector<16x16xf32>, vector<16x8xf32>, vector<16x8xf32> -> vector<16x8xf32>
    %66 = vector.extract_strided_slice %25 {offsets = [0, 8], sizes = [16, 8], strides = [1, 1]} : vector<16x64xf32> to vector<16x8xf32>
    %cst_33 = arith.constant dense<0.000000e+00> : vector<16x8xf32>
    %67 = tpu.matmul %61, %66, %cst_33 {dimension_numbers = #tpu.dot_dimension_numbers<[1], [0], [0], [1], [0, 0, 1, 1], [], []>} : vector<16x16xf32>, vector<16x8xf32>, vector<16x8xf32> -> vector<16x8xf32>
    %68 = vector.extract_strided_slice %7 {offsets = [0, 32], sizes = [16, 16], strides = [1, 1]} : vector<16x128xf32> to vector<16x16xf32>
    %69 = vector.extract_strided_slice %8 {offsets = [0, 32], sizes = [16, 16], strides = [1, 1]} : vector<16x128xf32> to vector<16x16xf32>
    %cst_34 = arith.constant dense<0.000000e+00> : vector<16x16xf32>
    %70 = tpu.matmul %68, %69, %cst_34 {dimension_numbers = #tpu.dot_dimension_numbers<[1], [1], [0], [0], [0, 0, 1, 0], [], []>} : vector<16x16xf32>, vector<16x16xf32>, vector<16x16xf32> -> vector<16x16xf32>
    %cst_35 = arith.constant 2.500000e-01 : f32
    %71 = vector.broadcast %cst_35 : f32 to vector<16x16xf32>
    %72 = arith.mulf %70, %71 : vector<16x16xf32>
    %cst_36 = arith.constant dense<0xFF800000> : vector<16xf32>
    %73 = vector.multi_reduction <maximumf>, %72, %cst_36 [1] : vector<16x16xf32> to vector<16xf32>
    %74 = vector.shape_cast %73 : vector<16xf32> to vector<16x1xf32>
    %75 = vector.broadcast %74 : vector<16x1xf32> to vector<16x16xf32>
    %76 = arith.subf %72, %75 : vector<16x16xf32>
    %77 = math.exp %76 : vector<16x16xf32>
    %cst_37 = arith.constant dense<0.000000e+00> : vector<16xf32>
    %78 = vector.multi_reduction <add>, %77, %cst_37 [1] : vector<16x16xf32> to vector<16xf32>
    %79 = vector.shape_cast %78 : vector<16xf32> to vector<16x1xf32>
    %80 = tpu.reciprocal %79 {approx = true} : vector<16x1xf32> -> vector<16x1xf32>
    %81 = vector.broadcast %80 : vector<16x1xf32> to vector<16x16xf32>
    %82 = arith.mulf %77, %81 : vector<16x16xf32>
    %83 = vector.extract_strided_slice %9 {offsets = [0, 32], sizes = [16, 16], strides = [1, 1]} : vector<16x128xf32> to vector<16x16xf32>
    %cst_38 = arith.constant dense<0.000000e+00> : vector<16x16xf32>
    %84 = tpu.matmul %82, %83, %cst_38 {dimension_numbers = #tpu.dot_dimension_numbers<[1], [0], [0], [1], [0, 0, 1, 1], [], []>} : vector<16x16xf32>, vector<16x16xf32>, vector<16x16xf32> -> vector<16x16xf32>
    %85 = vector.extract_strided_slice %18 {offsets = [0, 16], sizes = [16, 8], strides = [1, 1]} : vector<16x64xf32> to vector<16x8xf32>
    %cst_39 = arith.constant dense<0.000000e+00> : vector<16x8xf32>
    %86 = tpu.matmul %82, %85, %cst_39 {dimension_numbers = #tpu.dot_dimension_numbers<[1], [0], [0], [1], [0, 0, 1, 1], [], []>} : vector<16x16xf32>, vector<16x8xf32>, vector<16x8xf32> -> vector<16x8xf32>
    %87 = vector.extract_strided_slice %25 {offsets = [0, 16], sizes = [16, 8], strides = [1, 1]} : vector<16x64xf32> to vector<16x8xf32>
    %cst_40 = arith.constant dense<0.000000e+00> : vector<16x8xf32>
    %88 = tpu.matmul %82, %87, %cst_40 {dimension_numbers = #tpu.dot_dimension_numbers<[1], [0], [0], [1], [0, 0, 1, 1], [], []>} : vector<16x16xf32>, vector<16x8xf32>, vector<16x8xf32> -> vector<16x8xf32>
    %89 = vector.extract_strided_slice %7 {offsets = [0, 48], sizes = [16, 16], strides = [1, 1]} : vector<16x128xf32> to vector<16x16xf32>
    %90 = vector.extract_strided_slice %8 {offsets = [0, 48], sizes = [16, 16], strides = [1, 1]} : vector<16x128xf32> to vector<16x16xf32>
    %cst_41 = arith.constant dense<0.000000e+00> : vector<16x16xf32>
    %91 = tpu.matmul %89, %90, %cst_41 {dimension_numbers = #tpu.dot_dimension_numbers<[1], [1], [0], [0], [0, 0, 1, 0], [], []>} : vector<16x16xf32>, vector<16x16xf32>, vector<16x16xf32> -> vector<16x16xf32>
    %cst_42 = arith.constant 2.500000e-01 : f32
    %92 = vector.broadcast %cst_42 : f32 to vector<16x16xf32>
    %93 = arith.mulf %91, %92 : vector<16x16xf32>
    %cst_43 = arith.constant dense<0xFF800000> : vector<16xf32>
    %94 = vector.multi_reduction <maximumf>, %93, %cst_43 [1] : vector<16x16xf32> to vector<16xf32>
    %95 = vector.shape_cast %94 : vector<16xf32> to vector<16x1xf32>
    %96 = vector.broadcast %95 : vector<16x1xf32> to vector<16x16xf32>
    %97 = arith.subf %93, %96 : vector<16x16xf32>
    %98 = math.exp %97 : vector<16x16xf32>
    %cst_44 = arith.constant dense<0.000000e+00> : vector<16xf32>
    %99 = vector.multi_reduction <add>, %98, %cst_44 [1] : vector<16x16xf32> to vector<16xf32>
    %100 = vector.shape_cast %99 : vector<16xf32> to vector<16x1xf32>
    %101 = tpu.reciprocal %100 {approx = true} : vector<16x1xf32> -> vector<16x1xf32>
    %102 = vector.broadcast %101 : vector<16x1xf32> to vector<16x16xf32>
    %103 = arith.mulf %98, %102 : vector<16x16xf32>
    %104 = vector.extract_strided_slice %9 {offsets = [0, 48], sizes = [16, 16], strides = [1, 1]} : vector<16x128xf32> to vector<16x16xf32>
    %cst_45 = arith.constant dense<0.000000e+00> : vector<16x16xf32>
    %105 = tpu.matmul %103, %104, %cst_45 {dimension_numbers = #tpu.dot_dimension_numbers<[1], [0], [0], [1], [0, 0, 1, 1], [], []>} : vector<16x16xf32>, vector<16x16xf32>, vector<16x16xf32> -> vector<16x16xf32>
    %106 = vector.extract_strided_slice %18 {offsets = [0, 24], sizes = [16, 8], strides = [1, 1]} : vector<16x64xf32> to vector<16x8xf32>
    %cst_46 = arith.constant dense<0.000000e+00> : vector<16x8xf32>
    %107 = tpu.matmul %103, %106, %cst_46 {dimension_numbers = #tpu.dot_dimension_numbers<[1], [0], [0], [1], [0, 0, 1, 1], [], []>} : vector<16x16xf32>, vector<16x8xf32>, vector<16x8xf32> -> vector<16x8xf32>
    %108 = vector.extract_strided_slice %25 {offsets = [0, 24], sizes = [16, 8], strides = [1, 1]} : vector<16x64xf32> to vector<16x8xf32>
    %cst_47 = arith.constant dense<0.000000e+00> : vector<16x8xf32>
    %109 = tpu.matmul %103, %108, %cst_47 {dimension_numbers = #tpu.dot_dimension_numbers<[1], [0], [0], [1], [0, 0, 1, 1], [], []>} : vector<16x16xf32>, vector<16x8xf32>, vector<16x8xf32> -> vector<16x8xf32>
    %110 = vector.extract_strided_slice %7 {offsets = [0, 64], sizes = [16, 16], strides = [1, 1]} : vector<16x128xf32> to vector<16x16xf32>
    %111 = vector.extract_strided_slice %8 {offsets = [0, 64], sizes = [16, 16], strides = [1, 1]} : vector<16x128xf32> to vector<16x16xf32>
    %cst_48 = arith.constant dense<0.000000e+00> : vector<16x16xf32>
    %112 = tpu.matmul %110, %111, %cst_48 {dimension_numbers = #tpu.dot_dimension_numbers<[1], [1], [0], [0], [0, 0, 1, 0], [], []>} : vector<16x16xf32>, vector<16x16xf32>, vector<16x16xf32> -> vector<16x16xf32>
    %cst_49 = arith.constant 2.500000e-01 : f32
    %113 = vector.broadcast %cst_49 : f32 to vector<16x16xf32>
    %114 = arith.mulf %112, %113 : vector<16x16xf32>
    %cst_50 = arith.constant dense<0xFF800000> : vector<16xf32>
    %115 = vector.multi_reduction <maximumf>, %114, %cst_50 [1] : vector<16x16xf32> to vector<16xf32>
    %116 = vector.shape_cast %115 : vector<16xf32> to vector<16x1xf32>
    %117 = vector.broadcast %116 : vector<16x1xf32> to vector<16x16xf32>
    %118 = arith.subf %114, %117 : vector<16x16xf32>
    %119 = math.exp %118 : vector<16x16xf32>
    %cst_51 = arith.constant dense<0.000000e+00> : vector<16xf32>
    %120 = vector.multi_reduction <add>, %119, %cst_51 [1] : vector<16x16xf32> to vector<16xf32>
    %121 = vector.shape_cast %120 : vector<16xf32> to vector<16x1xf32>
    %122 = tpu.reciprocal %121 {approx = true} : vector<16x1xf32> -> vector<16x1xf32>
    %123 = vector.broadcast %122 : vector<16x1xf32> to vector<16x16xf32>
    %124 = arith.mulf %119, %123 : vector<16x16xf32>
    %125 = vector.extract_strided_slice %9 {offsets = [0, 64], sizes = [16, 16], strides = [1, 1]} : vector<16x128xf32> to vector<16x16xf32>
    %cst_52 = arith.constant dense<0.000000e+00> : vector<16x16xf32>
    %126 = tpu.matmul %124, %125, %cst_52 {dimension_numbers = #tpu.dot_dimension_numbers<[1], [0], [0], [1], [0, 0, 1, 1], [], []>} : vector<16x16xf32>, vector<16x16xf32>, vector<16x16xf32> -> vector<16x16xf32>
    %127 = vector.extract_strided_slice %18 {offsets = [0, 32], sizes = [16, 8], strides = [1, 1]} : vector<16x64xf32> to vector<16x8xf32>
    %cst_53 = arith.constant dense<0.000000e+00> : vector<16x8xf32>
    %128 = tpu.matmul %124, %127, %cst_53 {dimension_numbers = #tpu.dot_dimension_numbers<[1], [0], [0], [1], [0, 0, 1, 1], [], []>} : vector<16x16xf32>, vector<16x8xf32>, vector<16x8xf32> -> vector<16x8xf32>
    %129 = vector.extract_strided_slice %25 {offsets = [0, 32], sizes = [16, 8], strides = [1, 1]} : vector<16x64xf32> to vector<16x8xf32>
    %cst_54 = arith.constant dense<0.000000e+00> : vector<16x8xf32>
    %130 = tpu.matmul %124, %129, %cst_54 {dimension_numbers = #tpu.dot_dimension_numbers<[1], [0], [0], [1], [0, 0, 1, 1], [], []>} : vector<16x16xf32>, vector<16x8xf32>, vector<16x8xf32> -> vector<16x8xf32>
    %131 = vector.extract_strided_slice %7 {offsets = [0, 80], sizes = [16, 16], strides = [1, 1]} : vector<16x128xf32> to vector<16x16xf32>
    %132 = vector.extract_strided_slice %8 {offsets = [0, 80], sizes = [16, 16], strides = [1, 1]} : vector<16x128xf32> to vector<16x16xf32>
    %cst_55 = arith.constant dense<0.000000e+00> : vector<16x16xf32>
    %133 = tpu.matmul %131, %132, %cst_55 {dimension_numbers = #tpu.dot_dimension_numbers<[1], [1], [0], [0], [0, 0, 1, 0], [], []>} : vector<16x16xf32>, vector<16x16xf32>, vector<16x16xf32> -> vector<16x16xf32>
    %cst_56 = arith.constant 2.500000e-01 : f32
    %134 = vector.broadcast %cst_56 : f32 to vector<16x16xf32>
    %135 = arith.mulf %133, %134 : vector<16x16xf32>
    %cst_57 = arith.constant dense<0xFF800000> : vector<16xf32>
    %136 = vector.multi_reduction <maximumf>, %135, %cst_57 [1] : vector<16x16xf32> to vector<16xf32>
    %137 = vector.shape_cast %136 : vector<16xf32> to vector<16x1xf32>
    %138 = vector.broadcast %137 : vector<16x1xf32> to vector<16x16xf32>
    %139 = arith.subf %135, %138 : vector<16x16xf32>
    %140 = math.exp %139 : vector<16x16xf32>
    %cst_58 = arith.constant dense<0.000000e+00> : vector<16xf32>
    %141 = vector.multi_reduction <add>, %140, %cst_58 [1] : vector<16x16xf32> to vector<16xf32>
    %142 = vector.shape_cast %141 : vector<16xf32> to vector<16x1xf32>
    %143 = tpu.reciprocal %142 {approx = true} : vector<16x1xf32> -> vector<16x1xf32>
    %144 = vector.broadcast %143 : vector<16x1xf32> to vector<16x16xf32>
    %145 = arith.mulf %140, %144 : vector<16x16xf32>
    %146 = vector.extract_strided_slice %9 {offsets = [0, 80], sizes = [16, 16], strides = [1, 1]} : vector<16x128xf32> to vector<16x16xf32>
    %cst_59 = arith.constant dense<0.000000e+00> : vector<16x16xf32>
    %147 = tpu.matmul %145, %146, %cst_59 {dimension_numbers = #tpu.dot_dimension_numbers<[1], [0], [0], [1], [0, 0, 1, 1], [], []>} : vector<16x16xf32>, vector<16x16xf32>, vector<16x16xf32> -> vector<16x16xf32>
    %148 = vector.extract_strided_slice %18 {offsets = [0, 40], sizes = [16, 8], strides = [1, 1]} : vector<16x64xf32> to vector<16x8xf32>
    %cst_60 = arith.constant dense<0.000000e+00> : vector<16x8xf32>
    %149 = tpu.matmul %145, %148, %cst_60 {dimension_numbers = #tpu.dot_dimension_numbers<[1], [0], [0], [1], [0, 0, 1, 1], [], []>} : vector<16x16xf32>, vector<16x8xf32>, vector<16x8xf32> -> vector<16x8xf32>
    %150 = vector.extract_strided_slice %25 {offsets = [0, 40], sizes = [16, 8], strides = [1, 1]} : vector<16x64xf32> to vector<16x8xf32>
    %cst_61 = arith.constant dense<0.000000e+00> : vector<16x8xf32>
    %151 = tpu.matmul %145, %150, %cst_61 {dimension_numbers = #tpu.dot_dimension_numbers<[1], [0], [0], [1], [0, 0, 1, 1], [], []>} : vector<16x16xf32>, vector<16x8xf32>, vector<16x8xf32> -> vector<16x8xf32>
    %152 = vector.extract_strided_slice %7 {offsets = [0, 96], sizes = [16, 16], strides = [1, 1]} : vector<16x128xf32> to vector<16x16xf32>
    %153 = vector.extract_strided_slice %8 {offsets = [0, 96], sizes = [16, 16], strides = [1, 1]} : vector<16x128xf32> to vector<16x16xf32>
    %cst_62 = arith.constant dense<0.000000e+00> : vector<16x16xf32>
    %154 = tpu.matmul %152, %153, %cst_62 {dimension_numbers = #tpu.dot_dimension_numbers<[1], [1], [0], [0], [0, 0, 1, 0], [], []>} : vector<16x16xf32>, vector<16x16xf32>, vector<16x16xf32> -> vector<16x16xf32>
    %cst_63 = arith.constant 2.500000e-01 : f32
    %155 = vector.broadcast %cst_63 : f32 to vector<16x16xf32>
    %156 = arith.mulf %154, %155 : vector<16x16xf32>
    %cst_64 = arith.constant dense<0xFF800000> : vector<16xf32>
    %157 = vector.multi_reduction <maximumf>, %156, %cst_64 [1] : vector<16x16xf32> to vector<16xf32>
    %158 = vector.shape_cast %157 : vector<16xf32> to vector<16x1xf32>
    %159 = vector.broadcast %158 : vector<16x1xf32> to vector<16x16xf32>
    %160 = arith.subf %156, %159 : vector<16x16xf32>
    %161 = math.exp %160 : vector<16x16xf32>
    %cst_65 = arith.constant dense<0.000000e+00> : vector<16xf32>
    %162 = vector.multi_reduction <add>, %161, %cst_65 [1] : vector<16x16xf32> to vector<16xf32>
    %163 = vector.shape_cast %162 : vector<16xf32> to vector<16x1xf32>
    %164 = tpu.reciprocal %163 {approx = true} : vector<16x1xf32> -> vector<16x1xf32>
    %165 = vector.broadcast %164 : vector<16x1xf32> to vector<16x16xf32>
    %166 = arith.mulf %161, %165 : vector<16x16xf32>
    %167 = vector.extract_strided_slice %9 {offsets = [0, 96], sizes = [16, 16], strides = [1, 1]} : vector<16x128xf32> to vector<16x16xf32>
    %cst_66 = arith.constant dense<0.000000e+00> : vector<16x16xf32>
    %168 = tpu.matmul %166, %167, %cst_66 {dimension_numbers = #tpu.dot_dimension_numbers<[1], [0], [0], [1], [0, 0, 1, 1], [], []>} : vector<16x16xf32>, vector<16x16xf32>, vector<16x16xf32> -> vector<16x16xf32>
    %169 = vector.extract_strided_slice %18 {offsets = [0, 48], sizes = [16, 8], strides = [1, 1]} : vector<16x64xf32> to vector<16x8xf32>
    %cst_67 = arith.constant dense<0.000000e+00> : vector<16x8xf32>
    %170 = tpu.matmul %166, %169, %cst_67 {dimension_numbers = #tpu.dot_dimension_numbers<[1], [0], [0], [1], [0, 0, 1, 1], [], []>} : vector<16x16xf32>, vector<16x8xf32>, vector<16x8xf32> -> vector<16x8xf32>
    %171 = vector.extract_strided_slice %25 {offsets = [0, 48], sizes = [16, 8], strides = [1, 1]} : vector<16x64xf32> to vector<16x8xf32>
    %cst_68 = arith.constant dense<0.000000e+00> : vector<16x8xf32>
    %172 = tpu.matmul %166, %171, %cst_68 {dimension_numbers = #tpu.dot_dimension_numbers<[1], [0], [0], [1], [0, 0, 1, 1], [], []>} : vector<16x16xf32>, vector<16x8xf32>, vector<16x8xf32> -> vector<16x8xf32>
    %173 = vector.extract_strided_slice %7 {offsets = [0, 112], sizes = [16, 16], strides = [1, 1]} : vector<16x128xf32> to vector<16x16xf32>
    %174 = vector.extract_strided_slice %8 {offsets = [0, 112], sizes = [16, 16], strides = [1, 1]} : vector<16x128xf32> to vector<16x16xf32>
    %cst_69 = arith.constant dense<0.000000e+00> : vector<16x16xf32>
    %175 = tpu.matmul %173, %174, %cst_69 {dimension_numbers = #tpu.dot_dimension_numbers<[1], [1], [0], [0], [0, 0, 1, 0], [], []>} : vector<16x16xf32>, vector<16x16xf32>, vector<16x16xf32> -> vector<16x16xf32>
    %cst_70 = arith.constant 2.500000e-01 : f32
    %176 = vector.broadcast %cst_70 : f32 to vector<16x16xf32>
    %177 = arith.mulf %175, %176 : vector<16x16xf32>
    %cst_71 = arith.constant dense<0xFF800000> : vector<16xf32>
    %178 = vector.multi_reduction <maximumf>, %177, %cst_71 [1] : vector<16x16xf32> to vector<16xf32>
    %179 = vector.shape_cast %178 : vector<16xf32> to vector<16x1xf32>
    %180 = vector.broadcast %179 : vector<16x1xf32> to vector<16x16xf32>
    %181 = arith.subf %177, %180 : vector<16x16xf32>
    %182 = math.exp %181 : vector<16x16xf32>
    %cst_72 = arith.constant dense<0.000000e+00> : vector<16xf32>
    %183 = vector.multi_reduction <add>, %182, %cst_72 [1] : vector<16x16xf32> to vector<16xf32>
    %184 = vector.shape_cast %183 : vector<16xf32> to vector<16x1xf32>
    %185 = tpu.reciprocal %184 {approx = true} : vector<16x1xf32> -> vector<16x1xf32>
    %186 = vector.broadcast %185 : vector<16x1xf32> to vector<16x16xf32>
    %187 = arith.mulf %182, %186 : vector<16x16xf32>
    %188 = vector.extract_strided_slice %9 {offsets = [0, 112], sizes = [16, 16], strides = [1, 1]} : vector<16x128xf32> to vector<16x16xf32>
    %cst_73 = arith.constant dense<0.000000e+00> : vector<16x16xf32>
    %189 = tpu.matmul %187, %188, %cst_73 {dimension_numbers = #tpu.dot_dimension_numbers<[1], [0], [0], [1], [0, 0, 1, 1], [], []>} : vector<16x16xf32>, vector<16x16xf32>, vector<16x16xf32> -> vector<16x16xf32>
    %190 = vector.extract_strided_slice %18 {offsets = [0, 56], sizes = [16, 8], strides = [1, 1]} : vector<16x64xf32> to vector<16x8xf32>
    %cst_74 = arith.constant dense<0.000000e+00> : vector<16x8xf32>
    %191 = tpu.matmul %187, %190, %cst_74 {dimension_numbers = #tpu.dot_dimension_numbers<[1], [0], [0], [1], [0, 0, 1, 1], [], []>} : vector<16x16xf32>, vector<16x8xf32>, vector<16x8xf32> -> vector<16x8xf32>
    %192 = vector.extract_strided_slice %25 {offsets = [0, 56], sizes = [16, 8], strides = [1, 1]} : vector<16x64xf32> to vector<16x8xf32>
    %cst_75 = arith.constant dense<0.000000e+00> : vector<16x8xf32>
    %193 = tpu.matmul %187, %192, %cst_75 {dimension_numbers = #tpu.dot_dimension_numbers<[1], [0], [0], [1], [0, 0, 1, 1], [], []>} : vector<16x16xf32>, vector<16x8xf32>, vector<16x8xf32> -> vector<16x8xf32>
    %194 = tpu.concatenate %42, %63, %84, %105, %126, %147, %168, %189 in 1 : vector<16x16xf32>, vector<16x16xf32>, vector<16x16xf32>, vector<16x16xf32>, vector<16x16xf32>, vector<16x16xf32>, vector<16x16xf32>, vector<16x16xf32> -> vector<16x128xf32>
    %c0_76 = arith.constant 0 : index
    %c0_77 = arith.constant 0 : index
    %195 = vector.load %arg7[%c0_76, %c0_77] : memref<128x128xf32, #tpu.memory_space<vmem>>, vector<128x128xf32>
    %cst_78 = arith.constant dense<0.000000e+00> : vector<16x128xf32>
    %196 = tpu.matmul %194, %195, %cst_78 {dimension_numbers = #tpu.dot_dimension_numbers<[1], [0], [0], [1], [0, 0, 1, 1], [], []>} : vector<16x128xf32>, vector<128x128xf32>, vector<16x128xf32> -> vector<16x128xf32>
    %c0_79 = arith.constant 0 : index
    %c0_80 = arith.constant 0 : index
    %197 = vector.load %arg8[%c0_79, %c0_80] : memref<1x128xf32, #tpu.memory_space<vmem>>, vector<1x128xf32>
    %198 = vector.broadcast %197 : vector<1x128xf32> to vector<16x128xf32>
    %199 = arith.addf %196, %198 : vector<16x128xf32>
    %200 = arith.addf %199, %1 : vector<16x128xf32>
    %c0_81 = arith.constant 0 : index
    %c0_82 = arith.constant 0 : index
    %201 = vector.load %arg11[%c0_81, %c0_82] : memref<1x128xf32, #tpu.memory_space<vmem>>, vector<1x128xf32>
    %c0_83 = arith.constant 0 : index
    %c0_84 = arith.constant 0 : index
    %202 = vector.load %arg12[%c0_83, %c0_84] : memref<1x128xf32, #tpu.memory_space<vmem>>, vector<1x128xf32>
    %cst_85 = arith.constant dense<0.000000e+00> : vector<16xf32>
    %203 = vector.multi_reduction <add>, %200, %cst_85 [1] : vector<16x128xf32> to vector<16xf32>
    %204 = vector.shape_cast %203 : vector<16xf32> to vector<16x1xf32>
    %cst_86 = arith.constant 1.280000e+02 : f32
    %205 = vector.broadcast %cst_86 : f32 to vector<16x1xf32>
    %206 = arith.divf %204, %205 : vector<16x1xf32>
    %207 = vector.broadcast %206 : vector<16x1xf32> to vector<16x128xf32>
    %208 = arith.subf %200, %207 : vector<16x128xf32>
    %209 = arith.mulf %208, %208 : vector<16x128xf32>
    %cst_87 = arith.constant dense<0.000000e+00> : vector<16xf32>
    %210 = vector.multi_reduction <add>, %209, %cst_87 [1] : vector<16x128xf32> to vector<16xf32>
    %211 = vector.shape_cast %210 : vector<16xf32> to vector<16x1xf32>
    %cst_88 = arith.constant 1.280000e+02 : f32
    %212 = vector.broadcast %cst_88 : f32 to vector<16x1xf32>
    %213 = arith.divf %211, %212 : vector<16x1xf32>
    %cst_89 = arith.constant 9.99999974E-6 : f32
    %214 = vector.broadcast %cst_89 : f32 to vector<16x1xf32>
    %215 = arith.addf %213, %214 : vector<16x1xf32>
    %216 = math.rsqrt %215 : vector<16x1xf32>
    %217 = vector.broadcast %216 : vector<16x1xf32> to vector<16x128xf32>
    %218 = arith.mulf %208, %217 : vector<16x128xf32>
    %219 = vector.broadcast %201 : vector<1x128xf32> to vector<16x128xf32>
    %220 = arith.mulf %218, %219 : vector<16x128xf32>
    %221 = vector.broadcast %202 : vector<1x128xf32> to vector<16x128xf32>
    %222 = arith.addf %220, %221 : vector<16x128xf32>
    %c0_90 = arith.constant 0 : index
    %c0_91 = arith.constant 0 : index
    %c0_92 = arith.constant 0 : index
    %223 = vector.load %arg15[%c0_90, %c0_91, %c0_92] : memref<1x16x128xf32, #tpu.memory_space<vmem>>, vector<1x16x128xf32>
    %224 = vector.shape_cast %223 : vector<1x16x128xf32> to vector<16x128xf32>
    %225 = vector.shape_cast %222 : vector<16x128xf32> to vector<1x16x128xf32>
    tpu.vector_store %arg15[%c0_90, %c0_91, %c0_92], %225 {strides = array<i32>} : memref<1x16x128xf32, #tpu.memory_space<vmem>>, vector<1x16x128xf32>,
    %226 = tpu.concatenate %44, %65, %86, %107, %128, %149, %170, %191 in 1 : vector<16x8xf32>, vector<16x8xf32>, vector<16x8xf32>, vector<16x8xf32>, vector<16x8xf32>, vector<16x8xf32>, vector<16x8xf32>, vector<16x8xf32> -> vector<16x64xf32>
    %c0_93 = arith.constant 0 : index
    %c0_94 = arith.constant 0 : index
    %227 = vector.load %arg9[%c0_93, %c0_94] : memref<64x64xf32, #tpu.memory_space<vmem>>, vector<64x64xf32>
    %cst_95 = arith.constant dense<0.000000e+00> : vector<16x64xf32>
    %228 = tpu.matmul %226, %227, %cst_95 {dimension_numbers = #tpu.dot_dimension_numbers<[1], [0], [0], [1], [0, 0, 1, 1], [], []>} : vector<16x64xf32>, vector<64x64xf32>, vector<16x64xf32> -> vector<16x64xf32>
    %c0_96 = arith.constant 0 : index
    %c0_97 = arith.constant 0 : index
    %229 = vector.load %arg10[%c0_96, %c0_97] : memref<1x64xf32, #tpu.memory_space<vmem>>, vector<1x64xf32>
    %230 = vector.broadcast %229 : vector<1x64xf32> to vector<16x64xf32>
    %231 = arith.addf %228, %230 : vector<16x64xf32>
    %232 = vector.extract_strided_slice %11 {offsets = [0, 0, 0], sizes = [1, 16, 64], strides = [1, 1, 1]} : vector<2x16x64xf32> to vector<1x16x64xf32>
    %233 = vector.shape_cast %232 : vector<1x16x64xf32> to vector<16x64xf32>
    %234 = arith.addf %231, %233 : vector<16x64xf32>
    %c0_98 = arith.constant 0 : index
    %c0_99 = arith.constant 0 : index
    %235 = vector.load %arg13[%c0_98, %c0_99] : memref<1x64xf32, #tpu.memory_space<vmem>>, vector<1x64xf32>
    %c0_100 = arith.constant 0 : index
    %c0_101 = arith.constant 0 : index
    %236 = vector.load %arg14[%c0_100, %c0_101] : memref<1x64xf32, #tpu.memory_space<vmem>>, vector<1x64xf32>
    %cst_102 = arith.constant dense<0.000000e+00> : vector<16xf32>
    %237 = vector.multi_reduction <add>, %234, %cst_102 [1] : vector<16x64xf32> to vector<16xf32>
    %238 = vector.shape_cast %237 : vector<16xf32> to vector<16x1xf32>
    %cst_103 = arith.constant 6.400000e+01 : f32
    %239 = vector.broadcast %cst_103 : f32 to vector<16x1xf32>
    %240 = arith.divf %238, %239 : vector<16x1xf32>
    %241 = vector.broadcast %240 : vector<16x1xf32> to vector<16x64xf32>
    %242 = arith.subf %234, %241 : vector<16x64xf32>
    %243 = arith.mulf %242, %242 : vector<16x64xf32>
    %cst_104 = arith.constant dense<0.000000e+00> : vector<16xf32>
    %244 = vector.multi_reduction <add>, %243, %cst_104 [1] : vector<16x64xf32> to vector<16xf32>
    %245 = vector.shape_cast %244 : vector<16xf32> to vector<16x1xf32>
    %cst_105 = arith.constant 6.400000e+01 : f32
    %246 = vector.broadcast %cst_105 : f32 to vector<16x1xf32>
    %247 = arith.divf %245, %246 : vector<16x1xf32>
    %cst_106 = arith.constant 9.99999974E-6 : f32
    %248 = vector.broadcast %cst_106 : f32 to vector<16x1xf32>
    %249 = arith.addf %247, %248 : vector<16x1xf32>
    %250 = math.rsqrt %249 : vector<16x1xf32>
    %251 = vector.broadcast %250 : vector<16x1xf32> to vector<16x64xf32>
    %252 = arith.mulf %242, %251 : vector<16x64xf32>
    %253 = vector.broadcast %235 : vector<1x64xf32> to vector<16x64xf32>
    %254 = arith.mulf %252, %253 : vector<16x64xf32>
    %255 = vector.broadcast %236 : vector<1x64xf32> to vector<16x64xf32>
    %256 = arith.addf %254, %255 : vector<16x64xf32>
    %c0_107 = arith.constant 0 : index
    %c0_108 = arith.constant 0 : index
    %c0_109 = arith.constant 0 : index
    %c0_110 = arith.constant 0 : index
    %257 = vector.load %arg16[%c0_107, %c0_108, %c0_109, %c0_110] : memref<1x2x16x64xf32, #tpu.memory_space<vmem>>, vector<1x1x16x64xf32>
    %258 = vector.shape_cast %257 : vector<1x1x16x64xf32> to vector<16x64xf32>
    %259 = vector.shape_cast %256 : vector<16x64xf32> to vector<1x1x16x64xf32>
    tpu.vector_store %arg16[%c0_107, %c0_108, %c0_109, %c0_110], %259 {strides = array<i32>} : memref<1x2x16x64xf32, #tpu.memory_space<vmem>>, vector<1x1x16x64xf32>,
    %260 = tpu.concatenate %46, %67, %88, %109, %130, %151, %172, %193 in 1 : vector<16x8xf32>, vector<16x8xf32>, vector<16x8xf32>, vector<16x8xf32>, vector<16x8xf32>, vector<16x8xf32>, vector<16x8xf32>, vector<16x8xf32> -> vector<16x64xf32>
    %c0_111 = arith.constant 0 : index
    %c0_112 = arith.constant 0 : index
    %261 = vector.load %arg9[%c0_111, %c0_112] : memref<64x64xf32, #tpu.memory_space<vmem>>, vector<64x64xf32>
    %cst_113 = arith.constant dense<0.000000e+00> : vector<16x64xf32>
    %262 = tpu.matmul %260, %261, %cst_113 {dimension_numbers = #tpu.dot_dimension_numbers<[1], [0], [0], [1], [0, 0, 1, 1], [], []>} : vector<16x64xf32>, vector<64x64xf32>, vector<16x64xf32> -> vector<16x64xf32>
    %c0_114 = arith.constant 0 : index
    %c0_115 = arith.constant 0 : index
    %263 = vector.load %arg10[%c0_114, %c0_115] : memref<1x64xf32, #tpu.memory_space<vmem>>, vector<1x64xf32>
    %264 = vector.broadcast %263 : vector<1x64xf32> to vector<16x64xf32>
    %265 = arith.addf %262, %264 : vector<16x64xf32>
    %266 = vector.extract_strided_slice %11 {offsets = [1, 0, 0], sizes = [1, 16, 64], strides = [1, 1, 1]} : vector<2x16x64xf32> to vector<1x16x64xf32>
    %267 = vector.shape_cast %266 : vector<1x16x64xf32> to vector<16x64xf32>
    %268 = arith.addf %265, %267 : vector<16x64xf32>
    %c0_116 = arith.constant 0 : index
    %c0_117 = arith.constant 0 : index
    %269 = vector.load %arg13[%c0_116, %c0_117] : memref<1x64xf32, #tpu.memory_space<vmem>>, vector<1x64xf32>
    %c0_118 = arith.constant 0 : index
    %c0_119 = arith.constant 0 : index
    %270 = vector.load %arg14[%c0_118, %c0_119] : memref<1x64xf32, #tpu.memory_space<vmem>>, vector<1x64xf32>
    %cst_120 = arith.constant dense<0.000000e+00> : vector<16xf32>
    %271 = vector.multi_reduction <add>, %268, %cst_120 [1] : vector<16x64xf32> to vector<16xf32>
    %272 = vector.shape_cast %271 : vector<16xf32> to vector<16x1xf32>
    %cst_121 = arith.constant 6.400000e+01 : f32
    %273 = vector.broadcast %cst_121 : f32 to vector<16x1xf32>
    %274 = arith.divf %272, %273 : vector<16x1xf32>
    %275 = vector.broadcast %274 : vector<16x1xf32> to vector<16x64xf32>
    %276 = arith.subf %268, %275 : vector<16x64xf32>
    %277 = arith.mulf %276, %276 : vector<16x64xf32>
    %cst_122 = arith.constant dense<0.000000e+00> : vector<16xf32>
    %278 = vector.multi_reduction <add>, %277, %cst_122 [1] : vector<16x64xf32> to vector<16xf32>
    %279 = vector.shape_cast %278 : vector<16xf32> to vector<16x1xf32>
    %cst_123 = arith.constant 6.400000e+01 : f32
    %280 = vector.broadcast %cst_123 : f32 to vector<16x1xf32>
    %281 = arith.divf %279, %280 : vector<16x1xf32>
    %cst_124 = arith.constant 9.99999974E-6 : f32
    %282 = vector.broadcast %cst_124 : f32 to vector<16x1xf32>
    %283 = arith.addf %281, %282 : vector<16x1xf32>
    %284 = math.rsqrt %283 : vector<16x1xf32>
    %285 = vector.broadcast %284 : vector<16x1xf32> to vector<16x64xf32>
    %286 = arith.mulf %276, %285 : vector<16x64xf32>
    %287 = vector.broadcast %269 : vector<1x64xf32> to vector<16x64xf32>
    %288 = arith.mulf %286, %287 : vector<16x64xf32>
    %289 = vector.broadcast %270 : vector<1x64xf32> to vector<16x64xf32>
    %290 = arith.addf %288, %289 : vector<16x64xf32>
    %c0_125 = arith.constant 0 : index
    %c1 = arith.constant 1 : index
    %c0_126 = arith.constant 0 : index
    %c0_127 = arith.constant 0 : index
    %291 = vector.load %arg16[%c0_125, %c1, %c0_126, %c0_127] : memref<1x2x16x64xf32, #tpu.memory_space<vmem>>, vector<1x1x16x64xf32>
    %292 = vector.shape_cast %291 : vector<1x1x16x64xf32> to vector<16x64xf32>
    %293 = vector.shape_cast %290 : vector<16x64xf32> to vector<1x1x16x64xf32>
    tpu.vector_store %arg16[%c0_125, %c1, %c0_126, %c0_127], %293 {strides = array<i32>} : memref<1x2x16x64xf32, #tpu.memory_space<vmem>>, vector<1x1x16x64xf32>,
    return
  }
  func.func @transform_0(%arg0: i32) -> (i32, i32, i32) {
    %c0_i32 = arith.constant 0 : i32
    %c0_i32_0 = arith.constant 0 : i32
    %c0_i32_1 = arith.constant 0 : i32
    return %arg0, %c0_i32, %c0_i32_0 : i32, i32, i32
  }
  func.func @transform_1(%arg0: i32) -> (i32, i32, i32, i32) {
    %c0_i32 = arith.constant 0 : i32
    %c0_i32_0 = arith.constant 0 : i32
    %c0_i32_1 = arith.constant 0 : i32
    %c0_i32_2 = arith.constant 0 : i32
    return %arg0, %c0_i32, %c0_i32_0, %c0_i32_1 : i32, i32, i32, i32
  }
  func.func @transform_2(%arg0: i32) -> (i32, i32) {
    %c0_i32 = arith.constant 0 : i32
    %c0_i32_0 = arith.constant 0 : i32
    %c0_i32_1 = arith.constant 0 : i32
    return %c0_i32, %c0_i32_0 : i32, i32
  }
  func.func @transform_3(%arg0: i32) -> (i32, i32) {
    %c0_i32 = arith.constant 0 : i32
    %c0_i32_0 = arith.constant 0 : i32
    %c0_i32_1 = arith.constant 0 : i32
    return %c0_i32, %c0_i32_0 : i32, i32
  }
  func.func @transform_4(%arg0: i32) -> (i32, i32) {
    %c0_i32 = arith.constant 0 : i32
    %c0_i32_0 = arith.constant 0 : i32
    %c0_i32_1 = arith.constant 0 : i32
    return %c0_i32, %c0_i32_0 : i32, i32
  }
  func.func @transform_5(%arg0: i32) -> (i32, i32) {
    %c0_i32 = arith.constant 0 : i32
    %c0_i32_0 = arith.constant 0 : i32
    %c0_i32_1 = arith.constant 0 : i32
    return %c0_i32, %c0_i32_0 : i32, i32
  }
  func.func @transform_6(%arg0: i32) -> (i32, i32) {
    %c0_i32 = arith.constant 0 : i32
    %c0_i32_0 = arith.constant 0 : i32
    %c0_i32_1 = arith.constant 0 : i32
    return %c0_i32, %c0_i32_0 : i32, i32
  }
  func.func @transform_7(%arg0: i32) -> (i32, i32) {
    %c0_i32 = arith.constant 0 : i32
    %c0_i32_0 = arith.constant 0 : i32
    %c0_i32_1 = arith.constant 0 : i32
    return %c0_i32, %c0_i32_0 : i32, i32
  }
  func.func @transform_8(%arg0: i32) -> (i32, i32) {
    %c0_i32 = arith.constant 0 : i32
    %c0_i32_0 = arith.constant 0 : i32
    %c0_i32_1 = arith.constant 0 : i32
    return %c0_i32, %c0_i32_0 : i32, i32
  }
  func.func @transform_9(%arg0: i32) -> (i32, i32) {
    %c0_i32 = arith.constant 0 : i32
    %c0_i32_0 = arith.constant 0 : i32
    %c0_i32_1 = arith.constant 0 : i32
    return %c0_i32, %c0_i32_0 : i32, i32
  }
  func.func @transform_10(%arg0: i32) -> (i32, i32) {
    %c0_i32 = arith.constant 0 : i32
    %c0_i32_0 = arith.constant 0 : i32
    %c0_i32_1 = arith.constant 0 : i32
    return %c0_i32, %c0_i32_0 : i32, i32
  }
  func.func @transform_11(%arg0: i32) -> (i32, i32) {
    %c0_i32 = arith.constant 0 : i32
    %c0_i32_0 = arith.constant 0 : i32
    %c0_i32_1 = arith.constant 0 : i32
    return %c0_i32, %c0_i32_0 : i32, i32
  }
  func.func @transform_12(%arg0: i32) -> (i32, i32) {
    %c0_i32 = arith.constant 0 : i32
    %c0_i32_0 = arith.constant 0 : i32
    %c0_i32_1 = arith.constant 0 : i32
    return %c0_i32, %c0_i32_0 : i32, i32
  }
  func.func @transform_13(%arg0: i32) -> (i32, i32) {
    %c0_i32 = arith.constant 0 : i32
    %c0_i32_0 = arith.constant 0 : i32
    %c0_i32_1 = arith.constant 0 : i32
    return %c0_i32, %c0_i32_0 : i32, i32
  }
  func.func @transform_14(%arg0: i32) -> (i32, i32, i32) {
    %c0_i32 = arith.constant 0 : i32
    %c0_i32_0 = arith.constant 0 : i32
    %c0_i32_1 = arith.constant 0 : i32
    return %arg0, %c0_i32, %c0_i32_0 : i32, i32, i32
  }
  func.func @transform_15(%arg0: i32) -> (i32, i32, i32, i32) {
    %c0_i32 = arith.constant 0 : i32
    %c0_i32_0 = arith.constant 0 : i32
    %c0_i32_1 = arith.constant 0 : i32
    %c0_i32_2 = arith.constant 0 : i32
    return %arg0, %c0_i32, %c0_i32_0, %c0_i32_1 : i32, i32, i32, i32
  }
}

module attributes {stable_mosaic.version = 11 : i64} {
  func.func @_cat_proj_kernel(%arg0: i32, %arg1: memref<1x16x128xf32, #tpu.memory_space<vmem>>, %arg2: memref<1x2x16x64xf32, #tpu.memory_space<vmem>>, %arg3: memref<1x2x16x128xf32, #tpu.memory_space<vmem>>, %arg4: memref<128x128xf32, #tpu.memory_space<vmem>>, %arg5: memref<64x128xf32, #tpu.memory_space<vmem>>, %arg6: memref<1x128xf32, #tpu.memory_space<vmem>>, %arg7: memref<1x2x16x128xf32, #tpu.memory_space<vmem>>) attributes {dimension_semantics = [#tpu.dimension_semantics<parallel>], iteration_bounds = array<i64: 2>, scalar_prefetch = 0 : i64, scratch_operands = 0 : i64, tpu.core_type = #tpu.core_type<tc>, window_params = [{transform_indices = @transform_0, window_bounds = array<i64: 1, 16, 128>}, {transform_indices = @transform_1, window_bounds = array<i64: 1, 2, 16, 64>}, {transform_indices = @transform_2, window_bounds = array<i64: 1, 2, 16, 128>}, {pipeline_mode = #tpu.pipeline_mode<synchronous>, transform_indices = @transform_3, window_bounds = array<i64: 128, 128>}, {pipeline_mode = #tpu.pipeline_mode<synchronous>, transform_indices = @transform_4, window_bounds = array<i64: 64, 128>}, {pipeline_mode = #tpu.pipeline_mode<synchronous>, transform_indices = @transform_5, window_bounds = array<i64: 1, 128>}, {transform_indices = @transform_6, window_bounds = array<i64: 1, 2, 16, 128>}]} {
    %c0 = arith.constant 0 : index
    %c0_0 = arith.constant 0 : index
    %c0_1 = arith.constant 0 : index
    %0 = vector.load %arg1[%c0, %c0_0, %c0_1] : memref<1x16x128xf32, #tpu.memory_space<vmem>>, vector<1x16x128xf32>
    %1 = vector.shape_cast %0 : vector<1x16x128xf32> to vector<16x128xf32>
    %c0_2 = arith.constant 0 : index
    %c0_3 = arith.constant 0 : index
    %2 = vector.load %arg4[%c0_2, %c0_3] : memref<128x128xf32, #tpu.memory_space<vmem>>, vector<128x128xf32>
    %cst = arith.constant dense<0.000000e+00> : vector<16x128xf32>
    %3 = tpu.matmul %1, %2, %cst {dimension_numbers = #tpu.dot_dimension_numbers<[1], [0], [0], [1], [0, 0, 1, 1], [], []>} : vector<16x128xf32>, vector<128x128xf32>, vector<16x128xf32> -> vector<16x128xf32>
    %c0_4 = arith.constant 0 : index
    %c0_5 = arith.constant 0 : index
    %4 = vector.load %arg6[%c0_4, %c0_5] : memref<1x128xf32, #tpu.memory_space<vmem>>, vector<1x128xf32>
    %5 = vector.broadcast %4 : vector<1x128xf32> to vector<16x128xf32>
    %6 = arith.addf %3, %5 : vector<16x128xf32>
    %c0_6 = arith.constant 0 : index
    %c0_7 = arith.constant 0 : index
    %c0_8 = arith.constant 0 : index
    %c0_9 = arith.constant 0 : index
    %7 = vector.load %arg2[%c0_6, %c0_7, %c0_8, %c0_9] : memref<1x2x16x64xf32, #tpu.memory_space<vmem>>, vector<1x1x16x64xf32>
    %8 = vector.shape_cast %7 : vector<1x1x16x64xf32> to vector<16x64xf32>
    %c0_10 = arith.constant 0 : index
    %c0_11 = arith.constant 0 : index
    %9 = vector.load %arg5[%c0_10, %c0_11] : memref<64x128xf32, #tpu.memory_space<vmem>>, vector<64x128xf32>
    %cst_12 = arith.constant dense<0.000000e+00> : vector<16x128xf32>
    %10 = tpu.matmul %8, %9, %cst_12 {dimension_numbers = #tpu.dot_dimension_numbers<[1], [0], [0], [1], [0, 0, 1, 1], [], []>} : vector<16x64xf32>, vector<64x128xf32>, vector<16x128xf32> -> vector<16x128xf32>
    %11 = arith.addf %10, %6 : vector<16x128xf32>
    %c0_13 = arith.constant 0 : index
    %c0_14 = arith.constant 0 : index
    %c0_15 = arith.constant 0 : index
    %c0_16 = arith.constant 0 : index
    %12 = vector.load %arg3[%c0_13, %c0_14, %c0_15, %c0_16] : memref<1x2x16x128xf32, #tpu.memory_space<vmem>>, vector<1x1x16x128xf32>
    %13 = vector.shape_cast %12 : vector<1x1x16x128xf32> to vector<16x128xf32>
    %14 = arith.addf %11, %13 : vector<16x128xf32>
    %c0_17 = arith.constant 0 : index
    %c0_18 = arith.constant 0 : index
    %c0_19 = arith.constant 0 : index
    %c0_20 = arith.constant 0 : index
    %15 = vector.load %arg7[%c0_17, %c0_18, %c0_19, %c0_20] : memref<1x2x16x128xf32, #tpu.memory_space<vmem>>, vector<1x1x16x128xf32>
    %16 = vector.shape_cast %15 : vector<1x1x16x128xf32> to vector<16x128xf32>
    %17 = vector.shape_cast %14 : vector<16x128xf32> to vector<1x1x16x128xf32>
    tpu.vector_store %arg7[%c0_17, %c0_18, %c0_19, %c0_20], %17 {strides = array<i32>} : memref<1x2x16x128xf32, #tpu.memory_space<vmem>>, vector<1x1x16x128xf32>,
    %c0_21 = arith.constant 0 : index
    %c1 = arith.constant 1 : index
    %c0_22 = arith.constant 0 : index
    %c0_23 = arith.constant 0 : index
    %18 = vector.load %arg2[%c0_21, %c1, %c0_22, %c0_23] : memref<1x2x16x64xf32, #tpu.memory_space<vmem>>, vector<1x1x16x64xf32>
    %19 = vector.shape_cast %18 : vector<1x1x16x64xf32> to vector<16x64xf32>
    %c0_24 = arith.constant 0 : index
    %c0_25 = arith.constant 0 : index
    %20 = vector.load %arg5[%c0_24, %c0_25] : memref<64x128xf32, #tpu.memory_space<vmem>>, vector<64x128xf32>
    %cst_26 = arith.constant dense<0.000000e+00> : vector<16x128xf32>
    %21 = tpu.matmul %19, %20, %cst_26 {dimension_numbers = #tpu.dot_dimension_numbers<[1], [0], [0], [1], [0, 0, 1, 1], [], []>} : vector<16x64xf32>, vector<64x128xf32>, vector<16x128xf32> -> vector<16x128xf32>
    %22 = arith.addf %21, %6 : vector<16x128xf32>
    %c0_27 = arith.constant 0 : index
    %c1_28 = arith.constant 1 : index
    %c0_29 = arith.constant 0 : index
    %c0_30 = arith.constant 0 : index
    %23 = vector.load %arg3[%c0_27, %c1_28, %c0_29, %c0_30] : memref<1x2x16x128xf32, #tpu.memory_space<vmem>>, vector<1x1x16x128xf32>
    %24 = vector.shape_cast %23 : vector<1x1x16x128xf32> to vector<16x128xf32>
    %25 = arith.addf %22, %24 : vector<16x128xf32>
    %c0_31 = arith.constant 0 : index
    %c1_32 = arith.constant 1 : index
    %c0_33 = arith.constant 0 : index
    %c0_34 = arith.constant 0 : index
    %26 = vector.load %arg7[%c0_31, %c1_32, %c0_33, %c0_34] : memref<1x2x16x128xf32, #tpu.memory_space<vmem>>, vector<1x1x16x128xf32>
    %27 = vector.shape_cast %26 : vector<1x1x16x128xf32> to vector<16x128xf32>
    %28 = vector.shape_cast %25 : vector<16x128xf32> to vector<1x1x16x128xf32>
    tpu.vector_store %arg7[%c0_31, %c1_32, %c0_33, %c0_34], %28 {strides = array<i32>} : memref<1x2x16x128xf32, #tpu.memory_space<vmem>>, vector<1x1x16x128xf32>,
    return
  }
  func.func @transform_0(%arg0: i32) -> (i32, i32, i32) {
    %c0_i32 = arith.constant 0 : i32
    %c0_i32_0 = arith.constant 0 : i32
    %c0_i32_1 = arith.constant 0 : i32
    return %arg0, %c0_i32, %c0_i32_0 : i32, i32, i32
  }
  func.func @transform_1(%arg0: i32) -> (i32, i32, i32, i32) {
    %c0_i32 = arith.constant 0 : i32
    %c0_i32_0 = arith.constant 0 : i32
    %c0_i32_1 = arith.constant 0 : i32
    %c0_i32_2 = arith.constant 0 : i32
    return %arg0, %c0_i32, %c0_i32_0, %c0_i32_1 : i32, i32, i32, i32
  }
  func.func @transform_2(%arg0: i32) -> (i32, i32, i32, i32) {
    %c0_i32 = arith.constant 0 : i32
    %c0_i32_0 = arith.constant 0 : i32
    %c0_i32_1 = arith.constant 0 : i32
    %c0_i32_2 = arith.constant 0 : i32
    return %arg0, %c0_i32, %c0_i32_0, %c0_i32_1 : i32, i32, i32, i32
  }
  func.func @transform_3(%arg0: i32) -> (i32, i32) {
    %c0_i32 = arith.constant 0 : i32
    %c0_i32_0 = arith.constant 0 : i32
    %c0_i32_1 = arith.constant 0 : i32
    return %c0_i32, %c0_i32_0 : i32, i32
  }
  func.func @transform_4(%arg0: i32) -> (i32, i32) {
    %c0_i32 = arith.constant 0 : i32
    %c0_i32_0 = arith.constant 0 : i32
    %c0_i32_1 = arith.constant 0 : i32
    return %c0_i32, %c0_i32_0 : i32, i32
  }
  func.func @transform_5(%arg0: i32) -> (i32, i32) {
    %c0_i32 = arith.constant 0 : i32
    %c0_i32_0 = arith.constant 0 : i32
    %c0_i32_1 = arith.constant 0 : i32
    return %c0_i32, %c0_i32_0 : i32, i32
  }
  func.func @transform_6(%arg0: i32) -> (i32, i32, i32, i32) {
    %c0_i32 = arith.constant 0 : i32
    %c0_i32_0 = arith.constant 0 : i32
    %c0_i32_1 = arith.constant 0 : i32
    %c0_i32_2 = arith.constant 0 : i32
    return %arg0, %c0_i32, %c0_i32_0, %c0_i32_1 : i32, i32, i32, i32
  }
}

module attributes {stable_mosaic.version = 11 : i64} {
  func.func @_cat_proj_kernel(%arg0: i32, %arg1: memref<1x16x128xf32, #tpu.memory_space<vmem>>, %arg2: memref<1x2x16x64xf32, #tpu.memory_space<vmem>>, %arg3: memref<1x2x16x128xf32, #tpu.memory_space<vmem>>, %arg4: memref<128x128xf32, #tpu.memory_space<vmem>>, %arg5: memref<64x128xf32, #tpu.memory_space<vmem>>, %arg6: memref<1x128xf32, #tpu.memory_space<vmem>>, %arg7: memref<1x2x16x128xf32, #tpu.memory_space<vmem>>) attributes {dimension_semantics = [#tpu.dimension_semantics<parallel>], iteration_bounds = array<i64: 2>, scalar_prefetch = 0 : i64, scratch_operands = 0 : i64, tpu.core_type = #tpu.core_type<tc>, window_params = [{transform_indices = @transform_0, window_bounds = array<i64: 1, 16, 128>}, {transform_indices = @transform_1, window_bounds = array<i64: 1, 2, 16, 64>}, {transform_indices = @transform_2, window_bounds = array<i64: 1, 2, 16, 128>}, {pipeline_mode = #tpu.pipeline_mode<synchronous>, transform_indices = @transform_3, window_bounds = array<i64: 128, 128>}, {pipeline_mode = #tpu.pipeline_mode<synchronous>, transform_indices = @transform_4, window_bounds = array<i64: 64, 128>}, {pipeline_mode = #tpu.pipeline_mode<synchronous>, transform_indices = @transform_5, window_bounds = array<i64: 1, 128>}, {transform_indices = @transform_6, window_bounds = array<i64: 1, 2, 16, 128>}]} {
    %c0 = arith.constant 0 : index
    %c0_0 = arith.constant 0 : index
    %c0_1 = arith.constant 0 : index
    %0 = vector.load %arg1[%c0, %c0_0, %c0_1] : memref<1x16x128xf32, #tpu.memory_space<vmem>>, vector<1x16x128xf32>
    %1 = vector.shape_cast %0 : vector<1x16x128xf32> to vector<16x128xf32>
    %c0_2 = arith.constant 0 : index
    %c0_3 = arith.constant 0 : index
    %2 = vector.load %arg4[%c0_2, %c0_3] : memref<128x128xf32, #tpu.memory_space<vmem>>, vector<128x128xf32>
    %cst = arith.constant dense<0.000000e+00> : vector<16x128xf32>
    %3 = tpu.matmul %1, %2, %cst {dimension_numbers = #tpu.dot_dimension_numbers<[1], [0], [0], [1], [0, 0, 1, 1], [], []>} : vector<16x128xf32>, vector<128x128xf32>, vector<16x128xf32> -> vector<16x128xf32>
    %c0_4 = arith.constant 0 : index
    %c0_5 = arith.constant 0 : index
    %4 = vector.load %arg6[%c0_4, %c0_5] : memref<1x128xf32, #tpu.memory_space<vmem>>, vector<1x128xf32>
    %5 = vector.broadcast %4 : vector<1x128xf32> to vector<16x128xf32>
    %6 = arith.addf %3, %5 : vector<16x128xf32>
    %c0_6 = arith.constant 0 : index
    %c0_7 = arith.constant 0 : index
    %c0_8 = arith.constant 0 : index
    %c0_9 = arith.constant 0 : index
    %7 = vector.load %arg2[%c0_6, %c0_7, %c0_8, %c0_9] : memref<1x2x16x64xf32, #tpu.memory_space<vmem>>, vector<1x1x16x64xf32>
    %8 = vector.shape_cast %7 : vector<1x1x16x64xf32> to vector<16x64xf32>
    %c0_10 = arith.constant 0 : index
    %c0_11 = arith.constant 0 : index
    %9 = vector.load %arg5[%c0_10, %c0_11] : memref<64x128xf32, #tpu.memory_space<vmem>>, vector<64x128xf32>
    %cst_12 = arith.constant dense<0.000000e+00> : vector<16x128xf32>
    %10 = tpu.matmul %8, %9, %cst_12 {dimension_numbers = #tpu.dot_dimension_numbers<[1], [0], [0], [1], [0, 0, 1, 1], [], []>} : vector<16x64xf32>, vector<64x128xf32>, vector<16x128xf32> -> vector<16x128xf32>
    %11 = arith.addf %10, %6 : vector<16x128xf32>
    %c0_13 = arith.constant 0 : index
    %c0_14 = arith.constant 0 : index
    %c0_15 = arith.constant 0 : index
    %c0_16 = arith.constant 0 : index
    %12 = vector.load %arg3[%c0_13, %c0_14, %c0_15, %c0_16] : memref<1x2x16x128xf32, #tpu.memory_space<vmem>>, vector<1x1x16x128xf32>
    %13 = vector.shape_cast %12 : vector<1x1x16x128xf32> to vector<16x128xf32>
    %14 = arith.addf %11, %13 : vector<16x128xf32>
    %c0_17 = arith.constant 0 : index
    %c0_18 = arith.constant 0 : index
    %c0_19 = arith.constant 0 : index
    %c0_20 = arith.constant 0 : index
    %15 = vector.load %arg7[%c0_17, %c0_18, %c0_19, %c0_20] : memref<1x2x16x128xf32, #tpu.memory_space<vmem>>, vector<1x1x16x128xf32>
    %16 = vector.shape_cast %15 : vector<1x1x16x128xf32> to vector<16x128xf32>
    %17 = vector.shape_cast %14 : vector<16x128xf32> to vector<1x1x16x128xf32>
    tpu.vector_store %arg7[%c0_17, %c0_18, %c0_19, %c0_20], %17 {strides = array<i32>} : memref<1x2x16x128xf32, #tpu.memory_space<vmem>>, vector<1x1x16x128xf32>,
    %c0_21 = arith.constant 0 : index
    %c1 = arith.constant 1 : index
    %c0_22 = arith.constant 0 : index
    %c0_23 = arith.constant 0 : index
    %18 = vector.load %arg2[%c0_21, %c1, %c0_22, %c0_23] : memref<1x2x16x64xf32, #tpu.memory_space<vmem>>, vector<1x1x16x64xf32>
    %19 = vector.shape_cast %18 : vector<1x1x16x64xf32> to vector<16x64xf32>
    %c0_24 = arith.constant 0 : index
    %c0_25 = arith.constant 0 : index
    %20 = vector.load %arg5[%c0_24, %c0_25] : memref<64x128xf32, #tpu.memory_space<vmem>>, vector<64x128xf32>
    %cst_26 = arith.constant dense<0.000000e+00> : vector<16x128xf32>
    %21 = tpu.matmul %19, %20, %cst_26 {dimension_numbers = #tpu.dot_dimension_numbers<[1], [0], [0], [1], [0, 0, 1, 1], [], []>} : vector<16x64xf32>, vector<64x128xf32>, vector<16x128xf32> -> vector<16x128xf32>
    %22 = arith.addf %21, %6 : vector<16x128xf32>
    %c0_27 = arith.constant 0 : index
    %c1_28 = arith.constant 1 : index
    %c0_29 = arith.constant 0 : index
    %c0_30 = arith.constant 0 : index
    %23 = vector.load %arg3[%c0_27, %c1_28, %c0_29, %c0_30] : memref<1x2x16x128xf32, #tpu.memory_space<vmem>>, vector<1x1x16x128xf32>
    %24 = vector.shape_cast %23 : vector<1x1x16x128xf32> to vector<16x128xf32>
    %25 = arith.addf %22, %24 : vector<16x128xf32>
    %c0_31 = arith.constant 0 : index
    %c1_32 = arith.constant 1 : index
    %c0_33 = arith.constant 0 : index
    %c0_34 = arith.constant 0 : index
    %26 = vector.load %arg7[%c0_31, %c1_32, %c0_33, %c0_34] : memref<1x2x16x128xf32, #tpu.memory_space<vmem>>, vector<1x1x16x128xf32>
    %27 = vector.shape_cast %26 : vector<1x1x16x128xf32> to vector<16x128xf32>
    %28 = vector.shape_cast %25 : vector<16x128xf32> to vector<1x1x16x128xf32>
    tpu.vector_store %arg7[%c0_31, %c1_32, %c0_33, %c0_34], %28 {strides = array<i32>} : memref<1x2x16x128xf32, #tpu.memory_space<vmem>>, vector<1x1x16x128xf32>,
    return
  }
  func.func @transform_0(%arg0: i32) -> (i32, i32, i32) {
    %c0_i32 = arith.constant 0 : i32
    %c0_i32_0 = arith.constant 0 : i32
    %c0_i32_1 = arith.constant 0 : i32
    return %arg0, %c0_i32, %c0_i32_0 : i32, i32, i32
  }
  func.func @transform_1(%arg0: i32) -> (i32, i32, i32, i32) {
    %c0_i32 = arith.constant 0 : i32
    %c0_i32_0 = arith.constant 0 : i32
    %c0_i32_1 = arith.constant 0 : i32
    %c0_i32_2 = arith.constant 0 : i32
    return %arg0, %c0_i32, %c0_i32_0, %c0_i32_1 : i32, i32, i32, i32
  }
  func.func @transform_2(%arg0: i32) -> (i32, i32, i32, i32) {
    %c0_i32 = arith.constant 0 : i32
    %c0_i32_0 = arith.constant 0 : i32
    %c0_i32_1 = arith.constant 0 : i32
    %c0_i32_2 = arith.constant 0 : i32
    return %arg0, %c0_i32, %c0_i32_0, %c0_i32_1 : i32, i32, i32, i32
  }
  func.func @transform_3(%arg0: i32) -> (i32, i32) {
    %c0_i32 = arith.constant 0 : i32
    %c0_i32_0 = arith.constant 0 : i32
    %c0_i32_1 = arith.constant 0 : i32
    return %c0_i32, %c0_i32_0 : i32, i32
  }
  func.func @transform_4(%arg0: i32) -> (i32, i32) {
    %c0_i32 = arith.constant 0 : i32
    %c0_i32_0 = arith.constant 0 : i32
    %c0_i32_1 = arith.constant 0 : i32
    return %c0_i32, %c0_i32_0 : i32, i32
  }
  func.func @transform_5(%arg0: i32) -> (i32, i32) {
    %c0_i32 = arith.constant 0 : i32
    %c0_i32_0 = arith.constant 0 : i32
    %c0_i32_1 = arith.constant 0 : i32
    return %c0_i32, %c0_i32_0 : i32, i32
  }
  func.func @transform_6(%arg0: i32) -> (i32, i32, i32, i32) {
    %c0_i32 = arith.constant 0 : i32
    %c0_i32_0 = arith.constant 0 : i32
    %c0_i32_1 = arith.constant 0 : i32
    %c0_i32_2 = arith.constant 0 : i32
    return %arg0, %c0_i32, %c0_i32_0, %c0_i32_1 : i32, i32, i32, i32
  }
}

</mosaic_0001>

<llo_original>
// kernel: interaction_forward.10
$region0: #{interaction_forward.10}
  #allocation0 [shape = 'u32[]', space=smem, size = 0x4, offset = 0x4, fixed_abs, tag = 'smem constant byte address 0x4 - core index']
  #allocation1 [shape = 'u32[144,128]{1,0:T(1,128)}', space=vmem, size = 0x12000, scoped, tag = 'internal scratch']
  %s0 = inlined_call_operand.vmem [shape: f32[32,128], index: 0, kind: input, shape index: {}]
  %s1 = inlined_call_operand.vmem [shape: f32[128,128], index: 1, kind: input, shape index: {}]
  %s2 = inlined_call_operand.vmem [shape: f32[1,128], index: 2, kind: input, shape index: {}]
  %s3 = inlined_call_operand.vmem [shape: f32[1,128], index: 3, kind: input, shape index: {}]
  %s4 = inlined_call_operand.vmem [shape: f32[1,128], index: 4, kind: input, shape index: {}]
  %s5 = inlined_call_operand.vmem [shape: f32[32,128], index: 5, kind: output, shape index: {}]
  %s6 = sld [smem:[#allocation0]]
  $region53: #{interaction_forward.10} parent=0
    _
  %s8 = ssub.s32 1, %s6
  %s9 = scalar_select 0, %s8, %s6
  loop: start=0, step=1, limit=4
  $region2: #{interaction_forward.10} parent=0 // loop_pre_header
    _
  $region3: #{interaction_forward.10} parent=0 // loop_header
    %s11 = sphi 0, %s15
    %p12 = scmp.ge.s32.totalorder %s11, 4
    %s21 = sphi 0, %s23
    %s24 = sphi 0, %s21
    %s25 = sphi 0, %s24
    %s41 = sphi 0, %s25
    %s45 = sphi 0, %s45
    %s47 = sphi 0, %s45
    %s48 = sphi 0, %s47
    %s62 = sphi 0, %s48
    %s66 = sphi 0, %s66
    %s68 = sphi 0, %s66
    %s69 = sphi 0, %s68
    %s83 = sphi 0, %s69
    %s87 = sphi 0, %s87
    %s89 = sphi 0, %s87
    %s90 = sphi 0, %s89
    %s104 = sphi 0, %s90
    %s108 = sphi 0, %s108
    %s110 = sphi 0, %s108
    %s111 = sphi 0, %s110
    %s125 = sphi 0, %s111
    %s131 = sphi 0, %s133
    %s134 = sphi 0, %s131
    %s135 = sphi 0, %s134
    %s151 = sphi 0, %s135
  $region4: #{interaction_forward.10} parent=0 // loop_header_branch
    %14 = sbr.rel (%p12) target = $region8
  $region5: #{interaction_forward.10} parent=0 // loop_body
    %s16 = ssub.s32 %s11, 1
    %s17 = ssub.s32 %s11, 2
    %s18 = sadd.s32 %s11, 1
    %s19 = ssub.s32 %s11, %s18
    %p20 = scmp.eq.s32.totalorder %s19, 0
    %s22 = sadd.s32 %s21, 1
    %s23 = scalar_select %p20, %s21, %s22
    %p26 = pneg %p20
    %p27 = scmp.eq.s32.totalorder %s11, 1
    %p28 = por %p26, %p27
    %p29 = scmp.ne.s32.totalorder %s21, %s24
    %p30 = scmp.eq.s32.totalorder %s11, 0
    %p31 = por %p29, %p30
    %p32 = scmp.ne.s32.totalorder %s21, %s24
    %p33 = scmp.eq.s32.totalorder %s16, 1
    %p34 = por %p32, %p33
    %p35 = scmp.ne.s32.totalorder %s24, %s25
    %p36 = scmp.eq.s32.totalorder %s16, 0
    %p37 = por %p35, %p36
    %p38 = scmp.ne.s32.totalorder %s24, %s25
    %p39 = scmp.eq.s32.totalorder %s17, 1
    %p40 = por %p38, %p39
    %p42 = scmp.ne.s32.totalorder %s25, %s41
    %p43 = scmp.eq.s32.totalorder %s17, 0
    %p44 = por %p42, %p43
    %s46 = sadd.s32 %s45, 1
    %p49 = scmp.eq.s32.totalorder %s11, 1
    %p50 = scmp.ne.s32.totalorder %s45, %s47
    %p51 = scmp.eq.s32.totalorder %s11, 0
    %p52 = por %p50, %p51
    %p53 = scmp.ne.s32.totalorder %s45, %s47
    %p54 = scmp.eq.s32.totalorder %s16, 1
    %p55 = por %p53, %p54
    %p56 = scmp.ne.s32.totalorder %s47, %s48
    %p57 = scmp.eq.s32.totalorder %s16, 0
    %p58 = por %p56, %p57
    %p59 = scmp.ne.s32.totalorder %s47, %s48
    %p60 = scmp.eq.s32.totalorder %s17, 1
    %p61 = por %p59, %p60
    %p63 = scmp.ne.s32.totalorder %s48, %s62
    %p64 = scmp.eq.s32.totalorder %s17, 0
    %p65 = por %p63, %p64
    %s67 = sadd.s32 %s66, 1
    %p70 = scmp.eq.s32.totalorder %s11, 1
    %p71 = scmp.ne.s32.totalorder %s66, %s68
    %p72 = scmp.eq.s32.totalorder %s11, 0
    %p73 = por %p71, %p72
    %p74 = scmp.ne.s32.totalorder %s66, %s68
    %p75 = scmp.eq.s32.totalorder %s16, 1
    %p76 = por %p74, %p75
    %p77 = scmp.ne.s32.totalorder %s68, %s69
    %p78 = scmp.eq.s32.totalorder %s16, 0
    %p79 = por %p77, %p78
    %p80 = scmp.ne.s32.totalorder %s68, %s69
    %p81 = scmp.eq.s32.totalorder %s17, 1
    %p82 = por %p80, %p81
    %p84 = scmp.ne.s32.totalorder %s69, %s83
    %p85 = scmp.eq.s32.totalorder %s17, 0
    %p86 = por %p84, %p85
    %s88 = sadd.s32 %s87, 1
    %p91 = scmp.eq.s32.totalorder %s11, 1
    %p92 = scmp.ne.s32.totalorder %s87, %s89
    %p93 = scmp.eq.s32.totalorder %s11, 0
    %p94 = por %p92, %p93
    %p95 = scmp.ne.s32.totalorder %s87, %s89
    %p96 = scmp.eq.s32.totalorder %s16, 1
    %p97 = por %p95, %p96
    %p98 = scmp.ne.s32.totalorder %s89, %s90
    %p99 = scmp.eq.s32.totalorder %s16, 0
    %p100 = por %p98, %p99
    %p101 = scmp.ne.s32.totalorder %s89, %s90
    %p102 = scmp.eq.s32.totalorder %s17, 1
    %p103 = por %p101, %p102
    %p105 = scmp.ne.s32.totalorder %s90, %s104
    %p106 = scmp.eq.s32.totalorder %s17, 0
    %p107 = por %p105, %p106
    %s109 = sadd.s32 %s108, 1
    %p112 = scmp.eq.s32.totalorder %s11, 1
    %p113 = scmp.ne.s32.totalorder %s108, %s110
    %p114 = scmp.eq.s32.totalorder %s11, 0
    %p115 = por %p113, %p114
    %p116 = scmp.ne.s32.totalorder %s108, %s110
    %p117 = scmp.eq.s32.totalorder %s16, 1
    %p118 = por %p116, %p117
    %p119 = scmp.ne.s32.totalorder %s110, %s111
    %p120 = scmp.eq.s32.totalorder %s16, 0
    %p121 = por %p119, %p120
    %p122 = scmp.ne.s32.totalorder %s110, %s111
    %p123 = scmp.eq.s32.totalorder %s17, 1
    %p124 = por %p122, %p123
    %p126 = scmp.ne.s32.totalorder %s111, %s125
    %p127 = scmp.eq.s32.totalorder %s17, 0
    %p128 = por %p126, %p127
    %s129 = ssub.s32 %s11, %s18
    %p130 = scmp.eq.s32.totalorder %s129, 0
    %s132 = sadd.s32 %s131, 1
    %s133 = scalar_select %p130, %s131, %s132
    %p136 = pneg %p130
    %p137 = scmp.eq.s32.totalorder %s11, 1
    %p138 = por %p136, %p137
    %p139 = scmp.ne.s32.totalorder %s131, %s134
    %p140 = scmp.eq.s32.totalorder %s11, 0
    %p141 = por %p139, %p140
    %p142 = scmp.ne.s32.totalorder %s131, %s134
    %p143 = scmp.eq.s32.totalorder %s16, 1
    %p144 = por %p142, %p143
    %p145 = scmp.ne.s32.totalorder %s134, %s135
    %p146 = scmp.eq.s32.totalorder %s16, 0
    %p147 = por %p145, %p146
    %p148 = scmp.ne.s32.totalorder %s134, %s135
    %p149 = scmp.eq.s32.totalorder %s17, 1
    %p150 = por %p148, %p149
    %p152 = scmp.ne.s32.totalorder %s135, %s151
    %p153 = scmp.eq.s32.totalorder %s17, 0
    %p154 = por %p152, %p153
    %p155 = scmp.le.s32.totalorder 1, %s11
    %p156 = scmp.lt.s32.totalorder %s11, 3
    %p157 = pnand %p155, %p156
    %p158 = pneg %p157
    // Predicated region
    $region9: #{interaction_forward.10} parent=5 // pred_check
      _
    $region10: #{interaction_forward.10} parent=5 // pred_check_branch
      %160 = sbr.rel (%p157) target = $region12
    $region11: #{interaction_forward.10} parent=5 // pred_region
      %s161 = ssub.s32 %s11, 1
      // Predicated region
      $region13: #{interaction_forward.10} parent=11 // pred_check
        %p162 = pneg %p58
      $region14: #{interaction_forward.10} parent=11 // pred_check_branch
        %164 = sbr.rel (%p162) target = $region16
      $region15: #{interaction_forward.10} parent=11 // pred_region
        _
      $region16: #{interaction_forward.10} parent=11 // pred_fallthru
        _
      // Predicated region
      $region17: #{interaction_forward.10} parent=11 // pred_check
        %p165 = pneg %p79
      $region18: #{interaction_forward.10} parent=11 // pred_check_branch
        %167 = sbr.rel (%p165) target = $region20
      $region19: #{interaction_forward.10} parent=11 // pred_region
        _
      $region20: #{interaction_forward.10} parent=11 // pred_fallthru
        _
      // Predicated region
      $region21: #{interaction_forward.10} parent=11 // pred_check
        %p168 = pneg %p100
      $region22: #{interaction_forward.10} parent=11 // pred_check_branch
        %170 = sbr.rel (%p168) target = $region24
      $region23: #{interaction_forward.10} parent=11 // pred_region
        _
      $region24: #{interaction_forward.10} parent=11 // pred_fallthru
        _
      // Predicated region
      $region25: #{interaction_forward.10} parent=11 // pred_check
        %p171 = pneg %p121
      $region26: #{interaction_forward.10} parent=11 // pred_check_branch
        %173 = sbr.rel (%p171) target = $region28
      $region27: #{interaction_forward.10} parent=11 // pred_region
        _
      $region28: #{interaction_forward.10} parent=11 // pred_fallthru
        _
    $region12: #{interaction_forward.10} parent=5 // pred_fallthru
      _
    %p174 = scmp.lt.s32.totalorder %s11, 2
    // Predicated region
    $region29: #{interaction_forward.10} parent=5 // pred_check
      %p175 = pneg %p174
    $region30: #{interaction_forward.10} parent=5 // pred_check_branch
      %177 = sbr.rel (%p175) target = $region32
    $region31: #{interaction_forward.10} parent=5 // pred_region
      // Predicated region
      $region33: #{interaction_forward.10} parent=31 // pred_check
        %p178 = pneg %p31
      $region34: #{interaction_forward.10} parent=31 // pred_check_branch
        %180 = sbr.rel (%p178) target = $region36
      $region35: #{interaction_forward.10} parent=31 // pred_region
        %s181 = smul.u32 2, %s11
        %p182 = scmp.lt.s32.totalorder %s181, 3
        %s183 = scalar_select %p182, %s181, 3
        %s184 = smul.addr %s183, 8
        %s185 = scalar_lea.vmem %s0, %s184
        %s186 = smul.u32 2, %s11
      $region36: #{interaction_forward.10} parent=31 // pred_fallthru
        _
    $region32: #{interaction_forward.10} parent=5 // pred_fallthru
      _
    %p187 = scmp.le.s32.totalorder 1, %s11
    %p188 = scmp.lt.s32.totalorder %s11, 3
    %p189 = pnand %p187, %p188
    %p190 = pneg %p189
    // Predicated region
    $region37: #{interaction_forward.10} parent=5 // pred_check
      _
    $region38: #{interaction_forward.10} parent=5 // pred_check_branch
      %192 = sbr.rel (%p189) target = $region40
    $region39: #{interaction_forward.10} parent=5 // pred_region
      %s193 = ssub.s32 %s11, 1
      %s194 = smul.u32 2, %s16
      %p195 = scmp.lt.s32.totalorder %s194, 3
      %s196 = scalar_select %p195, %s194, 3
      %s197 = smul.addr %s196, 8
      %s198 = scalar_lea.vmem %s0, %s197
      %p199 = pneg %p37
      %p200 = pneg %p34
      %p201 = pneg %p58
      %p202 = pneg %p55
      %p203 = pneg %p79
      %p204 = pneg %p76
      %p205 = pneg %p100
      %p206 = pneg %p97
      %p207 = pneg %p121
      %p208 = pneg %p118
      %p209 = pneg %p147
      %p210 = pneg %p144
      %s211 = smul.u32 2, %s16
      %p212 = scmp.lt.s32.totalorder %s211, 3
      %s213 = scalar_select %p212, %s211, 3
      %s214 = smul.addr %s213, 8
      %s215 = scalar_lea.vmem %s5, %s214
      %s216 = smul.u32 2, %s16
      %p217 = scmp.lt.s32.totalorder %s216, 3
      %s218 = scalar_select %p217, %s216, 3
      %s219 = smul.addr %s218, 8
      %s220 = scalar_lea.vmem %s0, %s219
      %s221 = smul.u32 2, %s16
      %s222 = smul.u32 2, %s16
      %p223 = scmp.lt.s32.totalorder %s222, 3
      %s224 = scalar_select %p223, %s222, 3
      %s225 = smul.addr %s224, 8
      %s226 = scalar_lea.vmem %s5, %s225
      %s227 = smul.u32 2, %s16
      %v228 = vld [vmem:[%s220] sm:$0xff]
      %v229 = vld [vmem:[%s220 + $0x8] sm:$0xff]
      %v230 = vld [vmem:[%s1] sm:$0xff]
      %v231 = vld [vmem:[%s1 + $0x8] sm:$0xff]
      %v232 = vld [vmem:[%s1 + $0x10] sm:$0xff]
      %v233 = vld [vmem:[%s1 + $0x18] sm:$0xff]
      %v234 = vld [vmem:[%s1 + $0x20] sm:$0xff]
      %v235 = vld [vmem:[%s1 + $0x28] sm:$0xff]
      %v236 = vld [vmem:[%s1 + $0x30] sm:$0xff]
      %v237 = vld [vmem:[%s1 + $0x38] sm:$0xff]
      %v238 = vld [vmem:[%s1 + $0x40] sm:$0xff]
      %v239 = vld [vmem:[%s1 + $0x48] sm:$0xff]
      %v240 = vld [vmem:[%s1 + $0x50] sm:$0xff]
      %v241 = vld [vmem:[%s1 + $0x58] sm:$0xff]
      %v242 = vld [vmem:[%s1 + $0x60] sm:$0xff]
      %v243 = vld [vmem:[%s1 + $0x68] sm:$0xff]
      %v244 = vld [vmem:[%s1 + $0x70] sm:$0xff]
      %v245 = vld [vmem:[%s1 + $0x78] sm:$0xff]
      %v246 = vld [vmem:[%s2] sm:$0x1]
      %v248 = vlaneseq
      %v249 = vshrl.u32 %v248, 7
      %v250 = vsub.s32 0, %v249
      %v251 = vrot.slane %v246, %v250
      %253 = vmatprep.subr.mxu0 0.0
      %254 = vmatpush1.msra.mxu0 %v230
      %255 = vmatprep.subr.mxu0 0.0
      %256 = vmatpush1.msra.mxu0 %v231
      %257 = vmatprep.subr.mxu0 0.0
      %258 = vmatpush1.msra.mxu0 %v232
      %259 = vmatprep.subr.mxu0 0.0
      %260 = vmatpush1.msra.mxu0 %v233
      %261 = vmatprep.subr.mxu0 0.0
      %262 = vmatpush1.msra.mxu0 %v234
      %263 = vmatprep.subr.mxu0 0.0
      %264 = vmatpush1.msra.mxu0 %v235
      %265 = vmatprep.subr.mxu0 0.0
      %266 = vmatpush1.msra.mxu0 %v236
      %267 = vmatprep.subr.mxu0 0.0
      %268 = vmatpush1.msra.mxu0 %v237
      %269 = vmatprep.subr.mxu0 0.0
      %270 = vmatpush1.msra.mxu0 %v238
      %271 = vmatprep.subr.mxu0 0.0
      %272 = vmatpush1.msra.mxu0 %v239
      %273 = vmatprep.subr.mxu0 0.0
      %274 = vmatpush1.msra.mxu0 %v240
      %275 = vmatprep.subr.mxu0 0.0
      %276 = vmatpush1.msra.mxu0 %v241
      %277 = vmatprep.subr.mxu0 0.0
      %278 = vmatpush1.msra.mxu0 %v242
      %279 = vmatprep.subr.mxu0 0.0
      %280 = vmatpush1.msra.mxu0 %v243
      %281 = vmatprep.subr.mxu0 0.0
      %282 = vmatpush1.msra.mxu0 %v244
      %283 = vmatprep.subr.mxu0 0.0
      %284 = vmatpush1.msra.mxu0 %v245
      %285 = vmatprep.subr.mxu0 0.0
      %286 = vmatpush1.msra.mxu0 0.0
      %287 = vmatprep.subr.mxu0 0.0
      %288 = vmatpush1.msra.mxu0 0.0
      %289 = vmatprep.subr.mxu0 0.0
      %290 = vmatpush1.msra.mxu0 0.0
      %291 = vmatprep.subr.mxu0 0.0
      %292 = vmatpush1.msra.mxu0 0.0
      %293 = vmatprep.subr.mxu0 0.0
      %294 = vmatpush1.msra.mxu0 0.0
      %295 = vmatprep.subr.mxu0 0.0
      %296 = vmatpush1.msra.mxu0 0.0
      %297 = vmatprep.subr.mxu0 0.0
      %298 = vmatpush1.msra.mxu0 0.0
      %299 = vmatprep.subr.mxu0 0.0
      %300 = vmatpush1.msra.mxu0 0.0
      %301 = vmatprep.subr.mxu0 0.0
      %302 = vmatpush1.msra.mxu0 0.0
      %303 = vmatprep.subr.mxu0 0.0
      %304 = vmatpush1.msra.mxu0 0.0
      %305 = vmatprep.subr.mxu0 0.0
      %306 = vmatpush1.msra.mxu0 0.0
      %307 = vmatprep.subr.mxu0 0.0
      %308 = vmatpush1.msra.mxu0 0.0
      %309 = vmatprep.subr.mxu0 0.0
      %310 = vmatpush1.msra.mxu0 0.0
      %311 = vmatprep.subr.mxu0 0.0
      %312 = vmatpush1.msra.mxu0 0.0
      %313 = vmatprep.subr.mxu0 0.0
      %314 = vmatpush1.msra.mxu0 0.0
      %315 = vmatprep.subr.mxu0 0.0
      %316 = vmatpush1.msra.mxu0 0.0
      %317 = vmatprep.mubr.f32.mxu0 0.0
      %318 = vmatmul.mubr.f32.gmra.mrb[0].mxu0 %v228
      %v319 = vpop.f32.mrb[0].mxu0
      %v320 = vadd.f32 %v251, %v319
      %v321 = vpop.f32.mrb[0].mxu0
      %322 = vmatprep.mubr.f32.mxu0 0.0
      %323 = vmatmul.mubr.f32.gmra.mrb[0].mxu0 %v229
      %v324 = vpop.f32.mrb[0].mxu0
      %v325 = vadd.f32 %v251, %v324
      %v326 = vpop.f32.mrb[0].mxu0
      %327 = vdwg.mxu0
      %v328 = vld [vmem:[%s3] sm:$0x1]
      %v329 = vld [vmem:[%s4] sm:$0x1]
      %330 = vadd.xlane.f32.xlu0 %v320
      %v331 = vpop.xlane.xlu0 %330
      %332 = vadd.xlane.f32.xlu0 %v325
      %v333 = vpop.xlane.xlu0 %332
      %v334 = vrcp.pop 128.0
      %v335 = vmul.f32 %v331, %v334
      %v336 = vmul.f32 %v333, %v334
      %v337 = vsub.f32 %v320, %v335
      %v338 = vsub.f32 %v325, %v336
      %v339 = vmul.f32 %v337, %v337
      %v340 = vmul.f32 %v338, %v338
      %341 = vadd.xlane.f32.xlu0 %v339
      %v342 = vpop.xlane.xlu0 %341
      %343 = vadd.xlane.f32.xlu0 %v340
      %v344 = vpop.xlane.xlu0 %343
      %v345 = vmul.f32 %v342, %v334
      %v346 = vmul.f32 %v344, %v334
      %v347 = vadd.f32 %v345, 1e-05
      %v348 = vadd.f32 %v346, 1e-05
      %v349 = vrsqrt.pop %v347
      %v350 = vrsqrt.pop %v348
      %v351 = vmul.f32 %v337, %v349
      %v352 = vmul.f32 %v338, %v350
      %v354 = vlaneseq
      %v355 = vshrl.u32 %v354, 7
      %v356 = vsub.s32 0, %v355
      %v357 = vrot.slane %v328, %v356
      %v359 = vmul.f32 %v351, %v357
      %v360 = vmul.f32 %v352, %v357
      %v362 = vlaneseq
      %v363 = vshrl.u32 %v362, 7
      %v364 = vsub.s32 0, %v363
      %v365 = vrot.slane %v329, %v364
      %v367 = vadd.f32 %v359, %v365
      %v368 = vadd.f32 %v360, %v365
      %369 = vst [vmem:[%s226] sm:$0xff] %v367
      %370 = vst [vmem:[%s226 + $0x8] sm:$0xff] %v368
      %s371 = smul.u32 2, %s16
      %p372 = scmp.lt.s32.totalorder %s371, 3
      %s373 = scalar_select %p372, %s371, 3
      %s374 = smul.addr %s373, 8
      %s375 = scalar_lea.vmem %s5, %s374
      // Predicated region
      $region41: #{interaction_forward.10} parent=39 // pred_check
        %p376 = pneg %p144
      $region42: #{interaction_forward.10} parent=39 // pred_check_branch
        %378 = sbr.rel (%p376) target = $region44
      $region43: #{interaction_forward.10} parent=39 // pred_region
        %s379 = smul.u32 2, %s16
      $region44: #{interaction_forward.10} parent=39 // pred_fallthru
        _
    $region40: #{interaction_forward.10} parent=5 // pred_fallthru
      _
    %p380 = scmp.le.s32.totalorder 2, %s11
    // Predicated region
    $region45: #{interaction_forward.10} parent=5 // pred_check
      %p381 = pneg %p380
    $region46: #{interaction_forward.10} parent=5 // pred_check_branch
      %383 = sbr.rel (%p381) target = $region48
    $region47: #{interaction_forward.10} parent=5 // pred_region
      %s384 = ssub.s32 %s11, 2
      // Predicated region
      $region49: #{interaction_forward.10} parent=47 // pred_check
        %p385 = pneg %p150
      $region50: #{interaction_forward.10} parent=47 // pred_check_branch
        %387 = sbr.rel (%p385) target = $region52
      $region51: #{interaction_forward.10} parent=47 // pred_region
        %s388 = smul.u32 2, %s17
        %p389 = scmp.lt.s32.totalorder %s388, 3
        %s390 = scalar_select %p389, %s388, 3
        %s391 = smul.addr %s390, 8
        %s392 = scalar_lea.vmem %s5, %s391
      $region52: #{interaction_forward.10} parent=47 // pred_fallthru
        _
    $region48: #{interaction_forward.10} parent=5 // pred_fallthru
      _
  $region6: #{interaction_forward.10} parent=0 // loop_footer
    %s15 = sadd.s32 1, %s11
  $region7: #{interaction_forward.10} parent=0 // loop_footer_branch
    %10 = sbr.rel target = $region3
  $region8: #{interaction_forward.10} parent=0 // loop_exit
    _

// kernel: interaction_forward.11
$region0: #{interaction_forward.11}
  #allocation0 [shape = 'u32[]', space=smem, size = 0x4, offset = 0x4, fixed_abs, tag = 'smem constant byte address 0x4 - core index']
  #allocation1 [shape = 'u32[144,128]{1,0:T(1,128)}', space=vmem, size = 0x12000, scoped, tag = 'internal scratch']
  %s0 = inlined_call_operand.vmem [shape: f32[64,128], index: 0, kind: input, shape index: {}]
  %s1 = inlined_call_operand.vmem [shape: f32[128,64], index: 1, kind: input, shape index: {}]
  %s2 = inlined_call_operand.vmem [shape: f32[1,64], index: 2, kind: input, shape index: {}]
  %s3 = inlined_call_operand.vmem [shape: f32[1,64], index: 3, kind: input, shape index: {}]
  %s4 = inlined_call_operand.vmem [shape: f32[1,64], index: 4, kind: input, shape index: {}]
  %s5 = inlined_call_operand.vmem [shape: f32[64,64], index: 5, kind: output, shape index: {}]
  %s6 = sld [smem:[#allocation0]]
  $region53: #{interaction_forward.11} parent=0
    _
  %s8 = ssub.s32 1, %s6
  %s9 = scalar_select 0, %s8, %s6
  loop: start=0, step=1, limit=4
  $region2: #{interaction_forward.11} parent=0 // loop_pre_header
    _
  $region3: #{interaction_forward.11} parent=0 // loop_header
    %s11 = sphi 0, %s15
    %p12 = scmp.ge.s32.totalorder %s11, 4
    %s21 = sphi 0, %s23
    %s24 = sphi 0, %s21
    %s25 = sphi 0, %s24
    %s41 = sphi 0, %s25
    %s45 = sphi 0, %s45
    %s47 = sphi 0, %s45
    %s48 = sphi 0, %s47
    %s62 = sphi 0, %s48
    %s66 = sphi 0, %s66
    %s68 = sphi 0, %s66
    %s69 = sphi 0, %s68
    %s83 = sphi 0, %s69
    %s87 = sphi 0, %s87
    %s89 = sphi 0, %s87
    %s90 = sphi 0, %s89
    %s104 = sphi 0, %s90
    %s108 = sphi 0, %s108
    %s110 = sphi 0, %s108
    %s111 = sphi 0, %s110
    %s125 = sphi 0, %s111
    %s131 = sphi 0, %s133
    %s134 = sphi 0, %s131
    %s135 = sphi 0, %s134
    %s151 = sphi 0, %s135
  $region4: #{interaction_forward.11} parent=0 // loop_header_branch
    %14 = sbr.rel (%p12) target = $region8
  $region5: #{interaction_forward.11} parent=0 // loop_body
    %s16 = ssub.s32 %s11, 1
    %s17 = ssub.s32 %s11, 2
    %s18 = sadd.s32 %s11, 1
    %s19 = ssub.s32 %s11, %s18
    %p20 = scmp.eq.s32.totalorder %s19, 0
    %s22 = sadd.s32 %s21, 1
    %s23 = scalar_select %p20, %s21, %s22
    %p26 = pneg %p20
    %p27 = scmp.eq.s32.totalorder %s11, 1
    %p28 = por %p26, %p27
    %p29 = scmp.ne.s32.totalorder %s21, %s24
    %p30 = scmp.eq.s32.totalorder %s11, 0
    %p31 = por %p29, %p30
    %p32 = scmp.ne.s32.totalorder %s21, %s24
    %p33 = scmp.eq.s32.totalorder %s16, 1
    %p34 = por %p32, %p33
    %p35 = scmp.ne.s32.totalorder %s24, %s25
    %p36 = scmp.eq.s32.totalorder %s16, 0
    %p37 = por %p35, %p36
    %p38 = scmp.ne.s32.totalorder %s24, %s25
    %p39 = scmp.eq.s32.totalorder %s17, 1
    %p40 = por %p38, %p39
    %p42 = scmp.ne.s32.totalorder %s25, %s41
    %p43 = scmp.eq.s32.totalorder %s17, 0
    %p44 = por %p42, %p43
    %s46 = sadd.s32 %s45, 1
    %p49 = scmp.eq.s32.totalorder %s11, 1
    %p50 = scmp.ne.s32.totalorder %s45, %s47
    %p51 = scmp.eq.s32.totalorder %s11, 0
    %p52 = por %p50, %p51
    %p53 = scmp.ne.s32.totalorder %s45, %s47
    %p54 = scmp.eq.s32.totalorder %s16, 1
    %p55 = por %p53, %p54
    %p56 = scmp.ne.s32.totalorder %s47, %s48
    %p57 = scmp.eq.s32.totalorder %s16, 0
    %p58 = por %p56, %p57
    %p59 = scmp.ne.s32.totalorder %s47, %s48
    %p60 = scmp.eq.s32.totalorder %s17, 1
    %p61 = por %p59, %p60
    %p63 = scmp.ne.s32.totalorder %s48, %s62
    %p64 = scmp.eq.s32.totalorder %s17, 0
    %p65 = por %p63, %p64
    %s67 = sadd.s32 %s66, 1
    %p70 = scmp.eq.s32.totalorder %s11, 1
    %p71 = scmp.ne.s32.totalorder %s66, %s68
    %p72 = scmp.eq.s32.totalorder %s11, 0
    %p73 = por %p71, %p72
    %p74 = scmp.ne.s32.totalorder %s66, %s68
    %p75 = scmp.eq.s32.totalorder %s16, 1
    %p76 = por %p74, %p75
    %p77 = scmp.ne.s32.totalorder %s68, %s69
    %p78 = scmp.eq.s32.totalorder %s16, 0
    %p79 = por %p77, %p78
    %p80 = scmp.ne.s32.totalorder %s68, %s69
    %p81 = scmp.eq.s32.totalorder %s17, 1
    %p82 = por %p80, %p81
    %p84 = scmp.ne.s32.totalorder %s69, %s83
    %p85 = scmp.eq.s32.totalorder %s17, 0
    %p86 = por %p84, %p85
    %s88 = sadd.s32 %s87, 1
    %p91 = scmp.eq.s32.totalorder %s11, 1
    %p92 = scmp.ne.s32.totalorder %s87, %s89
    %p93 = scmp.eq.s32.totalorder %s11, 0
    %p94 = por %p92, %p93
    %p95 = scmp.ne.s32.totalorder %s87, %s89
    %p96 = scmp.eq.s32.totalorder %s16, 1
    %p97 = por %p95, %p96
    %p98 = scmp.ne.s32.totalorder %s89, %s90
    %p99 = scmp.eq.s32.totalorder %s16, 0
    %p100 = por %p98, %p99
    %p101 = scmp.ne.s32.totalorder %s89, %s90
    %p102 = scmp.eq.s32.totalorder %s17, 1
    %p103 = por %p101, %p102
    %p105 = scmp.ne.s32.totalorder %s90, %s104
    %p106 = scmp.eq.s32.totalorder %s17, 0
    %p107 = por %p105, %p106
    %s109 = sadd.s32 %s108, 1
    %p112 = scmp.eq.s32.totalorder %s11, 1
    %p113 = scmp.ne.s32.totalorder %s108, %s110
    %p114 = scmp.eq.s32.totalorder %s11, 0
    %p115 = por %p113, %p114
    %p116 = scmp.ne.s32.totalorder %s108, %s110
    %p117 = scmp.eq.s32.totalorder %s16, 1
    %p118 = por %p116, %p117
    %p119 = scmp.ne.s32.totalorder %s110, %s111
    %p120 = scmp.eq.s32.totalorder %s16, 0
    %p121 = por %p119, %p120
    %p122 = scmp.ne.s32.totalorder %s110, %s111
    %p123 = scmp.eq.s32.totalorder %s17, 1
    %p124 = por %p122, %p123
    %p126 = scmp.ne.s32.totalorder %s111, %s125
    %p127 = scmp.eq.s32.totalorder %s17, 0
    %p128 = por %p126, %p127
    %s129 = ssub.s32 %s11, %s18
    %p130 = scmp.eq.s32.totalorder %s129, 0
    %s132 = sadd.s32 %s131, 1
    %s133 = scalar_select %p130, %s131, %s132
    %p136 = pneg %p130
    %p137 = scmp.eq.s32.totalorder %s11, 1
    %p138 = por %p136, %p137
    %p139 = scmp.ne.s32.totalorder %s131, %s134
    %p140 = scmp.eq.s32.totalorder %s11, 0
    %p141 = por %p139, %p140
    %p142 = scmp.ne.s32.totalorder %s131, %s134
    %p143 = scmp.eq.s32.totalorder %s16, 1
    %p144 = por %p142, %p143
    %p145 = scmp.ne.s32.totalorder %s134, %s135
    %p146 = scmp.eq.s32.totalorder %s16, 0
    %p147 = por %p145, %p146
    %p148 = scmp.ne.s32.totalorder %s134, %s135
    %p149 = scmp.eq.s32.totalorder %s17, 1
    %p150 = por %p148, %p149
    %p152 = scmp.ne.s32.totalorder %s135, %s151
    %p153 = scmp.eq.s32.totalorder %s17, 0
    %p154 = por %p152, %p153
    %p155 = scmp.le.s32.totalorder 1, %s11
    %p156 = scmp.lt.s32.totalorder %s11, 3
    %p157 = pnand %p155, %p156
    %p158 = pneg %p157
    // Predicated region
    $region9: #{interaction_forward.11} parent=5 // pred_check
      _
    $region10: #{interaction_forward.11} parent=5 // pred_check_branch
      %160 = sbr.rel (%p157) target = $region12
    $region11: #{interaction_forward.11} parent=5 // pred_region
      %s161 = ssub.s32 %s11, 1
      // Predicated region
      $region13: #{interaction_forward.11} parent=11 // pred_check
        %p162 = pneg %p58
      $region14: #{interaction_forward.11} parent=11 // pred_check_branch
        %164 = sbr.rel (%p162) target = $region16
      $region15: #{interaction_forward.11} parent=11 // pred_region
        _
      $region16: #{interaction_forward.11} parent=11 // pred_fallthru
        _
      // Predicated region
      $region17: #{interaction_forward.11} parent=11 // pred_check
        %p165 = pneg %p79
      $region18: #{interaction_forward.11} parent=11 // pred_check_branch
        %167 = sbr.rel (%p165) target = $region20
      $region19: #{interaction_forward.11} parent=11 // pred_region
        _
      $region20: #{interaction_forward.11} parent=11 // pred_fallthru
        _
      // Predicated region
      $region21: #{interaction_forward.11} parent=11 // pred_check
        %p168 = pneg %p100
      $region22: #{interaction_forward.11} parent=11 // pred_check_branch
        %170 = sbr.rel (%p168) target = $region24
      $region23: #{interaction_forward.11} parent=11 // pred_region
        _
      $region24: #{interaction_forward.11} parent=11 // pred_fallthru
        _
      // Predicated region
      $region25: #{interaction_forward.11} parent=11 // pred_check
        %p171 = pneg %p121
      $region26: #{interaction_forward.11} parent=11 // pred_check_branch
        %173 = sbr.rel (%p171) target = $region28
      $region27: #{interaction_forward.11} parent=11 // pred_region
        _
      $region28: #{interaction_forward.11} parent=11 // pred_fallthru
        _
    $region12: #{interaction_forward.11} parent=5 // pred_fallthru
      _
    %p174 = scmp.lt.s32.totalorder %s11, 2
    // Predicated region
    $region29: #{interaction_forward.11} parent=5 // pred_check
      %p175 = pneg %p174
    $region30: #{interaction_forward.11} parent=5 // pred_check_branch
      %177 = sbr.rel (%p175) target = $region32
    $region31: #{interaction_forward.11} parent=5 // pred_region
      // Predicated region
      $region33: #{interaction_forward.11} parent=31 // pred_check
        %p178 = pneg %p31
      $region34: #{interaction_forward.11} parent=31 // pred_check_branch
        %180 = sbr.rel (%p178) target = $region36
      $region35: #{interaction_forward.11} parent=31 // pred_region
        %s181 = smul.u32 4, %s11
        %p182 = scmp.lt.s32.totalorder %s181, 7
        %s183 = scalar_select %p182, %s181, 7
        %s184 = smul.addr %s183, 8
        %s185 = scalar_lea.vmem %s0, %s184
        %s186 = smul.u32 4, %s11
      $region36: #{interaction_forward.11} parent=31 // pred_fallthru
        _
    $region32: #{interaction_forward.11} parent=5 // pred_fallthru
      _
    %p187 = scmp.le.s32.totalorder 1, %s11
    %p188 = scmp.lt.s32.totalorder %s11, 3
    %p189 = pnand %p187, %p188
    %p190 = pneg %p189
    // Predicated region
    $region37: #{interaction_forward.11} parent=5 // pred_check
      _
    $region38: #{interaction_forward.11} parent=5 // pred_check_branch
      %192 = sbr.rel (%p189) target = $region40
    $region39: #{interaction_forward.11} parent=5 // pred_region
      %s193 = ssub.s32 %s11, 1
      %s194 = smul.u32 4, %s16
      %p195 = scmp.lt.s32.totalorder %s194, 7
      %s196 = scalar_select %p195, %s194, 7
      %s197 = smul.addr %s196, 8
      %s198 = scalar_lea.vmem %s0, %s197
      %p199 = pneg %p37
      %p200 = pneg %p34
      %p201 = pneg %p58
      %p202 = pneg %p55
      %p203 = pneg %p79
      %p204 = pneg %p76
      %p205 = pneg %p100
      %p206 = pneg %p97
      %p207 = pneg %p121
      %p208 = pneg %p118
      %p209 = pneg %p147
      %p210 = pneg %p144
      %s211 = smul.u32 4, %s16
      %p212 = scmp.lt.s32.totalorder %s211, 7
      %s213 = scalar_select %p212, %s211, 7
      %s214 = smul.addr %s213, 8
      %s215 = scalar_lea.vmem %s5, %s214
      %s216 = smul.u32 4, %s16
      %p217 = scmp.lt.s32.totalorder %s216, 7
      %s218 = scalar_select %p217, %s216, 7
      %s219 = smul.addr %s218, 8
      %s220 = scalar_lea.vmem %s0, %s219
      %s221 = smul.u32 4, %s16
      %s222 = smul.u32 4, %s16
      %p223 = scmp.lt.s32.totalorder %s222, 7
      %s224 = scalar_select %p223, %s222, 7
      %s225 = smul.addr %s224, 8
      %s226 = scalar_lea.vmem %s5, %s225
      %s227 = smul.u32 4, %s16
      %v228 = vld [vmem:[%s220] sm:$0xff]
      %v229 = vld [vmem:[%s220 + $0x8] sm:$0xff]
      %v230 = vld [vmem:[%s220 + $0x10] sm:$0xff]
      %v231 = vld [vmem:[%s220 + $0x18] sm:$0xff]
      %v232 = vld [vmem:[%s1] sm:$0xff]
      %v233 = vld [vmem:[%s1 + $0x8] sm:$0xff]
      %v234 = vld [vmem:[%s1 + $0x10] sm:$0xff]
      %v235 = vld [vmem:[%s1 + $0x18] sm:$0xff]
      %v236 = vld [vmem:[%s1 + $0x20] sm:$0xff]
      %v237 = vld [vmem:[%s1 + $0x28] sm:$0xff]
      %v238 = vld [vmem:[%s1 + $0x30] sm:$0xff]
      %v239 = vld [vmem:[%s1 + $0x38] sm:$0xff]
      %v240 = vld [vmem:[%s1 + $0x40] sm:$0xff]
      %v241 = vld [vmem:[%s1 + $0x48] sm:$0xff]
      %v242 = vld [vmem:[%s1 + $0x50] sm:$0xff]
      %v243 = vld [vmem:[%s1 + $0x58] sm:$0xff]
      %v244 = vld [vmem:[%s1 + $0x60] sm:$0xff]
      %v245 = vld [vmem:[%s1 + $0x68] sm:$0xff]
      %v246 = vld [vmem:[%s1 + $0x70] sm:$0xff]
      %v247 = vld [vmem:[%s1 + $0x78] sm:$0xff]
      %v248 = vld [vmem:[%s2] sm:$0x1]
      %v250 = vlaneseq
      %v251 = vshrl.u32 %v250, 7
      %v252 = vsub.s32 0, %v251
      %v253 = vrot.slane %v248, %v252
      %255 = vmatprep.subr.mxu0 0.0
      %256 = vmatpush1.msra.mxu0 %v232
      %257 = vmatprep.subr.mxu0 0.0
      %258 = vmatpush1.msra.mxu0 %v233
      %259 = vmatprep.subr.mxu0 0.0
      %260 = vmatpush1.msra.mxu0 %v234
      %261 = vmatprep.subr.mxu0 0.0
      %262 = vmatpush1.msra.mxu0 %v235
      %263 = vmatprep.subr.mxu0 0.0
      %264 = vmatpush1.msra.mxu0 %v236
      %265 = vmatprep.subr.mxu0 0.0
      %266 = vmatpush1.msra.mxu0 %v237
      %267 = vmatprep.subr.mxu0 0.0
      %268 = vmatpush1.msra.mxu0 %v238
      %269 = vmatprep.subr.mxu0 0.0
      %270 = vmatpush1.msra.mxu0 %v239
      %271 = vmatprep.subr.mxu0 0.0
      %272 = vmatpush1.msra.mxu0 %v240
      %273 = vmatprep.subr.mxu0 0.0
      %274 = vmatpush1.msra.mxu0 %v241
      %275 = vmatprep.subr.mxu0 0.0
      %276 = vmatpush1.msra.mxu0 %v242
      %277 = vmatprep.subr.mxu0 0.0
      %278 = vmatpush1.msra.mxu0 %v243
      %279 = vmatprep.subr.mxu0 0.0
      %280 = vmatpush1.msra.mxu0 %v244
      %281 = vmatprep.subr.mxu0 0.0
      %282 = vmatpush1.msra.mxu0 %v245
      %283 = vmatprep.subr.mxu0 0.0
      %284 = vmatpush1.msra.mxu0 %v246
      %285 = vmatprep.subr.mxu0 0.0
      %286 = vmatpush1.msra.mxu0 %v247
      %287 = vmatprep.subr.mxu0 0.0
      %288 = vmatpush1.msra.mxu0 0.0
      %289 = vmatprep.subr.mxu0 0.0
      %290 = vmatpush1.msra.mxu0 0.0
      %291 = vmatprep.subr.mxu0 0.0
      %292 = vmatpush1.msra.mxu0 0.0
      %293 = vmatprep.subr.mxu0 0.0
      %294 = vmatpush1.msra.mxu0 0.0
      %295 = vmatprep.subr.mxu0 0.0
      %296 = vmatpush1.msra.mxu0 0.0
      %297 = vmatprep.subr.mxu0 0.0
      %298 = vmatpush1.msra.mxu0 0.0
      %299 = vmatprep.subr.mxu0 0.0
      %300 = vmatpush1.msra.mxu0 0.0
      %301 = vmatprep.subr.mxu0 0.0
      %302 = vmatpush1.msra.mxu0 0.0
      %303 = vmatprep.subr.mxu0 0.0
      %304 = vmatpush1.msra.mxu0 0.0
      %305 = vmatprep.subr.mxu0 0.0
      %306 = vmatpush1.msra.mxu0 0.0
      %307 = vmatprep.subr.mxu0 0.0
      %308 = vmatpush1.msra.mxu0 0.0
      %309 = vmatprep.subr.mxu0 0.0
      %310 = vmatpush1.msra.mxu0 0.0
      %311 = vmatprep.subr.mxu0 0.0
      %312 = vmatpush1.msra.mxu0 0.0
      %313 = vmatprep.subr.mxu0 0.0
      %314 = vmatpush1.msra.mxu0 0.0
      %315 = vmatprep.subr.mxu0 0.0
      %316 = vmatpush1.msra.mxu0 0.0
      %317 = vmatprep.subr.mxu0 0.0
      %318 = vmatpush1.msra.mxu0 0.0
      %319 = vmatprep.mubr.f32.mxu0 0.0
      %320 = vmatmul.mubr.f32.gmra.mrb[0].mxu0 %v228
      %v321 = vpop.f32.mrb[0].mxu0
      %v322 = vadd.f32 %v253, %v321
      %v323 = vpop.f32.mrb[0].mxu0
      %324 = vmatprep.mubr.f32.mxu0 0.0
      %325 = vmatmul.mubr.f32.gmra.mrb[0].mxu0 %v229
      %v326 = vpop.f32.mrb[0].mxu0
      %v327 = vadd.f32 %v253, %v326
      %v328 = vpop.f32.mrb[0].mxu0
      %329 = vmatprep.mubr.f32.mxu0 0.0
      %330 = vmatmul.mubr.f32.gmra.mrb[0].mxu0 %v230
      %v331 = vpop.f32.mrb[0].mxu0
      %v332 = vadd.f32 %v253, %v331
      %v333 = vpop.f32.mrb[0].mxu0
      %334 = vmatprep.mubr.f32.mxu0 0.0
      %335 = vmatmul.mubr.f32.gmra.mrb[0].mxu0 %v231
      %v336 = vpop.f32.mrb[0].mxu0
      %v337 = vadd.f32 %v253, %v336
      %v338 = vpop.f32.mrb[0].mxu0
      %339 = vdwg.mxu0
      %v340 = vld [vmem:[%s3] sm:$0x1]
      %v341 = vld [vmem:[%s4] sm:$0x1]
      %vm342 = vcmask 523264
      %v343 = vsel %vm342, %v322, 0.0
      %344 = vadd.xlane.f32.xlu0 %v343
      %v345 = vpop.xlane.xlu0 %344
      %v346 = vsel %vm342, %v327, 0.0
      %347 = vadd.xlane.f32.xlu0 %v346
      %v348 = vpop.xlane.xlu0 %347
      %v349 = vsel %vm342, %v332, 0.0
      %350 = vadd.xlane.f32.xlu0 %v349
      %v351 = vpop.xlane.xlu0 %350
      %v352 = vsel %vm342, %v337, 0.0
      %353 = vadd.xlane.f32.xlu0 %v352
      %v354 = vpop.xlane.xlu0 %353
      %v355 = vrcp.pop 64.0
      %v356 = vmul.f32 %v345, %v355
      %v357 = vmul.f32 %v348, %v355
      %v358 = vmul.f32 %v351, %v355
      %v359 = vmul.f32 %v354, %v355
      %v360 = vsub.f32 %v322, %v356
      %v361 = vsub.f32 %v327, %v357
      %v362 = vsub.f32 %v332, %v358
      %v363 = vsub.f32 %v337, %v359
      %v364 = vmul.f32 %v360, %v360
      %v365 = vmul.f32 %v361, %v361
      %v366 = vmul.f32 %v362, %v362
      %v367 = vmul.f32 %v363, %v363
      %v368 = vsel %vm342, %v364, 0.0
      %369 = vadd.xlane.f32.xlu0 %v368
      %v370 = vpop.xlane.xlu0 %369
      %v371 = vsel %vm342, %v365, 0.0
      %372 = vadd.xlane.f32.xlu0 %v371
      %v373 = vpop.xlane.xlu0 %372
      %v374 = vsel %vm342, %v366, 0.0
      %375 = vadd.xlane.f32.xlu0 %v374
      %v376 = vpop.xlane.xlu0 %375
      %v377 = vsel %vm342, %v367, 0.0
      %378 = vadd.xlane.f32.xlu0 %v377
      %v379 = vpop.xlane.xlu0 %378
      %v380 = vmul.f32 %v370, %v355
      %v381 = vmul.f32 %v373, %v355
      %v382 = vmul.f32 %v376, %v355
      %v383 = vmul.f32 %v379, %v355
      %v384 = vadd.f32 %v380, 1e-05
      %v385 = vadd.f32 %v381, 1e-05
      %v386 = vadd.f32 %v382, 1e-05
      %v387 = vadd.f32 %v383, 1e-05
      %v388 = vrsqrt.pop %v384
      %v389 = vrsqrt.pop %v385
      %v390 = vrsqrt.pop %v386
      %v391 = vrsqrt.pop %v387
      %v392 = vmul.f32 %v360, %v388
      %v393 = vmul.f32 %v361, %v389
      %v394 = vmul.f32 %v362, %v390
      %v395 = vmul.f32 %v363, %v391
      %v397 = vlaneseq
      %v398 = vshrl.u32 %v397, 7
      %v399 = vsub.s32 0, %v398
      %v400 = vrot.slane %v340, %v399
      %v402 = vmul.f32 %v392, %v400
      %v403 = vmul.f32 %v393, %v400
      %v404 = vmul.f32 %v394, %v400
      %v405 = vmul.f32 %v395, %v400
      %v407 = vlaneseq
      %v408 = vshrl.u32 %v407, 7
      %v409 = vsub.s32 0, %v408
      %v410 = vrot.slane %v341, %v409
      %v412 = vadd.f32 %v402, %v410
      %v413 = vadd.f32 %v403, %v410
      %v414 = vadd.f32 %v404, %v410
      %v415 = vadd.f32 %v405, %v410
      %416 = vst.msk [vmem:[%s226] sm:$0xff] %vm342, %v412
      %417 = vst.msk [vmem:[%s226 + $0x8] sm:$0xff] %vm342, %v413
      %418 = vst.msk [vmem:[%s226 + $0x10] sm:$0xff] %vm342, %v414
      %419 = vst.msk [vmem:[%s226 + $0x18] sm:$0xff] %vm342, %v415
      %s420 = smul.u32 4, %s16
      %p421 = scmp.lt.s32.totalorder %s420, 7
      %s422 = scalar_select %p421, %s420, 7
      %s423 = smul.addr %s422, 8
      %s424 = scalar_lea.vmem %s5, %s423
      // Predicated region
      $region41: #{interaction_forward.11} parent=39 // pred_check
        %p425 = pneg %p144
      $region42: #{interaction_forward.11} parent=39 // pred_check_branch
        %427 = sbr.rel (%p425) target = $region44
      $region43: #{interaction_forward.11} parent=39 // pred_region
        %s428 = smul.u32 4, %s16
      $region44: #{interaction_forward.11} parent=39 // pred_fallthru
        _
    $region40: #{interaction_forward.11} parent=5 // pred_fallthru
      _
    %p429 = scmp.le.s32.totalorder 2, %s11
    // Predicated region
    $region45: #{interaction_forward.11} parent=5 // pred_check
      %p430 = pneg %p429
    $region46: #{interaction_forward.11} parent=5 // pred_check_branch
      %432 = sbr.rel (%p430) target = $region48
    $region47: #{interaction_forward.11} parent=5 // pred_region
      %s433 = ssub.s32 %s11, 2
      // Predicated region
      $region49: #{interaction_forward.11} parent=47 // pred_check
        %p434 = pneg %p150
      $region50: #{interaction_forward.11} parent=47 // pred_check_branch
        %436 = sbr.rel (%p434) target = $region52
      $region51: #{interaction_forward.11} parent=47 // pred_region
        %s437 = smul.u32 4, %s17
        %p438 = scmp.lt.s32.totalorder %s437, 7
        %s439 = scalar_select %p438, %s437, 7
        %s440 = smul.addr %s439, 8
        %s441 = scalar_lea.vmem %s5, %s440
      $region52: #{interaction_forward.11} parent=47 // pred_fallthru
        _
    $region48: #{interaction_forward.11} parent=5 // pred_fallthru
      _
  $region6: #{interaction_forward.11} parent=0 // loop_footer
    %s15 = sadd.s32 1, %s11
  $region7: #{interaction_forward.11} parent=0 // loop_footer_branch
    %10 = sbr.rel target = $region3
  $region8: #{interaction_forward.11} parent=0 // loop_exit
    _

// kernel: interaction_forward.13
$region0: #{interaction_forward.13}
  #allocation0 [shape = 'u32[]', space=smem, size = 0x4, offset = 0x4, fixed_abs, tag = 'smem constant byte address 0x4 - core index']
  #allocation1 [shape = 'u32[144,128]{1,0:T(1,128)}', space=vmem, size = 0x12000, scoped, tag = 'internal scratch']
  %s0 = inlined_call_operand.vmem [shape: f32[2,16,128], index: 0, kind: input, shape index: {}]
  %s1 = inlined_call_operand.vmem [shape: f32[128,384], index: 1, kind: input, shape index: {}]
  %s2 = inlined_call_operand.vmem [shape: f32[1,384], index: 2, kind: input, shape index: {}]
  %s3 = inlined_call_operand.vmem [shape: f32[128,128], index: 3, kind: input, shape index: {}]
  %s4 = inlined_call_operand.vmem [shape: f32[1,128], index: 4, kind: input, shape index: {}]
  %s5 = inlined_call_operand.vmem [shape: f32[1,128], index: 5, kind: input, shape index: {}]
  %s6 = inlined_call_operand.vmem [shape: f32[1,128], index: 6, kind: input, shape index: {}]
  %s7 = inlined_call_operand.vmem [shape: f32[2,16,128], index: 7, kind: output, shape index: {}]
  %s8 = sld [smem:[#allocation0]]
  $region61: #{interaction_forward.13} parent=0
    _
  %s10 = ssub.s32 1, %s8
  %s11 = scalar_select 0, %s10, %s8
  loop: start=0, step=1, limit=4
  $region2: #{interaction_forward.13} parent=0 // loop_pre_header
    _
  $region3: #{interaction_forward.13} parent=0 // loop_header
    %s13 = sphi 0, %s17
    %p14 = scmp.ge.s32.totalorder %s13, 4
    %s23 = sphi 0, %s25
    %s26 = sphi 0, %s23
    %s27 = sphi 0, %s26
    %s43 = sphi 0, %s27
    %s47 = sphi 0, %s47
    %s49 = sphi 0, %s47
    %s50 = sphi 0, %s49
    %s64 = sphi 0, %s50
    %s68 = sphi 0, %s68
    %s70 = sphi 0, %s68
    %s71 = sphi 0, %s70
    %s85 = sphi 0, %s71
    %s89 = sphi 0, %s89
    %s91 = sphi 0, %s89
    %s92 = sphi 0, %s91
    %s106 = sphi 0, %s92
    %s110 = sphi 0, %s110
    %s112 = sphi 0, %s110
    %s113 = sphi 0, %s112
    %s127 = sphi 0, %s113
    %s131 = sphi 0, %s131
    %s133 = sphi 0, %s131
    %s134 = sphi 0, %s133
    %s148 = sphi 0, %s134
    %s152 = sphi 0, %s152
    %s154 = sphi 0, %s152
    %s155 = sphi 0, %s154
    %s169 = sphi 0, %s155
    %s175 = sphi 0, %s177
    %s178 = sphi 0, %s175
    %s179 = sphi 0, %s178
    %s195 = sphi 0, %s179
  $region4: #{interaction_forward.13} parent=0 // loop_header_branch
    %16 = sbr.rel (%p14) target = $region8
  $region5: #{interaction_forward.13} parent=0 // loop_body
    %s18 = ssub.s32 %s13, 1
    %s19 = ssub.s32 %s13, 2
    %s20 = sadd.s32 %s13, 1
    %s21 = ssub.s32 %s13, %s20
    %p22 = scmp.eq.s32.totalorder %s21, 0
    %s24 = sadd.s32 %s23, 1
    %s25 = scalar_select %p22, %s23, %s24
    %p28 = pneg %p22
    %p29 = scmp.eq.s32.totalorder %s13, 1
    %p30 = por %p28, %p29
    %p31 = scmp.ne.s32.totalorder %s23, %s26
    %p32 = scmp.eq.s32.totalorder %s13, 0
    %p33 = por %p31, %p32
    %p34 = scmp.ne.s32.totalorder %s23, %s26
    %p35 = scmp.eq.s32.totalorder %s18, 1
    %p36 = por %p34, %p35
    %p37 = scmp.ne.s32.totalorder %s26, %s27
    %p38 = scmp.eq.s32.totalorder %s18, 0
    %p39 = por %p37, %p38
    %p40 = scmp.ne.s32.totalorder %s26, %s27
    %p41 = scmp.eq.s32.totalorder %s19, 1
    %p42 = por %p40, %p41
    %p44 = scmp.ne.s32.totalorder %s27, %s43
    %p45 = scmp.eq.s32.totalorder %s19, 0
    %p46 = por %p44, %p45
    %s48 = sadd.s32 %s47, 1
    %p51 = scmp.eq.s32.totalorder %s13, 1
    %p52 = scmp.ne.s32.totalorder %s47, %s49
    %p53 = scmp.eq.s32.totalorder %s13, 0
    %p54 = por %p52, %p53
    %p55 = scmp.ne.s32.totalorder %s47, %s49
    %p56 = scmp.eq.s32.totalorder %s18, 1
    %p57 = por %p55, %p56
    %p58 = scmp.ne.s32.totalorder %s49, %s50
    %p59 = scmp.eq.s32.totalorder %s18, 0
    %p60 = por %p58, %p59
    %p61 = scmp.ne.s32.totalorder %s49, %s50
    %p62 = scmp.eq.s32.totalorder %s19, 1
    %p63 = por %p61, %p62
    %p65 = scmp.ne.s32.totalorder %s50, %s64
    %p66 = scmp.eq.s32.totalorder %s19, 0
    %p67 = por %p65, %p66
    %s69 = sadd.s32 %s68, 1
    %p72 = scmp.eq.s32.totalorder %s13, 1
    %p73 = scmp.ne.s32.totalorder %s68, %s70
    %p74 = scmp.eq.s32.totalorder %s13, 0
    %p75 = por %p73, %p74
    %p76 = scmp.ne.s32.totalorder %s68, %s70
    %p77 = scmp.eq.s32.totalorder %s18, 1
    %p78 = por %p76, %p77
    %p79 = scmp.ne.s32.totalorder %s70, %s71
    %p80 = scmp.eq.s32.totalorder %s18, 0
    %p81 = por %p79, %p80
    %p82 = scmp.ne.s32.totalorder %s70, %s71
    %p83 = scmp.eq.s32.totalorder %s19, 1
    %p84 = por %p82, %p83
    %p86 = scmp.ne.s32.totalorder %s71, %s85
    %p87 = scmp.eq.s32.totalorder %s19, 0
    %p88 = por %p86, %p87
    %s90 = sadd.s32 %s89, 1
    %p93 = scmp.eq.s32.totalorder %s13, 1
    %p94 = scmp.ne.s32.totalorder %s89, %s91
    %p95 = scmp.eq.s32.totalorder %s13, 0
    %p96 = por %p94, %p95
    %p97 = scmp.ne.s32.totalorder %s89, %s91
    %p98 = scmp.eq.s32.totalorder %s18, 1
    %p99 = por %p97, %p98
    %p100 = scmp.ne.s32.totalorder %s91, %s92
    %p101 = scmp.eq.s32.totalorder %s18, 0
    %p102 = por %p100, %p101
    %p103 = scmp.ne.s32.totalorder %s91, %s92
    %p104 = scmp.eq.s32.totalorder %s19, 1
    %p105 = por %p103, %p104
    %p107 = scmp.ne.s32.totalorder %s92, %s106
    %p108 = scmp.eq.s32.totalorder %s19, 0
    %p109 = por %p107, %p108
    %s111 = sadd.s32 %s110, 1
    %p114 = scmp.eq.s32.totalorder %s13, 1
    %p115 = scmp.ne.s32.totalorder %s110, %s112
    %p116 = scmp.eq.s32.totalorder %s13, 0
    %p117 = por %p115, %p116
    %p118 = scmp.ne.s32.totalorder %s110, %s112
    %p119 = scmp.eq.s32.totalorder %s18, 1
    %p120 = por %p118, %p119
    %p121 = scmp.ne.s32.totalorder %s112, %s113
    %p122 = scmp.eq.s32.totalorder %s18, 0
    %p123 = por %p121, %p122
    %p124 = scmp.ne.s32.totalorder %s112, %s113
    %p125 = scmp.eq.s32.totalorder %s19, 1
    %p126 = por %p124, %p125
    %p128 = scmp.ne.s32.totalorder %s113, %s127
    %p129 = scmp.eq.s32.totalorder %s19, 0
    %p130 = por %p128, %p129
    %s132 = sadd.s32 %s131, 1
    %p135 = scmp.eq.s32.totalorder %s13, 1
    %p136 = scmp.ne.s32.totalorder %s131, %s133
    %p137 = scmp.eq.s32.totalorder %s13, 0
    %p138 = por %p136, %p137
    %p139 = scmp.ne.s32.totalorder %s131, %s133
    %p140 = scmp.eq.s32.totalorder %s18, 1
    %p141 = por %p139, %p140
    %p142 = scmp.ne.s32.totalorder %s133, %s134
    %p143 = scmp.eq.s32.totalorder %s18, 0
    %p144 = por %p142, %p143
    %p145 = scmp.ne.s32.totalorder %s133, %s134
    %p146 = scmp.eq.s32.totalorder %s19, 1
    %p147 = por %p145, %p146
    %p149 = scmp.ne.s32.totalorder %s134, %s148
    %p150 = scmp.eq.s32.totalorder %s19, 0
    %p151 = por %p149, %p150
    %s153 = sadd.s32 %s152, 1
    %p156 = scmp.eq.s32.totalorder %s13, 1
    %p157 = scmp.ne.s32.totalorder %s152, %s154
    %p158 = scmp.eq.s32.totalorder %s13, 0
    %p159 = por %p157, %p158
    %p160 = scmp.ne.s32.totalorder %s152, %s154
    %p161 = scmp.eq.s32.totalorder %s18, 1
    %p162 = por %p160, %p161
    %p163 = scmp.ne.s32.totalorder %s154, %s155
    %p164 = scmp.eq.s32.totalorder %s18, 0
    %p165 = por %p163, %p164
    %p166 = scmp.ne.s32.totalorder %s154, %s155
    %p167 = scmp.eq.s32.totalorder %s19, 1
    %p168 = por %p166, %p167
    %p170 = scmp.ne.s32.totalorder %s155, %s169
    %p171 = scmp.eq.s32.totalorder %s19, 0
    %p172 = por %p170, %p171
    %s173 = ssub.s32 %s13, %s20
    %p174 = scmp.eq.s32.totalorder %s173, 0
    %s176 = sadd.s32 %s175, 1
    %s177 = scalar_select %p174, %s175, %s176
    %p180 = pneg %p174
    %p181 = scmp.eq.s32.totalorder %s13, 1
    %p182 = por %p180, %p181
    %p183 = scmp.ne.s32.totalorder %s175, %s178
    %p184 = scmp.eq.s32.totalorder %s13, 0
    %p185 = por %p183, %p184
    %p186 = scmp.ne.s32.totalorder %s175, %s178
    %p187 = scmp.eq.s32.totalorder %s18, 1
    %p188 = por %p186, %p187
    %p189 = scmp.ne.s32.totalorder %s178, %s179
    %p190 = scmp.eq.s32.totalorder %s18, 0
    %p191 = por %p189, %p190
    %p192 = scmp.ne.s32.totalorder %s178, %s179
    %p193 = scmp.eq.s32.totalorder %s19, 1
    %p194 = por %p192, %p193
    %p196 = scmp.ne.s32.totalorder %s179, %s195
    %p197 = scmp.eq.s32.totalorder %s19, 0
    %p198 = por %p196, %p197
    %p199 = scmp.le.s32.totalorder 1, %s13
    %p200 = scmp.lt.s32.totalorder %s13, 3
    %p201 = pnand %p199, %p200
    %p202 = pneg %p201
    // Predicated region
    $region9: #{interaction_forward.13} parent=5 // pred_check
      _
    $region10: #{interaction_forward.13} parent=5 // pred_check_branch
      %204 = sbr.rel (%p201) target = $region12
    $region11: #{interaction_forward.13} parent=5 // pred_region
      %s205 = ssub.s32 %s13, 1
      // Predicated region
      $region13: #{interaction_forward.13} parent=11 // pred_check
        %p206 = pneg %p60
      $region14: #{interaction_forward.13} parent=11 // pred_check_branch
        %208 = sbr.rel (%p206) target = $region16
      $region15: #{interaction_forward.13} parent=11 // pred_region
        _
      $region16: #{interaction_forward.13} parent=11 // pred_fallthru
        _
      // Predicated region
      $region17: #{interaction_forward.13} parent=11 // pred_check
        %p209 = pneg %p81
      $region18: #{interaction_forward.13} parent=11 // pred_check_branch
        %211 = sbr.rel (%p209) target = $region20
      $region19: #{interaction_forward.13} parent=11 // pred_region
        _
      $region20: #{interaction_forward.13} parent=11 // pred_fallthru
        _
      // Predicated region
      $region21: #{interaction_forward.13} parent=11 // pred_check
        %p212 = pneg %p102
      $region22: #{interaction_forward.13} parent=11 // pred_check_branch
        %214 = sbr.rel (%p212) target = $region24
      $region23: #{interaction_forward.13} parent=11 // pred_region
        _
      $region24: #{interaction_forward.13} parent=11 // pred_fallthru
        _
      // Predicated region
      $region25: #{interaction_forward.13} parent=11 // pred_check
        %p215 = pneg %p123
      $region26: #{interaction_forward.13} parent=11 // pred_check_branch
        %217 = sbr.rel (%p215) target = $region28
      $region27: #{interaction_forward.13} parent=11 // pred_region
        _
      $region28: #{interaction_forward.13} parent=11 // pred_fallthru
        _
      // Predicated region
      $region29: #{interaction_forward.13} parent=11 // pred_check
        %p218 = pneg %p144
      $region30: #{interaction_forward.13} parent=11 // pred_check_branch
        %220 = sbr.rel (%p218) target = $region32
      $region31: #{interaction_forward.13} parent=11 // pred_region
        _
      $region32: #{interaction_forward.13} parent=11 // pred_fallthru
        _
      // Predicated region
      $region33: #{interaction_forward.13} parent=11 // pred_check
        %p221 = pneg %p165
      $region34: #{interaction_forward.13} parent=11 // pred_check_branch
        %223 = sbr.rel (%p221) target = $region36
      $region35: #{interaction_forward.13} parent=11 // pred_region
        _
      $region36: #{interaction_forward.13} parent=11 // pred_fallthru
        _
    $region12: #{interaction_forward.13} parent=5 // pred_fallthru
      _
    %p224 = scmp.lt.s32.totalorder %s13, 2
    // Predicated region
    $region37: #{interaction_forward.13} parent=5 // pred_check
      %p225 = pneg %p224
    $region38: #{interaction_forward.13} parent=5 // pred_check_branch
      %227 = sbr.rel (%p225) target = $region40
    $region39: #{interaction_forward.13} parent=5 // pred_region
      // Predicated region
      $region41: #{interaction_forward.13} parent=39 // pred_check
        %p228 = pneg %p33
      $region42: #{interaction_forward.13} parent=39 // pred_check_branch
        %230 = sbr.rel (%p228) target = $region44
      $region43: #{interaction_forward.13} parent=39 // pred_region
        %p231 = scmp.lt.s32.totalorder %s13, 1
        %s232 = scalar_select %p231, %s13, 1
        %s233 = smul.addr %s232, 2
        %s234 = smul.addr %s233, 8
        %s235 = scalar_lea.vmem %s0, %s234
      $region44: #{interaction_forward.13} parent=39 // pred_fallthru
        _
    $region40: #{interaction_forward.13} parent=5 // pred_fallthru
      _
    %p236 = scmp.le.s32.totalorder 1, %s13
    %p237 = scmp.lt.s32.totalorder %s13, 3
    %p238 = pnand %p236, %p237
    %p239 = pneg %p238
    // Predicated region
    $region45: #{interaction_forward.13} parent=5 // pred_check
      _
    $region46: #{interaction_forward.13} parent=5 // pred_check_branch
      %241 = sbr.rel (%p238) target = $region48
    $region47: #{interaction_forward.13} parent=5 // pred_region
      %s242 = ssub.s32 %s13, 1
      %p243 = scmp.lt.s32.totalorder %s18, 1
      %s244 = scalar_select %p243, %s18, 1
      %s245 = smul.addr %s244, 2
      %s246 = smul.addr %s245, 8
      %s247 = scalar_lea.vmem %s0, %s246
      %p248 = pneg %p39
      %p249 = pneg %p36
      %p250 = pneg %p60
      %p251 = pneg %p57
      %p252 = pneg %p81
      %p253 = pneg %p78
      %p254 = pneg %p102
      %p255 = pneg %p99
      %p256 = pneg %p123
      %p257 = pneg %p120
      %p258 = pneg %p144
      %p259 = pneg %p141
      %p260 = pneg %p165
      %p261 = pneg %p162
      %p262 = pneg %p191
      %p263 = pneg %p188
      %p264 = scmp.lt.s32.totalorder %s18, 1
      %s265 = scalar_select %p264, %s18, 1
      %s266 = smul.addr %s265, 2
      %s267 = smul.addr %s266, 8
      %s268 = scalar_lea.vmem %s7, %s267
      %p269 = scmp.lt.s32.totalorder %s18, 1
      %s270 = scalar_select %p269, %s18, 1
      %s271 = smul.addr %s270, 2
      %s272 = smul.addr %s271, 8
      %s273 = scalar_lea.vmem %s0, %s272
      %p274 = scmp.lt.s32.totalorder %s18, 1
      %s275 = scalar_select %p274, %s18, 1
      %s276 = smul.addr %s275, 2
      %s277 = smul.addr %s276, 8
      %s278 = scalar_lea.vmem %s7, %s277
      %v279 = vld [vmem:[%s273] sm:$0xff]
      %v280 = vld [vmem:[%s273 + $0x8] sm:$0xff]
      %v281 = vld [vmem:[%s1] sm:$0xff]
      %v282 = vld [vmem:[%s1 + $0x8] sm:$0xff]
      %v283 = vld [vmem:[%s1 + $0x10] sm:$0xff]
      %v284 = vld [vmem:[%s1 + $0x18] sm:$0xff]
      %v285 = vld [vmem:[%s1 + $0x20] sm:$0xff]
      %v286 = vld [vmem:[%s1 + $0x28] sm:$0xff]
      %v287 = vld [vmem:[%s1 + $0x30] sm:$0xff]
      %v288 = vld [vmem:[%s1 + $0x38] sm:$0xff]
      %v289 = vld [vmem:[%s1 + $0x40] sm:$0xff]
      %v290 = vld [vmem:[%s1 + $0x48] sm:$0xff]
      %v291 = vld [vmem:[%s1 + $0x50] sm:$0xff]
      %v292 = vld [vmem:[%s1 + $0x58] sm:$0xff]
      %v293 = vld [vmem:[%s1 + $0x60] sm:$0xff]
      %v294 = vld [vmem:[%s1 + $0x68] sm:$0xff]
      %v295 = vld [vmem:[%s1 + $0x70] sm:$0xff]
      %v296 = vld [vmem:[%s1 + $0x78] sm:$0xff]
      %v297 = vld [vmem:[%s1 + $0x80] sm:$0xff]
      %v298 = vld [vmem:[%s1 + $0x88] sm:$0xff]
      %v299 = vld [vmem:[%s1 + $0x90] sm:$0xff]
      %v300 = vld [vmem:[%s1 + $0x98] sm:$0xff]
      %v301 = vld [vmem:[%s1 + $0xa0] sm:$0xff]
      %v302 = vld [vmem:[%s1 + $0xa8] sm:$0xff]
      %v303 = vld [vmem:[%s1 + $0xb0] sm:$0xff]
      %v304 = vld [vmem:[%s1 + $0xb8] sm:$0xff]
      %v305 = vld [vmem:[%s1 + $0xc0] sm:$0xff]
      %v306 = vld [vmem:[%s1 + $0xc8] sm:$0xff]
      %v307 = vld [vmem:[%s1 + $0xd0] sm:$0xff]
      %v308 = vld [vmem:[%s1 + $0xd8] sm:$0xff]
      %v309 = vld [vmem:[%s1 + $0xe0] sm:$0xff]
      %v310 = vld [vmem:[%s1 + $0xe8] sm:$0xff]
      %v311 = vld [vmem:[%s1 + $0xf0] sm:$0xff]
      %v312 = vld [vmem:[%s1 + $0xf8] sm:$0xff]
      %v313 = vld [vmem:[%s1 + $0x100] sm:$0xff]
      %v314 = vld [vmem:[%s1 + $0x108] sm:$0xff]
      %v315 = vld [vmem:[%s1 + $0x110] sm:$0xff]
      %v316 = vld [vmem:[%s1 + $0x118] sm:$0xff]
      %v317 = vld [vmem:[%s1 + $0x120] sm:$0xff]
      %v318 = vld [vmem:[%s1 + $0x128] sm:$0xff]
      %v319 = vld [vmem:[%s1 + $0x130] sm:$0xff]
      %v320 = vld [vmem:[%s1 + $0x138] sm:$0xff]
      %v321 = vld [vmem:[%s1 + $0x140] sm:$0xff]
      %v322 = vld [vmem:[%s1 + $0x148] sm:$0xff]
      %v323 = vld [vmem:[%s1 + $0x150] sm:$0xff]
      %v324 = vld [vmem:[%s1 + $0x158] sm:$0xff]
      %v325 = vld [vmem:[%s1 + $0x160] sm:$0xff]
      %v326 = vld [vmem:[%s1 + $0x168] sm:$0xff]
      %v327 = vld [vmem:[%s1 + $0x170] sm:$0xff]
      %v328 = vld [vmem:[%s1 + $0x178] sm:$0xff]
      %v329 = vld [vmem:[%s2] sm:$0x7]
      %v331 = vlaneseq
      %v332 = vshrl.u32 %v331, 7
      %v333 = vsub.s32 0, %v332
      %v334 = vrot.slane %v329, %v333
      %v335 = vlaneseq
      %v336 = vshrl.u32 %v335, 7
      %v337 = vsub.s32 1, %v336
      %v338 = vrot.slane %v329, %v337
      %v339 = vlaneseq
      %v340 = vshrl.u32 %v339, 7
      %v341 = vsub.s32 2, %v340
      %v342 = vrot.slane %v329, %v341
      %346 = vmatprep.subr.mxu0 %v282
      %347 = vmatpush1.msra.mxu0 %v281
      %348 = vmatprep.subr.mxu0 %v285
      %349 = vmatpush1.msra.mxu0 %v284
      %350 = vmatprep.subr.mxu0 %v288
      %351 = vmatpush1.msra.mxu0 %v287
      %352 = vmatprep.subr.mxu0 %v291
      %353 = vmatpush1.msra.mxu0 %v290
      %354 = vmatprep.subr.mxu0 %v294
      %355 = vmatpush1.msra.mxu0 %v293
      %356 = vmatprep.subr.mxu0 %v297
      %357 = vmatpush1.msra.mxu0 %v296
      %358 = vmatprep.subr.mxu0 %v300
      %359 = vmatpush1.msra.mxu0 %v299
      %360 = vmatprep.subr.mxu0 %v303
      %361 = vmatpush1.msra.mxu0 %v302
      %362 = vmatprep.subr.mxu0 %v306
      %363 = vmatpush1.msra.mxu0 %v305
      %364 = vmatprep.subr.mxu0 %v309
      %365 = vmatpush1.msra.mxu0 %v308
      %366 = vmatprep.subr.mxu0 %v312
      %367 = vmatpush1.msra.mxu0 %v311
      %368 = vmatprep.subr.mxu0 %v315
      %369 = vmatpush1.msra.mxu0 %v314
      %370 = vmatprep.subr.mxu0 %v318
      %371 = vmatpush1.msra.mxu0 %v317
      %372 = vmatprep.subr.mxu0 %v321
      %373 = vmatpush1.msra.mxu0 %v320
      %374 = vmatprep.subr.mxu0 %v324
      %375 = vmatpush1.msra.mxu0 %v323
      %376 = vmatprep.subr.mxu0 %v327
      %377 = vmatpush1.msra.mxu0 %v326
      %378 = vmatprep.subr.mxu0 0.0
      %379 = vmatpush1.msra.mxu0 0.0
      %380 = vmatprep.subr.mxu0 0.0
      %381 = vmatpush1.msra.mxu0 0.0
      %382 = vmatprep.subr.mxu0 0.0
      %383 = vmatpush1.msra.mxu0 0.0
      %384 = vmatprep.subr.mxu0 0.0
      %385 = vmatpush1.msra.mxu0 0.0
      %386 = vmatprep.subr.mxu0 0.0
      %387 = vmatpush1.msra.mxu0 0.0
      %388 = vmatprep.subr.mxu0 0.0
      %389 = vmatpush1.msra.mxu0 0.0
      %390 = vmatprep.subr.mxu0 0.0
      %391 = vmatpush1.msra.mxu0 0.0
      %392 = vmatprep.subr.mxu0 0.0
      %393 = vmatpush1.msra.mxu0 0.0
      %394 = vmatprep.subr.mxu0 0.0
      %395 = vmatpush1.msra.mxu0 0.0
      %396 = vmatprep.subr.mxu0 0.0
      %397 = vmatpush1.msra.mxu0 0.0
      %398 = vmatprep.subr.mxu0 0.0
      %399 = vmatpush1.msra.mxu0 0.0
      %400 = vmatprep.subr.mxu0 0.0
      %401 = vmatpush1.msra.mxu0 0.0
      %402 = vmatprep.subr.mxu0 0.0
      %403 = vmatpush1.msra.mxu0 0.0
      %404 = vmatprep.subr.mxu0 0.0
      %405 = vmatpush1.msra.mxu0 0.0
      %406 = vmatprep.subr.mxu0 0.0
      %407 = vmatpush1.msra.mxu0 0.0
      %408 = vmatprep.subr.mxu0 0.0
      %409 = vmatpush1.msra.mxu0 0.0
      %410 = vmatprep.mubr.f32.mxu0 0.0
      %411 = vmatmul.mubr.f32.gmra.mrb[0].mxu0 %v279
      %v412 = vpop.f32.mrb[0].mxu0
      %v413 = vadd.f32 %v334, %v412
      %v414 = vpop.f32.mrb[0].mxu0
      %v415 = vadd.f32 %v338, %v414
      %416 = vmatprep.mubr.f32.mxu0 0.0
      %417 = vmatmul.mubr.f32.gmra.mrb[0].mxu0 %v280
      %v418 = vpop.f32.mrb[0].mxu0
      %v419 = vadd.f32 %v334, %v418
      %v420 = vpop.f32.mrb[0].mxu0
      %v421 = vadd.f32 %v338, %v420
      %422 = vdwg.mxu0
      %423 = vmatprep.subr.mxu0 0.0
      %424 = vmatpush1.msra.mxu0 %v283
      %425 = vmatprep.subr.mxu0 0.0
      %426 = vmatpush1.msra.mxu0 %v286
      %427 = vmatprep.subr.mxu0 0.0
      %428 = vmatpush1.msra.mxu0 %v289
      %429 = vmatprep.subr.mxu0 0.0
      %430 = vmatpush1.msra.mxu0 %v292
      %431 = vmatprep.subr.mxu0 0.0
      %432 = vmatpush1.msra.mxu0 %v295
      %433 = vmatprep.subr.mxu0 0.0
      %434 = vmatpush1.msra.mxu0 %v298
      %435 = vmatprep.subr.mxu0 0.0
      %436 = vmatpush1.msra.mxu0 %v301
      %437 = vmatprep.subr.mxu0 0.0
      %438 = vmatpush1.msra.mxu0 %v304
      %439 = vmatprep.subr.mxu0 0.0
      %440 = vmatpush1.msra.mxu0 %v307
      %441 = vmatprep.subr.mxu0 0.0
      %442 = vmatpush1.msra.mxu0 %v310
      %443 = vmatprep.subr.mxu0 0.0
      %444 = vmatpush1.msra.mxu0 %v313
      %445 = vmatprep.subr.mxu0 0.0
      %446 = vmatpush1.msra.mxu0 %v316
      %447 = vmatprep.subr.mxu0 0.0
      %448 = vmatpush1.msra.mxu0 %v319
      %449 = vmatprep.subr.mxu0 0.0
      %450 = vmatpush1.msra.mxu0 %v322
      %451 = vmatprep.subr.mxu0 0.0
      %452 = vmatpush1.msra.mxu0 %v325
      %453 = vmatprep.subr.mxu0 0.0
      %454 = vmatpush1.msra.mxu0 %v328
      %455 = vmatprep.subr.mxu0 0.0
      %456 = vmatpush1.msra.mxu0 0.0
      %457 = vmatprep.subr.mxu0 0.0
      %458 = vmatpush1.msra.mxu0 0.0
      %459 = vmatprep.subr.mxu0 0.0
      %460 = vmatpush1.msra.mxu0 0.0
      %461 = vmatprep.subr.mxu0 0.0
      %462 = vmatpush1.msra.mxu0 0.0
      %463 = vmatprep.subr.mxu0 0.0
      %464 = vmatpush1.msra.mxu0 0.0
      %465 = vmatprep.subr.mxu0 0.0
      %466 = vmatpush1.msra.mxu0 0.0
      %467 = vmatprep.subr.mxu0 0.0
      %468 = vmatpush1.msra.mxu0 0.0
      %469 = vmatprep.subr.mxu0 0.0
      %470 = vmatpush1.msra.mxu0 0.0
      %471 = vmatprep.subr.mxu0 0.0
      %472 = vmatpush1.msra.mxu0 0.0
      %473 = vmatprep.subr.mxu0 0.0
      %474 = vmatpush1.msra.mxu0 0.0
      %475 = vmatprep.subr.mxu0 0.0
      %476 = vmatpush1.msra.mxu0 0.0
      %477 = vmatprep.subr.mxu0 0.0
      %478 = vmatpush1.msra.mxu0 0.0
      %479 = vmatprep.subr.mxu0 0.0
      %480 = vmatpush1.msra.mxu0 0.0
      %481 = vmatprep.subr.mxu0 0.0
      %482 = vmatpush1.msra.mxu0 0.0
      %483 = vmatprep.subr.mxu0 0.0
      %484 = vmatpush1.msra.mxu0 0.0
      %485 = vmatprep.subr.mxu0 0.0
      %486 = vmatpush1.msra.mxu0 0.0
      %487 = vmatprep.mubr.f32.mxu0 0.0
      %488 = vmatmul.mubr.f32.gmra.mrb[0].mxu0 %v279
      %v489 = vpop.f32.mrb[0].mxu0
      %v490 = vadd.f32 %v342, %v489
      %v491 = vpop.f32.mrb[0].mxu0
      %492 = vmatprep.mubr.f32.mxu0 0.0
      %493 = vmatmul.mubr.f32.gmra.mrb[0].mxu0 %v280
      %v494 = vpop.f32.mrb[0].mxu0
      %v495 = vadd.f32 %v342, %v494
      %v496 = vpop.f32.mrb[0].mxu0
      %497 = vdwg.mxu0
      %vm498 = vcmask 130048
      %v500 = vsel %vm498, %v413, 0
      %v503 = vsel %vm498, %v419, 0
      %v506 = vsel %vm498, %v415, 0
      %v509 = vsel %vm498, %v421, 0
      %511 = vmatprep.subr.mxu0 0.0
      %512 = vmatpush1.xpose.msra.mxu0 %v506
      %513 = vmatprep.subr.mxu0 0.0
      %514 = vmatpush1.xpose.msra.mxu0 %v509
      %515 = vmatprep.subr.mxu0 0.0
      %516 = vmatpush1.xpose.msra.mxu0 0.0
      %517 = vmatprep.subr.mxu0 0.0
      %518 = vmatpush1.xpose.msra.mxu0 0.0
      %519 = vmatprep.subr.mxu0 0.0
      %520 = vmatpush1.xpose.msra.mxu0 0.0
      %521 = vmatprep.subr.mxu0 0.0
      %522 = vmatpush1.xpose.msra.mxu0 0.0
      %523 = vmatprep.subr.mxu0 0.0
      %524 = vmatpush1.xpose.msra.mxu0 0.0
      %525 = vmatprep.subr.mxu0 0.0
      %526 = vmatpush1.xpose.msra.mxu0 0.0
      %527 = vmatprep.subr.mxu0 0.0
      %528 = vmatpush1.xpose.msra.mxu0 0.0
      %529 = vmatprep.subr.mxu0 0.0
      %530 = vmatpush1.xpose.msra.mxu0 0.0
      %531 = vmatprep.subr.mxu0 0.0
      %532 = vmatpush1.xpose.msra.mxu0 0.0
      %533 = vmatprep.subr.mxu0 0.0
      %534 = vmatpush1.xpose.msra.mxu0 0.0
      %535 = vmatprep.subr.mxu0 0.0
      %536 = vmatpush1.xpose.msra.mxu0 0.0
      %537 = vmatprep.subr.mxu0 0.0
      %538 = vmatpush1.xpose.msra.mxu0 0.0
      %539 = vmatprep.subr.mxu0 0.0
      %540 = vmatpush1.xpose.msra.mxu0 0.0
      %541 = vmatprep.subr.mxu0 0.0
      %542 = vmatpush1.xpose.msra.mxu0 0.0
      %543 = vmatprep.subr.mxu0 0.0
      %544 = vmatpush1.xpose.msra.mxu0 0.0
      %545 = vmatprep.subr.mxu0 0.0
      %546 = vmatpush1.xpose.msra.mxu0 0.0
      %547 = vmatprep.subr.mxu0 0.0
      %548 = vmatpush1.xpose.msra.mxu0 0.0
      %549 = vmatprep.subr.mxu0 0.0
      %550 = vmatpush1.xpose.msra.mxu0 0.0
      %551 = vmatprep.subr.mxu0 0.0
      %552 = vmatpush1.xpose.msra.mxu0 0.0
      %553 = vmatprep.subr.mxu0 0.0
      %554 = vmatpush1.xpose.msra.mxu0 0.0
      %555 = vmatprep.subr.mxu0 0.0
      %556 = vmatpush1.xpose.msra.mxu0 0.0
      %557 = vmatprep.subr.mxu0 0.0
      %558 = vmatpush1.xpose.msra.mxu0 0.0
      %559 = vmatprep.subr.mxu0 0.0
      %560 = vmatpush1.xpose.msra.mxu0 0.0
      %561 = vmatprep.subr.mxu0 0.0
      %562 = vmatpush1.xpose.msra.mxu0 0.0
      %563 = vmatprep.subr.mxu0 0.0
      %564 = vmatpush1.xpose.msra.mxu0 0.0
      %565 = vmatprep.subr.mxu0 0.0
      %566 = vmatpush1.xpose.msra.mxu0 0.0
      %567 = vmatprep.subr.mxu0 0.0
      %568 = vmatpush1.xpose.msra.mxu0 0.0
      %569 = vmatprep.subr.mxu0 0.0
      %570 = vmatpush1.xpose.msra.mxu0 0.0
      %571 = vmatprep.subr.mxu0 0.0
      %572 = vmatpush1.xpose.msra.mxu0 0.0
      %573 = vmatprep.subr.mxu0 0.0
      %574 = vmatpush1.xpose.msra.mxu0 0.0
      %575 = vmatprep.mubr.f32.mxu0 0.0
      %576 = vmatmul.mubr.f32.gmra.mrb[0].mxu0 %v500
      %v577 = vpop.f32.mrb[0].mxu0
      %v578 = vadd.f32 0.0, %v577
      %v579 = vpop.f32.mrb[0].mxu0
      %580 = vmatprep.mubr.f32.mxu0 0.0
      %581 = vmatmul.mubr.f32.gmra.mrb[0].mxu0 %v503
      %v582 = vpop.f32.mrb[0].mxu0
      %v583 = vadd.f32 0.0, %v582
      %v584 = vpop.f32.mrb[0].mxu0
      %585 = vdwg.mxu0
      %v586 = vmul.f32 %v578, 0.25
      %v587 = vmul.f32 %v583, 0.25
      %v588 = vsel %vm498, %v586, -inf
      %589 = vmax.xlane.f32.xlu0 %v588
      %v590 = vpop.xlane.xlu0 %589
      %v591 = vsel %vm498, %v587, -inf
      %592 = vmax.xlane.f32.xlu0 %v591
      %v593 = vpop.xlane.xlu0 %592
      %v594 = vsub.f32 %v586, %v590
      %v595 = vsub.f32 %v587, %v593
      %v596 = vmul.f32 %v594, 1.442695
      %v597 = vpow.pop %v596
      %v598 = vmul.f32 %v595, 1.442695
      %v599 = vpow.pop %v598
      %v600 = vsel %vm498, %v597, 0.0
      %601 = vadd.xlane.f32.xlu0 %v600
      %v602 = vpop.xlane.xlu0 %601
      %v603 = vsel %vm498, %v599, 0.0
      %604 = vadd.xlane.f32.xlu0 %v603
      %v605 = vpop.xlane.xlu0 %604
      %v606 = vrcp.pop %v602
      %v607 = vrcp.pop %v605
      %v608 = vmul.f32 %v597, %v606
      %v609 = vmul.f32 %v599, %v607
      %v611 = vsel %vm498, %v608, 0
      %v614 = vsel %vm498, %v609, 0
      %616 = vmatprep.subr.mxu0 0.0
      %617 = vmatpush1.msra.mxu0 %v490
      %618 = vmatprep.subr.mxu0 0.0
      %619 = vmatpush1.msra.mxu0 %v495
      %620 = vmatprep.subr.mxu0 0.0
      %621 = vmatpush1.msra.mxu0 0.0
      %622 = vmatprep.subr.mxu0 0.0
      %623 = vmatpush1.msra.mxu0 0.0
      %624 = vmatprep.subr.mxu0 0.0
      %625 = vmatpush1.msra.mxu0 0.0
      %626 = vmatprep.subr.mxu0 0.0
      %627 = vmatpush1.msra.mxu0 0.0
      %628 = vmatprep.subr.mxu0 0.0
      %629 = vmatpush1.msra.mxu0 0.0
      %630 = vmatprep.subr.mxu0 0.0
      %631 = vmatpush1.msra.mxu0 0.0
      %632 = vmatprep.subr.mxu0 0.0
      %633 = vmatpush1.msra.mxu0 0.0
      %634 = vmatprep.subr.mxu0 0.0
      %635 = vmatpush1.msra.mxu0 0.0
      %636 = vmatprep.subr.mxu0 0.0
      %637 = vmatpush1.msra.mxu0 0.0
      %638 = vmatprep.subr.mxu0 0.0
      %639 = vmatpush1.msra.mxu0 0.0
      %640 = vmatprep.subr.mxu0 0.0
      %641 = vmatpush1.msra.mxu0 0.0
      %642 = vmatprep.subr.mxu0 0.0
      %643 = vmatpush1.msra.mxu0 0.0
      %644 = vmatprep.subr.mxu0 0.0
      %645 = vmatpush1.msra.mxu0 0.0
      %646 = vmatprep.subr.mxu0 0.0
      %647 = vmatpush1.msra.mxu0 0.0
      %648 = vmatprep.subr.mxu0 0.0
      %649 = vmatpush1.msra.mxu0 0.0
      %650 = vmatprep.subr.mxu0 0.0
      %651 = vmatpush1.msra.mxu0 0.0
      %652 = vmatprep.subr.mxu0 0.0
      %653 = vmatpush1.msra.mxu0 0.0
      %654 = vmatprep.subr.mxu0 0.0
      %655 = vmatpush1.msra.mxu0 0.0
      %656 = vmatprep.subr.mxu0 0.0
      %657 = vmatpush1.msra.mxu0 0.0
      %658 = vmatprep.subr.mxu0 0.0
      %659 = vmatpush1.msra.mxu0 0.0
      %660 = vmatprep.subr.mxu0 0.0
      %661 = vmatpush1.msra.mxu0 0.0
      %662 = vmatprep.subr.mxu0 0.0
      %663 = vmatpush1.msra.mxu0 0.0
      %664 = vmatprep.subr.mxu0 0.0
      %665 = vmatpush1.msra.mxu0 0.0
      %666 = vmatprep.subr.mxu0 0.0
      %667 = vmatpush1.msra.mxu0 0.0
      %668 = vmatprep.subr.mxu0 0.0
      %669 = vmatpush1.msra.mxu0 0.0
      %670 = vmatprep.subr.mxu0 0.0
      %671 = vmatpush1.msra.mxu0 0.0
      %672 = vmatprep.subr.mxu0 0.0
      %673 = vmatpush1.msra.mxu0 0.0
      %674 = vmatprep.subr.mxu0 0.0
      %675 = vmatpush1.msra.mxu0 0.0
      %676 = vmatprep.subr.mxu0 0.0
      %677 = vmatpush1.msra.mxu0 0.0
      %678 = vmatprep.subr.mxu0 0.0
      %679 = vmatpush1.msra.mxu0 0.0
      %680 = vmatprep.mubr.f32.mxu0 0.0
      %681 = vmatmul.mubr.f32.gmra.mrb[0].mxu0 %v611
      %v682 = vpop.f32.mrb[0].mxu0
      %v683 = vadd.f32 0.0, %v682
      %v684 = vpop.f32.mrb[0].mxu0
      %685 = vmatprep.mubr.f32.mxu0 0.0
      %686 = vmatmul.mubr.f32.gmra.mrb[0].mxu0 %v614
      %v687 = vpop.f32.mrb[0].mxu0
      %v688 = vadd.f32 0.0, %v687
      %v689 = vpop.f32.mrb[0].mxu0
      %690 = vdwg.mxu0
      %691 = vrot.lane.b32.xlu0 %v413, 112
      %v692 = vpop.permute.xlu0 %691
      %693 = vrot.lane.b32.xlu0 %v419, 112
      %v694 = vpop.permute.xlu0 %693
      %695 = vrot.lane.b32.xlu0 %v415, 112
      %v696 = vpop.permute.xlu0 %695
      %697 = vrot.lane.b32.xlu0 %v421, 112
      %v698 = vpop.permute.xlu0 %697
      %v699 = vsel %vm498, %v692, 0
      %v701 = vsel %vm498, %v694, 0
      %v703 = vsel %vm498, %v696, 0
      %v705 = vsel %vm498, %v698, 0
      %707 = vmatprep.subr.mxu0 0.0
      %708 = vmatpush1.xpose.msra.mxu0 %v703
      %709 = vmatprep.subr.mxu0 0.0
      %710 = vmatpush1.xpose.msra.mxu0 %v705
      %711 = vmatprep.subr.mxu0 0.0
      %712 = vmatpush1.xpose.msra.mxu0 0.0
      %713 = vmatprep.subr.mxu0 0.0
      %714 = vmatpush1.xpose.msra.mxu0 0.0
      %715 = vmatprep.subr.mxu0 0.0
      %716 = vmatpush1.xpose.msra.mxu0 0.0
      %717 = vmatprep.subr.mxu0 0.0
      %718 = vmatpush1.xpose.msra.mxu0 0.0
      %719 = vmatprep.subr.mxu0 0.0
      %720 = vmatpush1.xpose.msra.mxu0 0.0
      %721 = vmatprep.subr.mxu0 0.0
      %722 = vmatpush1.xpose.msra.mxu0 0.0
      %723 = vmatprep.subr.mxu0 0.0
      %724 = vmatpush1.xpose.msra.mxu0 0.0
      %725 = vmatprep.subr.mxu0 0.0
      %726 = vmatpush1.xpose.msra.mxu0 0.0
      %727 = vmatprep.subr.mxu0 0.0
      %728 = vmatpush1.xpose.msra.mxu0 0.0
      %729 = vmatprep.subr.mxu0 0.0
      %730 = vmatpush1.xpose.msra.mxu0 0.0
      %731 = vmatprep.subr.mxu0 0.0
      %732 = vmatpush1.xpose.msra.mxu0 0.0
      %733 = vmatprep.subr.mxu0 0.0
      %734 = vmatpush1.xpose.msra.mxu0 0.0
      %735 = vmatprep.subr.mxu0 0.0
      %736 = vmatpush1.xpose.msra.mxu0 0.0
      %737 = vmatprep.subr.mxu0 0.0
      %738 = vmatpush1.xpose.msra.mxu0 0.0
      %739 = vmatprep.subr.mxu0 0.0
      %740 = vmatpush1.xpose.msra.mxu0 0.0
      %741 = vmatprep.subr.mxu0 0.0
      %742 = vmatpush1.xpose.msra.mxu0 0.0
      %743 = vmatprep.subr.mxu0 0.0
      %744 = vmatpush1.xpose.msra.mxu0 0.0
      %745 = vmatprep.subr.mxu0 0.0
      %746 = vmatpush1.xpose.msra.mxu0 0.0
      %747 = vmatprep.subr.mxu0 0.0
      %748 = vmatpush1.xpose.msra.mxu0 0.0
      %749 = vmatprep.subr.mxu0 0.0
      %750 = vmatpush1.xpose.msra.mxu0 0.0
      %751 = vmatprep.subr.mxu0 0.0
      %752 = vmatpush1.xpose.msra.mxu0 0.0
      %753 = vmatprep.subr.mxu0 0.0
      %754 = vmatpush1.xpose.msra.mxu0 0.0
      %755 = vmatprep.subr.mxu0 0.0
      %756 = vmatpush1.xpose.msra.mxu0 0.0
      %757 = vmatprep.subr.mxu0 0.0
      %758 = vmatpush1.xpose.msra.mxu0 0.0
      %759 = vmatprep.subr.mxu0 0.0
      %760 = vmatpush1.xpose.msra.mxu0 0.0
      %761 = vmatprep.subr.mxu0 0.0
      %762 = vmatpush1.xpose.msra.mxu0 0.0
      %763 = vmatprep.subr.mxu0 0.0
      %764 = vmatpush1.xpose.msra.mxu0 0.0
      %765 = vmatprep.subr.mxu0 0.0
      %766 = vmatpush1.xpose.msra.mxu0 0.0
      %767 = vmatprep.subr.mxu0 0.0
      %768 = vmatpush1.xpose.msra.mxu0 0.0
      %769 = vmatprep.subr.mxu0 0.0
      %770 = vmatpush1.xpose.msra.mxu0 0.0
      %771 = vmatprep.mubr.f32.mxu0 0.0
      %772 = vmatmul.mubr.f32.gmra.mrb[0].mxu0 %v699
      %v773 = vpop.f32.mrb[0].mxu0
      %v774 = vadd.f32 0.0, %v773
      %v775 = vpop.f32.mrb[0].mxu0
      %776 = vmatprep.mubr.f32.mxu0 0.0
      %777 = vmatmul.mubr.f32.gmra.mrb[0].mxu0 %v701
      %v778 = vpop.f32.mrb[0].mxu0
      %v779 = vadd.f32 0.0, %v778
      %v780 = vpop.f32.mrb[0].mxu0
      %781 = vdwg.mxu0
      %v782 = vmul.f32 %v774, 0.25
      %v783 = vmul.f32 %v779, 0.25
      %v784 = vsel %vm498, %v782, -inf
      %785 = vmax.xlane.f32.xlu0 %v784
      %v786 = vpop.xlane.xlu0 %785
      %v787 = vsel %vm498, %v783, -inf
      %788 = vmax.xlane.f32.xlu0 %v787
      %v789 = vpop.xlane.xlu0 %788
      %v790 = vsub.f32 %v782, %v786
      %v791 = vsub.f32 %v783, %v789
      %v792 = vmul.f32 %v790, 1.442695
      %v793 = vpow.pop %v792
      %v794 = vmul.f32 %v791, 1.442695
      %v795 = vpow.pop %v794
      %v796 = vsel %vm498, %v793, 0.0
      %797 = vadd.xlane.f32.xlu0 %v796
      %v798 = vpop.xlane.xlu0 %797
      %v799 = vsel %vm498, %v795, 0.0
      %800 = vadd.xlane.f32.xlu0 %v799
      %v801 = vpop.xlane.xlu0 %800
      %v802 = vrcp.pop %v798
      %v803 = vrcp.pop %v801
      %v804 = vmul.f32 %v793, %v802
      %v805 = vmul.f32 %v795, %v803
      %808 = vrot.lane.b32.xlu0 %v490, 112
      %v809 = vpop.permute.xlu0 %808
      %810 = vrot.lane.b32.xlu0 %v495, 112
      %v811 = vpop.permute.xlu0 %810
      %v815 = vsel %vm498, %v804, 0
      %v818 = vsel %vm498, %v805, 0
      %820 = vmatprep.subr.mxu0 0.0
      %821 = vmatpush1.msra.mxu0 %v809
      %822 = vmatprep.subr.mxu0 0.0
      %823 = vmatpush1.msra.mxu0 %v811
      %824 = vmatprep.subr.mxu0 0.0
      %825 = vmatpush1.msra.mxu0 0.0
      %826 = vmatprep.subr.mxu0 0.0
      %827 = vmatpush1.msra.mxu0 0.0
      %828 = vmatprep.subr.mxu0 0.0
      %829 = vmatpush1.msra.mxu0 0.0
      %830 = vmatprep.subr.mxu0 0.0
      %831 = vmatpush1.msra.mxu0 0.0
      %832 = vmatprep.subr.mxu0 0.0
      %833 = vmatpush1.msra.mxu0 0.0
      %834 = vmatprep.subr.mxu0 0.0
      %835 = vmatpush1.msra.mxu0 0.0
      %836 = vmatprep.subr.mxu0 0.0
      %837 = vmatpush1.msra.mxu0 0.0
      %838 = vmatprep.subr.mxu0 0.0
      %839 = vmatpush1.msra.mxu0 0.0
      %840 = vmatprep.subr.mxu0 0.0
      %841 = vmatpush1.msra.mxu0 0.0
      %842 = vmatprep.subr.mxu0 0.0
      %843 = vmatpush1.msra.mxu0 0.0
      %844 = vmatprep.subr.mxu0 0.0
      %845 = vmatpush1.msra.mxu0 0.0
      %846 = vmatprep.subr.mxu0 0.0
      %847 = vmatpush1.msra.mxu0 0.0
      %848 = vmatprep.subr.mxu0 0.0
      %849 = vmatpush1.msra.mxu0 0.0
      %850 = vmatprep.subr.mxu0 0.0
      %851 = vmatpush1.msra.mxu0 0.0
      %852 = vmatprep.subr.mxu0 0.0
      %853 = vmatpush1.msra.mxu0 0.0
      %854 = vmatprep.subr.mxu0 0.0
      %855 = vmatpush1.msra.mxu0 0.0
      %856 = vmatprep.subr.mxu0 0.0
      %857 = vmatpush1.msra.mxu0 0.0
      %858 = vmatprep.subr.mxu0 0.0
      %859 = vmatpush1.msra.mxu0 0.0
      %860 = vmatprep.subr.mxu0 0.0
      %861 = vmatpush1.msra.mxu0 0.0
      %862 = vmatprep.subr.mxu0 0.0
      %863 = vmatpush1.msra.mxu0 0.0
      %864 = vmatprep.subr.mxu0 0.0
      %865 = vmatpush1.msra.mxu0 0.0
      %866 = vmatprep.subr.mxu0 0.0
      %867 = vmatpush1.msra.mxu0 0.0
      %868 = vmatprep.subr.mxu0 0.0
      %869 = vmatpush1.msra.mxu0 0.0
      %870 = vmatprep.subr.mxu0 0.0
      %871 = vmatpush1.msra.mxu0 0.0
      %872 = vmatprep.subr.mxu0 0.0
      %873 = vmatpush1.msra.mxu0 0.0
      %874 = vmatprep.subr.mxu0 0.0
      %875 = vmatpush1.msra.mxu0 0.0
      %876 = vmatprep.subr.mxu0 0.0
      %877 = vmatpush1.msra.mxu0 0.0
      %878 = vmatprep.subr.mxu0 0.0
      %879 = vmatpush1.msra.mxu0 0.0
      %880 = vmatprep.subr.mxu0 0.0
      %881 = vmatpush1.msra.mxu0 0.0
      %882 = vmatprep.subr.mxu0 0.0
      %883 = vmatpush1.msra.mxu0 0.0
      %884 = vmatprep.mubr.f32.mxu0 0.0
      %885 = vmatmul.mubr.f32.gmra.mrb[0].mxu0 %v815
      %v886 = vpop.f32.mrb[0].mxu0
      %v887 = vadd.f32 0.0, %v886
      %v888 = vpop.f32.mrb[0].mxu0
      %889 = vmatprep.mubr.f32.mxu0 0.0
      %890 = vmatmul.mubr.f32.gmra.mrb[0].mxu0 %v818
      %v891 = vpop.f32.mrb[0].mxu0
      %v892 = vadd.f32 0.0, %v891
      %v893 = vpop.f32.mrb[0].mxu0
      %894 = vdwg.mxu0
      %895 = vrot.lane.b32.xlu0 %v413, 96
      %v896 = vpop.permute.xlu0 %895
      %897 = vrot.lane.b32.xlu0 %v419, 96
      %v898 = vpop.permute.xlu0 %897
      %899 = vrot.lane.b32.xlu0 %v415, 96
      %v900 = vpop.permute.xlu0 %899
      %901 = vrot.lane.b32.xlu0 %v421, 96
      %v902 = vpop.permute.xlu0 %901
      %v903 = vsel %vm498, %v896, 0
      %v905 = vsel %vm498, %v898, 0
      %v907 = vsel %vm498, %v900, 0
      %v909 = vsel %vm498, %v902, 0
      %911 = vmatprep.subr.mxu0 0.0
      %912 = vmatpush1.xpose.msra.mxu0 %v907
      %913 = vmatprep.subr.mxu0 0.0
      %914 = vmatpush1.xpose.msra.mxu0 %v909
      %915 = vmatprep.subr.mxu0 0.0
      %916 = vmatpush1.xpose.msra.mxu0 0.0
      %917 = vmatprep.subr.mxu0 0.0
      %918 = vmatpush1.xpose.msra.mxu0 0.0
      %919 = vmatprep.subr.mxu0 0.0
      %920 = vmatpush1.xpose.msra.mxu0 0.0
      %921 = vmatprep.subr.mxu0 0.0
      %922 = vmatpush1.xpose.msra.mxu0 0.0
      %923 = vmatprep.subr.mxu0 0.0
      %924 = vmatpush1.xpose.msra.mxu0 0.0
      %925 = vmatprep.subr.mxu0 0.0
      %926 = vmatpush1.xpose.msra.mxu0 0.0
      %927 = vmatprep.subr.mxu0 0.0
      %928 = vmatpush1.xpose.msra.mxu0 0.0
      %929 = vmatprep.subr.mxu0 0.0
      %930 = vmatpush1.xpose.msra.mxu0 0.0
      %931 = vmatprep.subr.mxu0 0.0
      %932 = vmatpush1.xpose.msra.mxu0 0.0
      %933 = vmatprep.subr.mxu0 0.0
      %934 = vmatpush1.xpose.msra.mxu0 0.0
      %935 = vmatprep.subr.mxu0 0.0
      %936 = vmatpush1.xpose.msra.mxu0 0.0
      %937 = vmatprep.subr.mxu0 0.0
      %938 = vmatpush1.xpose.msra.mxu0 0.0
      %939 = vmatprep.subr.mxu0 0.0
      %940 = vmatpush1.xpose.msra.mxu0 0.0
      %941 = vmatprep.subr.mxu0 0.0
      %942 = vmatpush1.xpose.msra.mxu0 0.0
      %943 = vmatprep.subr.mxu0 0.0
      %944 = vmatpush1.xpose.msra.mxu0 0.0
      %945 = vmatprep.subr.mxu0 0.0
      %946 = vmatpush1.xpose.msra.mxu0 0.0
      %947 = vmatprep.subr.mxu0 0.0
      %948 = vmatpush1.xpose.msra.mxu0 0.0
      %949 = vmatprep.subr.mxu0 0.0
      %950 = vmatpush1.xpose.msra.mxu0 0.0
      %951 = vmatprep.subr.mxu0 0.0
      %952 = vmatpush1.xpose.msra.mxu0 0.0
      %953 = vmatprep.subr.mxu0 0.0
      %954 = vmatpush1.xpose.msra.mxu0 0.0
      %955 = vmatprep.subr.mxu0 0.0
      %956 = vmatpush1.xpose.msra.mxu0 0.0
      %957 = vmatprep.subr.mxu0 0.0
      %958 = vmatpush1.xpose.msra.mxu0 0.0
      %959 = vmatprep.subr.mxu0 0.0
      %960 = vmatpush1.xpose.msra.mxu0 0.0
      %961 = vmatprep.subr.mxu0 0.0
      %962 = vmatpush1.xpose.msra.mxu0 0.0
      %963 = vmatprep.subr.mxu0 0.0
      %964 = vmatpush1.xpose.msra.mxu0 0.0
      %965 = vmatprep.subr.mxu0 0.0
      %966 = vmatpush1.xpose.msra.mxu0 0.0
      %967 = vmatprep.subr.mxu0 0.0
      %968 = vmatpush1.xpose.msra.mxu0 0.0
      %969 = vmatprep.subr.mxu0 0.0
      %970 = vmatpush1.xpose.msra.mxu0 0.0
      %971 = vmatprep.subr.mxu0 0.0
      %972 = vmatpush1.xpose.msra.mxu0 0.0
      %973 = vmatprep.subr.mxu0 0.0
      %974 = vmatpush1.xpose.msra.mxu0 0.0
      %975 = vmatprep.mubr.f32.mxu0 0.0
      %976 = vmatmul.mubr.f32.gmra.mrb[0].mxu0 %v903
      %v977 = vpop.f32.mrb[0].mxu0
      %v978 = vadd.f32 0.0, %v977
      %v979 = vpop.f32.mrb[0].mxu0
      %980 = vmatprep.mubr.f32.mxu0 0.0
      %981 = vmatmul.mubr.f32.gmra.mrb[0].mxu0 %v905
      %v982 = vpop.f32.mrb[0].mxu0
      %v983 = vadd.f32 0.0, %v982
      %v984 = vpop.f32.mrb[0].mxu0
      %985 = vdwg.mxu0
      %v986 = vmul.f32 %v978, 0.25
      %v987 = vmul.f32 %v983, 0.25
      %v988 = vsel %vm498, %v986, -inf
      %989 = vmax.xlane.f32.xlu0 %v988
      %v990 = vpop.xlane.xlu0 %989
      %v991 = vsel %vm498, %v987, -inf
      %992 = vmax.xlane.f32.xlu0 %v991
      %v993 = vpop.xlane.xlu0 %992
      %v994 = vsub.f32 %v986, %v990
      %v995 = vsub.f32 %v987, %v993
      %v996 = vmul.f32 %v994, 1.442695
      %v997 = vpow.pop %v996
      %v998 = vmul.f32 %v995, 1.442695
      %v999 = vpow.pop %v998
      %v1000 = vsel %vm498, %v997, 0.0
      %1001 = vadd.xlane.f32.xlu0 %v1000
      %v1002 = vpop.xlane.xlu0 %1001
      %v1003 = vsel %vm498, %v999, 0.0
      %1004 = vadd.xlane.f32.xlu0 %v1003
      %v1005 = vpop.xlane.xlu0 %1004
      %v1006 = vrcp.pop %v1002
      %v1007 = vrcp.pop %v1005
      %v1008 = vmul.f32 %v997, %v1006
      %v1009 = vmul.f32 %v999, %v1007
      %1010 = vrot.lane.b32.xlu0 %v490, 96
      %v1011 = vpop.permute.xlu0 %1010
      %1012 = vrot.lane.b32.xlu0 %v495, 96
      %v1013 = vpop.permute.xlu0 %1012
      %v1017 = vsel %vm498, %v1008, 0
      %v1020 = vsel %vm498, %v1009, 0
      %1022 = vmatprep.subr.mxu0 0.0
      %1023 = vmatpush1.msra.mxu0 %v1011
      %1024 = vmatprep.subr.mxu0 0.0
      %1025 = vmatpush1.msra.mxu0 %v1013
      %1026 = vmatprep.subr.mxu0 0.0
      %1027 = vmatpush1.msra.mxu0 0.0
      %1028 = vmatprep.subr.mxu0 0.0
      %1029 = vmatpush1.msra.mxu0 0.0
      %1030 = vmatprep.subr.mxu0 0.0
      %1031 = vmatpush1.msra.mxu0 0.0
      %1032 = vmatprep.subr.mxu0 0.0
      %1033 = vmatpush1.msra.mxu0 0.0
      %1034 = vmatprep.subr.mxu0 0.0
      %1035 = vmatpush1.msra.mxu0 0.0
      %1036 = vmatprep.subr.mxu0 0.0
      %1037 = vmatpush1.msra.mxu0 0.0
      %1038 = vmatprep.subr.mxu0 0.0
      %1039 = vmatpush1.msra.mxu0 0.0
      %1040 = vmatprep.subr.mxu0 0.0
      %1041 = vmatpush1.msra.mxu0 0.0
      %1042 = vmatprep.subr.mxu0 0.0
      %1043 = vmatpush1.msra.mxu0 0.0
      %1044 = vmatprep.subr.mxu0 0.0
      %1045 = vmatpush1.msra.mxu0 0.0
      %1046 = vmatprep.subr.mxu0 0.0
      %1047 = vmatpush1.msra.mxu0 0.0
      %1048 = vmatprep.subr.mxu0 0.0
      %1049 = vmatpush1.msra.mxu0 0.0
      %1050 = vmatprep.subr.mxu0 0.0
      %1051 = vmatpush1.msra.mxu0 0.0
      %1052 = vmatprep.subr.mxu0 0.0
      %1053 = vmatpush1.msra.mxu0 0.0
      %1054 = vmatprep.subr.mxu0 0.0
      %1055 = vmatpush1.msra.mxu0 0.0
      %1056 = vmatprep.subr.mxu0 0.0
      %1057 = vmatpush1.msra.mxu0 0.0
      %1058 = vmatprep.subr.mxu0 0.0
      %1059 = vmatpush1.msra.mxu0 0.0
      %1060 = vmatprep.subr.mxu0 0.0
      %1061 = vmatpush1.msra.mxu0 0.0
      %1062 = vmatprep.subr.mxu0 0.0
      %1063 = vmatpush1.msra.mxu0 0.0
      %1064 = vmatprep.subr.mxu0 0.0
      %1065 = vmatpush1.msra.mxu0 0.0
      %1066 = vmatprep.subr.mxu0 0.0
      %1067 = vmatpush1.msra.mxu0 0.0
      %1068 = vmatprep.subr.mxu0 0.0
      %1069 = vmatpush1.msra.mxu0 0.0
      %1070 = vmatprep.subr.mxu0 0.0
      %1071 = vmatpush1.msra.mxu0 0.0
      %1072 = vmatprep.subr.mxu0 0.0
      %1073 = vmatpush1.msra.mxu0 0.0
      %1074 = vmatprep.subr.mxu0 0.0
      %1075 = vmatpush1.msra.mxu0 0.0
      %1076 = vmatprep.subr.mxu0 0.0
      %1077 = vmatpush1.msra.mxu0 0.0
      %1078 = vmatprep.subr.mxu0 0.0
      %1079 = vmatpush1.msra.mxu0 0.0
      %1080 = vmatprep.subr.mxu0 0.0
      %1081 = vmatpush1.msra.mxu0 0.0
      %1082 = vmatprep.subr.mxu0 0.0
      %1083 = vmatpush1.msra.mxu0 0.0
      %1084 = vmatprep.subr.mxu0 0.0
      %1085 = vmatpush1.msra.mxu0 0.0
      %1086 = vmatprep.mubr.f32.mxu0 0.0
      %1087 = vmatmul.mubr.f32.gmra.mrb[0].mxu0 %v1017
      %v1088 = vpop.f32.mrb[0].mxu0
      %v1089 = vadd.f32 0.0, %v1088
      %v1090 = vpop.f32.mrb[0].mxu0
      %1091 = vmatprep.mubr.f32.mxu0 0.0
      %1092 = vmatmul.mubr.f32.gmra.mrb[0].mxu0 %v1020
      %v1093 = vpop.f32.mrb[0].mxu0
      %v1094 = vadd.f32 0.0, %v1093
      %v1095 = vpop.f32.mrb[0].mxu0
      %1096 = vdwg.mxu0
      %1097 = vrot.lane.b32.xlu0 %v413, 80
      %v1098 = vpop.permute.xlu0 %1097
      %1099 = vrot.lane.b32.xlu0 %v419, 80
      %v1100 = vpop.permute.xlu0 %1099
      %1101 = vrot.lane.b32.xlu0 %v415, 80
      %v1102 = vpop.permute.xlu0 %1101
      %1103 = vrot.lane.b32.xlu0 %v421, 80
      %v1104 = vpop.permute.xlu0 %1103
      %v1105 = vsel %vm498, %v1098, 0
      %v1107 = vsel %vm498, %v1100, 0
      %v1109 = vsel %vm498, %v1102, 0
      %v1111 = vsel %vm498, %v1104, 0
      %1113 = vmatprep.subr.mxu0 0.0
      %1114 = vmatpush1.xpose.msra.mxu0 %v1109
      %1115 = vmatprep.subr.mxu0 0.0
      %1116 = vmatpush1.xpose.msra.mxu0 %v1111
      %1117 = vmatprep.subr.mxu0 0.0
      %1118 = vmatpush1.xpose.msra.mxu0 0.0
      %1119 = vmatprep.subr.mxu0 0.0
      %1120 = vmatpush1.xpose.msra.mxu0 0.0
      %1121 = vmatprep.subr.mxu0 0.0
      %1122 = vmatpush1.xpose.msra.mxu0 0.0
      %1123 = vmatprep.subr.mxu0 0.0
      %1124 = vmatpush1.xpose.msra.mxu0 0.0
      %1125 = vmatprep.subr.mxu0 0.0
      %1126 = vmatpush1.xpose.msra.mxu0 0.0
      %1127 = vmatprep.subr.mxu0 0.0
      %1128 = vmatpush1.xpose.msra.mxu0 0.0
      %1129 = vmatprep.subr.mxu0 0.0
      %1130 = vmatpush1.xpose.msra.mxu0 0.0
      %1131 = vmatprep.subr.mxu0 0.0
      %1132 = vmatpush1.xpose.msra.mxu0 0.0
      %1133 = vmatprep.subr.mxu0 0.0
      %1134 = vmatpush1.xpose.msra.mxu0 0.0
      %1135 = vmatprep.subr.mxu0 0.0
      %1136 = vmatpush1.xpose.msra.mxu0 0.0
      %1137 = vmatprep.subr.mxu0 0.0
      %1138 = vmatpush1.xpose.msra.mxu0 0.0
      %1139 = vmatprep.subr.mxu0 0.0
      %1140 = vmatpush1.xpose.msra.mxu0 0.0
      %1141 = vmatprep.subr.mxu0 0.0
      %1142 = vmatpush1.xpose.msra.mxu0 0.0
      %1143 = vmatprep.subr.mxu0 0.0
      %1144 = vmatpush1.xpose.msra.mxu0 0.0
      %1145 = vmatprep.subr.mxu0 0.0
      %1146 = vmatpush1.xpose.msra.mxu0 0.0
      %1147 = vmatprep.subr.mxu0 0.0
      %1148 = vmatpush1.xpose.msra.mxu0 0.0
      %1149 = vmatprep.subr.mxu0 0.0
      %1150 = vmatpush1.xpose.msra.mxu0 0.0
      %1151 = vmatprep.subr.mxu0 0.0
      %1152 = vmatpush1.xpose.msra.mxu0 0.0
      %1153 = vmatprep.subr.mxu0 0.0
      %1154 = vmatpush1.xpose.msra.mxu0 0.0
      %1155 = vmatprep.subr.mxu0 0.0
      %1156 = vmatpush1.xpose.msra.mxu0 0.0
      %1157 = vmatprep.subr.mxu0 0.0
      %1158 = vmatpush1.xpose.msra.mxu0 0.0
      %1159 = vmatprep.subr.mxu0 0.0
      %1160 = vmatpush1.xpose.msra.mxu0 0.0
      %1161 = vmatprep.subr.mxu0 0.0
      %1162 = vmatpush1.xpose.msra.mxu0 0.0
      %1163 = vmatprep.subr.mxu0 0.0
      %1164 = vmatpush1.xpose.msra.mxu0 0.0
      %1165 = vmatprep.subr.mxu0 0.0
      %1166 = vmatpush1.xpose.msra.mxu0 0.0
      %1167 = vmatprep.subr.mxu0 0.0
      %1168 = vmatpush1.xpose.msra.mxu0 0.0
      %1169 = vmatprep.subr.mxu0 0.0
      %1170 = vmatpush1.xpose.msra.mxu0 0.0
      %1171 = vmatprep.subr.mxu0 0.0
      %1172 = vmatpush1.xpose.msra.mxu0 0.0
      %1173 = vmatprep.subr.mxu0 0.0
      %1174 = vmatpush1.xpose.msra.mxu0 0.0
      %1175 = vmatprep.subr.mxu0 0.0
      %1176 = vmatpush1.xpose.msra.mxu0 0.0
      %1177 = vmatprep.mubr.f32.mxu0 0.0
      %1178 = vmatmul.mubr.f32.gmra.mrb[0].mxu0 %v1105
      %v1179 = vpop.f32.mrb[0].mxu0
      %v1180 = vadd.f32 0.0, %v1179
      %v1181 = vpop.f32.mrb[0].mxu0
      %1182 = vmatprep.mubr.f32.mxu0 0.0
      %1183 = vmatmul.mubr.f32.gmra.mrb[0].mxu0 %v1107
      %v1184 = vpop.f32.mrb[0].mxu0
      %v1185 = vadd.f32 0.0, %v1184
      %v1186 = vpop.f32.mrb[0].mxu0
      %1187 = vdwg.mxu0
      %v1188 = vmul.f32 %v1180, 0.25
      %v1189 = vmul.f32 %v1185, 0.25
      %v1190 = vsel %vm498, %v1188, -inf
      %1191 = vmax.xlane.f32.xlu0 %v1190
      %v1192 = vpop.xlane.xlu0 %1191
      %v1193 = vsel %vm498, %v1189, -inf
      %1194 = vmax.xlane.f32.xlu0 %v1193
      %v1195 = vpop.xlane.xlu0 %1194
      %v1196 = vsub.f32 %v1188, %v1192
      %v1197 = vsub.f32 %v1189, %v1195
      %v1198 = vmul.f32 %v1196, 1.442695
      %v1199 = vpow.pop %v1198
      %v1200 = vmul.f32 %v1197, 1.442695
      %v1201 = vpow.pop %v1200
      %v1202 = vsel %vm498, %v1199, 0.0
      %1203 = vadd.xlane.f32.xlu0 %v1202
      %v1204 = vpop.xlane.xlu0 %1203
      %v1205 = vsel %vm498, %v1201, 0.0
      %1206 = vadd.xlane.f32.xlu0 %v1205
      %v1207 = vpop.xlane.xlu0 %1206
      %v1208 = vrcp.pop %v1204
      %v1209 = vrcp.pop %v1207
      %v1210 = vmul.f32 %v1199, %v1208
      %v1211 = vmul.f32 %v1201, %v1209
      %1212 = vrot.lane.b32.xlu0 %v490, 80
      %v1213 = vpop.permute.xlu0 %1212
      %1214 = vrot.lane.b32.xlu0 %v495, 80
      %v1215 = vpop.permute.xlu0 %1214
      %v1219 = vsel %vm498, %v1210, 0
      %v1222 = vsel %vm498, %v1211, 0
      %1224 = vmatprep.subr.mxu0 0.0
      %1225 = vmatpush1.msra.mxu0 %v1213
      %1226 = vmatprep.subr.mxu0 0.0
      %1227 = vmatpush1.msra.mxu0 %v1215
      %1228 = vmatprep.subr.mxu0 0.0
      %1229 = vmatpush1.msra.mxu0 0.0
      %1230 = vmatprep.subr.mxu0 0.0
      %1231 = vmatpush1.msra.mxu0 0.0
      %1232 = vmatprep.subr.mxu0 0.0
      %1233 = vmatpush1.msra.mxu0 0.0
      %1234 = vmatprep.subr.mxu0 0.0
      %1235 = vmatpush1.msra.mxu0 0.0
      %1236 = vmatprep.subr.mxu0 0.0
      %1237 = vmatpush1.msra.mxu0 0.0
      %1238 = vmatprep.subr.mxu0 0.0
      %1239 = vmatpush1.msra.mxu0 0.0
      %1240 = vmatprep.subr.mxu0 0.0
      %1241 = vmatpush1.msra.mxu0 0.0
      %1242 = vmatprep.subr.mxu0 0.0
      %1243 = vmatpush1.msra.mxu0 0.0
      %1244 = vmatprep.subr.mxu0 0.0
      %1245 = vmatpush1.msra.mxu0 0.0
      %1246 = vmatprep.subr.mxu0 0.0
      %1247 = vmatpush1.msra.mxu0 0.0
      %1248 = vmatprep.subr.mxu0 0.0
      %1249 = vmatpush1.msra.mxu0 0.0
      %1250 = vmatprep.subr.mxu0 0.0
      %1251 = vmatpush1.msra.mxu0 0.0
      %1252 = vmatprep.subr.mxu0 0.0
      %1253 = vmatpush1.msra.mxu0 0.0
      %1254 = vmatprep.subr.mxu0 0.0
      %1255 = vmatpush1.msra.mxu0 0.0
      %1256 = vmatprep.subr.mxu0 0.0
      %1257 = vmatpush1.msra.mxu0 0.0
      %1258 = vmatprep.subr.mxu0 0.0
      %1259 = vmatpush1.msra.mxu0 0.0
      %1260 = vmatprep.subr.mxu0 0.0
      %1261 = vmatpush1.msra.mxu0 0.0
      %1262 = vmatprep.subr.mxu0 0.0
      %1263 = vmatpush1.msra.mxu0 0.0
      %1264 = vmatprep.subr.mxu0 0.0
      %1265 = vmatpush1.msra.mxu0 0.0
      %1266 = vmatprep.subr.mxu0 0.0
      %1267 = vmatpush1.msra.mxu0 0.0
      %1268 = vmatprep.subr.mxu0 0.0
      %1269 = vmatpush1.msra.mxu0 0.0
      %1270 = vmatprep.subr.mxu0 0.0
      %1271 = vmatpush1.msra.mxu0 0.0
      %1272 = vmatprep.subr.mxu0 0.0
      %1273 = vmatpush1.msra.mxu0 0.0
      %1274 = vmatprep.subr.mxu0 0.0
      %1275 = vmatpush1.msra.mxu0 0.0
      %1276 = vmatprep.subr.mxu0 0.0
      %1277 = vmatpush1.msra.mxu0 0.0
      %1278 = vmatprep.subr.mxu0 0.0
      %1279 = vmatpush1.msra.mxu0 0.0
      %1280 = vmatprep.subr.mxu0 0.0
      %1281 = vmatpush1.msra.mxu0 0.0
      %1282 = vmatprep.subr.mxu0 0.0
      %1283 = vmatpush1.msra.mxu0 0.0
      %1284 = vmatprep.subr.mxu0 0.0
      %1285 = vmatpush1.msra.mxu0 0.0
      %1286 = vmatprep.subr.mxu0 0.0
      %1287 = vmatpush1.msra.mxu0 0.0
      %1288 = vmatprep.mubr.f32.mxu0 0.0
      %1289 = vmatmul.mubr.f32.gmra.mrb[0].mxu0 %v1219
      %v1290 = vpop.f32.mrb[0].mxu0
      %v1291 = vadd.f32 0.0, %v1290
      %v1292 = vpop.f32.mrb[0].mxu0
      %1293 = vmatprep.mubr.f32.mxu0 0.0
      %1294 = vmatmul.mubr.f32.gmra.mrb[0].mxu0 %v1222
      %v1295 = vpop.f32.mrb[0].mxu0
      %v1296 = vadd.f32 0.0, %v1295
      %v1297 = vpop.f32.mrb[0].mxu0
      %1298 = vdwg.mxu0
      %1299 = vrot.lane.b32.xlu0 %v413, 64
      %v1300 = vpop.permute.xlu0 %1299
      %1301 = vrot.lane.b32.xlu0 %v419, 64
      %v1302 = vpop.permute.xlu0 %1301
      %1303 = vrot.lane.b32.xlu0 %v415, 64
      %v1304 = vpop.permute.xlu0 %1303
      %1305 = vrot.lane.b32.xlu0 %v421, 64
      %v1306 = vpop.permute.xlu0 %1305
      %v1307 = vsel %vm498, %v1300, 0
      %v1309 = vsel %vm498, %v1302, 0
      %v1311 = vsel %vm498, %v1304, 0
      %v1313 = vsel %vm498, %v1306, 0
      %1315 = vmatprep.subr.mxu0 0.0
      %1316 = vmatpush1.xpose.msra.mxu0 %v1311
      %1317 = vmatprep.subr.mxu0 0.0
      %1318 = vmatpush1.xpose.msra.mxu0 %v1313
      %1319 = vmatprep.subr.mxu0 0.0
      %1320 = vmatpush1.xpose.msra.mxu0 0.0
      %1321 = vmatprep.subr.mxu0 0.0
      %1322 = vmatpush1.xpose.msra.mxu0 0.0
      %1323 = vmatprep.subr.mxu0 0.0
      %1324 = vmatpush1.xpose.msra.mxu0 0.0
      %1325 = vmatprep.subr.mxu0 0.0
      %1326 = vmatpush1.xpose.msra.mxu0 0.0
      %1327 = vmatprep.subr.mxu0 0.0
      %1328 = vmatpush1.xpose.msra.mxu0 0.0
      %1329 = vmatprep.subr.mxu0 0.0
      %1330 = vmatpush1.xpose.msra.mxu0 0.0
      %1331 = vmatprep.subr.mxu0 0.0
      %1332 = vmatpush1.xpose.msra.mxu0 0.0
      %1333 = vmatprep.subr.mxu0 0.0
      %1334 = vmatpush1.xpose.msra.mxu0 0.0
      %1335 = vmatprep.subr.mxu0 0.0
      %1336 = vmatpush1.xpose.msra.mxu0 0.0
      %1337 = vmatprep.subr.mxu0 0.0
      %1338 = vmatpush1.xpose.msra.mxu0 0.0
      %1339 = vmatprep.subr.mxu0 0.0
      %1340 = vmatpush1.xpose.msra.mxu0 0.0
      %1341 = vmatprep.subr.mxu0 0.0
      %1342 = vmatpush1.xpose.msra.mxu0 0.0
      %1343 = vmatprep.subr.mxu0 0.0
      %1344 = vmatpush1.xpose.msra.mxu0 0.0
      %1345 = vmatprep.subr.mxu0 0.0
      %1346 = vmatpush1.xpose.msra.mxu0 0.0
      %1347 = vmatprep.subr.mxu0 0.0
      %1348 = vmatpush1.xpose.msra.mxu0 0.0
      %1349 = vmatprep.subr.mxu0 0.0
      %1350 = vmatpush1.xpose.msra.mxu0 0.0
      %1351 = vmatprep.subr.mxu0 0.0
      %1352 = vmatpush1.xpose.msra.mxu0 0.0
      %1353 = vmatprep.subr.mxu0 0.0
      %1354 = vmatpush1.xpose.msra.mxu0 0.0
      %1355 = vmatprep.subr.mxu0 0.0
      %1356 = vmatpush1.xpose.msra.mxu0 0.0
      %1357 = vmatprep.subr.mxu0 0.0
      %1358 = vmatpush1.xpose.msra.mxu0 0.0
      %1359 = vmatprep.subr.mxu0 0.0
      %1360 = vmatpush1.xpose.msra.mxu0 0.0
      %1361 = vmatprep.subr.mxu0 0.0
      %1362 = vmatpush1.xpose.msra.mxu0 0.0
      %1363 = vmatprep.subr.mxu0 0.0
      %1364 = vmatpush1.xpose.msra.mxu0 0.0
      %1365 = vmatprep.subr.mxu0 0.0
      %1366 = vmatpush1.xpose.msra.mxu0 0.0
      %1367 = vmatprep.subr.mxu0 0.0
      %1368 = vmatpush1.xpose.msra.mxu0 0.0
      %1369 = vmatprep.subr.mxu0 0.0
      %1370 = vmatpush1.xpose.msra.mxu0 0.0
      %1371 = vmatprep.subr.mxu0 0.0
      %1372 = vmatpush1.xpose.msra.mxu0 0.0
      %1373 = vmatprep.subr.mxu0 0.0
      %1374 = vmatpush1.xpose.msra.mxu0 0.0
      %1375 = vmatprep.subr.mxu0 0.0
      %1376 = vmatpush1.xpose.msra.mxu0 0.0
      %1377 = vmatprep.subr.mxu0 0.0
      %1378 = vmatpush1.xpose.msra.mxu0 0.0
      %1379 = vmatprep.mubr.f32.mxu0 0.0
      %1380 = vmatmul.mubr.f32.gmra.mrb[0].mxu0 %v1307
      %v1381 = vpop.f32.mrb[0].mxu0
      %v1382 = vadd.f32 0.0, %v1381
      %v1383 = vpop.f32.mrb[0].mxu0
      %1384 = vmatprep.mubr.f32.mxu0 0.0
      %1385 = vmatmul.mubr.f32.gmra.mrb[0].mxu0 %v1309
      %v1386 = vpop.f32.mrb[0].mxu0
      %v1387 = vadd.f32 0.0, %v1386
      %v1388 = vpop.f32.mrb[0].mxu0
      %1389 = vdwg.mxu0
      %v1390 = vmul.f32 %v1382, 0.25
      %v1391 = vmul.f32 %v1387, 0.25
      %v1392 = vsel %vm498, %v1390, -inf
      %1393 = vmax.xlane.f32.xlu0 %v1392
      %v1394 = vpop.xlane.xlu0 %1393
      %v1395 = vsel %vm498, %v1391, -inf
      %1396 = vmax.xlane.f32.xlu0 %v1395
      %v1397 = vpop.xlane.xlu0 %1396
      %v1398 = vsub.f32 %v1390, %v1394
      %v1399 = vsub.f32 %v1391, %v1397
      %v1400 = vmul.f32 %v1398, 1.442695
      %v1401 = vpow.pop %v1400
      %v1402 = vmul.f32 %v1399, 1.442695
      %v1403 = vpow.pop %v1402
      %v1404 = vsel %vm498, %v1401, 0.0
      %1405 = vadd.xlane.f32.xlu0 %v1404
      %v1406 = vpop.xlane.xlu0 %1405
      %v1407 = vsel %vm498, %v1403, 0.0
      %1408 = vadd.xlane.f32.xlu0 %v1407
      %v1409 = vpop.xlane.xlu0 %1408
      %v1410 = vrcp.pop %v1406
      %v1411 = vrcp.pop %v1409
      %v1412 = vmul.f32 %v1401, %v1410
      %v1413 = vmul.f32 %v1403, %v1411
      %1414 = vrot.lane.b32.xlu0 %v490, 64
      %v1415 = vpop.permute.xlu0 %1414
      %1416 = vrot.lane.b32.xlu0 %v495, 64
      %v1417 = vpop.permute.xlu0 %1416
      %v1421 = vsel %vm498, %v1412, 0
      %v1424 = vsel %vm498, %v1413, 0
      %1426 = vmatprep.subr.mxu0 0.0
      %1427 = vmatpush1.msra.mxu0 %v1415
      %1428 = vmatprep.subr.mxu0 0.0
      %1429 = vmatpush1.msra.mxu0 %v1417
      %1430 = vmatprep.subr.mxu0 0.0
      %1431 = vmatpush1.msra.mxu0 0.0
      %1432 = vmatprep.subr.mxu0 0.0
      %1433 = vmatpush1.msra.mxu0 0.0
      %1434 = vmatprep.subr.mxu0 0.0
      %1435 = vmatpush1.msra.mxu0 0.0
      %1436 = vmatprep.subr.mxu0 0.0
      %1437 = vmatpush1.msra.mxu0 0.0
      %1438 = vmatprep.subr.mxu0 0.0
      %1439 = vmatpush1.msra.mxu0 0.0
      %1440 = vmatprep.subr.mxu0 0.0
      %1441 = vmatpush1.msra.mxu0 0.0
      %1442 = vmatprep.subr.mxu0 0.0
      %1443 = vmatpush1.msra.mxu0 0.0
      %1444 = vmatprep.subr.mxu0 0.0
      %1445 = vmatpush1.msra.mxu0 0.0
      %1446 = vmatprep.subr.mxu0 0.0
      %1447 = vmatpush1.msra.mxu0 0.0
      %1448 = vmatprep.subr.mxu0 0.0
      %1449 = vmatpush1.msra.mxu0 0.0
      %1450 = vmatprep.subr.mxu0 0.0
      %1451 = vmatpush1.msra.mxu0 0.0
      %1452 = vmatprep.subr.mxu0 0.0
      %1453 = vmatpush1.msra.mxu0 0.0
      %1454 = vmatprep.subr.mxu0 0.0
      %1455 = vmatpush1.msra.mxu0 0.0
      %1456 = vmatprep.subr.mxu0 0.0
      %1457 = vmatpush1.msra.mxu0 0.0
      %1458 = vmatprep.subr.mxu0 0.0
      %1459 = vmatpush1.msra.mxu0 0.0
      %1460 = vmatprep.subr.mxu0 0.0
      %1461 = vmatpush1.msra.mxu0 0.0
      %1462 = vmatprep.subr.mxu0 0.0
      %1463 = vmatpush1.msra.mxu0 0.0
      %1464 = vmatprep.subr.mxu0 0.0
      %1465 = vmatpush1.msra.mxu0 0.0
      %1466 = vmatprep.subr.mxu0 0.0
      %1467 = vmatpush1.msra.mxu0 0.0
      %1468 = vmatprep.subr.mxu0 0.0
      %1469 = vmatpush1.msra.mxu0 0.0
      %1470 = vmatprep.subr.mxu0 0.0
      %1471 = vmatpush1.msra.mxu0 0.0
      %1472 = vmatprep.subr.mxu0 0.0
      %1473 = vmatpush1.msra.mxu0 0.0
      %1474 = vmatprep.subr.mxu0 0.0
      %1475 = vmatpush1.msra.mxu0 0.0
      %1476 = vmatprep.subr.mxu0 0.0
      %1477 = vmatpush1.msra.mxu0 0.0
      %1478 = vmatprep.subr.mxu0 0.0
      %1479 = vmatpush1.msra.mxu0 0.0
      %1480 = vmatprep.subr.mxu0 0.0
      %1481 = vmatpush1.msra.mxu0 0.0
      %1482 = vmatprep.subr.mxu0 0.0
      %1483 = vmatpush1.msra.mxu0 0.0
      %1484 = vmatprep.subr.mxu0 0.0
      %1485 = vmatpush1.msra.mxu0 0.0
      %1486 = vmatprep.subr.mxu0 0.0
      %1487 = vmatpush1.msra.mxu0 0.0
      %1488 = vmatprep.subr.mxu0 0.0
      %1489 = vmatpush1.msra.mxu0 0.0
      %1490 = vmatprep.mubr.f32.mxu0 0.0
      %1491 = vmatmul.mubr.f32.gmra.mrb[0].mxu0 %v1421
      %v1492 = vpop.f32.mrb[0].mxu0
      %v1493 = vadd.f32 0.0, %v1492
      %v1494 = vpop.f32.mrb[0].mxu0
      %1495 = vmatprep.mubr.f32.mxu0 0.0
      %1496 = vmatmul.mubr.f32.gmra.mrb[0].mxu0 %v1424
      %v1497 = vpop.f32.mrb[0].mxu0
      %v1498 = vadd.f32 0.0, %v1497
      %v1499 = vpop.f32.mrb[0].mxu0
      %1500 = vdwg.mxu0
      %1501 = vrot.lane.b32.xlu0 %v413, 48
      %v1502 = vpop.permute.xlu0 %1501
      %1503 = vrot.lane.b32.xlu0 %v419, 48
      %v1504 = vpop.permute.xlu0 %1503
      %1505 = vrot.lane.b32.xlu0 %v415, 48
      %v1506 = vpop.permute.xlu0 %1505
      %1507 = vrot.lane.b32.xlu0 %v421, 48
      %v1508 = vpop.permute.xlu0 %1507
      %v1509 = vsel %vm498, %v1502, 0
      %v1511 = vsel %vm498, %v1504, 0
      %v1513 = vsel %vm498, %v1506, 0
      %v1515 = vsel %vm498, %v1508, 0
      %1517 = vmatprep.subr.mxu0 0.0
      %1518 = vmatpush1.xpose.msra.mxu0 %v1513
      %1519 = vmatprep.subr.mxu0 0.0
      %1520 = vmatpush1.xpose.msra.mxu0 %v1515
      %1521 = vmatprep.subr.mxu0 0.0
      %1522 = vmatpush1.xpose.msra.mxu0 0.0
      %1523 = vmatprep.subr.mxu0 0.0
      %1524 = vmatpush1.xpose.msra.mxu0 0.0
      %1525 = vmatprep.subr.mxu0 0.0
      %1526 = vmatpush1.xpose.msra.mxu0 0.0
      %1527 = vmatprep.subr.mxu0 0.0
      %1528 = vmatpush1.xpose.msra.mxu0 0.0
      %1529 = vmatprep.subr.mxu0 0.0
      %1530 = vmatpush1.xpose.msra.mxu0 0.0
      %1531 = vmatprep.subr.mxu0 0.0
      %1532 = vmatpush1.xpose.msra.mxu0 0.0
      %1533 = vmatprep.subr.mxu0 0.0
      %1534 = vmatpush1.xpose.msra.mxu0 0.0
      %1535 = vmatprep.subr.mxu0 0.0
      %1536 = vmatpush1.xpose.msra.mxu0 0.0
      %1537 = vmatprep.subr.mxu0 0.0
      %1538 = vmatpush1.xpose.msra.mxu0 0.0
      %1539 = vmatprep.subr.mxu0 0.0
      %1540 = vmatpush1.xpose.msra.mxu0 0.0
      %1541 = vmatprep.subr.mxu0 0.0
      %1542 = vmatpush1.xpose.msra.mxu0 0.0
      %1543 = vmatprep.subr.mxu0 0.0
      %1544 = vmatpush1.xpose.msra.mxu0 0.0
      %1545 = vmatprep.subr.mxu0 0.0
      %1546 = vmatpush1.xpose.msra.mxu0 0.0
      %1547 = vmatprep.subr.mxu0 0.0
      %1548 = vmatpush1.xpose.msra.mxu0 0.0
      %1549 = vmatprep.subr.mxu0 0.0
      %1550 = vmatpush1.xpose.msra.mxu0 0.0
      %1551 = vmatprep.subr.mxu0 0.0
      %1552 = vmatpush1.xpose.msra.mxu0 0.0
      %1553 = vmatprep.subr.mxu0 0.0
      %1554 = vmatpush1.xpose.msra.mxu0 0.0
      %1555 = vmatprep.subr.mxu0 0.0
      %1556 = vmatpush1.xpose.msra.mxu0 0.0
      %1557 = vmatprep.subr.mxu0 0.0
      %1558 = vmatpush1.xpose.msra.mxu0 0.0
      %1559 = vmatprep.subr.mxu0 0.0
      %1560 = vmatpush1.xpose.msra.mxu0 0.0
      %1561 = vmatprep.subr.mxu0 0.0
      %1562 = vmatpush1.xpose.msra.mxu0 0.0
      %1563 = vmatprep.subr.mxu0 0.0
      %1564 = vmatpush1.xpose.msra.mxu0 0.0
      %1565 = vmatprep.subr.mxu0 0.0
      %1566 = vmatpush1.xpose.msra.mxu0 0.0
      %1567 = vmatprep.subr.mxu0 0.0
      %1568 = vmatpush1.xpose.msra.mxu0 0.0
      %1569 = vmatprep.subr.mxu0 0.0
      %1570 = vmatpush1.xpose.msra.mxu0 0.0
      %1571 = vmatprep.subr.mxu0 0.0
      %1572 = vmatpush1.xpose.msra.mxu0 0.0
      %1573 = vmatprep.subr.mxu0 0.0
      %1574 = vmatpush1.xpose.msra.mxu0 0.0
      %1575 = vmatprep.subr.mxu0 0.0
      %1576 = vmatpush1.xpose.msra.mxu0 0.0
      %1577 = vmatprep.subr.mxu0 0.0
      %1578 = vmatpush1.xpose.msra.mxu0 0.0
      %1579 = vmatprep.subr.mxu0 0.0
      %1580 = vmatpush1.xpose.msra.mxu0 0.0
      %1581 = vmatprep.mubr.f32.mxu0 0.0
      %1582 = vmatmul.mubr.f32.gmra.mrb[0].mxu0 %v1509
      %v1583 = vpop.f32.mrb[0].mxu0
      %v1584 = vadd.f32 0.0, %v1583
      %v1585 = vpop.f32.mrb[0].mxu0
      %1586 = vmatprep.mubr.f32.mxu0 0.0
      %1587 = vmatmul.mubr.f32.gmra.mrb[0].mxu0 %v1511
      %v1588 = vpop.f32.mrb[0].mxu0
      %v1589 = vadd.f32 0.0, %v1588
      %v1590 = vpop.f32.mrb[0].mxu0
      %1591 = vdwg.mxu0
      %v1592 = vmul.f32 %v1584, 0.25
      %v1593 = vmul.f32 %v1589, 0.25
      %v1594 = vsel %vm498, %v1592, -inf
      %1595 = vmax.xlane.f32.xlu0 %v1594
      %v1596 = vpop.xlane.xlu0 %1595
      %v1597 = vsel %vm498, %v1593, -inf
      %1598 = vmax.xlane.f32.xlu0 %v1597
      %v1599 = vpop.xlane.xlu0 %1598
      %v1600 = vsub.f32 %v1592, %v1596
      %v1601 = vsub.f32 %v1593, %v1599
      %v1602 = vmul.f32 %v1600, 1.442695
      %v1603 = vpow.pop %v1602
      %v1604 = vmul.f32 %v1601, 1.442695
      %v1605 = vpow.pop %v1604
      %v1606 = vsel %vm498, %v1603, 0.0
      %1607 = vadd.xlane.f32.xlu0 %v1606
      %v1608 = vpop.xlane.xlu0 %1607
      %v1609 = vsel %vm498, %v1605, 0.0
      %1610 = vadd.xlane.f32.xlu0 %v1609
      %v1611 = vpop.xlane.xlu0 %1610
      %v1612 = vrcp.pop %v1608
      %v1613 = vrcp.pop %v1611
      %v1614 = vmul.f32 %v1603, %v1612
      %v1615 = vmul.f32 %v1605, %v1613
      %1616 = vrot.lane.b32.xlu0 %v490, 48
      %v1617 = vpop.permute.xlu0 %1616
      %1618 = vrot.lane.b32.xlu0 %v495, 48
      %v1619 = vpop.permute.xlu0 %1618
      %v1623 = vsel %vm498, %v1614, 0
      %v1626 = vsel %vm498, %v1615, 0
      %1628 = vmatprep.subr.mxu0 0.0
      %1629 = vmatpush1.msra.mxu0 %v1617
      %1630 = vmatprep.subr.mxu0 0.0
      %1631 = vmatpush1.msra.mxu0 %v1619
      %1632 = vmatprep.subr.mxu0 0.0
      %1633 = vmatpush1.msra.mxu0 0.0
      %1634 = vmatprep.subr.mxu0 0.0
      %1635 = vmatpush1.msra.mxu0 0.0
      %1636 = vmatprep.subr.mxu0 0.0
      %1637 = vmatpush1.msra.mxu0 0.0
      %1638 = vmatprep.subr.mxu0 0.0
      %1639 = vmatpush1.msra.mxu0 0.0
      %1640 = vmatprep.subr.mxu0 0.0
      %1641 = vmatpush1.msra.mxu0 0.0
      %1642 = vmatprep.subr.mxu0 0.0
      %1643 = vmatpush1.msra.mxu0 0.0
      %1644 = vmatprep.subr.mxu0 0.0
      %1645 = vmatpush1.msra.mxu0 0.0
      %1646 = vmatprep.subr.mxu0 0.0
      %1647 = vmatpush1.msra.mxu0 0.0
      %1648 = vmatprep.subr.mxu0 0.0
      %1649 = vmatpush1.msra.mxu0 0.0
      %1650 = vmatprep.subr.mxu0 0.0
      %1651 = vmatpush1.msra.mxu0 0.0
      %1652 = vmatprep.subr.mxu0 0.0
      %1653 = vmatpush1.msra.mxu0 0.0
      %1654 = vmatprep.subr.mxu0 0.0
      %1655 = vmatpush1.msra.mxu0 0.0
      %1656 = vmatprep.subr.mxu0 0.0
      %1657 = vmatpush1.msra.mxu0 0.0
      %1658 = vmatprep.subr.mxu0 0.0
      %1659 = vmatpush1.msra.mxu0 0.0
      %1660 = vmatprep.subr.mxu0 0.0
      %1661 = vmatpush1.msra.mxu0 0.0
      %1662 = vmatprep.subr.mxu0 0.0
      %1663 = vmatpush1.msra.mxu0 0.0
      %1664 = vmatprep.subr.mxu0 0.0
      %1665 = vmatpush1.msra.mxu0 0.0
      %1666 = vmatprep.subr.mxu0 0.0
      %1667 = vmatpush1.msra.mxu0 0.0
      %1668 = vmatprep.subr.mxu0 0.0
      %1669 = vmatpush1.msra.mxu0 0.0
      %1670 = vmatprep.subr.mxu0 0.0
      %1671 = vmatpush1.msra.mxu0 0.0
      %1672 = vmatprep.subr.mxu0 0.0
      %1673 = vmatpush1.msra.mxu0 0.0
      %1674 = vmatprep.subr.mxu0 0.0
      %1675 = vmatpush1.msra.mxu0 0.0
      %1676 = vmatprep.subr.mxu0 0.0
      %1677 = vmatpush1.msra.mxu0 0.0
      %1678 = vmatprep.subr.mxu0 0.0
      %1679 = vmatpush1.msra.mxu0 0.0
      %1680 = vmatprep.subr.mxu0 0.0
      %1681 = vmatpush1.msra.mxu0 0.0
      %1682 = vmatprep.subr.mxu0 0.0
      %1683 = vmatpush1.msra.mxu0 0.0
      %1684 = vmatprep.subr.mxu0 0.0
      %1685 = vmatpush1.msra.mxu0 0.0
      %1686 = vmatprep.subr.mxu0 0.0
      %1687 = vmatpush1.msra.mxu0 0.0
      %1688 = vmatprep.subr.mxu0 0.0
      %1689 = vmatpush1.msra.mxu0 0.0
      %1690 = vmatprep.subr.mxu0 0.0
      %1691 = vmatpush1.msra.mxu0 0.0
      %1692 = vmatprep.mubr.f32.mxu0 0.0
      %1693 = vmatmul.mubr.f32.gmra.mrb[0].mxu0 %v1623
      %v1694 = vpop.f32.mrb[0].mxu0
      %v1695 = vadd.f32 0.0, %v1694
      %v1696 = vpop.f32.mrb[0].mxu0
      %1697 = vmatprep.mubr.f32.mxu0 0.0
      %1698 = vmatmul.mubr.f32.gmra.mrb[0].mxu0 %v1626
      %v1699 = vpop.f32.mrb[0].mxu0
      %v1700 = vadd.f32 0.0, %v1699
      %v1701 = vpop.f32.mrb[0].mxu0
      %1702 = vdwg.mxu0
      %1703 = vrot.lane.b32.xlu0 %v413, 32
      %v1704 = vpop.permute.xlu0 %1703
      %1705 = vrot.lane.b32.xlu0 %v419, 32
      %v1706 = vpop.permute.xlu0 %1705
      %1707 = vrot.lane.b32.xlu0 %v415, 32
      %v1708 = vpop.permute.xlu0 %1707
      %1709 = vrot.lane.b32.xlu0 %v421, 32
      %v1710 = vpop.permute.xlu0 %1709
      %v1711 = vsel %vm498, %v1704, 0
      %v1713 = vsel %vm498, %v1706, 0
      %v1715 = vsel %vm498, %v1708, 0
      %v1717 = vsel %vm498, %v1710, 0
      %1719 = vmatprep.subr.mxu0 0.0
      %1720 = vmatpush1.xpose.msra.mxu0 %v1715
      %1721 = vmatprep.subr.mxu0 0.0
      %1722 = vmatpush1.xpose.msra.mxu0 %v1717
      %1723 = vmatprep.subr.mxu0 0.0
      %1724 = vmatpush1.xpose.msra.mxu0 0.0
      %1725 = vmatprep.subr.mxu0 0.0
      %1726 = vmatpush1.xpose.msra.mxu0 0.0
      %1727 = vmatprep.subr.mxu0 0.0
      %1728 = vmatpush1.xpose.msra.mxu0 0.0
      %1729 = vmatprep.subr.mxu0 0.0
      %1730 = vmatpush1.xpose.msra.mxu0 0.0
      %1731 = vmatprep.subr.mxu0 0.0
      %1732 = vmatpush1.xpose.msra.mxu0 0.0
      %1733 = vmatprep.subr.mxu0 0.0
      %1734 = vmatpush1.xpose.msra.mxu0 0.0
      %1735 = vmatprep.subr.mxu0 0.0
      %1736 = vmatpush1.xpose.msra.mxu0 0.0
      %1737 = vmatprep.subr.mxu0 0.0
      %1738 = vmatpush1.xpose.msra.mxu0 0.0
      %1739 = vmatprep.subr.mxu0 0.0
      %1740 = vmatpush1.xpose.msra.mxu0 0.0
      %1741 = vmatprep.subr.mxu0 0.0
      %1742 = vmatpush1.xpose.msra.mxu0 0.0
      %1743 = vmatprep.subr.mxu0 0.0
      %1744 = vmatpush1.xpose.msra.mxu0 0.0
      %1745 = vmatprep.subr.mxu0 0.0
      %1746 = vmatpush1.xpose.msra.mxu0 0.0
      %1747 = vmatprep.subr.mxu0 0.0
      %1748 = vmatpush1.xpose.msra.mxu0 0.0
      %1749 = vmatprep.subr.mxu0 0.0
      %1750 = vmatpush1.xpose.msra.mxu0 0.0
      %1751 = vmatprep.subr.mxu0 0.0
      %1752 = vmatpush1.xpose.msra.mxu0 0.0
      %1753 = vmatprep.subr.mxu0 0.0
      %1754 = vmatpush1.xpose.msra.mxu0 0.0
      %1755 = vmatprep.subr.mxu0 0.0
      %1756 = vmatpush1.xpose.msra.mxu0 0.0
      %1757 = vmatprep.subr.mxu0 0.0
      %1758 = vmatpush1.xpose.msra.mxu0 0.0
      %1759 = vmatprep.subr.mxu0 0.0
      %1760 = vmatpush1.xpose.msra.mxu0 0.0
      %1761 = vmatprep.subr.mxu0 0.0
      %1762 = vmatpush1.xpose.msra.mxu0 0.0
      %1763 = vmatprep.subr.mxu0 0.0
      %1764 = vmatpush1.xpose.msra.mxu0 0.0
      %1765 = vmatprep.subr.mxu0 0.0
      %1766 = vmatpush1.xpose.msra.mxu0 0.0
      %1767 = vmatprep.subr.mxu0 0.0
      %1768 = vmatpush1.xpose.msra.mxu0 0.0
      %1769 = vmatprep.subr.mxu0 0.0
      %1770 = vmatpush1.xpose.msra.mxu0 0.0
      %1771 = vmatprep.subr.mxu0 0.0
      %1772 = vmatpush1.xpose.msra.mxu0 0.0
      %1773 = vmatprep.subr.mxu0 0.0
      %1774 = vmatpush1.xpose.msra.mxu0 0.0
      %1775 = vmatprep.subr.mxu0 0.0
      %1776 = vmatpush1.xpose.msra.mxu0 0.0
      %1777 = vmatprep.subr.mxu0 0.0
      %1778 = vmatpush1.xpose.msra.mxu0 0.0
      %1779 = vmatprep.subr.mxu0 0.0
      %1780 = vmatpush1.xpose.msra.mxu0 0.0
      %1781 = vmatprep.subr.mxu0 0.0
      %1782 = vmatpush1.xpose.msra.mxu0 0.0
      %1783 = vmatprep.mubr.f32.mxu0 0.0
      %1784 = vmatmul.mubr.f32.gmra.mrb[0].mxu0 %v1711
      %v1785 = vpop.f32.mrb[0].mxu0
      %v1786 = vadd.f32 0.0, %v1785
      %v1787 = vpop.f32.mrb[0].mxu0
      %1788 = vmatprep.mubr.f32.mxu0 0.0
      %1789 = vmatmul.mubr.f32.gmra.mrb[0].mxu0 %v1713
      %v1790 = vpop.f32.mrb[0].mxu0
      %v1791 = vadd.f32 0.0, %v1790
      %v1792 = vpop.f32.mrb[0].mxu0
      %1793 = vdwg.mxu0
      %v1794 = vmul.f32 %v1786, 0.25
      %v1795 = vmul.f32 %v1791, 0.25
      %v1796 = vsel %vm498, %v1794, -inf
      %1797 = vmax.xlane.f32.xlu0 %v1796
      %v1798 = vpop.xlane.xlu0 %1797
      %v1799 = vsel %vm498, %v1795, -inf
      %1800 = vmax.xlane.f32.xlu0 %v1799
      %v1801 = vpop.xlane.xlu0 %1800
      %v1802 = vsub.f32 %v1794, %v1798
      %v1803 = vsub.f32 %v1795, %v1801
      %v1804 = vmul.f32 %v1802, 1.442695
      %v1805 = vpow.pop %v1804
      %v1806 = vmul.f32 %v1803, 1.442695
      %v1807 = vpow.pop %v1806
      %v1808 = vsel %vm498, %v1805, 0.0
      %1809 = vadd.xlane.f32.xlu0 %v1808
      %v1810 = vpop.xlane.xlu0 %1809
      %v1811 = vsel %vm498, %v1807, 0.0
      %1812 = vadd.xlane.f32.xlu0 %v1811
      %v1813 = vpop.xlane.xlu0 %1812
      %v1814 = vrcp.pop %v1810
      %v1815 = vrcp.pop %v1813
      %v1816 = vmul.f32 %v1805, %v1814
      %v1817 = vmul.f32 %v1807, %v1815
      %1818 = vrot.lane.b32.xlu0 %v490, 32
      %v1819 = vpop.permute.xlu0 %1818
      %1820 = vrot.lane.b32.xlu0 %v495, 32
      %v1821 = vpop.permute.xlu0 %1820
      %v1825 = vsel %vm498, %v1816, 0
      %v1828 = vsel %vm498, %v1817, 0
      %1830 = vmatprep.subr.mxu0 0.0
      %1831 = vmatpush1.msra.mxu0 %v1819
      %1832 = vmatprep.subr.mxu0 0.0
      %1833 = vmatpush1.msra.mxu0 %v1821
      %1834 = vmatprep.subr.mxu0 0.0
      %1835 = vmatpush1.msra.mxu0 0.0
      %1836 = vmatprep.subr.mxu0 0.0
      %1837 = vmatpush1.msra.mxu0 0.0
      %1838 = vmatprep.subr.mxu0 0.0
      %1839 = vmatpush1.msra.mxu0 0.0
      %1840 = vmatprep.subr.mxu0 0.0
      %1841 = vmatpush1.msra.mxu0 0.0
      %1842 = vmatprep.subr.mxu0 0.0
      %1843 = vmatpush1.msra.mxu0 0.0
      %1844 = vmatprep.subr.mxu0 0.0
      %1845 = vmatpush1.msra.mxu0 0.0
      %1846 = vmatprep.subr.mxu0 0.0
      %1847 = vmatpush1.msra.mxu0 0.0
      %1848 = vmatprep.subr.mxu0 0.0
      %1849 = vmatpush1.msra.mxu0 0.0
      %1850 = vmatprep.subr.mxu0 0.0
      %1851 = vmatpush1.msra.mxu0 0.0
      %1852 = vmatprep.subr.mxu0 0.0
      %1853 = vmatpush1.msra.mxu0 0.0
      %1854 = vmatprep.subr.mxu0 0.0
      %1855 = vmatpush1.msra.mxu0 0.0
      %1856 = vmatprep.subr.mxu0 0.0
      %1857 = vmatpush1.msra.mxu0 0.0
      %1858 = vmatprep.subr.mxu0 0.0
      %1859 = vmatpush1.msra.mxu0 0.0
      %1860 = vmatprep.subr.mxu0 0.0
      %1861 = vmatpush1.msra.mxu0 0.0
      %1862 = vmatprep.subr.mxu0 0.0
      %1863 = vmatpush1.msra.mxu0 0.0
      %1864 = vmatprep.subr.mxu0 0.0
      %1865 = vmatpush1.msra.mxu0 0.0
      %1866 = vmatprep.subr.mxu0 0.0
      %1867 = vmatpush1.msra.mxu0 0.0
      %1868 = vmatprep.subr.mxu0 0.0
      %1869 = vmatpush1.msra.mxu0 0.0
      %1870 = vmatprep.subr.mxu0 0.0
      %1871 = vmatpush1.msra.mxu0 0.0
      %1872 = vmatprep.subr.mxu0 0.0
      %1873 = vmatpush1.msra.mxu0 0.0
      %1874 = vmatprep.subr.mxu0 0.0
      %1875 = vmatpush1.msra.mxu0 0.0
      %1876 = vmatprep.subr.mxu0 0.0
      %1877 = vmatpush1.msra.mxu0 0.0
      %1878 = vmatprep.subr.mxu0 0.0
      %1879 = vmatpush1.msra.mxu0 0.0
      %1880 = vmatprep.subr.mxu0 0.0
      %1881 = vmatpush1.msra.mxu0 0.0
      %1882 = vmatprep.subr.mxu0 0.0
      %1883 = vmatpush1.msra.mxu0 0.0
      %1884 = vmatprep.subr.mxu0 0.0
      %1885 = vmatpush1.msra.mxu0 0.0
      %1886 = vmatprep.subr.mxu0 0.0
      %1887 = vmatpush1.msra.mxu0 0.0
      %1888 = vmatprep.subr.mxu0 0.0
      %1889 = vmatpush1.msra.mxu0 0.0
      %1890 = vmatprep.subr.mxu0 0.0
      %1891 = vmatpush1.msra.mxu0 0.0
      %1892 = vmatprep.subr.mxu0 0.0
      %1893 = vmatpush1.msra.mxu0 0.0
      %1894 = vmatprep.mubr.f32.mxu0 0.0
      %1895 = vmatmul.mubr.f32.gmra.mrb[0].mxu0 %v1825
      %v1896 = vpop.f32.mrb[0].mxu0
      %v1897 = vadd.f32 0.0, %v1896
      %v1898 = vpop.f32.mrb[0].mxu0
      %1899 = vmatprep.mubr.f32.mxu0 0.0
      %1900 = vmatmul.mubr.f32.gmra.mrb[0].mxu0 %v1828
      %v1901 = vpop.f32.mrb[0].mxu0
      %v1902 = vadd.f32 0.0, %v1901
      %v1903 = vpop.f32.mrb[0].mxu0
      %1904 = vdwg.mxu0
      %1905 = vrot.lane.b32.xlu0 %v413, 16
      %v1906 = vpop.permute.xlu0 %1905
      %1907 = vrot.lane.b32.xlu0 %v419, 16
      %v1908 = vpop.permute.xlu0 %1907
      %1909 = vrot.lane.b32.xlu0 %v415, 16
      %v1910 = vpop.permute.xlu0 %1909
      %1911 = vrot.lane.b32.xlu0 %v421, 16
      %v1912 = vpop.permute.xlu0 %1911
      %v1913 = vsel %vm498, %v1906, 0
      %v1915 = vsel %vm498, %v1908, 0
      %v1917 = vsel %vm498, %v1910, 0
      %v1919 = vsel %vm498, %v1912, 0
      %1921 = vmatprep.subr.mxu0 0.0
      %1922 = vmatpush1.xpose.msra.mxu0 %v1917
      %1923 = vmatprep.subr.mxu0 0.0
      %1924 = vmatpush1.xpose.msra.mxu0 %v1919
      %1925 = vmatprep.subr.mxu0 0.0
      %1926 = vmatpush1.xpose.msra.mxu0 0.0
      %1927 = vmatprep.subr.mxu0 0.0
      %1928 = vmatpush1.xpose.msra.mxu0 0.0
      %1929 = vmatprep.subr.mxu0 0.0
      %1930 = vmatpush1.xpose.msra.mxu0 0.0
      %1931 = vmatprep.subr.mxu0 0.0
      %1932 = vmatpush1.xpose.msra.mxu0 0.0
      %1933 = vmatprep.subr.mxu0 0.0
      %1934 = vmatpush1.xpose.msra.mxu0 0.0
      %1935 = vmatprep.subr.mxu0 0.0
      %1936 = vmatpush1.xpose.msra.mxu0 0.0
      %1937 = vmatprep.subr.mxu0 0.0
      %1938 = vmatpush1.xpose.msra.mxu0 0.0
      %1939 = vmatprep.subr.mxu0 0.0
      %1940 = vmatpush1.xpose.msra.mxu0 0.0
      %1941 = vmatprep.subr.mxu0 0.0
      %1942 = vmatpush1.xpose.msra.mxu0 0.0
      %1943 = vmatprep.subr.mxu0 0.0
      %1944 = vmatpush1.xpose.msra.mxu0 0.0
      %1945 = vmatprep.subr.mxu0 0.0
      %1946 = vmatpush1.xpose.msra.mxu0 0.0
      %1947 = vmatprep.subr.mxu0 0.0
      %1948 = vmatpush1.xpose.msra.mxu0 0.0
      %1949 = vmatprep.subr.mxu0 0.0
      %1950 = vmatpush1.xpose.msra.mxu0 0.0
      %1951 = vmatprep.subr.mxu0 0.0
      %1952 = vmatpush1.xpose.msra.mxu0 0.0
      %1953 = vmatprep.subr.mxu0 0.0
      %1954 = vmatpush1.xpose.msra.mxu0 0.0
      %1955 = vmatprep.subr.mxu0 0.0
      %1956 = vmatpush1.xpose.msra.mxu0 0.0
      %1957 = vmatprep.subr.mxu0 0.0
      %1958 = vmatpush1.xpose.msra.mxu0 0.0
      %1959 = vmatprep.subr.mxu0 0.0
      %1960 = vmatpush1.xpose.msra.mxu0 0.0
      %1961 = vmatprep.subr.mxu0 0.0
      %1962 = vmatpush1.xpose.msra.mxu0 0.0
      %1963 = vmatprep.subr.mxu0 0.0
      %1964 = vmatpush1.xpose.msra.mxu0 0.0
      %1965 = vmatprep.subr.mxu0 0.0
      %1966 = vmatpush1.xpose.msra.mxu0 0.0
      %1967 = vmatprep.subr.mxu0 0.0
      %1968 = vmatpush1.xpose.msra.mxu0 0.0
      %1969 = vmatprep.subr.mxu0 0.0
      %1970 = vmatpush1.xpose.msra.mxu0 0.0
      %1971 = vmatprep.subr.mxu0 0.0
      %1972 = vmatpush1.xpose.msra.mxu0 0.0
      %1973 = vmatprep.subr.mxu0 0.0
      %1974 = vmatpush1.xpose.msra.mxu0 0.0
      %1975 = vmatprep.subr.mxu0 0.0
      %1976 = vmatpush1.xpose.msra.mxu0 0.0
      %1977 = vmatprep.subr.mxu0 0.0
      %1978 = vmatpush1.xpose.msra.mxu0 0.0
      %1979 = vmatprep.subr.mxu0 0.0
      %1980 = vmatpush1.xpose.msra.mxu0 0.0
      %1981 = vmatprep.subr.mxu0 0.0
      %1982 = vmatpush1.xpose.msra.mxu0 0.0
      %1983 = vmatprep.subr.mxu0 0.0
      %1984 = vmatpush1.xpose.msra.mxu0 0.0
      %1985 = vmatprep.mubr.f32.mxu0 0.0
      %1986 = vmatmul.mubr.f32.gmra.mrb[0].mxu0 %v1913
      %v1987 = vpop.f32.mrb[0].mxu0
      %v1988 = vadd.f32 0.0, %v1987
      %v1989 = vpop.f32.mrb[0].mxu0
      %1990 = vmatprep.mubr.f32.mxu0 0.0
      %1991 = vmatmul.mubr.f32.gmra.mrb[0].mxu0 %v1915
      %v1992 = vpop.f32.mrb[0].mxu0
      %v1993 = vadd.f32 0.0, %v1992
      %v1994 = vpop.f32.mrb[0].mxu0
      %1995 = vdwg.mxu0
      %v1996 = vmul.f32 %v1988, 0.25
      %v1997 = vmul.f32 %v1993, 0.25
      %v1998 = vsel %vm498, %v1996, -inf
      %1999 = vmax.xlane.f32.xlu0 %v1998
      %v2000 = vpop.xlane.xlu0 %1999
      %v2001 = vsel %vm498, %v1997, -inf
      %2002 = vmax.xlane.f32.xlu0 %v2001
      %v2003 = vpop.xlane.xlu0 %2002
      %v2004 = vsub.f32 %v1996, %v2000
      %v2005 = vsub.f32 %v1997, %v2003
      %v2006 = vmul.f32 %v2004, 1.442695
      %v2007 = vpow.pop %v2006
      %v2008 = vmul.f32 %v2005, 1.442695
      %v2009 = vpow.pop %v2008
      %v2010 = vsel %vm498, %v2007, 0.0
      %2011 = vadd.xlane.f32.xlu0 %v2010
      %v2012 = vpop.xlane.xlu0 %2011
      %v2013 = vsel %vm498, %v2009, 0.0
      %2014 = vadd.xlane.f32.xlu0 %v2013
      %v2015 = vpop.xlane.xlu0 %2014
      %v2016 = vrcp.pop %v2012
      %v2017 = vrcp.pop %v2015
      %v2018 = vmul.f32 %v2007, %v2016
      %v2019 = vmul.f32 %v2009, %v2017
      %2020 = vrot.lane.b32.xlu0 %v490, 16
      %v2021 = vpop.permute.xlu0 %2020
      %2022 = vrot.lane.b32.xlu0 %v495, 16
      %v2023 = vpop.permute.xlu0 %2022
      %v2027 = vsel %vm498, %v2018, 0
      %v2030 = vsel %vm498, %v2019, 0
      %2032 = vmatprep.subr.mxu0 0.0
      %2033 = vmatpush1.msra.mxu0 %v2021
      %2034 = vmatprep.subr.mxu0 0.0
      %2035 = vmatpush1.msra.mxu0 %v2023
      %2036 = vmatprep.subr.mxu0 0.0
      %2037 = vmatpush1.msra.mxu0 0.0
      %2038 = vmatprep.subr.mxu0 0.0
      %2039 = vmatpush1.msra.mxu0 0.0
      %2040 = vmatprep.subr.mxu0 0.0
      %2041 = vmatpush1.msra.mxu0 0.0
      %2042 = vmatprep.subr.mxu0 0.0
      %2043 = vmatpush1.msra.mxu0 0.0
      %2044 = vmatprep.subr.mxu0 0.0
      %2045 = vmatpush1.msra.mxu0 0.0
      %2046 = vmatprep.subr.mxu0 0.0
      %2047 = vmatpush1.msra.mxu0 0.0
      %2048 = vmatprep.subr.mxu0 0.0
      %2049 = vmatpush1.msra.mxu0 0.0
      %2050 = vmatprep.subr.mxu0 0.0
      %2051 = vmatpush1.msra.mxu0 0.0
      %2052 = vmatprep.subr.mxu0 0.0
      %2053 = vmatpush1.msra.mxu0 0.0
      %2054 = vmatprep.subr.mxu0 0.0
      %2055 = vmatpush1.msra.mxu0 0.0
      %2056 = vmatprep.subr.mxu0 0.0
      %2057 = vmatpush1.msra.mxu0 0.0
      %2058 = vmatprep.subr.mxu0 0.0
      %2059 = vmatpush1.msra.mxu0 0.0
      %2060 = vmatprep.subr.mxu0 0.0
      %2061 = vmatpush1.msra.mxu0 0.0
      %2062 = vmatprep.subr.mxu0 0.0
      %2063 = vmatpush1.msra.mxu0 0.0
      %2064 = vmatprep.subr.mxu0 0.0
      %2065 = vmatpush1.msra.mxu0 0.0
      %2066 = vmatprep.subr.mxu0 0.0
      %2067 = vmatpush1.msra.mxu0 0.0
      %2068 = vmatprep.subr.mxu0 0.0
      %2069 = vmatpush1.msra.mxu0 0.0
      %2070 = vmatprep.subr.mxu0 0.0
      %2071 = vmatpush1.msra.mxu0 0.0
      %2072 = vmatprep.subr.mxu0 0.0
      %2073 = vmatpush1.msra.mxu0 0.0
      %2074 = vmatprep.subr.mxu0 0.0
      %2075 = vmatpush1.msra.mxu0 0.0
      %2076 = vmatprep.subr.mxu0 0.0
      %2077 = vmatpush1.msra.mxu0 0.0
      %2078 = vmatprep.subr.mxu0 0.0
      %2079 = vmatpush1.msra.mxu0 0.0
      %2080 = vmatprep.subr.mxu0 0.0
      %2081 = vmatpush1.msra.mxu0 0.0
      %2082 = vmatprep.subr.mxu0 0.0
      %2083 = vmatpush1.msra.mxu0 0.0
      %2084 = vmatprep.subr.mxu0 0.0
      %2085 = vmatpush1.msra.mxu0 0.0
      %2086 = vmatprep.subr.mxu0 0.0
      %2087 = vmatpush1.msra.mxu0 0.0
      %2088 = vmatprep.subr.mxu0 0.0
      %2089 = vmatpush1.msra.mxu0 0.0
      %2090 = vmatprep.subr.mxu0 0.0
      %2091 = vmatpush1.msra.mxu0 0.0
      %2092 = vmatprep.subr.mxu0 0.0
      %2093 = vmatpush1.msra.mxu0 0.0
      %2094 = vmatprep.subr.mxu0 0.0
      %2095 = vmatpush1.msra.mxu0 0.0
      %2096 = vmatprep.mubr.f32.mxu0 0.0
      %2097 = vmatmul.mubr.f32.gmra.mrb[0].mxu0 %v2027
      %v2098 = vpop.f32.mrb[0].mxu0
      %v2099 = vadd.f32 0.0, %v2098
      %v2100 = vpop.f32.mrb[0].mxu0
      %2101 = vmatprep.mubr.f32.mxu0 0.0
      %2102 = vmatmul.mubr.f32.gmra.mrb[0].mxu0 %v2030
      %v2103 = vpop.f32.mrb[0].mxu0
      %v2104 = vadd.f32 0.0, %v2103
      %v2105 = vpop.f32.mrb[0].mxu0
      %2106 = vdwg.mxu0
      %2109 = vrot.lane.b32.xlu0 %v887, 16
      %v2110 = vpop.permute.xlu0 %2109
      %2111 = vrot.lane.b32.xlu0 %v892, 16
      %v2112 = vpop.permute.xlu0 %2111
      %2117 = vrot.lane.b32.xlu0 %v1089, 32
      %v2118 = vpop.permute.xlu0 %2117
      %2119 = vrot.lane.b32.xlu0 %v1094, 32
      %v2120 = vpop.permute.xlu0 %2119
      %2125 = vrot.lane.b32.xlu0 %v1291, 48
      %v2126 = vpop.permute.xlu0 %2125
      %2127 = vrot.lane.b32.xlu0 %v1296, 48
      %v2128 = vpop.permute.xlu0 %2127
      %2133 = vrot.lane.b32.xlu0 %v1493, 64
      %v2134 = vpop.permute.xlu0 %2133
      %2135 = vrot.lane.b32.xlu0 %v1498, 64
      %v2136 = vpop.permute.xlu0 %2135
      %2141 = vrot.lane.b32.xlu0 %v1695, 80
      %v2142 = vpop.permute.xlu0 %2141
      %2143 = vrot.lane.b32.xlu0 %v1700, 80
      %v2144 = vpop.permute.xlu0 %2143
      %2149 = vrot.lane.b32.xlu0 %v1897, 96
      %v2150 = vpop.permute.xlu0 %2149
      %2151 = vrot.lane.b32.xlu0 %v1902, 96
      %v2152 = vpop.permute.xlu0 %2151
      %2157 = vrot.lane.b32.xlu0 %v2099, 112
      %v2158 = vpop.permute.xlu0 %2157
      %2159 = vrot.lane.b32.xlu0 %v2104, 112
      %v2160 = vpop.permute.xlu0 %2159
      %v2163 = vsel %vm498, %v683, %v2110
      %v2164 = vsel %vm498, %v688, %v2112
      %vm2165 = vcmask 261120
      %v2166 = vsel %vm2165, %v2163, %v2118
      %v2167 = vsel %vm2165, %v2164, %v2120
      %vm2168 = vcmask 392192
      %v2169 = vsel %vm2168, %v2166, %v2126
      %v2170 = vsel %vm2168, %v2167, %v2128
      %vm2171 = vcmask 523264
      %v2172 = vsel %vm2171, %v2169, %v2134
      %v2173 = vsel %vm2171, %v2170, %v2136
      %vm2174 = vcmask 654336
      %v2175 = vsel %vm2174, %v2172, %v2142
      %v2176 = vsel %vm2174, %v2173, %v2144
      %vm2177 = vcmask 785408
      %v2178 = vsel %vm2177, %v2175, %v2150
      %v2179 = vsel %vm2177, %v2176, %v2152
      %vm2180 = vcmask 916480
      %v2181 = vsel %vm2180, %v2178, %v2158
      %v2182 = vsel %vm2180, %v2179, %v2160
      %v2183 = vld [vmem:[%s3] sm:$0xff]
      %v2184 = vld [vmem:[%s3 + $0x8] sm:$0xff]
      %v2185 = vld [vmem:[%s3 + $0x10] sm:$0xff]
      %v2186 = vld [vmem:[%s3 + $0x18] sm:$0xff]
      %v2187 = vld [vmem:[%s3 + $0x20] sm:$0xff]
      %v2188 = vld [vmem:[%s3 + $0x28] sm:$0xff]
      %v2189 = vld [vmem:[%s3 + $0x30] sm:$0xff]
      %v2190 = vld [vmem:[%s3 + $0x38] sm:$0xff]
      %v2191 = vld [vmem:[%s3 + $0x40] sm:$0xff]
      %v2192 = vld [vmem:[%s3 + $0x48] sm:$0xff]
      %v2193 = vld [vmem:[%s3 + $0x50] sm:$0xff]
      %v2194 = vld [vmem:[%s3 + $0x58] sm:$0xff]
      %v2195 = vld [vmem:[%s3 + $0x60] sm:$0xff]
      %v2196 = vld [vmem:[%s3 + $0x68] sm:$0xff]
      %v2197 = vld [vmem:[%s3 + $0x70] sm:$0xff]
      %v2198 = vld [vmem:[%s3 + $0x78] sm:$0xff]
      %v2199 = vld [vmem:[%s4] sm:$0x1]
      %v2201 = vlaneseq
      %v2202 = vshrl.u32 %v2201, 7
      %v2203 = vsub.s32 0, %v2202
      %v2204 = vrot.slane %v2199, %v2203
      %2206 = vmatprep.subr.mxu0 0.0
      %2207 = vmatpush1.msra.mxu0 %v2183
      %2208 = vmatprep.subr.mxu0 0.0
      %2209 = vmatpush1.msra.mxu0 %v2184
      %2210 = vmatprep.subr.mxu0 0.0
      %2211 = vmatpush1.msra.mxu0 %v2185
      %2212 = vmatprep.subr.mxu0 0.0
      %2213 = vmatpush1.msra.mxu0 %v2186
      %2214 = vmatprep.subr.mxu0 0.0
      %2215 = vmatpush1.msra.mxu0 %v2187
      %2216 = vmatprep.subr.mxu0 0.0
      %2217 = vmatpush1.msra.mxu0 %v2188
      %2218 = vmatprep.subr.mxu0 0.0
      %2219 = vmatpush1.msra.mxu0 %v2189
      %2220 = vmatprep.subr.mxu0 0.0
      %2221 = vmatpush1.msra.mxu0 %v2190
      %2222 = vmatprep.subr.mxu0 0.0
      %2223 = vmatpush1.msra.mxu0 %v2191
      %2224 = vmatprep.subr.mxu0 0.0
      %2225 = vmatpush1.msra.mxu0 %v2192
      %2226 = vmatprep.subr.mxu0 0.0
      %2227 = vmatpush1.msra.mxu0 %v2193
      %2228 = vmatprep.subr.mxu0 0.0
      %2229 = vmatpush1.msra.mxu0 %v2194
      %2230 = vmatprep.subr.mxu0 0.0
      %2231 = vmatpush1.msra.mxu0 %v2195
      %2232 = vmatprep.subr.mxu0 0.0
      %2233 = vmatpush1.msra.mxu0 %v2196
      %2234 = vmatprep.subr.mxu0 0.0
      %2235 = vmatpush1.msra.mxu0 %v2197
      %2236 = vmatprep.subr.mxu0 0.0
      %2237 = vmatpush1.msra.mxu0 %v2198
      %2238 = vmatprep.subr.mxu0 0.0
      %2239 = vmatpush1.msra.mxu0 0.0
      %2240 = vmatprep.subr.mxu0 0.0
      %2241 = vmatpush1.msra.mxu0 0.0
      %2242 = vmatprep.subr.mxu0 0.0
      %2243 = vmatpush1.msra.mxu0 0.0
      %2244 = vmatprep.subr.mxu0 0.0
      %2245 = vmatpush1.msra.mxu0 0.0
      %2246 = vmatprep.subr.mxu0 0.0
      %2247 = vmatpush1.msra.mxu0 0.0
      %2248 = vmatprep.subr.mxu0 0.0
      %2249 = vmatpush1.msra.mxu0 0.0
      %2250 = vmatprep.subr.mxu0 0.0
      %2251 = vmatpush1.msra.mxu0 0.0
      %2252 = vmatprep.subr.mxu0 0.0
      %2253 = vmatpush1.msra.mxu0 0.0
      %2254 = vmatprep.subr.mxu0 0.0
      %2255 = vmatpush1.msra.mxu0 0.0
      %2256 = vmatprep.subr.mxu0 0.0
      %2257 = vmatpush1.msra.mxu0 0.0
      %2258 = vmatprep.subr.mxu0 0.0
      %2259 = vmatpush1.msra.mxu0 0.0
      %2260 = vmatprep.subr.mxu0 0.0
      %2261 = vmatpush1.msra.mxu0 0.0
      %2262 = vmatprep.subr.mxu0 0.0
      %2263 = vmatpush1.msra.mxu0 0.0
      %2264 = vmatprep.subr.mxu0 0.0
      %2265 = vmatpush1.msra.mxu0 0.0
      %2266 = vmatprep.subr.mxu0 0.0
      %2267 = vmatpush1.msra.mxu0 0.0
      %2268 = vmatprep.subr.mxu0 0.0
      %2269 = vmatpush1.msra.mxu0 0.0
      %2270 = vmatprep.mubr.f32.mxu0 0.0
      %2271 = vmatmul.mubr.f32.gmra.mrb[0].mxu0 %v2181
      %v2272 = vpop.f32.mrb[0].mxu0
      %v2273 = vadd.f32 %v2204, %v2272
      %v2274 = vpop.f32.mrb[0].mxu0
      %2275 = vmatprep.mubr.f32.mxu0 0.0
      %2276 = vmatmul.mubr.f32.gmra.mrb[0].mxu0 %v2182
      %v2277 = vpop.f32.mrb[0].mxu0
      %v2278 = vadd.f32 %v2204, %v2277
      %v2279 = vpop.f32.mrb[0].mxu0
      %2280 = vdwg.mxu0
      %v2281 = vadd.f32 %v2273, %v279
      %v2282 = vadd.f32 %v2278, %v280
      %v2283 = vld [vmem:[%s5] sm:$0x1]
      %v2284 = vld [vmem:[%s6] sm:$0x1]
      %2285 = vadd.xlane.f32.xlu0 %v2281
      %v2286 = vpop.xlane.xlu0 %2285
      %2287 = vadd.xlane.f32.xlu0 %v2282
      %v2288 = vpop.xlane.xlu0 %2287
      %v2289 = vrcp.pop 128.0
      %v2290 = vmul.f32 %v2286, %v2289
      %v2291 = vmul.f32 %v2288, %v2289
      %v2292 = vsub.f32 %v2281, %v2290
      %v2293 = vsub.f32 %v2282, %v2291
      %v2294 = vmul.f32 %v2292, %v2292
      %v2295 = vmul.f32 %v2293, %v2293
      %2296 = vadd.xlane.f32.xlu0 %v2294
      %v2297 = vpop.xlane.xlu0 %2296
      %2298 = vadd.xlane.f32.xlu0 %v2295
      %v2299 = vpop.xlane.xlu0 %2298
      %v2300 = vmul.f32 %v2297, %v2289
      %v2301 = vmul.f32 %v2299, %v2289
      %v2302 = vadd.f32 %v2300, 1e-05
      %v2303 = vadd.f32 %v2301, 1e-05
      %v2304 = vrsqrt.pop %v2302
      %v2305 = vrsqrt.pop %v2303
      %v2306 = vmul.f32 %v2292, %v2304
      %v2307 = vmul.f32 %v2293, %v2305
      %v2309 = vlaneseq
      %v2310 = vshrl.u32 %v2309, 7
      %v2311 = vsub.s32 0, %v2310
      %v2312 = vrot.slane %v2283, %v2311
      %v2314 = vmul.f32 %v2306, %v2312
      %v2315 = vmul.f32 %v2307, %v2312
      %v2317 = vlaneseq
      %v2318 = vshrl.u32 %v2317, 7
      %v2319 = vsub.s32 0, %v2318
      %v2320 = vrot.slane %v2284, %v2319
      %v2322 = vadd.f32 %v2314, %v2320
      %v2323 = vadd.f32 %v2315, %v2320
      %2324 = vst [vmem:[%s278] sm:$0xff] %v2322
      %2325 = vst [vmem:[%s278 + $0x8] sm:$0xff] %v2323
      %p2326 = scmp.lt.s32.totalorder %s18, 1
      %s2327 = scalar_select %p2326, %s18, 1
      %s2328 = smul.addr %s2327, 2
      %s2329 = smul.addr %s2328, 8
      %s2330 = scalar_lea.vmem %s7, %s2329
      // Predicated region
      $region49: #{interaction_forward.13} parent=47 // pred_check
        %p2331 = pneg %p188
      $region50: #{interaction_forward.13} parent=47 // pred_check_branch
        %2333 = sbr.rel (%p2331) target = $region52
      $region51: #{interaction_forward.13} parent=47 // pred_region
        _
      $region52: #{interaction_forward.13} parent=47 // pred_fallthru
        _
    $region48: #{interaction_forward.13} parent=5 // pred_fallthru
      _
    %p2334 = scmp.le.s32.totalorder 2, %s13
    // Predicated region
    $region53: #{interaction_forward.13} parent=5 // pred_check
      %p2335 = pneg %p2334
    $region54: #{interaction_forward.13} parent=5 // pred_check_branch
      %2337 = sbr.rel (%p2335) target = $region56
    $region55: #{interaction_forward.13} parent=5 // pred_region
      %s2338 = ssub.s32 %s13, 2
      // Predicated region
      $region57: #{interaction_forward.13} parent=55 // pred_check
        %p2339 = pneg %p194
      $region58: #{interaction_forward.13} parent=55 // pred_check_branch
        %2341 = sbr.rel (%p2339) target = $region60
      $region59: #{interaction_forward.13} parent=55 // pred_region
        %p2342 = scmp.lt.s32.totalorder %s19, 1
        %s2343 = scalar_select %p2342, %s19, 1
        %s2344 = smul.addr %s2343, 2
        %s2345 = smul.addr %s2344, 8
        %s2346 = scalar_lea.vmem %s7, %s2345
      $region60: #{interaction_forward.13} parent=55 // pred_fallthru
        _
    $region56: #{interaction_forward.13} parent=5 // pred_fallthru
      _
  $region6: #{interaction_forward.13} parent=0 // loop_footer
    %s17 = sadd.s32 1, %s13
  $region7: #{interaction_forward.13} parent=0 // loop_footer_branch
    %12 = sbr.rel target = $region3
  $region8: #{interaction_forward.13} parent=0 // loop_exit
    _

// kernel: interaction_forward.14
$region0: #{interaction_forward.14}
  #allocation0 [shape = 'u32[]', space=smem, size = 0x4, offset = 0x4, fixed_abs, tag = 'smem constant byte address 0x4 - core index']
  #allocation1 [shape = 'u32[144,128]{1,0:T(1,128)}', space=vmem, size = 0x12000, scoped, tag = 'internal scratch']
  %s0 = inlined_call_operand.vmem [shape: f32[2,16,128], index: 0, kind: input, shape index: {}]
  %s1 = inlined_call_operand.vmem [shape: f32[2,2,16,64], index: 1, kind: input, shape index: {}]
  %s2 = inlined_call_operand.vmem [shape: f32[2,2,16,128], index: 2, kind: input, shape index: {}]
  %s3 = inlined_call_operand.vmem [shape: f32[128,128], index: 3, kind: input, shape index: {}]
  %s4 = inlined_call_operand.vmem [shape: f32[64,128], index: 4, kind: input, shape index: {}]
  %s5 = inlined_call_operand.vmem [shape: f32[1,128], index: 5, kind: input, shape index: {}]
  %s6 = inlined_call_operand.vmem [shape: f32[2,2,16,128], index: 6, kind: output, shape index: {}]
  %s7 = sld [smem:[#allocation0]]
  $region57: #{interaction_forward.14} parent=0
    _
  %s9 = ssub.s32 1, %s7
  %s10 = scalar_select 0, %s9, %s7
  loop: start=0, step=1, limit=4
  $region2: #{interaction_forward.14} parent=0 // loop_pre_header
    _
  $region3: #{interaction_forward.14} parent=0 // loop_header
    %s12 = sphi 0, %s16
    %p13 = scmp.ge.s32.totalorder %s12, 4
    %s22 = sphi 0, %s24
    %s25 = sphi 0, %s22
    %s26 = sphi 0, %s25
    %s42 = sphi 0, %s26
    %s48 = sphi 0, %s50
    %s51 = sphi 0, %s48
    %s52 = sphi 0, %s51
    %s68 = sphi 0, %s52
    %s74 = sphi 0, %s76
    %s77 = sphi 0, %s74
    %s78 = sphi 0, %s77
    %s94 = sphi 0, %s78
    %s98 = sphi 0, %s98
    %s100 = sphi 0, %s98
    %s101 = sphi 0, %s100
    %s115 = sphi 0, %s101
    %s119 = sphi 0, %s119
    %s121 = sphi 0, %s119
    %s122 = sphi 0, %s121
    %s136 = sphi 0, %s122
    %s140 = sphi 0, %s140
    %s142 = sphi 0, %s140
    %s143 = sphi 0, %s142
    %s157 = sphi 0, %s143
    %s163 = sphi 0, %s165
    %s166 = sphi 0, %s163
    %s167 = sphi 0, %s166
    %s183 = sphi 0, %s167
  $region4: #{interaction_forward.14} parent=0 // loop_header_branch
    %15 = sbr.rel (%p13) target = $region8
  $region5: #{interaction_forward.14} parent=0 // loop_body
    %s17 = ssub.s32 %s12, 1
    %s18 = ssub.s32 %s12, 2
    %s19 = sadd.s32 %s12, 1
    %s20 = ssub.s32 %s12, %s19
    %p21 = scmp.eq.s32.totalorder %s20, 0
    %s23 = sadd.s32 %s22, 1
    %s24 = scalar_select %p21, %s22, %s23
    %p27 = pneg %p21
    %p28 = scmp.eq.s32.totalorder %s12, 1
    %p29 = por %p27, %p28
    %p30 = scmp.ne.s32.totalorder %s22, %s25
    %p31 = scmp.eq.s32.totalorder %s12, 0
    %p32 = por %p30, %p31
    %p33 = scmp.ne.s32.totalorder %s22, %s25
    %p34 = scmp.eq.s32.totalorder %s17, 1
    %p35 = por %p33, %p34
    %p36 = scmp.ne.s32.totalorder %s25, %s26
    %p37 = scmp.eq.s32.totalorder %s17, 0
    %p38 = por %p36, %p37
    %p39 = scmp.ne.s32.totalorder %s25, %s26
    %p40 = scmp.eq.s32.totalorder %s18, 1
    %p41 = por %p39, %p40
    %p43 = scmp.ne.s32.totalorder %s26, %s42
    %p44 = scmp.eq.s32.totalorder %s18, 0
    %p45 = por %p43, %p44
    %s46 = ssub.s32 %s12, %s19
    %p47 = scmp.eq.s32.totalorder %s46, 0
    %s49 = sadd.s32 %s48, 1
    %s50 = scalar_select %p47, %s48, %s49
    %p53 = pneg %p47
    %p54 = scmp.eq.s32.totalorder %s12, 1
    %p55 = por %p53, %p54
    %p56 = scmp.ne.s32.totalorder %s48, %s51
    %p57 = scmp.eq.s32.totalorder %s12, 0
    %p58 = por %p56, %p57
    %p59 = scmp.ne.s32.totalorder %s48, %s51
    %p60 = scmp.eq.s32.totalorder %s17, 1
    %p61 = por %p59, %p60
    %p62 = scmp.ne.s32.totalorder %s51, %s52
    %p63 = scmp.eq.s32.totalorder %s17, 0
    %p64 = por %p62, %p63
    %p65 = scmp.ne.s32.totalorder %s51, %s52
    %p66 = scmp.eq.s32.totalorder %s18, 1
    %p67 = por %p65, %p66
    %p69 = scmp.ne.s32.totalorder %s52, %s68
    %p70 = scmp.eq.s32.totalorder %s18, 0
    %p71 = por %p69, %p70
    %s72 = ssub.s32 %s12, %s19
    %p73 = scmp.eq.s32.totalorder %s72, 0
    %s75 = sadd.s32 %s74, 1
    %s76 = scalar_select %p73, %s74, %s75
    %p79 = pneg %p73
    %p80 = scmp.eq.s32.totalorder %s12, 1
    %p81 = por %p79, %p80
    %p82 = scmp.ne.s32.totalorder %s74, %s77
    %p83 = scmp.eq.s32.totalorder %s12, 0
    %p84 = por %p82, %p83
    %p85 = scmp.ne.s32.totalorder %s74, %s77
    %p86 = scmp.eq.s32.totalorder %s17, 1
    %p87 = por %p85, %p86
    %p88 = scmp.ne.s32.totalorder %s77, %s78
    %p89 = scmp.eq.s32.totalorder %s17, 0
    %p90 = por %p88, %p89
    %p91 = scmp.ne.s32.totalorder %s77, %s78
    %p92 = scmp.eq.s32.totalorder %s18, 1
    %p93 = por %p91, %p92
    %p95 = scmp.ne.s32.totalorder %s78, %s94
    %p96 = scmp.eq.s32.totalorder %s18, 0
    %p97 = por %p95, %p96
    %s99 = sadd.s32 %s98, 1
    %p102 = scmp.eq.s32.totalorder %s12, 1
    %p103 = scmp.ne.s32.totalorder %s98, %s100
    %p104 = scmp.eq.s32.totalorder %s12, 0
    %p105 = por %p103, %p104
    %p106 = scmp.ne.s32.totalorder %s98, %s100
    %p107 = scmp.eq.s32.totalorder %s17, 1
    %p108 = por %p106, %p107
    %p109 = scmp.ne.s32.totalorder %s100, %s101
    %p110 = scmp.eq.s32.totalorder %s17, 0
    %p111 = por %p109, %p110
    %p112 = scmp.ne.s32.totalorder %s100, %s101
    %p113 = scmp.eq.s32.totalorder %s18, 1
    %p114 = por %p112, %p113
    %p116 = scmp.ne.s32.totalorder %s101, %s115
    %p117 = scmp.eq.s32.totalorder %s18, 0
    %p118 = por %p116, %p117
    %s120 = sadd.s32 %s119, 1
    %p123 = scmp.eq.s32.totalorder %s12, 1
    %p124 = scmp.ne.s32.totalorder %s119, %s121
    %p125 = scmp.eq.s32.totalorder %s12, 0
    %p126 = por %p124, %p125
    %p127 = scmp.ne.s32.totalorder %s119, %s121
    %p128 = scmp.eq.s32.totalorder %s17, 1
    %p129 = por %p127, %p128
    %p130 = scmp.ne.s32.totalorder %s121, %s122
    %p131 = scmp.eq.s32.totalorder %s17, 0
    %p132 = por %p130, %p131
    %p133 = scmp.ne.s32.totalorder %s121, %s122
    %p134 = scmp.eq.s32.totalorder %s18, 1
    %p135 = por %p133, %p134
    %p137 = scmp.ne.s32.totalorder %s122, %s136
    %p138 = scmp.eq.s32.totalorder %s18, 0
    %p139 = por %p137, %p138
    %s141 = sadd.s32 %s140, 1
    %p144 = scmp.eq.s32.totalorder %s12, 1
    %p145 = scmp.ne.s32.totalorder %s140, %s142
    %p146 = scmp.eq.s32.totalorder %s12, 0
    %p147 = por %p145, %p146
    %p148 = scmp.ne.s32.totalorder %s140, %s142
    %p149 = scmp.eq.s32.totalorder %s17, 1
    %p150 = por %p148, %p149
    %p151 = scmp.ne.s32.totalorder %s142, %s143
    %p152 = scmp.eq.s32.totalorder %s17, 0
    %p153 = por %p151, %p152
    %p154 = scmp.ne.s32.totalorder %s142, %s143
    %p155 = scmp.eq.s32.totalorder %s18, 1
    %p156 = por %p154, %p155
    %p158 = scmp.ne.s32.totalorder %s143, %s157
    %p159 = scmp.eq.s32.totalorder %s18, 0
    %p160 = por %p158, %p159
    %s161 = ssub.s32 %s12, %s19
    %p162 = scmp.eq.s32.totalorder %s161, 0
    %s164 = sadd.s32 %s163, 1
    %s165 = scalar_select %p162, %s163, %s164
    %p168 = pneg %p162
    %p169 = scmp.eq.s32.totalorder %s12, 1
    %p170 = por %p168, %p169
    %p171 = scmp.ne.s32.totalorder %s163, %s166
    %p172 = scmp.eq.s32.totalorder %s12, 0
    %p173 = por %p171, %p172
    %p174 = scmp.ne.s32.totalorder %s163, %s166
    %p175 = scmp.eq.s32.totalorder %s17, 1
    %p176 = por %p174, %p175
    %p177 = scmp.ne.s32.totalorder %s166, %s167
    %p178 = scmp.eq.s32.totalorder %s17, 0
    %p179 = por %p177, %p178
    %p180 = scmp.ne.s32.totalorder %s166, %s167
    %p181 = scmp.eq.s32.totalorder %s18, 1
    %p182 = por %p180, %p181
    %p184 = scmp.ne.s32.totalorder %s167, %s183
    %p185 = scmp.eq.s32.totalorder %s18, 0
    %p186 = por %p184, %p185
    %p187 = scmp.le.s32.totalorder 1, %s12
    %p188 = scmp.lt.s32.totalorder %s12, 3
    %p189 = pnand %p187, %p188
    %p190 = pneg %p189
    // Predicated region
    $region9: #{interaction_forward.14} parent=5 // pred_check
      _
    $region10: #{interaction_forward.14} parent=5 // pred_check_branch
      %192 = sbr.rel (%p189) target = $region12
    $region11: #{interaction_forward.14} parent=5 // pred_region
      %s193 = ssub.s32 %s12, 1
      // Predicated region
      $region13: #{interaction_forward.14} parent=11 // pred_check
        %p194 = pneg %p111
      $region14: #{interaction_forward.14} parent=11 // pred_check_branch
        %196 = sbr.rel (%p194) target = $region16
      $region15: #{interaction_forward.14} parent=11 // pred_region
        _
      $region16: #{interaction_forward.14} parent=11 // pred_fallthru
        _
      // Predicated region
      $region17: #{interaction_forward.14} parent=11 // pred_check
        %p197 = pneg %p132
      $region18: #{interaction_forward.14} parent=11 // pred_check_branch
        %199 = sbr.rel (%p197) target = $region20
      $region19: #{interaction_forward.14} parent=11 // pred_region
        _
      $region20: #{interaction_forward.14} parent=11 // pred_fallthru
        _
      // Predicated region
      $region21: #{interaction_forward.14} parent=11 // pred_check
        %p200 = pneg %p153
      $region22: #{interaction_forward.14} parent=11 // pred_check_branch
        %202 = sbr.rel (%p200) target = $region24
      $region23: #{interaction_forward.14} parent=11 // pred_region
        _
      $region24: #{interaction_forward.14} parent=11 // pred_fallthru
        _
    $region12: #{interaction_forward.14} parent=5 // pred_fallthru
      _
    %p203 = scmp.lt.s32.totalorder %s12, 2
    // Predicated region
    $region25: #{interaction_forward.14} parent=5 // pred_check
      %p204 = pneg %p203
    $region26: #{interaction_forward.14} parent=5 // pred_check_branch
      %206 = sbr.rel (%p204) target = $region28
    $region27: #{interaction_forward.14} parent=5 // pred_region
      // Predicated region
      $region29: #{interaction_forward.14} parent=27 // pred_check
        %p207 = pneg %p32
      $region30: #{interaction_forward.14} parent=27 // pred_check_branch
        %209 = sbr.rel (%p207) target = $region32
      $region31: #{interaction_forward.14} parent=27 // pred_region
        %p210 = scmp.lt.s32.totalorder %s12, 1
        %s211 = scalar_select %p210, %s12, 1
        %s212 = smul.addr %s211, 2
        %s213 = smul.addr %s212, 8
        %s214 = scalar_lea.vmem %s0, %s213
      $region32: #{interaction_forward.14} parent=27 // pred_fallthru
        _
      // Predicated region
      $region33: #{interaction_forward.14} parent=27 // pred_check
        %p215 = pneg %p58
      $region34: #{interaction_forward.14} parent=27 // pred_check_branch
        %217 = sbr.rel (%p215) target = $region36
      $region35: #{interaction_forward.14} parent=27 // pred_region
        %p218 = scmp.lt.s32.totalorder %s12, 1
        %s219 = scalar_select %p218, %s12, 1
        %s220 = smul.addr %s219, 4
        %s221 = smul.addr %s220, 8
        %s222 = scalar_lea.vmem %s1, %s221
      $region36: #{interaction_forward.14} parent=27 // pred_fallthru
        _
      // Predicated region
      $region37: #{interaction_forward.14} parent=27 // pred_check
        %p223 = pneg %p84
      $region38: #{interaction_forward.14} parent=27 // pred_check_branch
        %225 = sbr.rel (%p223) target = $region40
      $region39: #{interaction_forward.14} parent=27 // pred_region
        %p226 = scmp.lt.s32.totalorder %s12, 1
        %s227 = scalar_select %p226, %s12, 1
        %s228 = smul.addr %s227, 4
        %s229 = smul.addr %s228, 8
        %s230 = scalar_lea.vmem %s2, %s229
      $region40: #{interaction_forward.14} parent=27 // pred_fallthru
        _
    $region28: #{interaction_forward.14} parent=5 // pred_fallthru
      _
    %p231 = scmp.le.s32.totalorder 1, %s12
    %p232 = scmp.lt.s32.totalorder %s12, 3
    %p233 = pnand %p231, %p232
    %p234 = pneg %p233
    // Predicated region
    $region41: #{interaction_forward.14} parent=5 // pred_check
      _
    $region42: #{interaction_forward.14} parent=5 // pred_check_branch
      %236 = sbr.rel (%p233) target = $region44
    $region43: #{interaction_forward.14} parent=5 // pred_region
      %s237 = ssub.s32 %s12, 1
      %p238 = scmp.lt.s32.totalorder %s17, 1
      %s239 = scalar_select %p238, %s17, 1
      %s240 = smul.addr %s239, 2
      %s241 = smul.addr %s240, 8
      %s242 = scalar_lea.vmem %s0, %s241
      %p243 = pneg %p38
      %p244 = pneg %p35
      %p245 = scmp.lt.s32.totalorder %s17, 1
      %s246 = scalar_select %p245, %s17, 1
      %s247 = smul.addr %s246, 4
      %s248 = smul.addr %s247, 8
      %s249 = scalar_lea.vmem %s1, %s248
      %p250 = pneg %p64
      %p251 = pneg %p61
      %p252 = scmp.lt.s32.totalorder %s17, 1
      %s253 = scalar_select %p252, %s17, 1
      %s254 = smul.addr %s253, 4
      %s255 = smul.addr %s254, 8
      %s256 = scalar_lea.vmem %s2, %s255
      %p257 = pneg %p90
      %p258 = pneg %p87
      %p259 = pneg %p111
      %p260 = pneg %p108
      %p261 = pneg %p132
      %p262 = pneg %p129
      %p263 = pneg %p153
      %p264 = pneg %p150
      %p265 = pneg %p179
      %p266 = pneg %p176
      %p267 = scmp.lt.s32.totalorder %s17, 1
      %s268 = scalar_select %p267, %s17, 1
      %s269 = smul.addr %s268, 4
      %s270 = smul.addr %s269, 8
      %s271 = scalar_lea.vmem %s6, %s270
      %p272 = scmp.lt.s32.totalorder %s17, 1
      %s273 = scalar_select %p272, %s17, 1
      %s274 = smul.addr %s273, 2
      %s275 = smul.addr %s274, 8
      %s276 = scalar_lea.vmem %s0, %s275
      %p277 = scmp.lt.s32.totalorder %s17, 1
      %s278 = scalar_select %p277, %s17, 1
      %s279 = smul.addr %s278, 4
      %s280 = smul.addr %s279, 8
      %s281 = scalar_lea.vmem %s1, %s280
      %p282 = scmp.lt.s32.totalorder %s17, 1
      %s283 = scalar_select %p282, %s17, 1
      %s284 = smul.addr %s283, 4
      %s285 = smul.addr %s284, 8
      %s286 = scalar_lea.vmem %s2, %s285
      %p287 = scmp.lt.s32.totalorder %s17, 1
      %s288 = scalar_select %p287, %s17, 1
      %s289 = smul.addr %s288, 4
      %s290 = smul.addr %s289, 8
      %s291 = scalar_lea.vmem %s6, %s290
      %v292 = vld [vmem:[%s276] sm:$0xff]
      %v293 = vld [vmem:[%s276 + $0x8] sm:$0xff]
      %v294 = vld [vmem:[%s3] sm:$0xff]
      %v295 = vld [vmem:[%s3 + $0x8] sm:$0xff]
      %v296 = vld [vmem:[%s3 + $0x10] sm:$0xff]
      %v297 = vld [vmem:[%s3 + $0x18] sm:$0xff]
      %v298 = vld [vmem:[%s3 + $0x20] sm:$0xff]
      %v299 = vld [vmem:[%s3 + $0x28] sm:$0xff]
      %v300 = vld [vmem:[%s3 + $0x30] sm:$0xff]
      %v301 = vld [vmem:[%s3 + $0x38] sm:$0xff]
      %v302 = vld [vmem:[%s3 + $0x40] sm:$0xff]
      %v303 = vld [vmem:[%s3 + $0x48] sm:$0xff]
      %v304 = vld [vmem:[%s3 + $0x50] sm:$0xff]
      %v305 = vld [vmem:[%s3 + $0x58] sm:$0xff]
      %v306 = vld [vmem:[%s3 + $0x60] sm:$0xff]
      %v307 = vld [vmem:[%s3 + $0x68] sm:$0xff]
      %v308 = vld [vmem:[%s3 + $0x70] sm:$0xff]
      %v309 = vld [vmem:[%s3 + $0x78] sm:$0xff]
      %v310 = vld [vmem:[%s5] sm:$0x1]
      %v312 = vlaneseq
      %v313 = vshrl.u32 %v312, 7
      %v314 = vsub.s32 0, %v313
      %v315 = vrot.slane %v310, %v314
      %317 = vmatprep.subr.mxu0 0.0
      %318 = vmatpush1.msra.mxu0 %v294
      %319 = vmatprep.subr.mxu0 0.0
      %320 = vmatpush1.msra.mxu0 %v295
      %321 = vmatprep.subr.mxu0 0.0
      %322 = vmatpush1.msra.mxu0 %v296
      %323 = vmatprep.subr.mxu0 0.0
      %324 = vmatpush1.msra.mxu0 %v297
      %325 = vmatprep.subr.mxu0 0.0
      %326 = vmatpush1.msra.mxu0 %v298
      %327 = vmatprep.subr.mxu0 0.0
      %328 = vmatpush1.msra.mxu0 %v299
      %329 = vmatprep.subr.mxu0 0.0
      %330 = vmatpush1.msra.mxu0 %v300
      %331 = vmatprep.subr.mxu0 0.0
      %332 = vmatpush1.msra.mxu0 %v301
      %333 = vmatprep.subr.mxu0 0.0
      %334 = vmatpush1.msra.mxu0 %v302
      %335 = vmatprep.subr.mxu0 0.0
      %336 = vmatpush1.msra.mxu0 %v303
      %337 = vmatprep.subr.mxu0 0.0
      %338 = vmatpush1.msra.mxu0 %v304
      %339 = vmatprep.subr.mxu0 0.0
      %340 = vmatpush1.msra.mxu0 %v305
      %341 = vmatprep.subr.mxu0 0.0
      %342 = vmatpush1.msra.mxu0 %v306
      %343 = vmatprep.subr.mxu0 0.0
      %344 = vmatpush1.msra.mxu0 %v307
      %345 = vmatprep.subr.mxu0 0.0
      %346 = vmatpush1.msra.mxu0 %v308
      %347 = vmatprep.subr.mxu0 0.0
      %348 = vmatpush1.msra.mxu0 %v309
      %349 = vmatprep.subr.mxu0 0.0
      %350 = vmatpush1.msra.mxu0 0.0
      %351 = vmatprep.subr.mxu0 0.0
      %352 = vmatpush1.msra.mxu0 0.0
      %353 = vmatprep.subr.mxu0 0.0
      %354 = vmatpush1.msra.mxu0 0.0
      %355 = vmatprep.subr.mxu0 0.0
      %356 = vmatpush1.msra.mxu0 0.0
      %357 = vmatprep.subr.mxu0 0.0
      %358 = vmatpush1.msra.mxu0 0.0
      %359 = vmatprep.subr.mxu0 0.0
      %360 = vmatpush1.msra.mxu0 0.0
      %361 = vmatprep.subr.mxu0 0.0
      %362 = vmatpush1.msra.mxu0 0.0
      %363 = vmatprep.subr.mxu0 0.0
      %364 = vmatpush1.msra.mxu0 0.0
      %365 = vmatprep.subr.mxu0 0.0
      %366 = vmatpush1.msra.mxu0 0.0
      %367 = vmatprep.subr.mxu0 0.0
      %368 = vmatpush1.msra.mxu0 0.0
      %369 = vmatprep.subr.mxu0 0.0
      %370 = vmatpush1.msra.mxu0 0.0
      %371 = vmatprep.subr.mxu0 0.0
      %372 = vmatpush1.msra.mxu0 0.0
      %373 = vmatprep.subr.mxu0 0.0
      %374 = vmatpush1.msra.mxu0 0.0
      %375 = vmatprep.subr.mxu0 0.0
      %376 = vmatpush1.msra.mxu0 0.0
      %377 = vmatprep.subr.mxu0 0.0
      %378 = vmatpush1.msra.mxu0 0.0
      %379 = vmatprep.subr.mxu0 0.0
      %380 = vmatpush1.msra.mxu0 0.0
      %381 = vmatprep.mubr.f32.mxu0 0.0
      %382 = vmatmul.mubr.f32.gmra.mrb[0].mxu0 %v292
      %v383 = vpop.f32.mrb[0].mxu0
      %v384 = vadd.f32 %v315, %v383
      %v385 = vpop.f32.mrb[0].mxu0
      %386 = vmatprep.mubr.f32.mxu0 0.0
      %387 = vmatmul.mubr.f32.gmra.mrb[0].mxu0 %v293
      %v388 = vpop.f32.mrb[0].mxu0
      %v389 = vadd.f32 %v315, %v388
      %v390 = vpop.f32.mrb[0].mxu0
      %391 = vdwg.mxu0
      %v392 = vld [vmem:[%s281] sm:$0xff]
      %v393 = vld [vmem:[%s281 + $0x8] sm:$0xff]
      %v394 = vld [vmem:[%s4] sm:$0xff]
      %v395 = vld [vmem:[%s4 + $0x8] sm:$0xff]
      %v396 = vld [vmem:[%s4 + $0x10] sm:$0xff]
      %v397 = vld [vmem:[%s4 + $0x18] sm:$0xff]
      %v398 = vld [vmem:[%s4 + $0x20] sm:$0xff]
      %v399 = vld [vmem:[%s4 + $0x28] sm:$0xff]
      %v400 = vld [vmem:[%s4 + $0x30] sm:$0xff]
      %v401 = vld [vmem:[%s4 + $0x38] sm:$0xff]
      %vm402 = vcmask 523264
      %v404 = vsel %vm402, %v392, 0
      %v407 = vsel %vm402, %v393, 0
      %409 = vmatprep.subr.mxu0 0.0
      %410 = vmatpush1.msra.mxu0 %v394
      %411 = vmatprep.subr.mxu0 0.0
      %412 = vmatpush1.msra.mxu0 %v395
      %413 = vmatprep.subr.mxu0 0.0
      %414 = vmatpush1.msra.mxu0 %v396
      %415 = vmatprep.subr.mxu0 0.0
      %416 = vmatpush1.msra.mxu0 %v397
      %417 = vmatprep.subr.mxu0 0.0
      %418 = vmatpush1.msra.mxu0 %v398
      %419 = vmatprep.subr.mxu0 0.0
      %420 = vmatpush1.msra.mxu0 %v399
      %421 = vmatprep.subr.mxu0 0.0
      %422 = vmatpush1.msra.mxu0 %v400
      %423 = vmatprep.subr.mxu0 0.0
      %424 = vmatpush1.msra.mxu0 %v401
      %425 = vmatprep.subr.mxu0 0.0
      %426 = vmatpush1.msra.mxu0 0.0
      %427 = vmatprep.subr.mxu0 0.0
      %428 = vmatpush1.msra.mxu0 0.0
      %429 = vmatprep.subr.mxu0 0.0
      %430 = vmatpush1.msra.mxu0 0.0
      %431 = vmatprep.subr.mxu0 0.0
      %432 = vmatpush1.msra.mxu0 0.0
      %433 = vmatprep.subr.mxu0 0.0
      %434 = vmatpush1.msra.mxu0 0.0
      %435 = vmatprep.subr.mxu0 0.0
      %436 = vmatpush1.msra.mxu0 0.0
      %437 = vmatprep.subr.mxu0 0.0
      %438 = vmatpush1.msra.mxu0 0.0
      %439 = vmatprep.subr.mxu0 0.0
      %440 = vmatpush1.msra.mxu0 0.0
      %441 = vmatprep.subr.mxu0 0.0
      %442 = vmatpush1.msra.mxu0 0.0
      %443 = vmatprep.subr.mxu0 0.0
      %444 = vmatpush1.msra.mxu0 0.0
      %445 = vmatprep.subr.mxu0 0.0
      %446 = vmatpush1.msra.mxu0 0.0
      %447 = vmatprep.subr.mxu0 0.0
      %448 = vmatpush1.msra.mxu0 0.0
      %449 = vmatprep.subr.mxu0 0.0
      %450 = vmatpush1.msra.mxu0 0.0
      %451 = vmatprep.subr.mxu0 0.0
      %452 = vmatpush1.msra.mxu0 0.0
      %453 = vmatprep.subr.mxu0 0.0
      %454 = vmatpush1.msra.mxu0 0.0
      %455 = vmatprep.subr.mxu0 0.0
      %456 = vmatpush1.msra.mxu0 0.0
      %457 = vmatprep.subr.mxu0 0.0
      %458 = vmatpush1.msra.mxu0 0.0
      %459 = vmatprep.subr.mxu0 0.0
      %460 = vmatpush1.msra.mxu0 0.0
      %461 = vmatprep.subr.mxu0 0.0
      %462 = vmatpush1.msra.mxu0 0.0
      %463 = vmatprep.subr.mxu0 0.0
      %464 = vmatpush1.msra.mxu0 0.0
      %465 = vmatprep.subr.mxu0 0.0
      %466 = vmatpush1.msra.mxu0 0.0
      %467 = vmatprep.subr.mxu0 0.0
      %468 = vmatpush1.msra.mxu0 0.0
      %469 = vmatprep.subr.mxu0 0.0
      %470 = vmatpush1.msra.mxu0 0.0
      %471 = vmatprep.subr.mxu0 0.0
      %472 = vmatpush1.msra.mxu0 0.0
      %473 = vmatprep.mubr.f32.mxu0 0.0
      %474 = vmatmul.mubr.f32.gmra.mrb[0].mxu0 %v404
      %v475 = vpop.f32.mrb[0].mxu0
      %v476 = vadd.f32 %v384, %v475
      %v477 = vpop.f32.mrb[0].mxu0
      %478 = vmatprep.mubr.f32.mxu0 0.0
      %479 = vmatmul.mubr.f32.gmra.mrb[0].mxu0 %v407
      %v480 = vpop.f32.mrb[0].mxu0
      %v481 = vadd.f32 %v389, %v480
      %v482 = vpop.f32.mrb[0].mxu0
      %483 = vdwg.mxu0
      %v484 = vld [vmem:[%s286] sm:$0xff]
      %v485 = vld [vmem:[%s286 + $0x8] sm:$0xff]
      %v486 = vadd.f32 %v476, %v484
      %v487 = vadd.f32 %v481, %v485
      %488 = vst [vmem:[%s291] sm:$0xff] %v486
      %489 = vst [vmem:[%s291 + $0x8] sm:$0xff] %v487
      %s490 = scalar_lea.vmem %s281, 16
      %v491 = vld [vmem:[%s490] sm:$0xff]
      %v492 = vld [vmem:[%s490 + $0x8] sm:$0xff]
      %v493 = vld [vmem:[%s4] sm:$0xff]
      %v494 = vld [vmem:[%s4 + $0x8] sm:$0xff]
      %v495 = vld [vmem:[%s4 + $0x10] sm:$0xff]
      %v496 = vld [vmem:[%s4 + $0x18] sm:$0xff]
      %v497 = vld [vmem:[%s4 + $0x20] sm:$0xff]
      %v498 = vld [vmem:[%s4 + $0x28] sm:$0xff]
      %v499 = vld [vmem:[%s4 + $0x30] sm:$0xff]
      %v500 = vld [vmem:[%s4 + $0x38] sm:$0xff]
      %v502 = vsel %vm402, %v491, 0
      %v505 = vsel %vm402, %v492, 0
      %507 = vmatprep.subr.mxu0 0.0
      %508 = vmatpush1.msra.mxu0 %v493
      %509 = vmatprep.subr.mxu0 0.0
      %510 = vmatpush1.msra.mxu0 %v494
      %511 = vmatprep.subr.mxu0 0.0
      %512 = vmatpush1.msra.mxu0 %v495
      %513 = vmatprep.subr.mxu0 0.0
      %514 = vmatpush1.msra.mxu0 %v496
      %515 = vmatprep.subr.mxu0 0.0
      %516 = vmatpush1.msra.mxu0 %v497
      %517 = vmatprep.subr.mxu0 0.0
      %518 = vmatpush1.msra.mxu0 %v498
      %519 = vmatprep.subr.mxu0 0.0
      %520 = vmatpush1.msra.mxu0 %v499
      %521 = vmatprep.subr.mxu0 0.0
      %522 = vmatpush1.msra.mxu0 %v500
      %523 = vmatprep.subr.mxu0 0.0
      %524 = vmatpush1.msra.mxu0 0.0
      %525 = vmatprep.subr.mxu0 0.0
      %526 = vmatpush1.msra.mxu0 0.0
      %527 = vmatprep.subr.mxu0 0.0
      %528 = vmatpush1.msra.mxu0 0.0
      %529 = vmatprep.subr.mxu0 0.0
      %530 = vmatpush1.msra.mxu0 0.0
      %531 = vmatprep.subr.mxu0 0.0
      %532 = vmatpush1.msra.mxu0 0.0
      %533 = vmatprep.subr.mxu0 0.0
      %534 = vmatpush1.msra.mxu0 0.0
      %535 = vmatprep.subr.mxu0 0.0
      %536 = vmatpush1.msra.mxu0 0.0
      %537 = vmatprep.subr.mxu0 0.0
      %538 = vmatpush1.msra.mxu0 0.0
      %539 = vmatprep.subr.mxu0 0.0
      %540 = vmatpush1.msra.mxu0 0.0
      %541 = vmatprep.subr.mxu0 0.0
      %542 = vmatpush1.msra.mxu0 0.0
      %543 = vmatprep.subr.mxu0 0.0
      %544 = vmatpush1.msra.mxu0 0.0
      %545 = vmatprep.subr.mxu0 0.0
      %546 = vmatpush1.msra.mxu0 0.0
      %547 = vmatprep.subr.mxu0 0.0
      %548 = vmatpush1.msra.mxu0 0.0
      %549 = vmatprep.subr.mxu0 0.0
      %550 = vmatpush1.msra.mxu0 0.0
      %551 = vmatprep.subr.mxu0 0.0
      %552 = vmatpush1.msra.mxu0 0.0
      %553 = vmatprep.subr.mxu0 0.0
      %554 = vmatpush1.msra.mxu0 0.0
      %555 = vmatprep.subr.mxu0 0.0
      %556 = vmatpush1.msra.mxu0 0.0
      %557 = vmatprep.subr.mxu0 0.0
      %558 = vmatpush1.msra.mxu0 0.0
      %559 = vmatprep.subr.mxu0 0.0
      %560 = vmatpush1.msra.mxu0 0.0
      %561 = vmatprep.subr.mxu0 0.0
      %562 = vmatpush1.msra.mxu0 0.0
      %563 = vmatprep.subr.mxu0 0.0
      %564 = vmatpush1.msra.mxu0 0.0
      %565 = vmatprep.subr.mxu0 0.0
      %566 = vmatpush1.msra.mxu0 0.0
      %567 = vmatprep.subr.mxu0 0.0
      %568 = vmatpush1.msra.mxu0 0.0
      %569 = vmatprep.subr.mxu0 0.0
      %570 = vmatpush1.msra.mxu0 0.0
      %571 = vmatprep.mubr.f32.mxu0 0.0
      %572 = vmatmul.mubr.f32.gmra.mrb[0].mxu0 %v502
      %v573 = vpop.f32.mrb[0].mxu0
      %v574 = vadd.f32 %v384, %v573
      %v575 = vpop.f32.mrb[0].mxu0
      %576 = vmatprep.mubr.f32.mxu0 0.0
      %577 = vmatmul.mubr.f32.gmra.mrb[0].mxu0 %v505
      %v578 = vpop.f32.mrb[0].mxu0
      %v579 = vadd.f32 %v389, %v578
      %v580 = vpop.f32.mrb[0].mxu0
      %581 = vdwg.mxu0
      %s582 = scalar_lea.vmem %s286, 16
      %v583 = vld [vmem:[%s582] sm:$0xff]
      %v584 = vld [vmem:[%s582 + $0x8] sm:$0xff]
      %v585 = vadd.f32 %v574, %v583
      %v586 = vadd.f32 %v579, %v584
      %s587 = scalar_lea.vmem %s291, 16
      %588 = vst [vmem:[%s587] sm:$0xff] %v585
      %589 = vst [vmem:[%s587 + $0x8] sm:$0xff] %v586
      %p590 = scmp.lt.s32.totalorder %s17, 1
      %s591 = scalar_select %p590, %s17, 1
      %s592 = smul.addr %s591, 4
      %s593 = smul.addr %s592, 8
      %s594 = scalar_lea.vmem %s6, %s593
      // Predicated region
      $region45: #{interaction_forward.14} parent=43 // pred_check
        %p595 = pneg %p176
      $region46: #{interaction_forward.14} parent=43 // pred_check_branch
        %597 = sbr.rel (%p595) target = $region48
      $region47: #{interaction_forward.14} parent=43 // pred_region
        _
      $region48: #{interaction_forward.14} parent=43 // pred_fallthru
        _
    $region44: #{interaction_forward.14} parent=5 // pred_fallthru
      _
    %p598 = scmp.le.s32.totalorder 2, %s12
    // Predicated region
    $region49: #{interaction_forward.14} parent=5 // pred_check
      %p599 = pneg %p598
    $region50: #{interaction_forward.14} parent=5 // pred_check_branch
      %601 = sbr.rel (%p599) target = $region52
    $region51: #{interaction_forward.14} parent=5 // pred_region
      %s602 = ssub.s32 %s12, 2
      // Predicated region
      $region53: #{interaction_forward.14} parent=51 // pred_check
        %p603 = pneg %p182
      $region54: #{interaction_forward.14} parent=51 // pred_check_branch
        %605 = sbr.rel (%p603) target = $region56
      $region55: #{interaction_forward.14} parent=51 // pred_region
        %p606 = scmp.lt.s32.totalorder %s18, 1
        %s607 = scalar_select %p606, %s18, 1
        %s608 = smul.addr %s607, 4
        %s609 = smul.addr %s608, 8
        %s610 = scalar_lea.vmem %s6, %s609
      $region56: #{interaction_forward.14} parent=51 // pred_fallthru
        _
    $region52: #{interaction_forward.14} parent=5 // pred_fallthru
      _
  $region6: #{interaction_forward.14} parent=0 // loop_footer
    %s16 = sadd.s32 1, %s12
  $region7: #{interaction_forward.14} parent=0 // loop_footer_branch
    %11 = sbr.rel target = $region3
  $region8: #{interaction_forward.14} parent=0 // loop_exit
    _

// kernel: interaction_forward.19
$region0: #{interaction_forward.19}
  #allocation0 [shape = 'u32[]', space=smem, size = 0x4, offset = 0x4, fixed_abs, tag = 'smem constant byte address 0x4 - core index']
  #allocation1 [shape = 'u32[144,128]{1,0:T(1,128)}', space=vmem, size = 0x12000, scoped, tag = 'internal scratch']
  %s0 = inlined_call_operand.vmem [shape: f32[2,16,128], index: 0, kind: input, shape index: {}]
  %s1 = inlined_call_operand.vmem [shape: f32[2,2,16,64], index: 1, kind: input, shape index: {}]
  %s2 = inlined_call_operand.vmem [shape: f32[2,2,16,128], index: 2, kind: input, shape index: {}]
  %s3 = inlined_call_operand.vmem [shape: f32[128,128], index: 3, kind: input, shape index: {}]
  %s4 = inlined_call_operand.vmem [shape: f32[64,128], index: 4, kind: input, shape index: {}]
  %s5 = inlined_call_operand.vmem [shape: f32[1,128], index: 5, kind: input, shape index: {}]
  %s6 = inlined_call_operand.hbm [shape: f32[2,2,16,128], index: 6, kind: output, shape index: {}]
  %s7 = sld [smem:[#allocation0]]
  $region57: #{interaction_forward.19} parent=0
    _
  %s9 = ssub.s32 1, %s7
  %s10 = scalar_select 0, %s9, %s7
  $region1: #{interaction_forward.19} parent=0
    #allocation2 [shape = 'u8[32768]{0}', space=vmem, size = 0x8000, scoped, tag = 'output window, operand 0']
    #allocation3 [shape = 's32[2]{0}', space=sflag, size = 0x8, scoped, tag = 'scoped memory for interaction_forward.19']
    %11 = vsyncpa [#allocation3], 0
    %s12 = scalar_lea.sflag [#allocation3], 1
    %13 = vsyncpa %s12, 0
    loop: start=0, step=1, limit=4
    $region2: #{interaction_forward.19} parent=1 // loop_pre_header
      _
    $region3: #{interaction_forward.19} parent=1 // loop_header
      %s15 = sphi 0, %s19
      %p16 = scmp.ge.s32.totalorder %s15, 4
      %s25 = sphi 0, %s27
      %s28 = sphi 0, %s25
      %s29 = sphi 0, %s28
      %s45 = sphi 0, %s29
      %s51 = sphi 0, %s53
      %s54 = sphi 0, %s51
      %s55 = sphi 0, %s54
      %s71 = sphi 0, %s55
      %s77 = sphi 0, %s79
      %s80 = sphi 0, %s77
      %s81 = sphi 0, %s80
      %s97 = sphi 0, %s81
      %s101 = sphi 0, %s101
      %s103 = sphi 0, %s101
      %s104 = sphi 0, %s103
      %s118 = sphi 0, %s104
      %s122 = sphi 0, %s122
      %s124 = sphi 0, %s122
      %s125 = sphi 0, %s124
      %s139 = sphi 0, %s125
      %s143 = sphi 0, %s143
      %s145 = sphi 0, %s143
      %s146 = sphi 0, %s145
      %s160 = sphi 0, %s146
      %s166 = sphi 0, %s168
      %s169 = sphi 0, %s166
      %s170 = sphi 0, %s169
      %s186 = sphi 0, %s170
    $region4: #{interaction_forward.19} parent=1 // loop_header_branch
      %18 = sbr.rel (%p16) target = $region8
    $region5: #{interaction_forward.19} parent=1 // loop_body
      %s20 = ssub.s32 %s15, 1
      %s21 = ssub.s32 %s15, 2
      %s22 = sadd.s32 %s15, 1
      %s23 = ssub.s32 %s15, %s22
      %p24 = scmp.eq.s32.totalorder %s23, 0
      %s26 = sadd.s32 %s25, 1
      %s27 = scalar_select %p24, %s25, %s26
      %p30 = pneg %p24
      %p31 = scmp.eq.s32.totalorder %s15, 1
      %p32 = por %p30, %p31
      %p33 = scmp.ne.s32.totalorder %s25, %s28
      %p34 = scmp.eq.s32.totalorder %s15, 0
      %p35 = por %p33, %p34
      %p36 = scmp.ne.s32.totalorder %s25, %s28
      %p37 = scmp.eq.s32.totalorder %s20, 1
      %p38 = por %p36, %p37
      %p39 = scmp.ne.s32.totalorder %s28, %s29
      %p40 = scmp.eq.s32.totalorder %s20, 0
      %p41 = por %p39, %p40
      %p42 = scmp.ne.s32.totalorder %s28, %s29
      %p43 = scmp.eq.s32.totalorder %s21, 1
      %p44 = por %p42, %p43
      %p46 = scmp.ne.s32.totalorder %s29, %s45
      %p47 = scmp.eq.s32.totalorder %s21, 0
      %p48 = por %p46, %p47
      %s49 = ssub.s32 %s15, %s22
      %p50 = scmp.eq.s32.totalorder %s49, 0
      %s52 = sadd.s32 %s51, 1
      %s53 = scalar_select %p50, %s51, %s52
      %p56 = pneg %p50
      %p57 = scmp.eq.s32.totalorder %s15, 1
      %p58 = por %p56, %p57
      %p59 = scmp.ne.s32.totalorder %s51, %s54
      %p60 = scmp.eq.s32.totalorder %s15, 0
      %p61 = por %p59, %p60
      %p62 = scmp.ne.s32.totalorder %s51, %s54
      %p63 = scmp.eq.s32.totalorder %s20, 1
      %p64 = por %p62, %p63
      %p65 = scmp.ne.s32.totalorder %s54, %s55
      %p66 = scmp.eq.s32.totalorder %s20, 0
      %p67 = por %p65, %p66
      %p68 = scmp.ne.s32.totalorder %s54, %s55
      %p69 = scmp.eq.s32.totalorder %s21, 1
      %p70 = por %p68, %p69
      %p72 = scmp.ne.s32.totalorder %s55, %s71
      %p73 = scmp.eq.s32.totalorder %s21, 0
      %p74 = por %p72, %p73
      %s75 = ssub.s32 %s15, %s22
      %p76 = scmp.eq.s32.totalorder %s75, 0
      %s78 = sadd.s32 %s77, 1
      %s79 = scalar_select %p76, %s77, %s78
      %p82 = pneg %p76
      %p83 = scmp.eq.s32.totalorder %s15, 1
      %p84 = por %p82, %p83
      %p85 = scmp.ne.s32.totalorder %s77, %s80
      %p86 = scmp.eq.s32.totalorder %s15, 0
      %p87 = por %p85, %p86
      %p88 = scmp.ne.s32.totalorder %s77, %s80
      %p89 = scmp.eq.s32.totalorder %s20, 1
      %p90 = por %p88, %p89
      %p91 = scmp.ne.s32.totalorder %s80, %s81
      %p92 = scmp.eq.s32.totalorder %s20, 0
      %p93 = por %p91, %p92
      %p94 = scmp.ne.s32.totalorder %s80, %s81
      %p95 = scmp.eq.s32.totalorder %s21, 1
      %p96 = por %p94, %p95
      %p98 = scmp.ne.s32.totalorder %s81, %s97
      %p99 = scmp.eq.s32.totalorder %s21, 0
      %p100 = por %p98, %p99
      %s102 = sadd.s32 %s101, 1
      %p105 = scmp.eq.s32.totalorder %s15, 1
      %p106 = scmp.ne.s32.totalorder %s101, %s103
      %p107 = scmp.eq.s32.totalorder %s15, 0
      %p108 = por %p106, %p107
      %p109 = scmp.ne.s32.totalorder %s101, %s103
      %p110 = scmp.eq.s32.totalorder %s20, 1
      %p111 = por %p109, %p110
      %p112 = scmp.ne.s32.totalorder %s103, %s104
      %p113 = scmp.eq.s32.totalorder %s20, 0
      %p114 = por %p112, %p113
      %p115 = scmp.ne.s32.totalorder %s103, %s104
      %p116 = scmp.eq.s32.totalorder %s21, 1
      %p117 = por %p115, %p116
      %p119 = scmp.ne.s32.totalorder %s104, %s118
      %p120 = scmp.eq.s32.totalorder %s21, 0
      %p121 = por %p119, %p120
      %s123 = sadd.s32 %s122, 1
      %p126 = scmp.eq.s32.totalorder %s15, 1
      %p127 = scmp.ne.s32.totalorder %s122, %s124
      %p128 = scmp.eq.s32.totalorder %s15, 0
      %p129 = por %p127, %p128
      %p130 = scmp.ne.s32.totalorder %s122, %s124
      %p131 = scmp.eq.s32.totalorder %s20, 1
      %p132 = por %p130, %p131
      %p133 = scmp.ne.s32.totalorder %s124, %s125
      %p134 = scmp.eq.s32.totalorder %s20, 0
      %p135 = por %p133, %p134
      %p136 = scmp.ne.s32.totalorder %s124, %s125
      %p137 = scmp.eq.s32.totalorder %s21, 1
      %p138 = por %p136, %p137
      %p140 = scmp.ne.s32.totalorder %s125, %s139
      %p141 = scmp.eq.s32.totalorder %s21, 0
      %p142 = por %p140, %p141
      %s144 = sadd.s32 %s143, 1
      %p147 = scmp.eq.s32.totalorder %s15, 1
      %p148 = scmp.ne.s32.totalorder %s143, %s145
      %p149 = scmp.eq.s32.totalorder %s15, 0
      %p150 = por %p148, %p149
      %p151 = scmp.ne.s32.totalorder %s143, %s145
      %p152 = scmp.eq.s32.totalorder %s20, 1
      %p153 = por %p151, %p152
      %p154 = scmp.ne.s32.totalorder %s145, %s146
      %p155 = scmp.eq.s32.totalorder %s20, 0
      %p156 = por %p154, %p155
      %p157 = scmp.ne.s32.totalorder %s145, %s146
      %p158 = scmp.eq.s32.totalorder %s21, 1
      %p159 = por %p157, %p158
      %p161 = scmp.ne.s32.totalorder %s146, %s160
      %p162 = scmp.eq.s32.totalorder %s21, 0
      %p163 = por %p161, %p162
      %s164 = ssub.s32 %s15, %s22
      %p165 = scmp.eq.s32.totalorder %s164, 0
      %s167 = sadd.s32 %s166, 1
      %s168 = scalar_select %p165, %s166, %s167
      %p171 = pneg %p165
      %p172 = scmp.eq.s32.totalorder %s15, 1
      %p173 = por %p171, %p172
      %p174 = scmp.ne.s32.totalorder %s166, %s169
      %p175 = scmp.eq.s32.totalorder %s15, 0
      %p176 = por %p174, %p175
      %p177 = scmp.ne.s32.totalorder %s166, %s169
      %p178 = scmp.eq.s32.totalorder %s20, 1
      %p179 = por %p177, %p178
      %p180 = scmp.ne.s32.totalorder %s169, %s170
      %p181 = scmp.eq.s32.totalorder %s20, 0
      %p182 = por %p180, %p181
      %p183 = scmp.ne.s32.totalorder %s169, %s170
      %p184 = scmp.eq.s32.totalorder %s21, 1
      %p185 = por %p183, %p184
      %p187 = scmp.ne.s32.totalorder %s170, %s186
      %p188 = scmp.eq.s32.totalorder %s21, 0
      %p189 = por %p187, %p188
      %p190 = scmp.le.s32.totalorder 1, %s15
      %p191 = scmp.lt.s32.totalorder %s15, 3
      %p192 = pnand %p190, %p191
      %p193 = pneg %p192
      // Predicated region
      $region9: #{interaction_forward.19} parent=5 // pred_check
        _
      $region10: #{interaction_forward.19} parent=5 // pred_check_branch
        %195 = sbr.rel (%p192) target = $region12
      $region11: #{interaction_forward.19} parent=5 // pred_region
        %s196 = ssub.s32 %s15, 1
        // Predicated region
        $region13: #{interaction_forward.19} parent=11 // pred_check
          %p197 = pneg %p114
        $region14: #{interaction_forward.19} parent=11 // pred_check_branch
          %199 = sbr.rel (%p197) target = $region16
        $region15: #{interaction_forward.19} parent=11 // pred_region
          _
        $region16: #{interaction_forward.19} parent=11 // pred_fallthru
          _
        // Predicated region
        $region17: #{interaction_forward.19} parent=11 // pred_check
          %p200 = pneg %p135
        $region18: #{interaction_forward.19} parent=11 // pred_check_branch
          %202 = sbr.rel (%p200) target = $region20
        $region19: #{interaction_forward.19} parent=11 // pred_region
          _
        $region20: #{interaction_forward.19} parent=11 // pred_fallthru
          _
        // Predicated region
        $region21: #{interaction_forward.19} parent=11 // pred_check
          %p203 = pneg %p156
        $region22: #{interaction_forward.19} parent=11 // pred_check_branch
          %205 = sbr.rel (%p203) target = $region24
        $region23: #{interaction_forward.19} parent=11 // pred_region
          _
        $region24: #{interaction_forward.19} parent=11 // pred_fallthru
          _
      $region12: #{interaction_forward.19} parent=5 // pred_fallthru
        _
      %p206 = scmp.lt.s32.totalorder %s15, 2
      // Predicated region
      $region25: #{interaction_forward.19} parent=5 // pred_check
        %p207 = pneg %p206
      $region26: #{interaction_forward.19} parent=5 // pred_check_branch
        %209 = sbr.rel (%p207) target = $region28
      $region27: #{interaction_forward.19} parent=5 // pred_region
        // Predicated region
        $region29: #{interaction_forward.19} parent=27 // pred_check
          %p210 = pneg %p35
        $region30: #{interaction_forward.19} parent=27 // pred_check_branch
          %212 = sbr.rel (%p210) target = $region32
        $region31: #{interaction_forward.19} parent=27 // pred_region
          %p213 = scmp.lt.s32.totalorder %s15, 1
          %s214 = scalar_select %p213, %s15, 1
          %s215 = smul.addr %s214, 2
          %s216 = smul.addr %s215, 8
          %s217 = scalar_lea.vmem %s0, %s216
        $region32: #{interaction_forward.19} parent=27 // pred_fallthru
          _
        // Predicated region
        $region33: #{interaction_forward.19} parent=27 // pred_check
          %p218 = pneg %p61
        $region34: #{interaction_forward.19} parent=27 // pred_check_branch
          %220 = sbr.rel (%p218) target = $region36
        $region35: #{interaction_forward.19} parent=27 // pred_region
          %p221 = scmp.lt.s32.totalorder %s15, 1
          %s222 = scalar_select %p221, %s15, 1
          %s223 = smul.addr %s222, 4
          %s224 = smul.addr %s223, 8
          %s225 = scalar_lea.vmem %s1, %s224
        $region36: #{interaction_forward.19} parent=27 // pred_fallthru
          _
        // Predicated region
        $region37: #{interaction_forward.19} parent=27 // pred_check
          %p226 = pneg %p87
        $region38: #{interaction_forward.19} parent=27 // pred_check_branch
          %228 = sbr.rel (%p226) target = $region40
        $region39: #{interaction_forward.19} parent=27 // pred_region
          %p229 = scmp.lt.s32.totalorder %s15, 1
          %s230 = scalar_select %p229, %s15, 1
          %s231 = smul.addr %s230, 4
          %s232 = smul.addr %s231, 8
          %s233 = scalar_lea.vmem %s2, %s232
        $region40: #{interaction_forward.19} parent=27 // pred_fallthru
          _
      $region28: #{interaction_forward.19} parent=5 // pred_fallthru
        _
      %p234 = scmp.le.s32.totalorder 1, %s15
      %p235 = scmp.lt.s32.totalorder %s15, 3
      %p236 = pnand %p234, %p235
      %p237 = pneg %p236
      // Predicated region
      $region41: #{interaction_forward.19} parent=5 // pred_check
        _
      $region42: #{interaction_forward.19} parent=5 // pred_check_branch
        %239 = sbr.rel (%p236) target = $region44
      $region43: #{interaction_forward.19} parent=5 // pred_region
        %s240 = ssub.s32 %s15, 1
        %p241 = scmp.lt.s32.totalorder %s20, 1
        %s242 = scalar_select %p241, %s20, 1
        %s243 = smul.addr %s242, 2
        %s244 = smul.addr %s243, 8
        %s245 = scalar_lea.vmem %s0, %s244
        %p246 = pneg %p41
        %p247 = pneg %p38
        %p248 = scmp.lt.s32.totalorder %s20, 1
        %s249 = scalar_select %p248, %s20, 1
        %s250 = smul.addr %s249, 4
        %s251 = smul.addr %s250, 8
        %s252 = scalar_lea.vmem %s1, %s251
        %p253 = pneg %p67
        %p254 = pneg %p64
        %p255 = scmp.lt.s32.totalorder %s20, 1
        %s256 = scalar_select %p255, %s20, 1
        %s257 = smul.addr %s256, 4
        %s258 = smul.addr %s257, 8
        %s259 = scalar_lea.vmem %s2, %s258
        %p260 = pneg %p93
        %p261 = pneg %p90
        %p262 = pneg %p114
        %p263 = pneg %p111
        %p264 = pneg %p135
        %p265 = pneg %p132
        %p266 = pneg %p156
        %p267 = pneg %p153
        %p268 = pneg %p182
        %p269 = pneg %p179
        %s270 = sand.u32 %s169, 1
        %s271 = scalar_lea.sflag [#allocation3], %s270
        %s272 = sand.u32 %s169, 1
        %s273 = smul.addr %s272, 32
        %s274 = scalar_lea.vmem [#allocation2], %s273
        %p275 = scmp.lt.s32.totalorder %s20, 1
        %s276 = scalar_select %p275, %s20, 1
        %s277 = smul.addr %s276, 2
        %s278 = smul.addr %s277, 8
        %s279 = scalar_lea.vmem %s0, %s278
        %p280 = scmp.lt.s32.totalorder %s20, 1
        %s281 = scalar_select %p280, %s20, 1
        %s282 = smul.addr %s281, 4
        %s283 = smul.addr %s282, 8
        %s284 = scalar_lea.vmem %s1, %s283
        %p285 = scmp.lt.s32.totalorder %s20, 1
        %s286 = scalar_select %p285, %s20, 1
        %s287 = smul.addr %s286, 4
        %s288 = smul.addr %s287, 8
        %s289 = scalar_lea.vmem %s2, %s288
        %v290 = vld [vmem:[%s279] sm:$0xff]
        %v291 = vld [vmem:[%s279 + $0x8] sm:$0xff]
        %v292 = vld [vmem:[%s3] sm:$0xff]
        %v293 = vld [vmem:[%s3 + $0x8] sm:$0xff]
        %v294 = vld [vmem:[%s3 + $0x10] sm:$0xff]
        %v295 = vld [vmem:[%s3 + $0x18] sm:$0xff]
        %v296 = vld [vmem:[%s3 + $0x20] sm:$0xff]
        %v297 = vld [vmem:[%s3 + $0x28] sm:$0xff]
        %v298 = vld [vmem:[%s3 + $0x30] sm:$0xff]
        %v299 = vld [vmem:[%s3 + $0x38] sm:$0xff]
        %v300 = vld [vmem:[%s3 + $0x40] sm:$0xff]
        %v301 = vld [vmem:[%s3 + $0x48] sm:$0xff]
        %v302 = vld [vmem:[%s3 + $0x50] sm:$0xff]
        %v303 = vld [vmem:[%s3 + $0x58] sm:$0xff]
        %v304 = vld [vmem:[%s3 + $0x60] sm:$0xff]
        %v305 = vld [vmem:[%s3 + $0x68] sm:$0xff]
        %v306 = vld [vmem:[%s3 + $0x70] sm:$0xff]
        %v307 = vld [vmem:[%s3 + $0x78] sm:$0xff]
        %v308 = vld [vmem:[%s5] sm:$0x1]
        %v310 = vlaneseq
        %v311 = vshrl.u32 %v310, 7
        %v312 = vsub.s32 0, %v311
        %v313 = vrot.slane %v308, %v312
        %315 = vmatprep.subr.mxu0 0.0
        %316 = vmatpush1.msra.mxu0 %v292
        %317 = vmatprep.subr.mxu0 0.0
        %318 = vmatpush1.msra.mxu0 %v293
        %319 = vmatprep.subr.mxu0 0.0
        %320 = vmatpush1.msra.mxu0 %v294
        %321 = vmatprep.subr.mxu0 0.0
        %322 = vmatpush1.msra.mxu0 %v295
        %323 = vmatprep.subr.mxu0 0.0
        %324 = vmatpush1.msra.mxu0 %v296
        %325 = vmatprep.subr.mxu0 0.0
        %326 = vmatpush1.msra.mxu0 %v297
        %327 = vmatprep.subr.mxu0 0.0
        %328 = vmatpush1.msra.mxu0 %v298
        %329 = vmatprep.subr.mxu0 0.0
        %330 = vmatpush1.msra.mxu0 %v299
        %331 = vmatprep.subr.mxu0 0.0
        %332 = vmatpush1.msra.mxu0 %v300
        %333 = vmatprep.subr.mxu0 0.0
        %334 = vmatpush1.msra.mxu0 %v301
        %335 = vmatprep.subr.mxu0 0.0
        %336 = vmatpush1.msra.mxu0 %v302
        %337 = vmatprep.subr.mxu0 0.0
        %338 = vmatpush1.msra.mxu0 %v303
        %339 = vmatprep.subr.mxu0 0.0
        %340 = vmatpush1.msra.mxu0 %v304
        %341 = vmatprep.subr.mxu0 0.0
        %342 = vmatpush1.msra.mxu0 %v305
        %343 = vmatprep.subr.mxu0 0.0
        %344 = vmatpush1.msra.mxu0 %v306
        %345 = vmatprep.subr.mxu0 0.0
        %346 = vmatpush1.msra.mxu0 %v307
        %347 = vmatprep.subr.mxu0 0.0
        %348 = vmatpush1.msra.mxu0 0.0
        %349 = vmatprep.subr.mxu0 0.0
        %350 = vmatpush1.msra.mxu0 0.0
        %351 = vmatprep.subr.mxu0 0.0
        %352 = vmatpush1.msra.mxu0 0.0
        %353 = vmatprep.subr.mxu0 0.0
        %354 = vmatpush1.msra.mxu0 0.0
        %355 = vmatprep.subr.mxu0 0.0
        %356 = vmatpush1.msra.mxu0 0.0
        %357 = vmatprep.subr.mxu0 0.0
        %358 = vmatpush1.msra.mxu0 0.0
        %359 = vmatprep.subr.mxu0 0.0
        %360 = vmatpush1.msra.mxu0 0.0
        %361 = vmatprep.subr.mxu0 0.0
        %362 = vmatpush1.msra.mxu0 0.0
        %363 = vmatprep.subr.mxu0 0.0
        %364 = vmatpush1.msra.mxu0 0.0
        %365 = vmatprep.subr.mxu0 0.0
        %366 = vmatpush1.msra.mxu0 0.0
        %367 = vmatprep.subr.mxu0 0.0
        %368 = vmatpush1.msra.mxu0 0.0
        %369 = vmatprep.subr.mxu0 0.0
        %370 = vmatpush1.msra.mxu0 0.0
        %371 = vmatprep.subr.mxu0 0.0
        %372 = vmatpush1.msra.mxu0 0.0
        %373 = vmatprep.subr.mxu0 0.0
        %374 = vmatpush1.msra.mxu0 0.0
        %375 = vmatprep.subr.mxu0 0.0
        %376 = vmatpush1.msra.mxu0 0.0
        %377 = vmatprep.subr.mxu0 0.0
        %378 = vmatpush1.msra.mxu0 0.0
        %379 = vmatprep.mubr.f32.mxu0 0.0
        %380 = vmatmul.mubr.f32.gmra.mrb[0].mxu0 %v290
        %v381 = vpop.f32.mrb[0].mxu0
        %v382 = vadd.f32 %v313, %v381
        %v383 = vpop.f32.mrb[0].mxu0
        %384 = vmatprep.mubr.f32.mxu0 0.0
        %385 = vmatmul.mubr.f32.gmra.mrb[0].mxu0 %v291
        %v386 = vpop.f32.mrb[0].mxu0
        %v387 = vadd.f32 %v313, %v386
        %v388 = vpop.f32.mrb[0].mxu0
        %389 = vdwg.mxu0
        %v390 = vld [vmem:[%s284] sm:$0xff]
        %v391 = vld [vmem:[%s284 + $0x8] sm:$0xff]
        %v392 = vld [vmem:[%s4] sm:$0xff]
        %v393 = vld [vmem:[%s4 + $0x8] sm:$0xff]
        %v394 = vld [vmem:[%s4 + $0x10] sm:$0xff]
        %v395 = vld [vmem:[%s4 + $0x18] sm:$0xff]
        %v396 = vld [vmem:[%s4 + $0x20] sm:$0xff]
        %v397 = vld [vmem:[%s4 + $0x28] sm:$0xff]
        %v398 = vld [vmem:[%s4 + $0x30] sm:$0xff]
        %v399 = vld [vmem:[%s4 + $0x38] sm:$0xff]
        %vm400 = vcmask 523264
        %v402 = vsel %vm400, %v390, 0
        %v405 = vsel %vm400, %v391, 0
        %407 = vmatprep.subr.mxu0 0.0
        %408 = vmatpush1.msra.mxu0 %v392
        %409 = vmatprep.subr.mxu0 0.0
        %410 = vmatpush1.msra.mxu0 %v393
        %411 = vmatprep.subr.mxu0 0.0
        %412 = vmatpush1.msra.mxu0 %v394
        %413 = vmatprep.subr.mxu0 0.0
        %414 = vmatpush1.msra.mxu0 %v395
        %415 = vmatprep.subr.mxu0 0.0
        %416 = vmatpush1.msra.mxu0 %v396
        %417 = vmatprep.subr.mxu0 0.0
        %418 = vmatpush1.msra.mxu0 %v397
        %419 = vmatprep.subr.mxu0 0.0
        %420 = vmatpush1.msra.mxu0 %v398
        %421 = vmatprep.subr.mxu0 0.0
        %422 = vmatpush1.msra.mxu0 %v399
        %423 = vmatprep.subr.mxu0 0.0
        %424 = vmatpush1.msra.mxu0 0.0
        %425 = vmatprep.subr.mxu0 0.0
        %426 = vmatpush1.msra.mxu0 0.0
        %427 = vmatprep.subr.mxu0 0.0
        %428 = vmatpush1.msra.mxu0 0.0
        %429 = vmatprep.subr.mxu0 0.0
        %430 = vmatpush1.msra.mxu0 0.0
        %431 = vmatprep.subr.mxu0 0.0
        %432 = vmatpush1.msra.mxu0 0.0
        %433 = vmatprep.subr.mxu0 0.0
        %434 = vmatpush1.msra.mxu0 0.0
        %435 = vmatprep.subr.mxu0 0.0
        %436 = vmatpush1.msra.mxu0 0.0
        %437 = vmatprep.subr.mxu0 0.0
        %438 = vmatpush1.msra.mxu0 0.0
        %439 = vmatprep.subr.mxu0 0.0
        %440 = vmatpush1.msra.mxu0 0.0
        %441 = vmatprep.subr.mxu0 0.0
        %442 = vmatpush1.msra.mxu0 0.0
        %443 = vmatprep.subr.mxu0 0.0
        %444 = vmatpush1.msra.mxu0 0.0
        %445 = vmatprep.subr.mxu0 0.0
        %446 = vmatpush1.msra.mxu0 0.0
        %447 = vmatprep.subr.mxu0 0.0
        %448 = vmatpush1.msra.mxu0 0.0
        %449 = vmatprep.subr.mxu0 0.0
        %450 = vmatpush1.msra.mxu0 0.0
        %451 = vmatprep.subr.mxu0 0.0
        %452 = vmatpush1.msra.mxu0 0.0
        %453 = vmatprep.subr.mxu0 0.0
        %454 = vmatpush1.msra.mxu0 0.0
        %455 = vmatprep.subr.mxu0 0.0
        %456 = vmatpush1.msra.mxu0 0.0
        %457 = vmatprep.subr.mxu0 0.0
        %458 = vmatpush1.msra.mxu0 0.0
        %459 = vmatprep.subr.mxu0 0.0
        %460 = vmatpush1.msra.mxu0 0.0
        %461 = vmatprep.subr.mxu0 0.0
        %462 = vmatpush1.msra.mxu0 0.0
        %463 = vmatprep.subr.mxu0 0.0
        %464 = vmatpush1.msra.mxu0 0.0
        %465 = vmatprep.subr.mxu0 0.0
        %466 = vmatpush1.msra.mxu0 0.0
        %467 = vmatprep.subr.mxu0 0.0
        %468 = vmatpush1.msra.mxu0 0.0
        %469 = vmatprep.subr.mxu0 0.0
        %470 = vmatpush1.msra.mxu0 0.0
        %471 = vmatprep.mubr.f32.mxu0 0.0
        %472 = vmatmul.mubr.f32.gmra.mrb[0].mxu0 %v402
        %v473 = vpop.f32.mrb[0].mxu0
        %v474 = vadd.f32 %v382, %v473
        %v475 = vpop.f32.mrb[0].mxu0
        %476 = vmatprep.mubr.f32.mxu0 0.0
        %477 = vmatmul.mubr.f32.gmra.mrb[0].mxu0 %v405
        %v478 = vpop.f32.mrb[0].mxu0
        %v479 = vadd.f32 %v387, %v478
        %v480 = vpop.f32.mrb[0].mxu0
        %481 = vdwg.mxu0
        %v482 = vld [vmem:[%s289] sm:$0xff]
        %v483 = vld [vmem:[%s289 + $0x8] sm:$0xff]
        %v484 = vadd.f32 %v474, %v482
        %v485 = vadd.f32 %v479, %v483
        %486 = vst [vmem:[%s274] sm:$0xff] %v484
        %487 = vst [vmem:[%s274 + $0x8] sm:$0xff] %v485
        %s488 = scalar_lea.vmem %s284, 16
        %v489 = vld [vmem:[%s488] sm:$0xff]
        %v490 = vld [vmem:[%s488 + $0x8] sm:$0xff]
        %v491 = vld [vmem:[%s4] sm:$0xff]
        %v492 = vld [vmem:[%s4 + $0x8] sm:$0xff]
        %v493 = vld [vmem:[%s4 + $0x10] sm:$0xff]
        %v494 = vld [vmem:[%s4 + $0x18] sm:$0xff]
        %v495 = vld [vmem:[%s4 + $0x20] sm:$0xff]
        %v496 = vld [vmem:[%s4 + $0x28] sm:$0xff]
        %v497 = vld [vmem:[%s4 + $0x30] sm:$0xff]
        %v498 = vld [vmem:[%s4 + $0x38] sm:$0xff]
        %v500 = vsel %vm400, %v489, 0
        %v503 = vsel %vm400, %v490, 0
        %505 = vmatprep.subr.mxu0 0.0
        %506 = vmatpush1.msra.mxu0 %v491
        %507 = vmatprep.subr.mxu0 0.0
        %508 = vmatpush1.msra.mxu0 %v492
        %509 = vmatprep.subr.mxu0 0.0
        %510 = vmatpush1.msra.mxu0 %v493
        %511 = vmatprep.subr.mxu0 0.0
        %512 = vmatpush1.msra.mxu0 %v494
        %513 = vmatprep.subr.mxu0 0.0
        %514 = vmatpush1.msra.mxu0 %v495
        %515 = vmatprep.subr.mxu0 0.0
        %516 = vmatpush1.msra.mxu0 %v496
        %517 = vmatprep.subr.mxu0 0.0
        %518 = vmatpush1.msra.mxu0 %v497
        %519 = vmatprep.subr.mxu0 0.0
        %520 = vmatpush1.msra.mxu0 %v498
        %521 = vmatprep.subr.mxu0 0.0
        %522 = vmatpush1.msra.mxu0 0.0
        %523 = vmatprep.subr.mxu0 0.0
        %524 = vmatpush1.msra.mxu0 0.0
        %525 = vmatprep.subr.mxu0 0.0
        %526 = vmatpush1.msra.mxu0 0.0
        %527 = vmatprep.subr.mxu0 0.0
        %528 = vmatpush1.msra.mxu0 0.0
        %529 = vmatprep.subr.mxu0 0.0
        %530 = vmatpush1.msra.mxu0 0.0
        %531 = vmatprep.subr.mxu0 0.0
        %532 = vmatpush1.msra.mxu0 0.0
        %533 = vmatprep.subr.mxu0 0.0
        %534 = vmatpush1.msra.mxu0 0.0
        %535 = vmatprep.subr.mxu0 0.0
        %536 = vmatpush1.msra.mxu0 0.0
        %537 = vmatprep.subr.mxu0 0.0
        %538 = vmatpush1.msra.mxu0 0.0
        %539 = vmatprep.subr.mxu0 0.0
        %540 = vmatpush1.msra.mxu0 0.0
        %541 = vmatprep.subr.mxu0 0.0
        %542 = vmatpush1.msra.mxu0 0.0
        %543 = vmatprep.subr.mxu0 0.0
        %544 = vmatpush1.msra.mxu0 0.0
        %545 = vmatprep.subr.mxu0 0.0
        %546 = vmatpush1.msra.mxu0 0.0
        %547 = vmatprep.subr.mxu0 0.0
        %548 = vmatpush1.msra.mxu0 0.0
        %549 = vmatprep.subr.mxu0 0.0
        %550 = vmatpush1.msra.mxu0 0.0
        %551 = vmatprep.subr.mxu0 0.0
        %552 = vmatpush1.msra.mxu0 0.0
        %553 = vmatprep.subr.mxu0 0.0
        %554 = vmatpush1.msra.mxu0 0.0
        %555 = vmatprep.subr.mxu0 0.0
        %556 = vmatpush1.msra.mxu0 0.0
        %557 = vmatprep.subr.mxu0 0.0
        %558 = vmatpush1.msra.mxu0 0.0
        %559 = vmatprep.subr.mxu0 0.0
        %560 = vmatpush1.msra.mxu0 0.0
        %561 = vmatprep.subr.mxu0 0.0
        %562 = vmatpush1.msra.mxu0 0.0
        %563 = vmatprep.subr.mxu0 0.0
        %564 = vmatpush1.msra.mxu0 0.0
        %565 = vmatprep.subr.mxu0 0.0
        %566 = vmatpush1.msra.mxu0 0.0
        %567 = vmatprep.subr.mxu0 0.0
        %568 = vmatpush1.msra.mxu0 0.0
        %569 = vmatprep.mubr.f32.mxu0 0.0
        %570 = vmatmul.mubr.f32.gmra.mrb[0].mxu0 %v500
        %v571 = vpop.f32.mrb[0].mxu0
        %v572 = vadd.f32 %v382, %v571
        %v573 = vpop.f32.mrb[0].mxu0
        %574 = vmatprep.mubr.f32.mxu0 0.0
        %575 = vmatmul.mubr.f32.gmra.mrb[0].mxu0 %v503
        %v576 = vpop.f32.mrb[0].mxu0
        %v577 = vadd.f32 %v387, %v576
        %v578 = vpop.f32.mrb[0].mxu0
        %579 = vdwg.mxu0
        %s580 = scalar_lea.vmem %s289, 16
        %v581 = vld [vmem:[%s580] sm:$0xff]
        %v582 = vld [vmem:[%s580 + $0x8] sm:$0xff]
        %v583 = vadd.f32 %v572, %v581
        %v584 = vadd.f32 %v577, %v582
        %s585 = scalar_lea.vmem %s274, 16 [#allocation2]
        %586 = vst [vmem:[%s585] sm:$0xff] %v583
        %587 = vst [vmem:[%s585 + $0x8] sm:$0xff] %v584
        %s588 = sand.u32 %s169, 1
        %s589 = scalar_lea.sflag [#allocation3], %s588
        %s590 = sand.u32 %s169, 1
        %s591 = smul.addr %s590, 32
        %s592 = scalar_lea.vmem [#allocation2], %s591
        // Predicated region
        $region45: #{interaction_forward.19} parent=43 // pred_check
          %p593 = pneg %p179
        $region46: #{interaction_forward.19} parent=43 // pred_check_branch
          %595 = sbr.rel (%p593) target = $region48
        $region47: #{interaction_forward.19} parent=43 // pred_region
          %s597 = ssub.s32 512, 512
          %598 = vsyncadd %s589, %s597
          %s599 = smul.addr %s20, 4
          %s600 = smul.addr %s599, 128
          %s601 = scalar_lea.hbm %s6, %s600
          %s602 = sshll.u32 %s592, 4
          %s603 = int_to_ptr.vmem [resolvable:$true] %s602
          %608 = dma.vmem_to_hbm [thread:$0]  %s603, 512, %s601, %s589, 128, 128, 8
        $region48: #{interaction_forward.19} parent=43 // pred_fallthru
          _
      $region44: #{interaction_forward.19} parent=5 // pred_fallthru
        _
      %p609 = scmp.le.s32.totalorder 2, %s15
      // Predicated region
      $region49: #{interaction_forward.19} parent=5 // pred_check
        %p610 = pneg %p609
      $region50: #{interaction_forward.19} parent=5 // pred_check_branch
        %612 = sbr.rel (%p610) target = $region52
      $region51: #{interaction_forward.19} parent=5 // pred_region
        %s613 = ssub.s32 %s15, 2
        // Predicated region
        $region53: #{interaction_forward.19} parent=51 // pred_check
          %p614 = pneg %p185
        $region54: #{interaction_forward.19} parent=51 // pred_check_branch
          %616 = sbr.rel (%p614) target = $region56
        $region55: #{interaction_forward.19} parent=51 // pred_region
          %s617 = sand.u32 %s170, 1
          %s618 = scalar_lea.sflag [#allocation3], %s617
          %s619 = sand.u32 %s170, 1
          %s620 = smul.addr %s619, 32
          %s621 = scalar_lea.vmem [#allocation2], %s620
          %622 = dma.done %s618, 512
        $region56: #{interaction_forward.19} parent=51 // pred_fallthru
          _
      $region52: #{interaction_forward.19} parent=5 // pred_fallthru
        _
    $region6: #{interaction_forward.19} parent=1 // loop_footer
      %s19 = sadd.s32 1, %s15
    $region7: #{interaction_forward.19} parent=1 // loop_footer_branch
      %14 = sbr.rel target = $region3
    $region8: #{interaction_forward.19} parent=1 // loop_exit
      _
    %623 = vsyncpa [#allocation3], 1
    %s624 = scalar_lea.sflag [#allocation3], 1
    %625 = vsyncpa %s624, 1

// kernel: interaction_forward.12
$region0: #{interaction_forward.12}
  #allocation0 [shape = 'u32[]', space=smem, size = 0x4, offset = 0x4, fixed_abs, tag = 'smem constant byte address 0x4 - core index']
  #allocation1 [shape = 'u32[144,128]{1,0:T(1,128)}', space=vmem, size = 0x12000, scoped, tag = 'internal scratch']
  %s0 = inlined_call_operand.vmem [shape: f32[2,16,128], index: 0, kind: input, shape index: {}]
  %s1 = inlined_call_operand.vmem [shape: f32[2,2,16,64], index: 1, kind: input, shape index: {}]
  %s2 = inlined_call_operand.vmem [shape: f32[128,384], index: 2, kind: input, shape index: {}]
  %s3 = inlined_call_operand.vmem [shape: f32[1,384], index: 3, kind: input, shape index: {}]
  %s4 = inlined_call_operand.vmem [shape: f32[64,64], index: 4, kind: input, shape index: {}]
  %s5 = inlined_call_operand.vmem [shape: f32[1,64], index: 5, kind: input, shape index: {}]
  %s6 = inlined_call_operand.vmem [shape: f32[128,128], index: 6, kind: input, shape index: {}]
  %s7 = inlined_call_operand.vmem [shape: f32[1,128], index: 7, kind: input, shape index: {}]
  %s8 = inlined_call_operand.vmem [shape: f32[64,64], index: 8, kind: input, shape index: {}]
  %s9 = inlined_call_operand.vmem [shape: f32[1,64], index: 9, kind: input, shape index: {}]
  %s10 = inlined_call_operand.vmem [shape: f32[1,128], index: 10, kind: input, shape index: {}]
  %s11 = inlined_call_operand.vmem [shape: f32[1,128], index: 11, kind: input, shape index: {}]
  %s12 = inlined_call_operand.vmem [shape: f32[1,64], index: 12, kind: input, shape index: {}]
  %s13 = inlined_call_operand.vmem [shape: f32[1,64], index: 13, kind: input, shape index: {}]
  %s14 = inlined_call_operand.vmem [shape: f32[2,16,128], index: 14, kind: output, shape index: {0}]
  %s15 = inlined_call_operand.vmem [shape: f32[2,2,16,64], index: 15, kind: output, shape index: {1}]
  %16 = xla_tuple %s14, %s15
  %s17 = sld [smem:[#allocation0]]
  $region97: #{interaction_forward.12} parent=0
    _
  %s19 = ssub.s32 1, %s17
  %s20 = scalar_select 0, %s19, %s17
  loop: start=0, step=1, limit=4
  $region2: #{interaction_forward.12} parent=0 // loop_pre_header
    _
  $region3: #{interaction_forward.12} parent=0 // loop_header
    %s22 = sphi 0, %s26
    %p23 = scmp.ge.s32.totalorder %s22, 4
    %s32 = sphi 0, %s34
    %s35 = sphi 0, %s32
    %s36 = sphi 0, %s35
    %s52 = sphi 0, %s36
    %s58 = sphi 0, %s60
    %s61 = sphi 0, %s58
    %s62 = sphi 0, %s61
    %s78 = sphi 0, %s62
    %s82 = sphi 0, %s82
    %s84 = sphi 0, %s82
    %s85 = sphi 0, %s84
    %s99 = sphi 0, %s85
    %s103 = sphi 0, %s103
    %s105 = sphi 0, %s103
    %s106 = sphi 0, %s105
    %s120 = sphi 0, %s106
    %s124 = sphi 0, %s124
    %s126 = sphi 0, %s124
    %s127 = sphi 0, %s126
    %s141 = sphi 0, %s127
    %s145 = sphi 0, %s145
    %s147 = sphi 0, %s145
    %s148 = sphi 0, %s147
    %s162 = sphi 0, %s148
    %s166 = sphi 0, %s166
    %s168 = sphi 0, %s166
    %s169 = sphi 0, %s168
    %s183 = sphi 0, %s169
    %s187 = sphi 0, %s187
    %s189 = sphi 0, %s187
    %s190 = sphi 0, %s189
    %s204 = sphi 0, %s190
    %s208 = sphi 0, %s208
    %s210 = sphi 0, %s208
    %s211 = sphi 0, %s210
    %s225 = sphi 0, %s211
    %s229 = sphi 0, %s229
    %s231 = sphi 0, %s229
    %s232 = sphi 0, %s231
    %s246 = sphi 0, %s232
    %s250 = sphi 0, %s250
    %s252 = sphi 0, %s250
    %s253 = sphi 0, %s252
    %s267 = sphi 0, %s253
    %s271 = sphi 0, %s271
    %s273 = sphi 0, %s271
    %s274 = sphi 0, %s273
    %s288 = sphi 0, %s274
    %s292 = sphi 0, %s292
    %s294 = sphi 0, %s292
    %s295 = sphi 0, %s294
    %s309 = sphi 0, %s295
    %s313 = sphi 0, %s313
    %s315 = sphi 0, %s313
    %s316 = sphi 0, %s315
    %s330 = sphi 0, %s316
    %s336 = sphi 0, %s338
    %s339 = sphi 0, %s336
    %s340 = sphi 0, %s339
    %s356 = sphi 0, %s340
    %s362 = sphi 0, %s364
    %s365 = sphi 0, %s362
    %s366 = sphi 0, %s365
    %s382 = sphi 0, %s366
  $region4: #{interaction_forward.12} parent=0 // loop_header_branch
    %25 = sbr.rel (%p23) target = $region8
  $region5: #{interaction_forward.12} parent=0 // loop_body
    %s27 = ssub.s32 %s22, 1
    %s28 = ssub.s32 %s22, 2
    %s29 = sadd.s32 %s22, 1
    %s30 = ssub.s32 %s22, %s29
    %p31 = scmp.eq.s32.totalorder %s30, 0
    %s33 = sadd.s32 %s32, 1
    %s34 = scalar_select %p31, %s32, %s33
    %p37 = pneg %p31
    %p38 = scmp.eq.s32.totalorder %s22, 1
    %p39 = por %p37, %p38
    %p40 = scmp.ne.s32.totalorder %s32, %s35
    %p41 = scmp.eq.s32.totalorder %s22, 0
    %p42 = por %p40, %p41
    %p43 = scmp.ne.s32.totalorder %s32, %s35
    %p44 = scmp.eq.s32.totalorder %s27, 1
    %p45 = por %p43, %p44
    %p46 = scmp.ne.s32.totalorder %s35, %s36
    %p47 = scmp.eq.s32.totalorder %s27, 0
    %p48 = por %p46, %p47
    %p49 = scmp.ne.s32.totalorder %s35, %s36
    %p50 = scmp.eq.s32.totalorder %s28, 1
    %p51 = por %p49, %p50
    %p53 = scmp.ne.s32.totalorder %s36, %s52
    %p54 = scmp.eq.s32.totalorder %s28, 0
    %p55 = por %p53, %p54
    %s56 = ssub.s32 %s22, %s29
    %p57 = scmp.eq.s32.totalorder %s56, 0
    %s59 = sadd.s32 %s58, 1
    %s60 = scalar_select %p57, %s58, %s59
    %p63 = pneg %p57
    %p64 = scmp.eq.s32.totalorder %s22, 1
    %p65 = por %p63, %p64
    %p66 = scmp.ne.s32.totalorder %s58, %s61
    %p67 = scmp.eq.s32.totalorder %s22, 0
    %p68 = por %p66, %p67
    %p69 = scmp.ne.s32.totalorder %s58, %s61
    %p70 = scmp.eq.s32.totalorder %s27, 1
    %p71 = por %p69, %p70
    %p72 = scmp.ne.s32.totalorder %s61, %s62
    %p73 = scmp.eq.s32.totalorder %s27, 0
    %p74 = por %p72, %p73
    %p75 = scmp.ne.s32.totalorder %s61, %s62
    %p76 = scmp.eq.s32.totalorder %s28, 1
    %p77 = por %p75, %p76
    %p79 = scmp.ne.s32.totalorder %s62, %s78
    %p80 = scmp.eq.s32.totalorder %s28, 0
    %p81 = por %p79, %p80
    %s83 = sadd.s32 %s82, 1
    %p86 = scmp.eq.s32.totalorder %s22, 1
    %p87 = scmp.ne.s32.totalorder %s82, %s84
    %p88 = scmp.eq.s32.totalorder %s22, 0
    %p89 = por %p87, %p88
    %p90 = scmp.ne.s32.totalorder %s82, %s84
    %p91 = scmp.eq.s32.totalorder %s27, 1
    %p92 = por %p90, %p91
    %p93 = scmp.ne.s32.totalorder %s84, %s85
    %p94 = scmp.eq.s32.totalorder %s27, 0
    %p95 = por %p93, %p94
    %p96 = scmp.ne.s32.totalorder %s84, %s85
    %p97 = scmp.eq.s32.totalorder %s28, 1
    %p98 = por %p96, %p97
    %p100 = scmp.ne.s32.totalorder %s85, %s99
    %p101 = scmp.eq.s32.totalorder %s28, 0
    %p102 = por %p100, %p101
    %s104 = sadd.s32 %s103, 1
    %p107 = scmp.eq.s32.totalorder %s22, 1
    %p108 = scmp.ne.s32.totalorder %s103, %s105
    %p109 = scmp.eq.s32.totalorder %s22, 0
    %p110 = por %p108, %p109
    %p111 = scmp.ne.s32.totalorder %s103, %s105
    %p112 = scmp.eq.s32.totalorder %s27, 1
    %p113 = por %p111, %p112
    %p114 = scmp.ne.s32.totalorder %s105, %s106
    %p115 = scmp.eq.s32.totalorder %s27, 0
    %p116 = por %p114, %p115
    %p117 = scmp.ne.s32.totalorder %s105, %s106
    %p118 = scmp.eq.s32.totalorder %s28, 1
    %p119 = por %p117, %p118
    %p121 = scmp.ne.s32.totalorder %s106, %s120
    %p122 = scmp.eq.s32.totalorder %s28, 0
    %p123 = por %p121, %p122
    %s125 = sadd.s32 %s124, 1
    %p128 = scmp.eq.s32.totalorder %s22, 1
    %p129 = scmp.ne.s32.totalorder %s124, %s126
    %p130 = scmp.eq.s32.totalorder %s22, 0
    %p131 = por %p129, %p130
    %p132 = scmp.ne.s32.totalorder %s124, %s126
    %p133 = scmp.eq.s32.totalorder %s27, 1
    %p134 = por %p132, %p133
    %p135 = scmp.ne.s32.totalorder %s126, %s127
    %p136 = scmp.eq.s32.totalorder %s27, 0
    %p137 = por %p135, %p136
    %p138 = scmp.ne.s32.totalorder %s126, %s127
    %p139 = scmp.eq.s32.totalorder %s28, 1
    %p140 = por %p138, %p139
    %p142 = scmp.ne.s32.totalorder %s127, %s141
    %p143 = scmp.eq.s32.totalorder %s28, 0
    %p144 = por %p142, %p143
    %s146 = sadd.s32 %s145, 1
    %p149 = scmp.eq.s32.totalorder %s22, 1
    %p150 = scmp.ne.s32.totalorder %s145, %s147
    %p151 = scmp.eq.s32.totalorder %s22, 0
    %p152 = por %p150, %p151
    %p153 = scmp.ne.s32.totalorder %s145, %s147
    %p154 = scmp.eq.s32.totalorder %s27, 1
    %p155 = por %p153, %p154
    %p156 = scmp.ne.s32.totalorder %s147, %s148
    %p157 = scmp.eq.s32.totalorder %s27, 0
    %p158 = por %p156, %p157
    %p159 = scmp.ne.s32.totalorder %s147, %s148
    %p160 = scmp.eq.s32.totalorder %s28, 1
    %p161 = por %p159, %p160
    %p163 = scmp.ne.s32.totalorder %s148, %s162
    %p164 = scmp.eq.s32.totalorder %s28, 0
    %p165 = por %p163, %p164
    %s167 = sadd.s32 %s166, 1
    %p170 = scmp.eq.s32.totalorder %s22, 1
    %p171 = scmp.ne.s32.totalorder %s166, %s168
    %p172 = scmp.eq.s32.totalorder %s22, 0
    %p173 = por %p171, %p172
    %p174 = scmp.ne.s32.totalorder %s166, %s168
    %p175 = scmp.eq.s32.totalorder %s27, 1
    %p176 = por %p174, %p175
    %p177 = scmp.ne.s32.totalorder %s168, %s169
    %p178 = scmp.eq.s32.totalorder %s27, 0
    %p179 = por %p177, %p178
    %p180 = scmp.ne.s32.totalorder %s168, %s169
    %p181 = scmp.eq.s32.totalorder %s28, 1
    %p182 = por %p180, %p181
    %p184 = scmp.ne.s32.totalorder %s169, %s183
    %p185 = scmp.eq.s32.totalorder %s28, 0
    %p186 = por %p184, %p185
    %s188 = sadd.s32 %s187, 1
    %p191 = scmp.eq.s32.totalorder %s22, 1
    %p192 = scmp.ne.s32.totalorder %s187, %s189
    %p193 = scmp.eq.s32.totalorder %s22, 0
    %p194 = por %p192, %p193
    %p195 = scmp.ne.s32.totalorder %s187, %s189
    %p196 = scmp.eq.s32.totalorder %s27, 1
    %p197 = por %p195, %p196
    %p198 = scmp.ne.s32.totalorder %s189, %s190
    %p199 = scmp.eq.s32.totalorder %s27, 0
    %p200 = por %p198, %p199
    %p201 = scmp.ne.s32.totalorder %s189, %s190
    %p202 = scmp.eq.s32.totalorder %s28, 1
    %p203 = por %p201, %p202
    %p205 = scmp.ne.s32.totalorder %s190, %s204
    %p206 = scmp.eq.s32.totalorder %s28, 0
    %p207 = por %p205, %p206
    %s209 = sadd.s32 %s208, 1
    %p212 = scmp.eq.s32.totalorder %s22, 1
    %p213 = scmp.ne.s32.totalorder %s208, %s210
    %p214 = scmp.eq.s32.totalorder %s22, 0
    %p215 = por %p213, %p214
    %p216 = scmp.ne.s32.totalorder %s208, %s210
    %p217 = scmp.eq.s32.totalorder %s27, 1
    %p218 = por %p216, %p217
    %p219 = scmp.ne.s32.totalorder %s210, %s211
    %p220 = scmp.eq.s32.totalorder %s27, 0
    %p221 = por %p219, %p220
    %p222 = scmp.ne.s32.totalorder %s210, %s211
    %p223 = scmp.eq.s32.totalorder %s28, 1
    %p224 = por %p222, %p223
    %p226 = scmp.ne.s32.totalorder %s211, %s225
    %p227 = scmp.eq.s32.totalorder %s28, 0
    %p228 = por %p226, %p227
    %s230 = sadd.s32 %s229, 1
    %p233 = scmp.eq.s32.totalorder %s22, 1
    %p234 = scmp.ne.s32.totalorder %s229, %s231
    %p235 = scmp.eq.s32.totalorder %s22, 0
    %p236 = por %p234, %p235
    %p237 = scmp.ne.s32.totalorder %s229, %s231
    %p238 = scmp.eq.s32.totalorder %s27, 1
    %p239 = por %p237, %p238
    %p240 = scmp.ne.s32.totalorder %s231, %s232
    %p241 = scmp.eq.s32.totalorder %s27, 0
    %p242 = por %p240, %p241
    %p243 = scmp.ne.s32.totalorder %s231, %s232
    %p244 = scmp.eq.s32.totalorder %s28, 1
    %p245 = por %p243, %p244
    %p247 = scmp.ne.s32.totalorder %s232, %s246
    %p248 = scmp.eq.s32.totalorder %s28, 0
    %p249 = por %p247, %p248
    %s251 = sadd.s32 %s250, 1
    %p254 = scmp.eq.s32.totalorder %s22, 1
    %p255 = scmp.ne.s32.totalorder %s250, %s252
    %p256 = scmp.eq.s32.totalorder %s22, 0
    %p257 = por %p255, %p256
    %p258 = scmp.ne.s32.totalorder %s250, %s252
    %p259 = scmp.eq.s32.totalorder %s27, 1
    %p260 = por %p258, %p259
    %p261 = scmp.ne.s32.totalorder %s252, %s253
    %p262 = scmp.eq.s32.totalorder %s27, 0
    %p263 = por %p261, %p262
    %p264 = scmp.ne.s32.totalorder %s252, %s253
    %p265 = scmp.eq.s32.totalorder %s28, 1
    %p266 = por %p264, %p265
    %p268 = scmp.ne.s32.totalorder %s253, %s267
    %p269 = scmp.eq.s32.totalorder %s28, 0
    %p270 = por %p268, %p269
    %s272 = sadd.s32 %s271, 1
    %p275 = scmp.eq.s32.totalorder %s22, 1
    %p276 = scmp.ne.s32.totalorder %s271, %s273
    %p277 = scmp.eq.s32.totalorder %s22, 0
    %p278 = por %p276, %p277
    %p279 = scmp.ne.s32.totalorder %s271, %s273
    %p280 = scmp.eq.s32.totalorder %s27, 1
    %p281 = por %p279, %p280
    %p282 = scmp.ne.s32.totalorder %s273, %s274
    %p283 = scmp.eq.s32.totalorder %s27, 0
    %p284 = por %p282, %p283
    %p285 = scmp.ne.s32.totalorder %s273, %s274
    %p286 = scmp.eq.s32.totalorder %s28, 1
    %p287 = por %p285, %p286
    %p289 = scmp.ne.s32.totalorder %s274, %s288
    %p290 = scmp.eq.s32.totalorder %s28, 0
    %p291 = por %p289, %p290
    %s293 = sadd.s32 %s292, 1
    %p296 = scmp.eq.s32.totalorder %s22, 1
    %p297 = scmp.ne.s32.totalorder %s292, %s294
    %p298 = scmp.eq.s32.totalorder %s22, 0
    %p299 = por %p297, %p298
    %p300 = scmp.ne.s32.totalorder %s292, %s294
    %p301 = scmp.eq.s32.totalorder %s27, 1
    %p302 = por %p300, %p301
    %p303 = scmp.ne.s32.totalorder %s294, %s295
    %p304 = scmp.eq.s32.totalorder %s27, 0
    %p305 = por %p303, %p304
    %p306 = scmp.ne.s32.totalorder %s294, %s295
    %p307 = scmp.eq.s32.totalorder %s28, 1
    %p308 = por %p306, %p307
    %p310 = scmp.ne.s32.totalorder %s295, %s309
    %p311 = scmp.eq.s32.totalorder %s28, 0
    %p312 = por %p310, %p311
    %s314 = sadd.s32 %s313, 1
    %p317 = scmp.eq.s32.totalorder %s22, 1
    %p318 = scmp.ne.s32.totalorder %s313, %s315
    %p319 = scmp.eq.s32.totalorder %s22, 0
    %p320 = por %p318, %p319
    %p321 = scmp.ne.s32.totalorder %s313, %s315
    %p322 = scmp.eq.s32.totalorder %s27, 1
    %p323 = por %p321, %p322
    %p324 = scmp.ne.s32.totalorder %s315, %s316
    %p325 = scmp.eq.s32.totalorder %s27, 0
    %p326 = por %p324, %p325
    %p327 = scmp.ne.s32.totalorder %s315, %s316
    %p328 = scmp.eq.s32.totalorder %s28, 1
    %p329 = por %p327, %p328
    %p331 = scmp.ne.s32.totalorder %s316, %s330
    %p332 = scmp.eq.s32.totalorder %s28, 0
    %p333 = por %p331, %p332
    %s334 = ssub.s32 %s22, %s29
    %p335 = scmp.eq.s32.totalorder %s334, 0
    %s337 = sadd.s32 %s336, 1
    %s338 = scalar_select %p335, %s336, %s337
    %p341 = pneg %p335
    %p342 = scmp.eq.s32.totalorder %s22, 1
    %p343 = por %p341, %p342
    %p344 = scmp.ne.s32.totalorder %s336, %s339
    %p345 = scmp.eq.s32.totalorder %s22, 0
    %p346 = por %p344, %p345
    %p347 = scmp.ne.s32.totalorder %s336, %s339
    %p348 = scmp.eq.s32.totalorder %s27, 1
    %p349 = por %p347, %p348
    %p350 = scmp.ne.s32.totalorder %s339, %s340
    %p351 = scmp.eq.s32.totalorder %s27, 0
    %p352 = por %p350, %p351
    %p353 = scmp.ne.s32.totalorder %s339, %s340
    %p354 = scmp.eq.s32.totalorder %s28, 1
    %p355 = por %p353, %p354
    %p357 = scmp.ne.s32.totalorder %s340, %s356
    %p358 = scmp.eq.s32.totalorder %s28, 0
    %p359 = por %p357, %p358
    %s360 = ssub.s32 %s22, %s29
    %p361 = scmp.eq.s32.totalorder %s360, 0
    %s363 = sadd.s32 %s362, 1
    %s364 = scalar_select %p361, %s362, %s363
    %p367 = pneg %p361
    %p368 = scmp.eq.s32.totalorder %s22, 1
    %p369 = por %p367, %p368
    %p370 = scmp.ne.s32.totalorder %s362, %s365
    %p371 = scmp.eq.s32.totalorder %s22, 0
    %p372 = por %p370, %p371
    %p373 = scmp.ne.s32.totalorder %s362, %s365
    %p374 = scmp.eq.s32.totalorder %s27, 1
    %p375 = por %p373, %p374
    %p376 = scmp.ne.s32.totalorder %s365, %s366
    %p377 = scmp.eq.s32.totalorder %s27, 0
    %p378 = por %p376, %p377
    %p379 = scmp.ne.s32.totalorder %s365, %s366
    %p380 = scmp.eq.s32.totalorder %s28, 1
    %p381 = por %p379, %p380
    %p383 = scmp.ne.s32.totalorder %s366, %s382
    %p384 = scmp.eq.s32.totalorder %s28, 0
    %p385 = por %p383, %p384
    %p386 = scmp.le.s32.totalorder 1, %s22
    %p387 = scmp.lt.s32.totalorder %s22, 3
    %p388 = pnand %p386, %p387
    %p389 = pneg %p388
    // Predicated region
    $region9: #{interaction_forward.12} parent=5 // pred_check
      _
    $region10: #{interaction_forward.12} parent=5 // pred_check_branch
      %391 = sbr.rel (%p388) target = $region12
    $region11: #{interaction_forward.12} parent=5 // pred_region
      %s392 = ssub.s32 %s22, 1
      // Predicated region
      $region13: #{interaction_forward.12} parent=11 // pred_check
        %p393 = pneg %p95
      $region14: #{interaction_forward.12} parent=11 // pred_check_branch
        %395 = sbr.rel (%p393) target = $region16
      $region15: #{interaction_forward.12} parent=11 // pred_region
        _
      $region16: #{interaction_forward.12} parent=11 // pred_fallthru
        _
      // Predicated region
      $region17: #{interaction_forward.12} parent=11 // pred_check
        %p396 = pneg %p116
      $region18: #{interaction_forward.12} parent=11 // pred_check_branch
        %398 = sbr.rel (%p396) target = $region20
      $region19: #{interaction_forward.12} parent=11 // pred_region
        _
      $region20: #{interaction_forward.12} parent=11 // pred_fallthru
        _
      // Predicated region
      $region21: #{interaction_forward.12} parent=11 // pred_check
        %p399 = pneg %p137
      $region22: #{interaction_forward.12} parent=11 // pred_check_branch
        %401 = sbr.rel (%p399) target = $region24
      $region23: #{interaction_forward.12} parent=11 // pred_region
        _
      $region24: #{interaction_forward.12} parent=11 // pred_fallthru
        _
      // Predicated region
      $region25: #{interaction_forward.12} parent=11 // pred_check
        %p402 = pneg %p158
      $region26: #{interaction_forward.12} parent=11 // pred_check_branch
        %404 = sbr.rel (%p402) target = $region28
      $region27: #{interaction_forward.12} parent=11 // pred_region
        _
      $region28: #{interaction_forward.12} parent=11 // pred_fallthru
        _
      // Predicated region
      $region29: #{interaction_forward.12} parent=11 // pred_check
        %p405 = pneg %p179
      $region30: #{interaction_forward.12} parent=11 // pred_check_branch
        %407 = sbr.rel (%p405) target = $region32
      $region31: #{interaction_forward.12} parent=11 // pred_region
        _
      $region32: #{interaction_forward.12} parent=11 // pred_fallthru
        _
      // Predicated region
      $region33: #{interaction_forward.12} parent=11 // pred_check
        %p408 = pneg %p200
      $region34: #{interaction_forward.12} parent=11 // pred_check_branch
        %410 = sbr.rel (%p408) target = $region36
      $region35: #{interaction_forward.12} parent=11 // pred_region
        _
      $region36: #{interaction_forward.12} parent=11 // pred_fallthru
        _
      // Predicated region
      $region37: #{interaction_forward.12} parent=11 // pred_check
        %p411 = pneg %p221
      $region38: #{interaction_forward.12} parent=11 // pred_check_branch
        %413 = sbr.rel (%p411) target = $region40
      $region39: #{interaction_forward.12} parent=11 // pred_region
        _
      $region40: #{interaction_forward.12} parent=11 // pred_fallthru
        _
      // Predicated region
      $region41: #{interaction_forward.12} parent=11 // pred_check
        %p414 = pneg %p242
      $region42: #{interaction_forward.12} parent=11 // pred_check_branch
        %416 = sbr.rel (%p414) target = $region44
      $region43: #{interaction_forward.12} parent=11 // pred_region
        _
      $region44: #{interaction_forward.12} parent=11 // pred_fallthru
        _
      // Predicated region
      $region45: #{interaction_forward.12} parent=11 // pred_check
        %p417 = pneg %p263
      $region46: #{interaction_forward.12} parent=11 // pred_check_branch
        %419 = sbr.rel (%p417) target = $region48
      $region47: #{interaction_forward.12} parent=11 // pred_region
        _
      $region48: #{interaction_forward.12} parent=11 // pred_fallthru
        _
      // Predicated region
      $region49: #{interaction_forward.12} parent=11 // pred_check
        %p420 = pneg %p284
      $region50: #{interaction_forward.12} parent=11 // pred_check_branch
        %422 = sbr.rel (%p420) target = $region52
      $region51: #{interaction_forward.12} parent=11 // pred_region
        _
      $region52: #{interaction_forward.12} parent=11 // pred_fallthru
        _
      // Predicated region
      $region53: #{interaction_forward.12} parent=11 // pred_check
        %p423 = pneg %p305
      $region54: #{interaction_forward.12} parent=11 // pred_check_branch
        %425 = sbr.rel (%p423) target = $region56
      $region55: #{interaction_forward.12} parent=11 // pred_region
        _
      $region56: #{interaction_forward.12} parent=11 // pred_fallthru
        _
      // Predicated region
      $region57: #{interaction_forward.12} parent=11 // pred_check
        %p426 = pneg %p326
      $region58: #{interaction_forward.12} parent=11 // pred_check_branch
        %428 = sbr.rel (%p426) target = $region60
      $region59: #{interaction_forward.12} parent=11 // pred_region
        _
      $region60: #{interaction_forward.12} parent=11 // pred_fallthru
        _
    $region12: #{interaction_forward.12} parent=5 // pred_fallthru
      _
    %p429 = scmp.lt.s32.totalorder %s22, 2
    // Predicated region
    $region61: #{interaction_forward.12} parent=5 // pred_check
      %p430 = pneg %p429
    $region62: #{interaction_forward.12} parent=5 // pred_check_branch
      %432 = sbr.rel (%p430) target = $region64
    $region63: #{interaction_forward.12} parent=5 // pred_region
      // Predicated region
      $region65: #{interaction_forward.12} parent=63 // pred_check
        %p433 = pneg %p42
      $region66: #{interaction_forward.12} parent=63 // pred_check_branch
        %435 = sbr.rel (%p433) target = $region68
      $region67: #{interaction_forward.12} parent=63 // pred_region
        %p436 = scmp.lt.s32.totalorder %s22, 1
        %s437 = scalar_select %p436, %s22, 1
        %s438 = smul.addr %s437, 2
        %s439 = smul.addr %s438, 8
        %s440 = scalar_lea.vmem %s0, %s439
      $region68: #{interaction_forward.12} parent=63 // pred_fallthru
        _
      // Predicated region
      $region69: #{interaction_forward.12} parent=63 // pred_check
        %p441 = pneg %p68
      $region70: #{interaction_forward.12} parent=63 // pred_check_branch
        %443 = sbr.rel (%p441) target = $region72
      $region71: #{interaction_forward.12} parent=63 // pred_region
        %p444 = scmp.lt.s32.totalorder %s22, 1
        %s445 = scalar_select %p444, %s22, 1
        %s446 = smul.addr %s445, 4
        %s447 = smul.addr %s446, 8
        %s448 = scalar_lea.vmem %s1, %s447
      $region72: #{interaction_forward.12} parent=63 // pred_fallthru
        _
    $region64: #{interaction_forward.12} parent=5 // pred_fallthru
      _
    %p449 = scmp.le.s32.totalorder 1, %s22
    %p450 = scmp.lt.s32.totalorder %s22, 3
    %p451 = pnand %p449, %p450
    %p452 = pneg %p451
    // Predicated region
    $region73: #{interaction_forward.12} parent=5 // pred_check
      _
    $region74: #{interaction_forward.12} parent=5 // pred_check_branch
      %454 = sbr.rel (%p451) target = $region76
    $region75: #{interaction_forward.12} parent=5 // pred_region
      %s455 = ssub.s32 %s22, 1
      %p456 = scmp.lt.s32.totalorder %s27, 1
      %s457 = scalar_select %p456, %s27, 1
      %s458 = smul.addr %s457, 2
      %s459 = smul.addr %s458, 8
      %s460 = scalar_lea.vmem %s0, %s459
      %p461 = pneg %p48
      %p462 = pneg %p45
      %p463 = scmp.lt.s32.totalorder %s27, 1
      %s464 = scalar_select %p463, %s27, 1
      %s465 = smul.addr %s464, 4
      %s466 = smul.addr %s465, 8
      %s467 = scalar_lea.vmem %s1, %s466
      %p468 = pneg %p74
      %p469 = pneg %p71
      %p470 = pneg %p95
      %p471 = pneg %p92
      %p472 = pneg %p116
      %p473 = pneg %p113
      %p474 = pneg %p137
      %p475 = pneg %p134
      %p476 = pneg %p158
      %p477 = pneg %p155
      %p478 = pneg %p179
      %p479 = pneg %p176
      %p480 = pneg %p200
      %p481 = pneg %p197
      %p482 = pneg %p221
      %p483 = pneg %p218
      %p484 = pneg %p242
      %p485 = pneg %p239
      %p486 = pneg %p263
      %p487 = pneg %p260
      %p488 = pneg %p284
      %p489 = pneg %p281
      %p490 = pneg %p305
      %p491 = pneg %p302
      %p492 = pneg %p326
      %p493 = pneg %p323
      %p494 = pneg %p352
      %p495 = pneg %p349
      %p496 = scmp.lt.s32.totalorder %s27, 1
      %s497 = scalar_select %p496, %s27, 1
      %s498 = smul.addr %s497, 2
      %s499 = smul.addr %s498, 8
      %s500 = scalar_lea.vmem %s14, %s499
      %p501 = pneg %p378
      %p502 = pneg %p375
      %p503 = scmp.lt.s32.totalorder %s27, 1
      %s504 = scalar_select %p503, %s27, 1
      %s505 = smul.addr %s504, 4
      %s506 = smul.addr %s505, 8
      %s507 = scalar_lea.vmem %s15, %s506
      %p508 = scmp.lt.s32.totalorder %s27, 1
      %s509 = scalar_select %p508, %s27, 1
      %s510 = smul.addr %s509, 2
      %s511 = smul.addr %s510, 8
      %s512 = scalar_lea.vmem %s0, %s511
      %p513 = scmp.lt.s32.totalorder %s27, 1
      %s514 = scalar_select %p513, %s27, 1
      %s515 = smul.addr %s514, 4
      %s516 = smul.addr %s515, 8
      %s517 = scalar_lea.vmem %s1, %s516
      %p518 = scmp.lt.s32.totalorder %s27, 1
      %s519 = scalar_select %p518, %s27, 1
      %s520 = smul.addr %s519, 2
      %s521 = smul.addr %s520, 8
      %s522 = scalar_lea.vmem %s14, %s521
      %p523 = scmp.lt.s32.totalorder %s27, 1
      %s524 = scalar_select %p523, %s27, 1
      %s525 = smul.addr %s524, 4
      %s526 = smul.addr %s525, 8
      %s527 = scalar_lea.vmem %s15, %s526
      %v528 = vld [vmem:[%s512] sm:$0xff]
      %v529 = vld [vmem:[%s512 + $0x8] sm:$0xff]
      %v530 = vld [vmem:[%s2] sm:$0xff]
      %v531 = vld [vmem:[%s2 + $0x8] sm:$0xff]
      %v532 = vld [vmem:[%s2 + $0x10] sm:$0xff]
      %v533 = vld [vmem:[%s2 + $0x18] sm:$0xff]
      %v534 = vld [vmem:[%s2 + $0x20] sm:$0xff]
      %v535 = vld [vmem:[%s2 + $0x28] sm:$0xff]
      %v536 = vld [vmem:[%s2 + $0x30] sm:$0xff]
      %v537 = vld [vmem:[%s2 + $0x38] sm:$0xff]
      %v538 = vld [vmem:[%s2 + $0x40] sm:$0xff]
      %v539 = vld [vmem:[%s2 + $0x48] sm:$0xff]
      %v540 = vld [vmem:[%s2 + $0x50] sm:$0xff]
      %v541 = vld [vmem:[%s2 + $0x58] sm:$0xff]
      %v542 = vld [vmem:[%s2 + $0x60] sm:$0xff]
      %v543 = vld [vmem:[%s2 + $0x68] sm:$0xff]
      %v544 = vld [vmem:[%s2 + $0x70] sm:$0xff]
      %v545 = vld [vmem:[%s2 + $0x78] sm:$0xff]
      %v546 = vld [vmem:[%s2 + $0x80] sm:$0xff]
      %v547 = vld [vmem:[%s2 + $0x88] sm:$0xff]
      %v548 = vld [vmem:[%s2 + $0x90] sm:$0xff]
      %v549 = vld [vmem:[%s2 + $0x98] sm:$0xff]
      %v550 = vld [vmem:[%s2 + $0xa0] sm:$0xff]
      %v551 = vld [vmem:[%s2 + $0xa8] sm:$0xff]
      %v552 = vld [vmem:[%s2 + $0xb0] sm:$0xff]
      %v553 = vld [vmem:[%s2 + $0xb8] sm:$0xff]
      %v554 = vld [vmem:[%s2 + $0xc0] sm:$0xff]
      %v555 = vld [vmem:[%s2 + $0xc8] sm:$0xff]
      %v556 = vld [vmem:[%s2 + $0xd0] sm:$0xff]
      %v557 = vld [vmem:[%s2 + $0xd8] sm:$0xff]
      %v558 = vld [vmem:[%s2 + $0xe0] sm:$0xff]
      %v559 = vld [vmem:[%s2 + $0xe8] sm:$0xff]
      %v560 = vld [vmem:[%s2 + $0xf0] sm:$0xff]
      %v561 = vld [vmem:[%s2 + $0xf8] sm:$0xff]
      %v562 = vld [vmem:[%s2 + $0x100] sm:$0xff]
      %v563 = vld [vmem:[%s2 + $0x108] sm:$0xff]
      %v564 = vld [vmem:[%s2 + $0x110] sm:$0xff]
      %v565 = vld [vmem:[%s2 + $0x118] sm:$0xff]
      %v566 = vld [vmem:[%s2 + $0x120] sm:$0xff]
      %v567 = vld [vmem:[%s2 + $0x128] sm:$0xff]
      %v568 = vld [vmem:[%s2 + $0x130] sm:$0xff]
      %v569 = vld [vmem:[%s2 + $0x138] sm:$0xff]
      %v570 = vld [vmem:[%s2 + $0x140] sm:$0xff]
      %v571 = vld [vmem:[%s2 + $0x148] sm:$0xff]
      %v572 = vld [vmem:[%s2 + $0x150] sm:$0xff]
      %v573 = vld [vmem:[%s2 + $0x158] sm:$0xff]
      %v574 = vld [vmem:[%s2 + $0x160] sm:$0xff]
      %v575 = vld [vmem:[%s2 + $0x168] sm:$0xff]
      %v576 = vld [vmem:[%s2 + $0x170] sm:$0xff]
      %v577 = vld [vmem:[%s2 + $0x178] sm:$0xff]
      %v578 = vld [vmem:[%s3] sm:$0x7]
      %v580 = vlaneseq
      %v581 = vshrl.u32 %v580, 7
      %v582 = vsub.s32 0, %v581
      %v583 = vrot.slane %v578, %v582
      %v584 = vlaneseq
      %v585 = vshrl.u32 %v584, 7
      %v586 = vsub.s32 1, %v585
      %v587 = vrot.slane %v578, %v586
      %v588 = vlaneseq
      %v589 = vshrl.u32 %v588, 7
      %v590 = vsub.s32 2, %v589
      %v591 = vrot.slane %v578, %v590
      %595 = vmatprep.subr.mxu0 %v531
      %596 = vmatpush1.msra.mxu0 %v530
      %597 = vmatprep.subr.mxu0 %v534
      %598 = vmatpush1.msra.mxu0 %v533
      %599 = vmatprep.subr.mxu0 %v537
      %600 = vmatpush1.msra.mxu0 %v536
      %601 = vmatprep.subr.mxu0 %v540
      %602 = vmatpush1.msra.mxu0 %v539
      %603 = vmatprep.subr.mxu0 %v543
      %604 = vmatpush1.msra.mxu0 %v542
      %605 = vmatprep.subr.mxu0 %v546
      %606 = vmatpush1.msra.mxu0 %v545
      %607 = vmatprep.subr.mxu0 %v549
      %608 = vmatpush1.msra.mxu0 %v548
      %609 = vmatprep.subr.mxu0 %v552
      %610 = vmatpush1.msra.mxu0 %v551
      %611 = vmatprep.subr.mxu0 %v555
      %612 = vmatpush1.msra.mxu0 %v554
      %613 = vmatprep.subr.mxu0 %v558
      %614 = vmatpush1.msra.mxu0 %v557
      %615 = vmatprep.subr.mxu0 %v561
      %616 = vmatpush1.msra.mxu0 %v560
      %617 = vmatprep.subr.mxu0 %v564
      %618 = vmatpush1.msra.mxu0 %v563
      %619 = vmatprep.subr.mxu0 %v567
      %620 = vmatpush1.msra.mxu0 %v566
      %621 = vmatprep.subr.mxu0 %v570
      %622 = vmatpush1.msra.mxu0 %v569
      %623 = vmatprep.subr.mxu0 %v573
      %624 = vmatpush1.msra.mxu0 %v572
      %625 = vmatprep.subr.mxu0 %v576
      %626 = vmatpush1.msra.mxu0 %v575
      %627 = vmatprep.subr.mxu0 0.0
      %628 = vmatpush1.msra.mxu0 0.0
      %629 = vmatprep.subr.mxu0 0.0
      %630 = vmatpush1.msra.mxu0 0.0
      %631 = vmatprep.subr.mxu0 0.0
      %632 = vmatpush1.msra.mxu0 0.0
      %633 = vmatprep.subr.mxu0 0.0
      %634 = vmatpush1.msra.mxu0 0.0
      %635 = vmatprep.subr.mxu0 0.0
      %636 = vmatpush1.msra.mxu0 0.0
      %637 = vmatprep.subr.mxu0 0.0
      %638 = vmatpush1.msra.mxu0 0.0
      %639 = vmatprep.subr.mxu0 0.0
      %640 = vmatpush1.msra.mxu0 0.0
      %641 = vmatprep.subr.mxu0 0.0
      %642 = vmatpush1.msra.mxu0 0.0
      %643 = vmatprep.subr.mxu0 0.0
      %644 = vmatpush1.msra.mxu0 0.0
      %645 = vmatprep.subr.mxu0 0.0
      %646 = vmatpush1.msra.mxu0 0.0
      %647 = vmatprep.subr.mxu0 0.0
      %648 = vmatpush1.msra.mxu0 0.0
      %649 = vmatprep.subr.mxu0 0.0
      %650 = vmatpush1.msra.mxu0 0.0
      %651 = vmatprep.subr.mxu0 0.0
      %652 = vmatpush1.msra.mxu0 0.0
      %653 = vmatprep.subr.mxu0 0.0
      %654 = vmatpush1.msra.mxu0 0.0
      %655 = vmatprep.subr.mxu0 0.0
      %656 = vmatpush1.msra.mxu0 0.0
      %657 = vmatprep.subr.mxu0 0.0
      %658 = vmatpush1.msra.mxu0 0.0
      %659 = vmatprep.mubr.f32.mxu0 0.0
      %660 = vmatmul.mubr.f32.gmra.mrb[0].mxu0 %v528
      %v661 = vpop.f32.mrb[0].mxu0
      %v662 = vadd.f32 %v583, %v661
      %v663 = vpop.f32.mrb[0].mxu0
      %v664 = vadd.f32 %v587, %v663
      %665 = vmatprep.mubr.f32.mxu0 0.0
      %666 = vmatmul.mubr.f32.gmra.mrb[0].mxu0 %v529
      %v667 = vpop.f32.mrb[0].mxu0
      %v668 = vadd.f32 %v583, %v667
      %v669 = vpop.f32.mrb[0].mxu0
      %v670 = vadd.f32 %v587, %v669
      %671 = vdwg.mxu0
      %672 = vmatprep.subr.mxu0 0.0
      %673 = vmatpush1.msra.mxu0 %v532
      %674 = vmatprep.subr.mxu0 0.0
      %675 = vmatpush1.msra.mxu0 %v535
      %676 = vmatprep.subr.mxu0 0.0
      %677 = vmatpush1.msra.mxu0 %v538
      %678 = vmatprep.subr.mxu0 0.0
      %679 = vmatpush1.msra.mxu0 %v541
      %680 = vmatprep.subr.mxu0 0.0
      %681 = vmatpush1.msra.mxu0 %v544
      %682 = vmatprep.subr.mxu0 0.0
      %683 = vmatpush1.msra.mxu0 %v547
      %684 = vmatprep.subr.mxu0 0.0
      %685 = vmatpush1.msra.mxu0 %v550
      %686 = vmatprep.subr.mxu0 0.0
      %687 = vmatpush1.msra.mxu0 %v553
      %688 = vmatprep.subr.mxu0 0.0
      %689 = vmatpush1.msra.mxu0 %v556
      %690 = vmatprep.subr.mxu0 0.0
      %691 = vmatpush1.msra.mxu0 %v559
      %692 = vmatprep.subr.mxu0 0.0
      %693 = vmatpush1.msra.mxu0 %v562
      %694 = vmatprep.subr.mxu0 0.0
      %695 = vmatpush1.msra.mxu0 %v565
      %696 = vmatprep.subr.mxu0 0.0
      %697 = vmatpush1.msra.mxu0 %v568
      %698 = vmatprep.subr.mxu0 0.0
      %699 = vmatpush1.msra.mxu0 %v571
      %700 = vmatprep.subr.mxu0 0.0
      %701 = vmatpush1.msra.mxu0 %v574
      %702 = vmatprep.subr.mxu0 0.0
      %703 = vmatpush1.msra.mxu0 %v577
      %704 = vmatprep.subr.mxu0 0.0
      %705 = vmatpush1.msra.mxu0 0.0
      %706 = vmatprep.subr.mxu0 0.0
      %707 = vmatpush1.msra.mxu0 0.0
      %708 = vmatprep.subr.mxu0 0.0
      %709 = vmatpush1.msra.mxu0 0.0
      %710 = vmatprep.subr.mxu0 0.0
      %711 = vmatpush1.msra.mxu0 0.0
      %712 = vmatprep.subr.mxu0 0.0
      %713 = vmatpush1.msra.mxu0 0.0
      %714 = vmatprep.subr.mxu0 0.0
      %715 = vmatpush1.msra.mxu0 0.0
      %716 = vmatprep.subr.mxu0 0.0
      %717 = vmatpush1.msra.mxu0 0.0
      %718 = vmatprep.subr.mxu0 0.0
      %719 = vmatpush1.msra.mxu0 0.0
      %720 = vmatprep.subr.mxu0 0.0
      %721 = vmatpush1.msra.mxu0 0.0
      %722 = vmatprep.subr.mxu0 0.0
      %723 = vmatpush1.msra.mxu0 0.0
      %724 = vmatprep.subr.mxu0 0.0
      %725 = vmatpush1.msra.mxu0 0.0
      %726 = vmatprep.subr.mxu0 0.0
      %727 = vmatpush1.msra.mxu0 0.0
      %728 = vmatprep.subr.mxu0 0.0
      %729 = vmatpush1.msra.mxu0 0.0
      %730 = vmatprep.subr.mxu0 0.0
      %731 = vmatpush1.msra.mxu0 0.0
      %732 = vmatprep.subr.mxu0 0.0
      %733 = vmatpush1.msra.mxu0 0.0
      %734 = vmatprep.subr.mxu0 0.0
      %735 = vmatpush1.msra.mxu0 0.0
      %736 = vmatprep.mubr.f32.mxu0 0.0
      %737 = vmatmul.mubr.f32.gmra.mrb[0].mxu0 %v528
      %v738 = vpop.f32.mrb[0].mxu0
      %v739 = vadd.f32 %v591, %v738
      %v740 = vpop.f32.mrb[0].mxu0
      %741 = vmatprep.mubr.f32.mxu0 0.0
      %742 = vmatmul.mubr.f32.gmra.mrb[0].mxu0 %v529
      %v743 = vpop.f32.mrb[0].mxu0
      %v744 = vadd.f32 %v591, %v743
      %v745 = vpop.f32.mrb[0].mxu0
      %746 = vdwg.mxu0
      %v747 = vld [vmem:[%s517] sm:$0xff]
      %v748 = vld [vmem:[%s517 + $0x8] sm:$0xff]
      %v749 = vld [vmem:[%s517 + $0x10] sm:$0xff]
      %v750 = vld [vmem:[%s517 + $0x18] sm:$0xff]
      %v751 = vld [vmem:[%s4] sm:$0xff]
      %v752 = vld [vmem:[%s4 + $0x8] sm:$0xff]
      %v753 = vld [vmem:[%s4 + $0x10] sm:$0xff]
      %v754 = vld [vmem:[%s4 + $0x18] sm:$0xff]
      %v755 = vld [vmem:[%s4 + $0x20] sm:$0xff]
      %v756 = vld [vmem:[%s4 + $0x28] sm:$0xff]
      %v757 = vld [vmem:[%s4 + $0x30] sm:$0xff]
      %v758 = vld [vmem:[%s4 + $0x38] sm:$0xff]
      %v759 = vld [vmem:[%s5] sm:$0x1]
      %v761 = vlaneseq
      %v762 = vshrl.u32 %v761, 7
      %v763 = vsub.s32 0, %v762
      %v764 = vrot.slane %v759, %v763
      %vm766 = vcmask 523264
      %v768 = vsel %vm766, %v747, 0
      %v771 = vsel %vm766, %v748, 0
      %773 = vmatprep.subr.mxu0 0.0
      %774 = vmatpush1.msra.mxu0 %v751
      %775 = vmatprep.subr.mxu0 0.0
      %776 = vmatpush1.msra.mxu0 %v752
      %777 = vmatprep.subr.mxu0 0.0
      %778 = vmatpush1.msra.mxu0 %v753
      %779 = vmatprep.subr.mxu0 0.0
      %780 = vmatpush1.msra.mxu0 %v754
      %781 = vmatprep.subr.mxu0 0.0
      %782 = vmatpush1.msra.mxu0 %v755
      %783 = vmatprep.subr.mxu0 0.0
      %784 = vmatpush1.msra.mxu0 %v756
      %785 = vmatprep.subr.mxu0 0.0
      %786 = vmatpush1.msra.mxu0 %v757
      %787 = vmatprep.subr.mxu0 0.0
      %788 = vmatpush1.msra.mxu0 %v758
      %789 = vmatprep.subr.mxu0 0.0
      %790 = vmatpush1.msra.mxu0 0.0
      %791 = vmatprep.subr.mxu0 0.0
      %792 = vmatpush1.msra.mxu0 0.0
      %793 = vmatprep.subr.mxu0 0.0
      %794 = vmatpush1.msra.mxu0 0.0
      %795 = vmatprep.subr.mxu0 0.0
      %796 = vmatpush1.msra.mxu0 0.0
      %797 = vmatprep.subr.mxu0 0.0
      %798 = vmatpush1.msra.mxu0 0.0
      %799 = vmatprep.subr.mxu0 0.0
      %800 = vmatpush1.msra.mxu0 0.0
      %801 = vmatprep.subr.mxu0 0.0
      %802 = vmatpush1.msra.mxu0 0.0
      %803 = vmatprep.subr.mxu0 0.0
      %804 = vmatpush1.msra.mxu0 0.0
      %805 = vmatprep.subr.mxu0 0.0
      %806 = vmatpush1.msra.mxu0 0.0
      %807 = vmatprep.subr.mxu0 0.0
      %808 = vmatpush1.msra.mxu0 0.0
      %809 = vmatprep.subr.mxu0 0.0
      %810 = vmatpush1.msra.mxu0 0.0
      %811 = vmatprep.subr.mxu0 0.0
      %812 = vmatpush1.msra.mxu0 0.0
      %813 = vmatprep.subr.mxu0 0.0
      %814 = vmatpush1.msra.mxu0 0.0
      %815 = vmatprep.subr.mxu0 0.0
      %816 = vmatpush1.msra.mxu0 0.0
      %817 = vmatprep.subr.mxu0 0.0
      %818 = vmatpush1.msra.mxu0 0.0
      %819 = vmatprep.subr.mxu0 0.0
      %820 = vmatpush1.msra.mxu0 0.0
      %821 = vmatprep.subr.mxu0 0.0
      %822 = vmatpush1.msra.mxu0 0.0
      %823 = vmatprep.subr.mxu0 0.0
      %824 = vmatpush1.msra.mxu0 0.0
      %825 = vmatprep.subr.mxu0 0.0
      %826 = vmatpush1.msra.mxu0 0.0
      %827 = vmatprep.subr.mxu0 0.0
      %828 = vmatpush1.msra.mxu0 0.0
      %829 = vmatprep.subr.mxu0 0.0
      %830 = vmatpush1.msra.mxu0 0.0
      %831 = vmatprep.subr.mxu0 0.0
      %832 = vmatpush1.msra.mxu0 0.0
      %833 = vmatprep.subr.mxu0 0.0
      %834 = vmatpush1.msra.mxu0 0.0
      %835 = vmatprep.subr.mxu0 0.0
      %836 = vmatpush1.msra.mxu0 0.0
      %837 = vmatprep.mubr.f32.mxu0 0.0
      %838 = vmatmul.mubr.f32.gmra.mrb[0].mxu0 %v768
      %v839 = vpop.f32.mrb[0].mxu0
      %v840 = vadd.f32 %v764, %v839
      %v841 = vpop.f32.mrb[0].mxu0
      %842 = vmatprep.mubr.f32.mxu0 0.0
      %843 = vmatmul.mubr.f32.gmra.mrb[0].mxu0 %v771
      %v844 = vpop.f32.mrb[0].mxu0
      %v845 = vadd.f32 %v764, %v844
      %v846 = vpop.f32.mrb[0].mxu0
      %847 = vdwg.mxu0
      %v849 = vsel %vm766, %v749, 0
      %v852 = vsel %vm766, %v750, 0
      %854 = vmatprep.subr.mxu0 0.0
      %855 = vmatpush1.msra.mxu0 %v751
      %856 = vmatprep.subr.mxu0 0.0
      %857 = vmatpush1.msra.mxu0 %v752
      %858 = vmatprep.subr.mxu0 0.0
      %859 = vmatpush1.msra.mxu0 %v753
      %860 = vmatprep.subr.mxu0 0.0
      %861 = vmatpush1.msra.mxu0 %v754
      %862 = vmatprep.subr.mxu0 0.0
      %863 = vmatpush1.msra.mxu0 %v755
      %864 = vmatprep.subr.mxu0 0.0
      %865 = vmatpush1.msra.mxu0 %v756
      %866 = vmatprep.subr.mxu0 0.0
      %867 = vmatpush1.msra.mxu0 %v757
      %868 = vmatprep.subr.mxu0 0.0
      %869 = vmatpush1.msra.mxu0 %v758
      %870 = vmatprep.subr.mxu0 0.0
      %871 = vmatpush1.msra.mxu0 0.0
      %872 = vmatprep.subr.mxu0 0.0
      %873 = vmatpush1.msra.mxu0 0.0
      %874 = vmatprep.subr.mxu0 0.0
      %875 = vmatpush1.msra.mxu0 0.0
      %876 = vmatprep.subr.mxu0 0.0
      %877 = vmatpush1.msra.mxu0 0.0
      %878 = vmatprep.subr.mxu0 0.0
      %879 = vmatpush1.msra.mxu0 0.0
      %880 = vmatprep.subr.mxu0 0.0
      %881 = vmatpush1.msra.mxu0 0.0
      %882 = vmatprep.subr.mxu0 0.0
      %883 = vmatpush1.msra.mxu0 0.0
      %884 = vmatprep.subr.mxu0 0.0
      %885 = vmatpush1.msra.mxu0 0.0
      %886 = vmatprep.subr.mxu0 0.0
      %887 = vmatpush1.msra.mxu0 0.0
      %888 = vmatprep.subr.mxu0 0.0
      %889 = vmatpush1.msra.mxu0 0.0
      %890 = vmatprep.subr.mxu0 0.0
      %891 = vmatpush1.msra.mxu0 0.0
      %892 = vmatprep.subr.mxu0 0.0
      %893 = vmatpush1.msra.mxu0 0.0
      %894 = vmatprep.subr.mxu0 0.0
      %895 = vmatpush1.msra.mxu0 0.0
      %896 = vmatprep.subr.mxu0 0.0
      %897 = vmatpush1.msra.mxu0 0.0
      %898 = vmatprep.subr.mxu0 0.0
      %899 = vmatpush1.msra.mxu0 0.0
      %900 = vmatprep.subr.mxu0 0.0
      %901 = vmatpush1.msra.mxu0 0.0
      %902 = vmatprep.subr.mxu0 0.0
      %903 = vmatpush1.msra.mxu0 0.0
      %904 = vmatprep.subr.mxu0 0.0
      %905 = vmatpush1.msra.mxu0 0.0
      %906 = vmatprep.subr.mxu0 0.0
      %907 = vmatpush1.msra.mxu0 0.0
      %908 = vmatprep.subr.mxu0 0.0
      %909 = vmatpush1.msra.mxu0 0.0
      %910 = vmatprep.subr.mxu0 0.0
      %911 = vmatpush1.msra.mxu0 0.0
      %912 = vmatprep.subr.mxu0 0.0
      %913 = vmatpush1.msra.mxu0 0.0
      %914 = vmatprep.subr.mxu0 0.0
      %915 = vmatpush1.msra.mxu0 0.0
      %916 = vmatprep.subr.mxu0 0.0
      %917 = vmatpush1.msra.mxu0 0.0
      %918 = vmatprep.mubr.f32.mxu0 0.0
      %919 = vmatmul.mubr.f32.gmra.mrb[0].mxu0 %v849
      %v920 = vpop.f32.mrb[0].mxu0
      %v921 = vadd.f32 %v764, %v920
      %v922 = vpop.f32.mrb[0].mxu0
      %923 = vmatprep.mubr.f32.mxu0 0.0
      %924 = vmatmul.mubr.f32.gmra.mrb[0].mxu0 %v852
      %v925 = vpop.f32.mrb[0].mxu0
      %v926 = vadd.f32 %v764, %v925
      %v927 = vpop.f32.mrb[0].mxu0
      %928 = vdwg.mxu0
      %vm929 = vcmask 130048
      %v931 = vsel %vm929, %v662, 0
      %v934 = vsel %vm929, %v668, 0
      %v937 = vsel %vm929, %v664, 0
      %v940 = vsel %vm929, %v670, 0
      %942 = vmatprep.subr.mxu0 0.0
      %943 = vmatpush1.xpose.msra.mxu0 %v937
      %944 = vmatprep.subr.mxu0 0.0
      %945 = vmatpush1.xpose.msra.mxu0 %v940
      %946 = vmatprep.subr.mxu0 0.0
      %947 = vmatpush1.xpose.msra.mxu0 0.0
      %948 = vmatprep.subr.mxu0 0.0
      %949 = vmatpush1.xpose.msra.mxu0 0.0
      %950 = vmatprep.subr.mxu0 0.0
      %951 = vmatpush1.xpose.msra.mxu0 0.0
      %952 = vmatprep.subr.mxu0 0.0
      %953 = vmatpush1.xpose.msra.mxu0 0.0
      %954 = vmatprep.subr.mxu0 0.0
      %955 = vmatpush1.xpose.msra.mxu0 0.0
      %956 = vmatprep.subr.mxu0 0.0
      %957 = vmatpush1.xpose.msra.mxu0 0.0
      %958 = vmatprep.subr.mxu0 0.0
      %959 = vmatpush1.xpose.msra.mxu0 0.0
      %960 = vmatprep.subr.mxu0 0.0
      %961 = vmatpush1.xpose.msra.mxu0 0.0
      %962 = vmatprep.subr.mxu0 0.0
      %963 = vmatpush1.xpose.msra.mxu0 0.0
      %964 = vmatprep.subr.mxu0 0.0
      %965 = vmatpush1.xpose.msra.mxu0 0.0
      %966 = vmatprep.subr.mxu0 0.0
      %967 = vmatpush1.xpose.msra.mxu0 0.0
      %968 = vmatprep.subr.mxu0 0.0
      %969 = vmatpush1.xpose.msra.mxu0 0.0
      %970 = vmatprep.subr.mxu0 0.0
      %971 = vmatpush1.xpose.msra.mxu0 0.0
      %972 = vmatprep.subr.mxu0 0.0
      %973 = vmatpush1.xpose.msra.mxu0 0.0
      %974 = vmatprep.subr.mxu0 0.0
      %975 = vmatpush1.xpose.msra.mxu0 0.0
      %976 = vmatprep.subr.mxu0 0.0
      %977 = vmatpush1.xpose.msra.mxu0 0.0
      %978 = vmatprep.subr.mxu0 0.0
      %979 = vmatpush1.xpose.msra.mxu0 0.0
      %980 = vmatprep.subr.mxu0 0.0
      %981 = vmatpush1.xpose.msra.mxu0 0.0
      %982 = vmatprep.subr.mxu0 0.0
      %983 = vmatpush1.xpose.msra.mxu0 0.0
      %984 = vmatprep.subr.mxu0 0.0
      %985 = vmatpush1.xpose.msra.mxu0 0.0
      %986 = vmatprep.subr.mxu0 0.0
      %987 = vmatpush1.xpose.msra.mxu0 0.0
      %988 = vmatprep.subr.mxu0 0.0
      %989 = vmatpush1.xpose.msra.mxu0 0.0
      %990 = vmatprep.subr.mxu0 0.0
      %991 = vmatpush1.xpose.msra.mxu0 0.0
      %992 = vmatprep.subr.mxu0 0.0
      %993 = vmatpush1.xpose.msra.mxu0 0.0
      %994 = vmatprep.subr.mxu0 0.0
      %995 = vmatpush1.xpose.msra.mxu0 0.0
      %996 = vmatprep.subr.mxu0 0.0
      %997 = vmatpush1.xpose.msra.mxu0 0.0
      %998 = vmatprep.subr.mxu0 0.0
      %999 = vmatpush1.xpose.msra.mxu0 0.0
      %1000 = vmatprep.subr.mxu0 0.0
      %1001 = vmatpush1.xpose.msra.mxu0 0.0
      %1002 = vmatprep.subr.mxu0 0.0
      %1003 = vmatpush1.xpose.msra.mxu0 0.0
      %1004 = vmatprep.subr.mxu0 0.0
      %1005 = vmatpush1.xpose.msra.mxu0 0.0
      %1006 = vmatprep.mubr.f32.mxu0 0.0
      %1007 = vmatmul.mubr.f32.gmra.mrb[0].mxu0 %v931
      %v1008 = vpop.f32.mrb[0].mxu0
      %v1009 = vadd.f32 0.0, %v1008
      %v1010 = vpop.f32.mrb[0].mxu0
      %1011 = vmatprep.mubr.f32.mxu0 0.0
      %1012 = vmatmul.mubr.f32.gmra.mrb[0].mxu0 %v934
      %v1013 = vpop.f32.mrb[0].mxu0
      %v1014 = vadd.f32 0.0, %v1013
      %v1015 = vpop.f32.mrb[0].mxu0
      %1016 = vdwg.mxu0
      %v1017 = vmul.f32 %v1009, 0.25
      %v1018 = vmul.f32 %v1014, 0.25
      %v1019 = vsel %vm929, %v1017, -inf
      %1020 = vmax.xlane.f32.xlu0 %v1019
      %v1021 = vpop.xlane.xlu0 %1020
      %v1022 = vsel %vm929, %v1018, -inf
      %1023 = vmax.xlane.f32.xlu0 %v1022
      %v1024 = vpop.xlane.xlu0 %1023
      %v1025 = vsub.f32 %v1017, %v1021
      %v1026 = vsub.f32 %v1018, %v1024
      %v1027 = vmul.f32 %v1025, 1.442695
      %v1028 = vpow.pop %v1027
      %v1029 = vmul.f32 %v1026, 1.442695
      %v1030 = vpow.pop %v1029
      %v1031 = vsel %vm929, %v1028, 0.0
      %1032 = vadd.xlane.f32.xlu0 %v1031
      %v1033 = vpop.xlane.xlu0 %1032
      %v1034 = vsel %vm929, %v1030, 0.0
      %1035 = vadd.xlane.f32.xlu0 %v1034
      %v1036 = vpop.xlane.xlu0 %1035
      %v1037 = vrcp.pop %v1033
      %v1038 = vrcp.pop %v1036
      %v1039 = vmul.f32 %v1028, %v1037
      %v1040 = vmul.f32 %v1030, %v1038
      %v1042 = vsel %vm929, %v1039, 0
      %v1045 = vsel %vm929, %v1040, 0
      %1047 = vmatprep.subr.mxu0 0.0
      %1048 = vmatpush1.msra.mxu0 %v739
      %1049 = vmatprep.subr.mxu0 0.0
      %1050 = vmatpush1.msra.mxu0 %v744
      %1051 = vmatprep.subr.mxu0 0.0
      %1052 = vmatpush1.msra.mxu0 0.0
      %1053 = vmatprep.subr.mxu0 0.0
      %1054 = vmatpush1.msra.mxu0 0.0
      %1055 = vmatprep.subr.mxu0 0.0
      %1056 = vmatpush1.msra.mxu0 0.0
      %1057 = vmatprep.subr.mxu0 0.0
      %1058 = vmatpush1.msra.mxu0 0.0
      %1059 = vmatprep.subr.mxu0 0.0
      %1060 = vmatpush1.msra.mxu0 0.0
      %1061 = vmatprep.subr.mxu0 0.0
      %1062 = vmatpush1.msra.mxu0 0.0
      %1063 = vmatprep.subr.mxu0 0.0
      %1064 = vmatpush1.msra.mxu0 0.0
      %1065 = vmatprep.subr.mxu0 0.0
      %1066 = vmatpush1.msra.mxu0 0.0
      %1067 = vmatprep.subr.mxu0 0.0
      %1068 = vmatpush1.msra.mxu0 0.0
      %1069 = vmatprep.subr.mxu0 0.0
      %1070 = vmatpush1.msra.mxu0 0.0
      %1071 = vmatprep.subr.mxu0 0.0
      %1072 = vmatpush1.msra.mxu0 0.0
      %1073 = vmatprep.subr.mxu0 0.0
      %1074 = vmatpush1.msra.mxu0 0.0
      %1075 = vmatprep.subr.mxu0 0.0
      %1076 = vmatpush1.msra.mxu0 0.0
      %1077 = vmatprep.subr.mxu0 0.0
      %1078 = vmatpush1.msra.mxu0 0.0
      %1079 = vmatprep.subr.mxu0 0.0
      %1080 = vmatpush1.msra.mxu0 0.0
      %1081 = vmatprep.subr.mxu0 0.0
      %1082 = vmatpush1.msra.mxu0 0.0
      %1083 = vmatprep.subr.mxu0 0.0
      %1084 = vmatpush1.msra.mxu0 0.0
      %1085 = vmatprep.subr.mxu0 0.0
      %1086 = vmatpush1.msra.mxu0 0.0
      %1087 = vmatprep.subr.mxu0 0.0
      %1088 = vmatpush1.msra.mxu0 0.0
      %1089 = vmatprep.subr.mxu0 0.0
      %1090 = vmatpush1.msra.mxu0 0.0
      %1091 = vmatprep.subr.mxu0 0.0
      %1092 = vmatpush1.msra.mxu0 0.0
      %1093 = vmatprep.subr.mxu0 0.0
      %1094 = vmatpush1.msra.mxu0 0.0
      %1095 = vmatprep.subr.mxu0 0.0
      %1096 = vmatpush1.msra.mxu0 0.0
      %1097 = vmatprep.subr.mxu0 0.0
      %1098 = vmatpush1.msra.mxu0 0.0
      %1099 = vmatprep.subr.mxu0 0.0
      %1100 = vmatpush1.msra.mxu0 0.0
      %1101 = vmatprep.subr.mxu0 0.0
      %1102 = vmatpush1.msra.mxu0 0.0
      %1103 = vmatprep.subr.mxu0 0.0
      %1104 = vmatpush1.msra.mxu0 0.0
      %1105 = vmatprep.subr.mxu0 0.0
      %1106 = vmatpush1.msra.mxu0 0.0
      %1107 = vmatprep.subr.mxu0 0.0
      %1108 = vmatpush1.msra.mxu0 0.0
      %1109 = vmatprep.subr.mxu0 0.0
      %1110 = vmatpush1.msra.mxu0 0.0
      %1111 = vmatprep.mubr.f32.mxu0 0.0
      %1112 = vmatmul.mubr.f32.gmra.mrb[0].mxu0 %v1042
      %v1113 = vpop.f32.mrb[0].mxu0
      %v1114 = vadd.f32 0.0, %v1113
      %v1115 = vpop.f32.mrb[0].mxu0
      %1116 = vmatprep.mubr.f32.mxu0 0.0
      %1117 = vmatmul.mubr.f32.gmra.mrb[0].mxu0 %v1045
      %v1118 = vpop.f32.mrb[0].mxu0
      %v1119 = vadd.f32 0.0, %v1118
      %v1120 = vpop.f32.mrb[0].mxu0
      %1121 = vdwg.mxu0
      %1122 = vmatprep.subr.mxu0 0.0
      %1123 = vmatpush1.msra.mxu0 %v840
      %1124 = vmatprep.subr.mxu0 0.0
      %1125 = vmatpush1.msra.mxu0 %v845
      %1126 = vmatprep.subr.mxu0 0.0
      %1127 = vmatpush1.msra.mxu0 0.0
      %1128 = vmatprep.subr.mxu0 0.0
      %1129 = vmatpush1.msra.mxu0 0.0
      %1130 = vmatprep.subr.mxu0 0.0
      %1131 = vmatpush1.msra.mxu0 0.0
      %1132 = vmatprep.subr.mxu0 0.0
      %1133 = vmatpush1.msra.mxu0 0.0
      %1134 = vmatprep.subr.mxu0 0.0
      %1135 = vmatpush1.msra.mxu0 0.0
      %1136 = vmatprep.subr.mxu0 0.0
      %1137 = vmatpush1.msra.mxu0 0.0
      %1138 = vmatprep.subr.mxu0 0.0
      %1139 = vmatpush1.msra.mxu0 0.0
      %1140 = vmatprep.subr.mxu0 0.0
      %1141 = vmatpush1.msra.mxu0 0.0
      %1142 = vmatprep.subr.mxu0 0.0
      %1143 = vmatpush1.msra.mxu0 0.0
      %1144 = vmatprep.subr.mxu0 0.0
      %1145 = vmatpush1.msra.mxu0 0.0
      %1146 = vmatprep.subr.mxu0 0.0
      %1147 = vmatpush1.msra.mxu0 0.0
      %1148 = vmatprep.subr.mxu0 0.0
      %1149 = vmatpush1.msra.mxu0 0.0
      %1150 = vmatprep.subr.mxu0 0.0
      %1151 = vmatpush1.msra.mxu0 0.0
      %1152 = vmatprep.subr.mxu0 0.0
      %1153 = vmatpush1.msra.mxu0 0.0
      %1154 = vmatprep.subr.mxu0 0.0
      %1155 = vmatpush1.msra.mxu0 0.0
      %1156 = vmatprep.subr.mxu0 0.0
      %1157 = vmatpush1.msra.mxu0 0.0
      %1158 = vmatprep.subr.mxu0 0.0
      %1159 = vmatpush1.msra.mxu0 0.0
      %1160 = vmatprep.subr.mxu0 0.0
      %1161 = vmatpush1.msra.mxu0 0.0
      %1162 = vmatprep.subr.mxu0 0.0
      %1163 = vmatpush1.msra.mxu0 0.0
      %1164 = vmatprep.subr.mxu0 0.0
      %1165 = vmatpush1.msra.mxu0 0.0
      %1166 = vmatprep.subr.mxu0 0.0
      %1167 = vmatpush1.msra.mxu0 0.0
      %1168 = vmatprep.subr.mxu0 0.0
      %1169 = vmatpush1.msra.mxu0 0.0
      %1170 = vmatprep.subr.mxu0 0.0
      %1171 = vmatpush1.msra.mxu0 0.0
      %1172 = vmatprep.subr.mxu0 0.0
      %1173 = vmatpush1.msra.mxu0 0.0
      %1174 = vmatprep.subr.mxu0 0.0
      %1175 = vmatpush1.msra.mxu0 0.0
      %1176 = vmatprep.subr.mxu0 0.0
      %1177 = vmatpush1.msra.mxu0 0.0
      %1178 = vmatprep.subr.mxu0 0.0
      %1179 = vmatpush1.msra.mxu0 0.0
      %1180 = vmatprep.subr.mxu0 0.0
      %1181 = vmatpush1.msra.mxu0 0.0
      %1182 = vmatprep.subr.mxu0 0.0
      %1183 = vmatpush1.msra.mxu0 0.0
      %1184 = vmatprep.subr.mxu0 0.0
      %1185 = vmatpush1.msra.mxu0 0.0
      %1186 = vmatprep.mubr.f32.mxu0 0.0
      %1187 = vmatmul.mubr.f32.gmra.mrb[0].mxu0 %v1042
      %v1188 = vpop.f32.mrb[0].mxu0
      %v1189 = vadd.f32 0.0, %v1188
      %v1190 = vpop.f32.mrb[0].mxu0
      %1191 = vmatprep.mubr.f32.mxu0 0.0
      %1192 = vmatmul.mubr.f32.gmra.mrb[0].mxu0 %v1045
      %v1193 = vpop.f32.mrb[0].mxu0
      %v1194 = vadd.f32 0.0, %v1193
      %v1195 = vpop.f32.mrb[0].mxu0
      %1196 = vdwg.mxu0
      %1197 = vmatprep.subr.mxu0 0.0
      %1198 = vmatpush1.msra.mxu0 %v921
      %1199 = vmatprep.subr.mxu0 0.0
      %1200 = vmatpush1.msra.mxu0 %v926
      %1201 = vmatprep.subr.mxu0 0.0
      %1202 = vmatpush1.msra.mxu0 0.0
      %1203 = vmatprep.subr.mxu0 0.0
      %1204 = vmatpush1.msra.mxu0 0.0
      %1205 = vmatprep.subr.mxu0 0.0
      %1206 = vmatpush1.msra.mxu0 0.0
      %1207 = vmatprep.subr.mxu0 0.0
      %1208 = vmatpush1.msra.mxu0 0.0
      %1209 = vmatprep.subr.mxu0 0.0
      %1210 = vmatpush1.msra.mxu0 0.0
      %1211 = vmatprep.subr.mxu0 0.0
      %1212 = vmatpush1.msra.mxu0 0.0
      %1213 = vmatprep.subr.mxu0 0.0
      %1214 = vmatpush1.msra.mxu0 0.0
      %1215 = vmatprep.subr.mxu0 0.0
      %1216 = vmatpush1.msra.mxu0 0.0
      %1217 = vmatprep.subr.mxu0 0.0
      %1218 = vmatpush1.msra.mxu0 0.0
      %1219 = vmatprep.subr.mxu0 0.0
      %1220 = vmatpush1.msra.mxu0 0.0
      %1221 = vmatprep.subr.mxu0 0.0
      %1222 = vmatpush1.msra.mxu0 0.0
      %1223 = vmatprep.subr.mxu0 0.0
      %1224 = vmatpush1.msra.mxu0 0.0
      %1225 = vmatprep.subr.mxu0 0.0
      %1226 = vmatpush1.msra.mxu0 0.0
      %1227 = vmatprep.subr.mxu0 0.0
      %1228 = vmatpush1.msra.mxu0 0.0
      %1229 = vmatprep.subr.mxu0 0.0
      %1230 = vmatpush1.msra.mxu0 0.0
      %1231 = vmatprep.subr.mxu0 0.0
      %1232 = vmatpush1.msra.mxu0 0.0
      %1233 = vmatprep.subr.mxu0 0.0
      %1234 = vmatpush1.msra.mxu0 0.0
      %1235 = vmatprep.subr.mxu0 0.0
      %1236 = vmatpush1.msra.mxu0 0.0
      %1237 = vmatprep.subr.mxu0 0.0
      %1238 = vmatpush1.msra.mxu0 0.0
      %1239 = vmatprep.subr.mxu0 0.0
      %1240 = vmatpush1.msra.mxu0 0.0
      %1241 = vmatprep.subr.mxu0 0.0
      %1242 = vmatpush1.msra.mxu0 0.0
      %1243 = vmatprep.subr.mxu0 0.0
      %1244 = vmatpush1.msra.mxu0 0.0
      %1245 = vmatprep.subr.mxu0 0.0
      %1246 = vmatpush1.msra.mxu0 0.0
      %1247 = vmatprep.subr.mxu0 0.0
      %1248 = vmatpush1.msra.mxu0 0.0
      %1249 = vmatprep.subr.mxu0 0.0
      %1250 = vmatpush1.msra.mxu0 0.0
      %1251 = vmatprep.subr.mxu0 0.0
      %1252 = vmatpush1.msra.mxu0 0.0
      %1253 = vmatprep.subr.mxu0 0.0
      %1254 = vmatpush1.msra.mxu0 0.0
      %1255 = vmatprep.subr.mxu0 0.0
      %1256 = vmatpush1.msra.mxu0 0.0
      %1257 = vmatprep.subr.mxu0 0.0
      %1258 = vmatpush1.msra.mxu0 0.0
      %1259 = vmatprep.subr.mxu0 0.0
      %1260 = vmatpush1.msra.mxu0 0.0
      %1261 = vmatprep.mubr.f32.mxu0 0.0
      %1262 = vmatmul.mubr.f32.gmra.mrb[0].mxu0 %v1042
      %v1263 = vpop.f32.mrb[0].mxu0
      %v1264 = vadd.f32 0.0, %v1263
      %v1265 = vpop.f32.mrb[0].mxu0
      %1266 = vmatprep.mubr.f32.mxu0 0.0
      %1267 = vmatmul.mubr.f32.gmra.mrb[0].mxu0 %v1045
      %v1268 = vpop.f32.mrb[0].mxu0
      %v1269 = vadd.f32 0.0, %v1268
      %v1270 = vpop.f32.mrb[0].mxu0
      %1271 = vdwg.mxu0
      %1272 = vrot.lane.b32.xlu0 %v662, 112
      %v1273 = vpop.permute.xlu0 %1272
      %1274 = vrot.lane.b32.xlu0 %v668, 112
      %v1275 = vpop.permute.xlu0 %1274
      %1276 = vrot.lane.b32.xlu0 %v664, 112
      %v1277 = vpop.permute.xlu0 %1276
      %1278 = vrot.lane.b32.xlu0 %v670, 112
      %v1279 = vpop.permute.xlu0 %1278
      %v1280 = vsel %vm929, %v1273, 0
      %v1282 = vsel %vm929, %v1275, 0
      %v1284 = vsel %vm929, %v1277, 0
      %v1286 = vsel %vm929, %v1279, 0
      %1288 = vmatprep.subr.mxu0 0.0
      %1289 = vmatpush1.xpose.msra.mxu0 %v1284
      %1290 = vmatprep.subr.mxu0 0.0
      %1291 = vmatpush1.xpose.msra.mxu0 %v1286
      %1292 = vmatprep.subr.mxu0 0.0
      %1293 = vmatpush1.xpose.msra.mxu0 0.0
      %1294 = vmatprep.subr.mxu0 0.0
      %1295 = vmatpush1.xpose.msra.mxu0 0.0
      %1296 = vmatprep.subr.mxu0 0.0
      %1297 = vmatpush1.xpose.msra.mxu0 0.0
      %1298 = vmatprep.subr.mxu0 0.0
      %1299 = vmatpush1.xpose.msra.mxu0 0.0
      %1300 = vmatprep.subr.mxu0 0.0
      %1301 = vmatpush1.xpose.msra.mxu0 0.0
      %1302 = vmatprep.subr.mxu0 0.0
      %1303 = vmatpush1.xpose.msra.mxu0 0.0
      %1304 = vmatprep.subr.mxu0 0.0
      %1305 = vmatpush1.xpose.msra.mxu0 0.0
      %1306 = vmatprep.subr.mxu0 0.0
      %1307 = vmatpush1.xpose.msra.mxu0 0.0
      %1308 = vmatprep.subr.mxu0 0.0
      %1309 = vmatpush1.xpose.msra.mxu0 0.0
      %1310 = vmatprep.subr.mxu0 0.0
      %1311 = vmatpush1.xpose.msra.mxu0 0.0
      %1312 = vmatprep.subr.mxu0 0.0
      %1313 = vmatpush1.xpose.msra.mxu0 0.0
      %1314 = vmatprep.subr.mxu0 0.0
      %1315 = vmatpush1.xpose.msra.mxu0 0.0
      %1316 = vmatprep.subr.mxu0 0.0
      %1317 = vmatpush1.xpose.msra.mxu0 0.0
      %1318 = vmatprep.subr.mxu0 0.0
      %1319 = vmatpush1.xpose.msra.mxu0 0.0
      %1320 = vmatprep.subr.mxu0 0.0
      %1321 = vmatpush1.xpose.msra.mxu0 0.0
      %1322 = vmatprep.subr.mxu0 0.0
      %1323 = vmatpush1.xpose.msra.mxu0 0.0
      %1324 = vmatprep.subr.mxu0 0.0
      %1325 = vmatpush1.xpose.msra.mxu0 0.0
      %1326 = vmatprep.subr.mxu0 0.0
      %1327 = vmatpush1.xpose.msra.mxu0 0.0
      %1328 = vmatprep.subr.mxu0 0.0
      %1329 = vmatpush1.xpose.msra.mxu0 0.0
      %1330 = vmatprep.subr.mxu0 0.0
      %1331 = vmatpush1.xpose.msra.mxu0 0.0
      %1332 = vmatprep.subr.mxu0 0.0
      %1333 = vmatpush1.xpose.msra.mxu0 0.0
      %1334 = vmatprep.subr.mxu0 0.0
      %1335 = vmatpush1.xpose.msra.mxu0 0.0
      %1336 = vmatprep.subr.mxu0 0.0
      %1337 = vmatpush1.xpose.msra.mxu0 0.0
      %1338 = vmatprep.subr.mxu0 0.0
      %1339 = vmatpush1.xpose.msra.mxu0 0.0
      %1340 = vmatprep.subr.mxu0 0.0
      %1341 = vmatpush1.xpose.msra.mxu0 0.0
      %1342 = vmatprep.subr.mxu0 0.0
      %1343 = vmatpush1.xpose.msra.mxu0 0.0
      %1344 = vmatprep.subr.mxu0 0.0
      %1345 = vmatpush1.xpose.msra.mxu0 0.0
      %1346 = vmatprep.subr.mxu0 0.0
      %1347 = vmatpush1.xpose.msra.mxu0 0.0
      %1348 = vmatprep.subr.mxu0 0.0
      %1349 = vmatpush1.xpose.msra.mxu0 0.0
      %1350 = vmatprep.subr.mxu0 0.0
      %1351 = vmatpush1.xpose.msra.mxu0 0.0
      %1352 = vmatprep.mubr.f32.mxu0 0.0
      %1353 = vmatmul.mubr.f32.gmra.mrb[0].mxu0 %v1280
      %v1354 = vpop.f32.mrb[0].mxu0
      %v1355 = vadd.f32 0.0, %v1354
      %v1356 = vpop.f32.mrb[0].mxu0
      %1357 = vmatprep.mubr.f32.mxu0 0.0
      %1358 = vmatmul.mubr.f32.gmra.mrb[0].mxu0 %v1282
      %v1359 = vpop.f32.mrb[0].mxu0
      %v1360 = vadd.f32 0.0, %v1359
      %v1361 = vpop.f32.mrb[0].mxu0
      %1362 = vdwg.mxu0
      %v1363 = vmul.f32 %v1355, 0.25
      %v1364 = vmul.f32 %v1360, 0.25
      %v1365 = vsel %vm929, %v1363, -inf
      %1366 = vmax.xlane.f32.xlu0 %v1365
      %v1367 = vpop.xlane.xlu0 %1366
      %v1368 = vsel %vm929, %v1364, -inf
      %1369 = vmax.xlane.f32.xlu0 %v1368
      %v1370 = vpop.xlane.xlu0 %1369
      %v1371 = vsub.f32 %v1363, %v1367
      %v1372 = vsub.f32 %v1364, %v1370
      %v1373 = vmul.f32 %v1371, 1.442695
      %v1374 = vpow.pop %v1373
      %v1375 = vmul.f32 %v1372, 1.442695
      %v1376 = vpow.pop %v1375
      %v1377 = vsel %vm929, %v1374, 0.0
      %1378 = vadd.xlane.f32.xlu0 %v1377
      %v1379 = vpop.xlane.xlu0 %1378
      %v1380 = vsel %vm929, %v1376, 0.0
      %1381 = vadd.xlane.f32.xlu0 %v1380
      %v1382 = vpop.xlane.xlu0 %1381
      %v1383 = vrcp.pop %v1379
      %v1384 = vrcp.pop %v1382
      %v1385 = vmul.f32 %v1374, %v1383
      %v1386 = vmul.f32 %v1376, %v1384
      %1389 = vrot.lane.b32.xlu0 %v739, 112
      %v1390 = vpop.permute.xlu0 %1389
      %1391 = vrot.lane.b32.xlu0 %v744, 112
      %v1392 = vpop.permute.xlu0 %1391
      %v1396 = vsel %vm929, %v1385, 0
      %v1399 = vsel %vm929, %v1386, 0
      %1401 = vmatprep.subr.mxu0 0.0
      %1402 = vmatpush1.msra.mxu0 %v1390
      %1403 = vmatprep.subr.mxu0 0.0
      %1404 = vmatpush1.msra.mxu0 %v1392
      %1405 = vmatprep.subr.mxu0 0.0
      %1406 = vmatpush1.msra.mxu0 0.0
      %1407 = vmatprep.subr.mxu0 0.0
      %1408 = vmatpush1.msra.mxu0 0.0
      %1409 = vmatprep.subr.mxu0 0.0
      %1410 = vmatpush1.msra.mxu0 0.0
      %1411 = vmatprep.subr.mxu0 0.0
      %1412 = vmatpush1.msra.mxu0 0.0
      %1413 = vmatprep.subr.mxu0 0.0
      %1414 = vmatpush1.msra.mxu0 0.0
      %1415 = vmatprep.subr.mxu0 0.0
      %1416 = vmatpush1.msra.mxu0 0.0
      %1417 = vmatprep.subr.mxu0 0.0
      %1418 = vmatpush1.msra.mxu0 0.0
      %1419 = vmatprep.subr.mxu0 0.0
      %1420 = vmatpush1.msra.mxu0 0.0
      %1421 = vmatprep.subr.mxu0 0.0
      %1422 = vmatpush1.msra.mxu0 0.0
      %1423 = vmatprep.subr.mxu0 0.0
      %1424 = vmatpush1.msra.mxu0 0.0
      %1425 = vmatprep.subr.mxu0 0.0
      %1426 = vmatpush1.msra.mxu0 0.0
      %1427 = vmatprep.subr.mxu0 0.0
      %1428 = vmatpush1.msra.mxu0 0.0
      %1429 = vmatprep.subr.mxu0 0.0
      %1430 = vmatpush1.msra.mxu0 0.0
      %1431 = vmatprep.subr.mxu0 0.0
      %1432 = vmatpush1.msra.mxu0 0.0
      %1433 = vmatprep.subr.mxu0 0.0
      %1434 = vmatpush1.msra.mxu0 0.0
      %1435 = vmatprep.subr.mxu0 0.0
      %1436 = vmatpush1.msra.mxu0 0.0
      %1437 = vmatprep.subr.mxu0 0.0
      %1438 = vmatpush1.msra.mxu0 0.0
      %1439 = vmatprep.subr.mxu0 0.0
      %1440 = vmatpush1.msra.mxu0 0.0
      %1441 = vmatprep.subr.mxu0 0.0
      %1442 = vmatpush1.msra.mxu0 0.0
      %1443 = vmatprep.subr.mxu0 0.0
      %1444 = vmatpush1.msra.mxu0 0.0
      %1445 = vmatprep.subr.mxu0 0.0
      %1446 = vmatpush1.msra.mxu0 0.0
      %1447 = vmatprep.subr.mxu0 0.0
      %1448 = vmatpush1.msra.mxu0 0.0
      %1449 = vmatprep.subr.mxu0 0.0
      %1450 = vmatpush1.msra.mxu0 0.0
      %1451 = vmatprep.subr.mxu0 0.0
      %1452 = vmatpush1.msra.mxu0 0.0
      %1453 = vmatprep.subr.mxu0 0.0
      %1454 = vmatpush1.msra.mxu0 0.0
      %1455 = vmatprep.subr.mxu0 0.0
      %1456 = vmatpush1.msra.mxu0 0.0
      %1457 = vmatprep.subr.mxu0 0.0
      %1458 = vmatpush1.msra.mxu0 0.0
      %1459 = vmatprep.subr.mxu0 0.0
      %1460 = vmatpush1.msra.mxu0 0.0
      %1461 = vmatprep.subr.mxu0 0.0
      %1462 = vmatpush1.msra.mxu0 0.0
      %1463 = vmatprep.subr.mxu0 0.0
      %1464 = vmatpush1.msra.mxu0 0.0
      %1465 = vmatprep.mubr.f32.mxu0 0.0
      %1466 = vmatmul.mubr.f32.gmra.mrb[0].mxu0 %v1396
      %v1467 = vpop.f32.mrb[0].mxu0
      %v1468 = vadd.f32 0.0, %v1467
      %v1469 = vpop.f32.mrb[0].mxu0
      %1470 = vmatprep.mubr.f32.mxu0 0.0
      %1471 = vmatmul.mubr.f32.gmra.mrb[0].mxu0 %v1399
      %v1472 = vpop.f32.mrb[0].mxu0
      %v1473 = vadd.f32 0.0, %v1472
      %v1474 = vpop.f32.mrb[0].mxu0
      %1475 = vdwg.mxu0
      %1478 = vrot.lane.b32.xlu0 %v840, 120
      %v1479 = vpop.permute.xlu0 %1478
      %1480 = vrot.lane.b32.xlu0 %v845, 120
      %v1481 = vpop.permute.xlu0 %1480
      %1484 = vmatprep.subr.mxu0 0.0
      %1485 = vmatpush1.msra.mxu0 %v1479
      %1486 = vmatprep.subr.mxu0 0.0
      %1487 = vmatpush1.msra.mxu0 %v1481
      %1488 = vmatprep.subr.mxu0 0.0
      %1489 = vmatpush1.msra.mxu0 0.0
      %1490 = vmatprep.subr.mxu0 0.0
      %1491 = vmatpush1.msra.mxu0 0.0
      %1492 = vmatprep.subr.mxu0 0.0
      %1493 = vmatpush1.msra.mxu0 0.0
      %1494 = vmatprep.subr.mxu0 0.0
      %1495 = vmatpush1.msra.mxu0 0.0
      %1496 = vmatprep.subr.mxu0 0.0
      %1497 = vmatpush1.msra.mxu0 0.0
      %1498 = vmatprep.subr.mxu0 0.0
      %1499 = vmatpush1.msra.mxu0 0.0
      %1500 = vmatprep.subr.mxu0 0.0
      %1501 = vmatpush1.msra.mxu0 0.0
      %1502 = vmatprep.subr.mxu0 0.0
      %1503 = vmatpush1.msra.mxu0 0.0
      %1504 = vmatprep.subr.mxu0 0.0
      %1505 = vmatpush1.msra.mxu0 0.0
      %1506 = vmatprep.subr.mxu0 0.0
      %1507 = vmatpush1.msra.mxu0 0.0
      %1508 = vmatprep.subr.mxu0 0.0
      %1509 = vmatpush1.msra.mxu0 0.0
      %1510 = vmatprep.subr.mxu0 0.0
      %1511 = vmatpush1.msra.mxu0 0.0
      %1512 = vmatprep.subr.mxu0 0.0
      %1513 = vmatpush1.msra.mxu0 0.0
      %1514 = vmatprep.subr.mxu0 0.0
      %1515 = vmatpush1.msra.mxu0 0.0
      %1516 = vmatprep.subr.mxu0 0.0
      %1517 = vmatpush1.msra.mxu0 0.0
      %1518 = vmatprep.subr.mxu0 0.0
      %1519 = vmatpush1.msra.mxu0 0.0
      %1520 = vmatprep.subr.mxu0 0.0
      %1521 = vmatpush1.msra.mxu0 0.0
      %1522 = vmatprep.subr.mxu0 0.0
      %1523 = vmatpush1.msra.mxu0 0.0
      %1524 = vmatprep.subr.mxu0 0.0
      %1525 = vmatpush1.msra.mxu0 0.0
      %1526 = vmatprep.subr.mxu0 0.0
      %1527 = vmatpush1.msra.mxu0 0.0
      %1528 = vmatprep.subr.mxu0 0.0
      %1529 = vmatpush1.msra.mxu0 0.0
      %1530 = vmatprep.subr.mxu0 0.0
      %1531 = vmatpush1.msra.mxu0 0.0
      %1532 = vmatprep.subr.mxu0 0.0
      %1533 = vmatpush1.msra.mxu0 0.0
      %1534 = vmatprep.subr.mxu0 0.0
      %1535 = vmatpush1.msra.mxu0 0.0
      %1536 = vmatprep.subr.mxu0 0.0
      %1537 = vmatpush1.msra.mxu0 0.0
      %1538 = vmatprep.subr.mxu0 0.0
      %1539 = vmatpush1.msra.mxu0 0.0
      %1540 = vmatprep.subr.mxu0 0.0
      %1541 = vmatpush1.msra.mxu0 0.0
      %1542 = vmatprep.subr.mxu0 0.0
      %1543 = vmatpush1.msra.mxu0 0.0
      %1544 = vmatprep.subr.mxu0 0.0
      %1545 = vmatpush1.msra.mxu0 0.0
      %1546 = vmatprep.subr.mxu0 0.0
      %1547 = vmatpush1.msra.mxu0 0.0
      %1548 = vmatprep.mubr.f32.mxu0 0.0
      %1549 = vmatmul.mubr.f32.gmra.mrb[0].mxu0 %v1396
      %v1550 = vpop.f32.mrb[0].mxu0
      %v1551 = vadd.f32 0.0, %v1550
      %v1552 = vpop.f32.mrb[0].mxu0
      %1553 = vmatprep.mubr.f32.mxu0 0.0
      %1554 = vmatmul.mubr.f32.gmra.mrb[0].mxu0 %v1399
      %v1555 = vpop.f32.mrb[0].mxu0
      %v1556 = vadd.f32 0.0, %v1555
      %v1557 = vpop.f32.mrb[0].mxu0
      %1558 = vdwg.mxu0
      %1561 = vrot.lane.b32.xlu0 %v921, 120
      %v1562 = vpop.permute.xlu0 %1561
      %1563 = vrot.lane.b32.xlu0 %v926, 120
      %v1564 = vpop.permute.xlu0 %1563
      %1567 = vmatprep.subr.mxu0 0.0
      %1568 = vmatpush1.msra.mxu0 %v1562
      %1569 = vmatprep.subr.mxu0 0.0
      %1570 = vmatpush1.msra.mxu0 %v1564
      %1571 = vmatprep.subr.mxu0 0.0
      %1572 = vmatpush1.msra.mxu0 0.0
      %1573 = vmatprep.subr.mxu0 0.0
      %1574 = vmatpush1.msra.mxu0 0.0
      %1575 = vmatprep.subr.mxu0 0.0
      %1576 = vmatpush1.msra.mxu0 0.0
      %1577 = vmatprep.subr.mxu0 0.0
      %1578 = vmatpush1.msra.mxu0 0.0
      %1579 = vmatprep.subr.mxu0 0.0
      %1580 = vmatpush1.msra.mxu0 0.0
      %1581 = vmatprep.subr.mxu0 0.0
      %1582 = vmatpush1.msra.mxu0 0.0
      %1583 = vmatprep.subr.mxu0 0.0
      %1584 = vmatpush1.msra.mxu0 0.0
      %1585 = vmatprep.subr.mxu0 0.0
      %1586 = vmatpush1.msra.mxu0 0.0
      %1587 = vmatprep.subr.mxu0 0.0
      %1588 = vmatpush1.msra.mxu0 0.0
      %1589 = vmatprep.subr.mxu0 0.0
      %1590 = vmatpush1.msra.mxu0 0.0
      %1591 = vmatprep.subr.mxu0 0.0
      %1592 = vmatpush1.msra.mxu0 0.0
      %1593 = vmatprep.subr.mxu0 0.0
      %1594 = vmatpush1.msra.mxu0 0.0
      %1595 = vmatprep.subr.mxu0 0.0
      %1596 = vmatpush1.msra.mxu0 0.0
      %1597 = vmatprep.subr.mxu0 0.0
      %1598 = vmatpush1.msra.mxu0 0.0
      %1599 = vmatprep.subr.mxu0 0.0
      %1600 = vmatpush1.msra.mxu0 0.0
      %1601 = vmatprep.subr.mxu0 0.0
      %1602 = vmatpush1.msra.mxu0 0.0
      %1603 = vmatprep.subr.mxu0 0.0
      %1604 = vmatpush1.msra.mxu0 0.0
      %1605 = vmatprep.subr.mxu0 0.0
      %1606 = vmatpush1.msra.mxu0 0.0
      %1607 = vmatprep.subr.mxu0 0.0
      %1608 = vmatpush1.msra.mxu0 0.0
      %1609 = vmatprep.subr.mxu0 0.0
      %1610 = vmatpush1.msra.mxu0 0.0
      %1611 = vmatprep.subr.mxu0 0.0
      %1612 = vmatpush1.msra.mxu0 0.0
      %1613 = vmatprep.subr.mxu0 0.0
      %1614 = vmatpush1.msra.mxu0 0.0
      %1615 = vmatprep.subr.mxu0 0.0
      %1616 = vmatpush1.msra.mxu0 0.0
      %1617 = vmatprep.subr.mxu0 0.0
      %1618 = vmatpush1.msra.mxu0 0.0
      %1619 = vmatprep.subr.mxu0 0.0
      %1620 = vmatpush1.msra.mxu0 0.0
      %1621 = vmatprep.subr.mxu0 0.0
      %1622 = vmatpush1.msra.mxu0 0.0
      %1623 = vmatprep.subr.mxu0 0.0
      %1624 = vmatpush1.msra.mxu0 0.0
      %1625 = vmatprep.subr.mxu0 0.0
      %1626 = vmatpush1.msra.mxu0 0.0
      %1627 = vmatprep.subr.mxu0 0.0
      %1628 = vmatpush1.msra.mxu0 0.0
      %1629 = vmatprep.subr.mxu0 0.0
      %1630 = vmatpush1.msra.mxu0 0.0
      %1631 = vmatprep.mubr.f32.mxu0 0.0
      %1632 = vmatmul.mubr.f32.gmra.mrb[0].mxu0 %v1396
      %v1633 = vpop.f32.mrb[0].mxu0
      %v1634 = vadd.f32 0.0, %v1633
      %v1635 = vpop.f32.mrb[0].mxu0
      %1636 = vmatprep.mubr.f32.mxu0 0.0
      %1637 = vmatmul.mubr.f32.gmra.mrb[0].mxu0 %v1399
      %v1638 = vpop.f32.mrb[0].mxu0
      %v1639 = vadd.f32 0.0, %v1638
      %v1640 = vpop.f32.mrb[0].mxu0
      %1641 = vdwg.mxu0
      %1642 = vrot.lane.b32.xlu0 %v662, 96
      %v1643 = vpop.permute.xlu0 %1642
      %1644 = vrot.lane.b32.xlu0 %v668, 96
      %v1645 = vpop.permute.xlu0 %1644
      %1646 = vrot.lane.b32.xlu0 %v664, 96
      %v1647 = vpop.permute.xlu0 %1646
      %1648 = vrot.lane.b32.xlu0 %v670, 96
      %v1649 = vpop.permute.xlu0 %1648
      %v1650 = vsel %vm929, %v1643, 0
      %v1652 = vsel %vm929, %v1645, 0
      %v1654 = vsel %vm929, %v1647, 0
      %v1656 = vsel %vm929, %v1649, 0
      %1658 = vmatprep.subr.mxu0 0.0
      %1659 = vmatpush1.xpose.msra.mxu0 %v1654
      %1660 = vmatprep.subr.mxu0 0.0
      %1661 = vmatpush1.xpose.msra.mxu0 %v1656
      %1662 = vmatprep.subr.mxu0 0.0
      %1663 = vmatpush1.xpose.msra.mxu0 0.0
      %1664 = vmatprep.subr.mxu0 0.0
      %1665 = vmatpush1.xpose.msra.mxu0 0.0
      %1666 = vmatprep.subr.mxu0 0.0
      %1667 = vmatpush1.xpose.msra.mxu0 0.0
      %1668 = vmatprep.subr.mxu0 0.0
      %1669 = vmatpush1.xpose.msra.mxu0 0.0
      %1670 = vmatprep.subr.mxu0 0.0
      %1671 = vmatpush1.xpose.msra.mxu0 0.0
      %1672 = vmatprep.subr.mxu0 0.0
      %1673 = vmatpush1.xpose.msra.mxu0 0.0
      %1674 = vmatprep.subr.mxu0 0.0
      %1675 = vmatpush1.xpose.msra.mxu0 0.0
      %1676 = vmatprep.subr.mxu0 0.0
      %1677 = vmatpush1.xpose.msra.mxu0 0.0
      %1678 = vmatprep.subr.mxu0 0.0
      %1679 = vmatpush1.xpose.msra.mxu0 0.0
      %1680 = vmatprep.subr.mxu0 0.0
      %1681 = vmatpush1.xpose.msra.mxu0 0.0
      %1682 = vmatprep.subr.mxu0 0.0
      %1683 = vmatpush1.xpose.msra.mxu0 0.0
      %1684 = vmatprep.subr.mxu0 0.0
      %1685 = vmatpush1.xpose.msra.mxu0 0.0
      %1686 = vmatprep.subr.mxu0 0.0
      %1687 = vmatpush1.xpose.msra.mxu0 0.0
      %1688 = vmatprep.subr.mxu0 0.0
      %1689 = vmatpush1.xpose.msra.mxu0 0.0
      %1690 = vmatprep.subr.mxu0 0.0
      %1691 = vmatpush1.xpose.msra.mxu0 0.0
      %1692 = vmatprep.subr.mxu0 0.0
      %1693 = vmatpush1.xpose.msra.mxu0 0.0
      %1694 = vmatprep.subr.mxu0 0.0
      %1695 = vmatpush1.xpose.msra.mxu0 0.0
      %1696 = vmatprep.subr.mxu0 0.0
      %1697 = vmatpush1.xpose.msra.mxu0 0.0
      %1698 = vmatprep.subr.mxu0 0.0
      %1699 = vmatpush1.xpose.msra.mxu0 0.0
      %1700 = vmatprep.subr.mxu0 0.0
      %1701 = vmatpush1.xpose.msra.mxu0 0.0
      %1702 = vmatprep.subr.mxu0 0.0
      %1703 = vmatpush1.xpose.msra.mxu0 0.0
      %1704 = vmatprep.subr.mxu0 0.0
      %1705 = vmatpush1.xpose.msra.mxu0 0.0
      %1706 = vmatprep.subr.mxu0 0.0
      %1707 = vmatpush1.xpose.msra.mxu0 0.0
      %1708 = vmatprep.subr.mxu0 0.0
      %1709 = vmatpush1.xpose.msra.mxu0 0.0
      %1710 = vmatprep.subr.mxu0 0.0
      %1711 = vmatpush1.xpose.msra.mxu0 0.0
      %1712 = vmatprep.subr.mxu0 0.0
      %1713 = vmatpush1.xpose.msra.mxu0 0.0
      %1714 = vmatprep.subr.mxu0 0.0
      %1715 = vmatpush1.xpose.msra.mxu0 0.0
      %1716 = vmatprep.subr.mxu0 0.0
      %1717 = vmatpush1.xpose.msra.mxu0 0.0
      %1718 = vmatprep.subr.mxu0 0.0
      %1719 = vmatpush1.xpose.msra.mxu0 0.0
      %1720 = vmatprep.subr.mxu0 0.0
      %1721 = vmatpush1.xpose.msra.mxu0 0.0
      %1722 = vmatprep.mubr.f32.mxu0 0.0
      %1723 = vmatmul.mubr.f32.gmra.mrb[0].mxu0 %v1650
      %v1724 = vpop.f32.mrb[0].mxu0
      %v1725 = vadd.f32 0.0, %v1724
      %v1726 = vpop.f32.mrb[0].mxu0
      %1727 = vmatprep.mubr.f32.mxu0 0.0
      %1728 = vmatmul.mubr.f32.gmra.mrb[0].mxu0 %v1652
      %v1729 = vpop.f32.mrb[0].mxu0
      %v1730 = vadd.f32 0.0, %v1729
      %v1731 = vpop.f32.mrb[0].mxu0
      %1732 = vdwg.mxu0
      %v1733 = vmul.f32 %v1725, 0.25
      %v1734 = vmul.f32 %v1730, 0.25
      %v1735 = vsel %vm929, %v1733, -inf
      %1736 = vmax.xlane.f32.xlu0 %v1735
      %v1737 = vpop.xlane.xlu0 %1736
      %v1738 = vsel %vm929, %v1734, -inf
      %1739 = vmax.xlane.f32.xlu0 %v1738
      %v1740 = vpop.xlane.xlu0 %1739
      %v1741 = vsub.f32 %v1733, %v1737
      %v1742 = vsub.f32 %v1734, %v1740
      %v1743 = vmul.f32 %v1741, 1.442695
      %v1744 = vpow.pop %v1743
      %v1745 = vmul.f32 %v1742, 1.442695
      %v1746 = vpow.pop %v1745
      %v1747 = vsel %vm929, %v1744, 0.0
      %1748 = vadd.xlane.f32.xlu0 %v1747
      %v1749 = vpop.xlane.xlu0 %1748
      %v1750 = vsel %vm929, %v1746, 0.0
      %1751 = vadd.xlane.f32.xlu0 %v1750
      %v1752 = vpop.xlane.xlu0 %1751
      %v1753 = vrcp.pop %v1749
      %v1754 = vrcp.pop %v1752
      %v1755 = vmul.f32 %v1744, %v1753
      %v1756 = vmul.f32 %v1746, %v1754
      %1757 = vrot.lane.b32.xlu0 %v739, 96
      %v1758 = vpop.permute.xlu0 %1757
      %1759 = vrot.lane.b32.xlu0 %v744, 96
      %v1760 = vpop.permute.xlu0 %1759
      %v1764 = vsel %vm929, %v1755, 0
      %v1767 = vsel %vm929, %v1756, 0
      %1769 = vmatprep.subr.mxu0 0.0
      %1770 = vmatpush1.msra.mxu0 %v1758
      %1771 = vmatprep.subr.mxu0 0.0
      %1772 = vmatpush1.msra.mxu0 %v1760
      %1773 = vmatprep.subr.mxu0 0.0
      %1774 = vmatpush1.msra.mxu0 0.0
      %1775 = vmatprep.subr.mxu0 0.0
      %1776 = vmatpush1.msra.mxu0 0.0
      %1777 = vmatprep.subr.mxu0 0.0
      %1778 = vmatpush1.msra.mxu0 0.0
      %1779 = vmatprep.subr.mxu0 0.0
      %1780 = vmatpush1.msra.mxu0 0.0
      %1781 = vmatprep.subr.mxu0 0.0
      %1782 = vmatpush1.msra.mxu0 0.0
      %1783 = vmatprep.subr.mxu0 0.0
      %1784 = vmatpush1.msra.mxu0 0.0
      %1785 = vmatprep.subr.mxu0 0.0
      %1786 = vmatpush1.msra.mxu0 0.0
      %1787 = vmatprep.subr.mxu0 0.0
      %1788 = vmatpush1.msra.mxu0 0.0
      %1789 = vmatprep.subr.mxu0 0.0
      %1790 = vmatpush1.msra.mxu0 0.0
      %1791 = vmatprep.subr.mxu0 0.0
      %1792 = vmatpush1.msra.mxu0 0.0
      %1793 = vmatprep.subr.mxu0 0.0
      %1794 = vmatpush1.msra.mxu0 0.0
      %1795 = vmatprep.subr.mxu0 0.0
      %1796 = vmatpush1.msra.mxu0 0.0
      %1797 = vmatprep.subr.mxu0 0.0
      %1798 = vmatpush1.msra.mxu0 0.0
      %1799 = vmatprep.subr.mxu0 0.0
      %1800 = vmatpush1.msra.mxu0 0.0
      %1801 = vmatprep.subr.mxu0 0.0
      %1802 = vmatpush1.msra.mxu0 0.0
      %1803 = vmatprep.subr.mxu0 0.0
      %1804 = vmatpush1.msra.mxu0 0.0
      %1805 = vmatprep.subr.mxu0 0.0
      %1806 = vmatpush1.msra.mxu0 0.0
      %1807 = vmatprep.subr.mxu0 0.0
      %1808 = vmatpush1.msra.mxu0 0.0
      %1809 = vmatprep.subr.mxu0 0.0
      %1810 = vmatpush1.msra.mxu0 0.0
      %1811 = vmatprep.subr.mxu0 0.0
      %1812 = vmatpush1.msra.mxu0 0.0
      %1813 = vmatprep.subr.mxu0 0.0
      %1814 = vmatpush1.msra.mxu0 0.0
      %1815 = vmatprep.subr.mxu0 0.0
      %1816 = vmatpush1.msra.mxu0 0.0
      %1817 = vmatprep.subr.mxu0 0.0
      %1818 = vmatpush1.msra.mxu0 0.0
      %1819 = vmatprep.subr.mxu0 0.0
      %1820 = vmatpush1.msra.mxu0 0.0
      %1821 = vmatprep.subr.mxu0 0.0
      %1822 = vmatpush1.msra.mxu0 0.0
      %1823 = vmatprep.subr.mxu0 0.0
      %1824 = vmatpush1.msra.mxu0 0.0
      %1825 = vmatprep.subr.mxu0 0.0
      %1826 = vmatpush1.msra.mxu0 0.0
      %1827 = vmatprep.subr.mxu0 0.0
      %1828 = vmatpush1.msra.mxu0 0.0
      %1829 = vmatprep.subr.mxu0 0.0
      %1830 = vmatpush1.msra.mxu0 0.0
      %1831 = vmatprep.subr.mxu0 0.0
      %1832 = vmatpush1.msra.mxu0 0.0
      %1833 = vmatprep.mubr.f32.mxu0 0.0
      %1834 = vmatmul.mubr.f32.gmra.mrb[0].mxu0 %v1764
      %v1835 = vpop.f32.mrb[0].mxu0
      %v1836 = vadd.f32 0.0, %v1835
      %v1837 = vpop.f32.mrb[0].mxu0
      %1838 = vmatprep.mubr.f32.mxu0 0.0
      %1839 = vmatmul.mubr.f32.gmra.mrb[0].mxu0 %v1767
      %v1840 = vpop.f32.mrb[0].mxu0
      %v1841 = vadd.f32 0.0, %v1840
      %v1842 = vpop.f32.mrb[0].mxu0
      %1843 = vdwg.mxu0
      %1844 = vrot.lane.b32.xlu0 %v840, 112
      %v1845 = vpop.permute.xlu0 %1844
      %1846 = vrot.lane.b32.xlu0 %v845, 112
      %v1847 = vpop.permute.xlu0 %1846
      %1850 = vmatprep.subr.mxu0 0.0
      %1851 = vmatpush1.msra.mxu0 %v1845
      %1852 = vmatprep.subr.mxu0 0.0
      %1853 = vmatpush1.msra.mxu0 %v1847
      %1854 = vmatprep.subr.mxu0 0.0
      %1855 = vmatpush1.msra.mxu0 0.0
      %1856 = vmatprep.subr.mxu0 0.0
      %1857 = vmatpush1.msra.mxu0 0.0
      %1858 = vmatprep.subr.mxu0 0.0
      %1859 = vmatpush1.msra.mxu0 0.0
      %1860 = vmatprep.subr.mxu0 0.0
      %1861 = vmatpush1.msra.mxu0 0.0
      %1862 = vmatprep.subr.mxu0 0.0
      %1863 = vmatpush1.msra.mxu0 0.0
      %1864 = vmatprep.subr.mxu0 0.0
      %1865 = vmatpush1.msra.mxu0 0.0
      %1866 = vmatprep.subr.mxu0 0.0
      %1867 = vmatpush1.msra.mxu0 0.0
      %1868 = vmatprep.subr.mxu0 0.0
      %1869 = vmatpush1.msra.mxu0 0.0
      %1870 = vmatprep.subr.mxu0 0.0
      %1871 = vmatpush1.msra.mxu0 0.0
      %1872 = vmatprep.subr.mxu0 0.0
      %1873 = vmatpush1.msra.mxu0 0.0
      %1874 = vmatprep.subr.mxu0 0.0
      %1875 = vmatpush1.msra.mxu0 0.0
      %1876 = vmatprep.subr.mxu0 0.0
      %1877 = vmatpush1.msra.mxu0 0.0
      %1878 = vmatprep.subr.mxu0 0.0
      %1879 = vmatpush1.msra.mxu0 0.0
      %1880 = vmatprep.subr.mxu0 0.0
      %1881 = vmatpush1.msra.mxu0 0.0
      %1882 = vmatprep.subr.mxu0 0.0
      %1883 = vmatpush1.msra.mxu0 0.0
      %1884 = vmatprep.subr.mxu0 0.0
      %1885 = vmatpush1.msra.mxu0 0.0
      %1886 = vmatprep.subr.mxu0 0.0
      %1887 = vmatpush1.msra.mxu0 0.0
      %1888 = vmatprep.subr.mxu0 0.0
      %1889 = vmatpush1.msra.mxu0 0.0
      %1890 = vmatprep.subr.mxu0 0.0
      %1891 = vmatpush1.msra.mxu0 0.0
      %1892 = vmatprep.subr.mxu0 0.0
      %1893 = vmatpush1.msra.mxu0 0.0
      %1894 = vmatprep.subr.mxu0 0.0
      %1895 = vmatpush1.msra.mxu0 0.0
      %1896 = vmatprep.subr.mxu0 0.0
      %1897 = vmatpush1.msra.mxu0 0.0
      %1898 = vmatprep.subr.mxu0 0.0
      %1899 = vmatpush1.msra.mxu0 0.0
      %1900 = vmatprep.subr.mxu0 0.0
      %1901 = vmatpush1.msra.mxu0 0.0
      %1902 = vmatprep.subr.mxu0 0.0
      %1903 = vmatpush1.msra.mxu0 0.0
      %1904 = vmatprep.subr.mxu0 0.0
      %1905 = vmatpush1.msra.mxu0 0.0
      %1906 = vmatprep.subr.mxu0 0.0
      %1907 = vmatpush1.msra.mxu0 0.0
      %1908 = vmatprep.subr.mxu0 0.0
      %1909 = vmatpush1.msra.mxu0 0.0
      %1910 = vmatprep.subr.mxu0 0.0
      %1911 = vmatpush1.msra.mxu0 0.0
      %1912 = vmatprep.subr.mxu0 0.0
      %1913 = vmatpush1.msra.mxu0 0.0
      %1914 = vmatprep.mubr.f32.mxu0 0.0
      %1915 = vmatmul.mubr.f32.gmra.mrb[0].mxu0 %v1764
      %v1916 = vpop.f32.mrb[0].mxu0
      %v1917 = vadd.f32 0.0, %v1916
      %v1918 = vpop.f32.mrb[0].mxu0
      %1919 = vmatprep.mubr.f32.mxu0 0.0
      %1920 = vmatmul.mubr.f32.gmra.mrb[0].mxu0 %v1767
      %v1921 = vpop.f32.mrb[0].mxu0
      %v1922 = vadd.f32 0.0, %v1921
      %v1923 = vpop.f32.mrb[0].mxu0
      %1924 = vdwg.mxu0
      %1925 = vrot.lane.b32.xlu0 %v921, 112
      %v1926 = vpop.permute.xlu0 %1925
      %1927 = vrot.lane.b32.xlu0 %v926, 112
      %v1928 = vpop.permute.xlu0 %1927
      %1931 = vmatprep.subr.mxu0 0.0
      %1932 = vmatpush1.msra.mxu0 %v1926
      %1933 = vmatprep.subr.mxu0 0.0
      %1934 = vmatpush1.msra.mxu0 %v1928
      %1935 = vmatprep.subr.mxu0 0.0
      %1936 = vmatpush1.msra.mxu0 0.0
      %1937 = vmatprep.subr.mxu0 0.0
      %1938 = vmatpush1.msra.mxu0 0.0
      %1939 = vmatprep.subr.mxu0 0.0
      %1940 = vmatpush1.msra.mxu0 0.0
      %1941 = vmatprep.subr.mxu0 0.0
      %1942 = vmatpush1.msra.mxu0 0.0
      %1943 = vmatprep.subr.mxu0 0.0
      %1944 = vmatpush1.msra.mxu0 0.0
      %1945 = vmatprep.subr.mxu0 0.0
      %1946 = vmatpush1.msra.mxu0 0.0
      %1947 = vmatprep.subr.mxu0 0.0
      %1948 = vmatpush1.msra.mxu0 0.0
      %1949 = vmatprep.subr.mxu0 0.0
      %1950 = vmatpush1.msra.mxu0 0.0
      %1951 = vmatprep.subr.mxu0 0.0
      %1952 = vmatpush1.msra.mxu0 0.0
      %1953 = vmatprep.subr.mxu0 0.0
      %1954 = vmatpush1.msra.mxu0 0.0
      %1955 = vmatprep.subr.mxu0 0.0
      %1956 = vmatpush1.msra.mxu0 0.0
      %1957 = vmatprep.subr.mxu0 0.0
      %1958 = vmatpush1.msra.mxu0 0.0
      %1959 = vmatprep.subr.mxu0 0.0
      %1960 = vmatpush1.msra.mxu0 0.0
      %1961 = vmatprep.subr.mxu0 0.0
      %1962 = vmatpush1.msra.mxu0 0.0
      %1963 = vmatprep.subr.mxu0 0.0
      %1964 = vmatpush1.msra.mxu0 0.0
      %1965 = vmatprep.subr.mxu0 0.0
      %1966 = vmatpush1.msra.mxu0 0.0
      %1967 = vmatprep.subr.mxu0 0.0
      %1968 = vmatpush1.msra.mxu0 0.0
      %1969 = vmatprep.subr.mxu0 0.0
      %1970 = vmatpush1.msra.mxu0 0.0
      %1971 = vmatprep.subr.mxu0 0.0
      %1972 = vmatpush1.msra.mxu0 0.0
      %1973 = vmatprep.subr.mxu0 0.0
      %1974 = vmatpush1.msra.mxu0 0.0
      %1975 = vmatprep.subr.mxu0 0.0
      %1976 = vmatpush1.msra.mxu0 0.0
      %1977 = vmatprep.subr.mxu0 0.0
      %1978 = vmatpush1.msra.mxu0 0.0
      %1979 = vmatprep.subr.mxu0 0.0
      %1980 = vmatpush1.msra.mxu0 0.0
      %1981 = vmatprep.subr.mxu0 0.0
      %1982 = vmatpush1.msra.mxu0 0.0
      %1983 = vmatprep.subr.mxu0 0.0
      %1984 = vmatpush1.msra.mxu0 0.0
      %1985 = vmatprep.subr.mxu0 0.0
      %1986 = vmatpush1.msra.mxu0 0.0
      %1987 = vmatprep.subr.mxu0 0.0
      %1988 = vmatpush1.msra.mxu0 0.0
      %1989 = vmatprep.subr.mxu0 0.0
      %1990 = vmatpush1.msra.mxu0 0.0
      %1991 = vmatprep.subr.mxu0 0.0
      %1992 = vmatpush1.msra.mxu0 0.0
      %1993 = vmatprep.subr.mxu0 0.0
      %1994 = vmatpush1.msra.mxu0 0.0
      %1995 = vmatprep.mubr.f32.mxu0 0.0
      %1996 = vmatmul.mubr.f32.gmra.mrb[0].mxu0 %v1764
      %v1997 = vpop.f32.mrb[0].mxu0
      %v1998 = vadd.f32 0.0, %v1997
      %v1999 = vpop.f32.mrb[0].mxu0
      %2000 = vmatprep.mubr.f32.mxu0 0.0
      %2001 = vmatmul.mubr.f32.gmra.mrb[0].mxu0 %v1767
      %v2002 = vpop.f32.mrb[0].mxu0
      %v2003 = vadd.f32 0.0, %v2002
      %v2004 = vpop.f32.mrb[0].mxu0
      %2005 = vdwg.mxu0
      %2006 = vrot.lane.b32.xlu0 %v662, 80
      %v2007 = vpop.permute.xlu0 %2006
      %2008 = vrot.lane.b32.xlu0 %v668, 80
      %v2009 = vpop.permute.xlu0 %2008
      %2010 = vrot.lane.b32.xlu0 %v664, 80
      %v2011 = vpop.permute.xlu0 %2010
      %2012 = vrot.lane.b32.xlu0 %v670, 80
      %v2013 = vpop.permute.xlu0 %2012
      %v2014 = vsel %vm929, %v2007, 0
      %v2016 = vsel %vm929, %v2009, 0
      %v2018 = vsel %vm929, %v2011, 0
      %v2020 = vsel %vm929, %v2013, 0
      %2022 = vmatprep.subr.mxu0 0.0
      %2023 = vmatpush1.xpose.msra.mxu0 %v2018
      %2024 = vmatprep.subr.mxu0 0.0
      %2025 = vmatpush1.xpose.msra.mxu0 %v2020
      %2026 = vmatprep.subr.mxu0 0.0
      %2027 = vmatpush1.xpose.msra.mxu0 0.0
      %2028 = vmatprep.subr.mxu0 0.0
      %2029 = vmatpush1.xpose.msra.mxu0 0.0
      %2030 = vmatprep.subr.mxu0 0.0
      %2031 = vmatpush1.xpose.msra.mxu0 0.0
      %2032 = vmatprep.subr.mxu0 0.0
      %2033 = vmatpush1.xpose.msra.mxu0 0.0
      %2034 = vmatprep.subr.mxu0 0.0
      %2035 = vmatpush1.xpose.msra.mxu0 0.0
      %2036 = vmatprep.subr.mxu0 0.0
      %2037 = vmatpush1.xpose.msra.mxu0 0.0
      %2038 = vmatprep.subr.mxu0 0.0
      %2039 = vmatpush1.xpose.msra.mxu0 0.0
      %2040 = vmatprep.subr.mxu0 0.0
      %2041 = vmatpush1.xpose.msra.mxu0 0.0
      %2042 = vmatprep.subr.mxu0 0.0
      %2043 = vmatpush1.xpose.msra.mxu0 0.0
      %2044 = vmatprep.subr.mxu0 0.0
      %2045 = vmatpush1.xpose.msra.mxu0 0.0
      %2046 = vmatprep.subr.mxu0 0.0
      %2047 = vmatpush1.xpose.msra.mxu0 0.0
      %2048 = vmatprep.subr.mxu0 0.0
      %2049 = vmatpush1.xpose.msra.mxu0 0.0
      %2050 = vmatprep.subr.mxu0 0.0
      %2051 = vmatpush1.xpose.msra.mxu0 0.0
      %2052 = vmatprep.subr.mxu0 0.0
      %2053 = vmatpush1.xpose.msra.mxu0 0.0
      %2054 = vmatprep.subr.mxu0 0.0
      %2055 = vmatpush1.xpose.msra.mxu0 0.0
      %2056 = vmatprep.subr.mxu0 0.0
      %2057 = vmatpush1.xpose.msra.mxu0 0.0
      %2058 = vmatprep.subr.mxu0 0.0
      %2059 = vmatpush1.xpose.msra.mxu0 0.0
      %2060 = vmatprep.subr.mxu0 0.0
      %2061 = vmatpush1.xpose.msra.mxu0 0.0
      %2062 = vmatprep.subr.mxu0 0.0
      %2063 = vmatpush1.xpose.msra.mxu0 0.0
      %2064 = vmatprep.subr.mxu0 0.0
      %2065 = vmatpush1.xpose.msra.mxu0 0.0
      %2066 = vmatprep.subr.mxu0 0.0
      %2067 = vmatpush1.xpose.msra.mxu0 0.0
      %2068 = vmatprep.subr.mxu0 0.0
      %2069 = vmatpush1.xpose.msra.mxu0 0.0
      %2070 = vmatprep.subr.mxu0 0.0
      %2071 = vmatpush1.xpose.msra.mxu0 0.0
      %2072 = vmatprep.subr.mxu0 0.0
      %2073 = vmatpush1.xpose.msra.mxu0 0.0
      %2074 = vmatprep.subr.mxu0 0.0
      %2075 = vmatpush1.xpose.msra.mxu0 0.0
      %2076 = vmatprep.subr.mxu0 0.0
      %2077 = vmatpush1.xpose.msra.mxu0 0.0
      %2078 = vmatprep.subr.mxu0 0.0
      %2079 = vmatpush1.xpose.msra.mxu0 0.0
      %2080 = vmatprep.subr.mxu0 0.0
      %2081 = vmatpush1.xpose.msra.mxu0 0.0
      %2082 = vmatprep.subr.mxu0 0.0
      %2083 = vmatpush1.xpose.msra.mxu0 0.0
      %2084 = vmatprep.subr.mxu0 0.0
      %2085 = vmatpush1.xpose.msra.mxu0 0.0
      %2086 = vmatprep.mubr.f32.mxu0 0.0
      %2087 = vmatmul.mubr.f32.gmra.mrb[0].mxu0 %v2014
      %v2088 = vpop.f32.mrb[0].mxu0
      %v2089 = vadd.f32 0.0, %v2088
      %v2090 = vpop.f32.mrb[0].mxu0
      %2091 = vmatprep.mubr.f32.mxu0 0.0
      %2092 = vmatmul.mubr.f32.gmra.mrb[0].mxu0 %v2016
      %v2093 = vpop.f32.mrb[0].mxu0
      %v2094 = vadd.f32 0.0, %v2093
      %v2095 = vpop.f32.mrb[0].mxu0
      %2096 = vdwg.mxu0
      %v2097 = vmul.f32 %v2089, 0.25
      %v2098 = vmul.f32 %v2094, 0.25
      %v2099 = vsel %vm929, %v2097, -inf
      %2100 = vmax.xlane.f32.xlu0 %v2099
      %v2101 = vpop.xlane.xlu0 %2100
      %v2102 = vsel %vm929, %v2098, -inf
      %2103 = vmax.xlane.f32.xlu0 %v2102
      %v2104 = vpop.xlane.xlu0 %2103
      %v2105 = vsub.f32 %v2097, %v2101
      %v2106 = vsub.f32 %v2098, %v2104
      %v2107 = vmul.f32 %v2105, 1.442695
      %v2108 = vpow.pop %v2107
      %v2109 = vmul.f32 %v2106, 1.442695
      %v2110 = vpow.pop %v2109
      %v2111 = vsel %vm929, %v2108, 0.0
      %2112 = vadd.xlane.f32.xlu0 %v2111
      %v2113 = vpop.xlane.xlu0 %2112
      %v2114 = vsel %vm929, %v2110, 0.0
      %2115 = vadd.xlane.f32.xlu0 %v2114
      %v2116 = vpop.xlane.xlu0 %2115
      %v2117 = vrcp.pop %v2113
      %v2118 = vrcp.pop %v2116
      %v2119 = vmul.f32 %v2108, %v2117
      %v2120 = vmul.f32 %v2110, %v2118
      %2121 = vrot.lane.b32.xlu0 %v739, 80
      %v2122 = vpop.permute.xlu0 %2121
      %2123 = vrot.lane.b32.xlu0 %v744, 80
      %v2124 = vpop.permute.xlu0 %2123
      %v2128 = vsel %vm929, %v2119, 0
      %v2131 = vsel %vm929, %v2120, 0
      %2133 = vmatprep.subr.mxu0 0.0
      %2134 = vmatpush1.msra.mxu0 %v2122
      %2135 = vmatprep.subr.mxu0 0.0
      %2136 = vmatpush1.msra.mxu0 %v2124
      %2137 = vmatprep.subr.mxu0 0.0
      %2138 = vmatpush1.msra.mxu0 0.0
      %2139 = vmatprep.subr.mxu0 0.0
      %2140 = vmatpush1.msra.mxu0 0.0
      %2141 = vmatprep.subr.mxu0 0.0
      %2142 = vmatpush1.msra.mxu0 0.0
      %2143 = vmatprep.subr.mxu0 0.0
      %2144 = vmatpush1.msra.mxu0 0.0
      %2145 = vmatprep.subr.mxu0 0.0
      %2146 = vmatpush1.msra.mxu0 0.0
      %2147 = vmatprep.subr.mxu0 0.0
      %2148 = vmatpush1.msra.mxu0 0.0
      %2149 = vmatprep.subr.mxu0 0.0
      %2150 = vmatpush1.msra.mxu0 0.0
      %2151 = vmatprep.subr.mxu0 0.0
      %2152 = vmatpush1.msra.mxu0 0.0
      %2153 = vmatprep.subr.mxu0 0.0
      %2154 = vmatpush1.msra.mxu0 0.0
      %2155 = vmatprep.subr.mxu0 0.0
      %2156 = vmatpush1.msra.mxu0 0.0
      %2157 = vmatprep.subr.mxu0 0.0
      %2158 = vmatpush1.msra.mxu0 0.0
      %2159 = vmatprep.subr.mxu0 0.0
      %2160 = vmatpush1.msra.mxu0 0.0
      %2161 = vmatprep.subr.mxu0 0.0
      %2162 = vmatpush1.msra.mxu0 0.0
      %2163 = vmatprep.subr.mxu0 0.0
      %2164 = vmatpush1.msra.mxu0 0.0
      %2165 = vmatprep.subr.mxu0 0.0
      %2166 = vmatpush1.msra.mxu0 0.0
      %2167 = vmatprep.subr.mxu0 0.0
      %2168 = vmatpush1.msra.mxu0 0.0
      %2169 = vmatprep.subr.mxu0 0.0
      %2170 = vmatpush1.msra.mxu0 0.0
      %2171 = vmatprep.subr.mxu0 0.0
      %2172 = vmatpush1.msra.mxu0 0.0
      %2173 = vmatprep.subr.mxu0 0.0
      %2174 = vmatpush1.msra.mxu0 0.0
      %2175 = vmatprep.subr.mxu0 0.0
      %2176 = vmatpush1.msra.mxu0 0.0
      %2177 = vmatprep.subr.mxu0 0.0
      %2178 = vmatpush1.msra.mxu0 0.0
      %2179 = vmatprep.subr.mxu0 0.0
      %2180 = vmatpush1.msra.mxu0 0.0
      %2181 = vmatprep.subr.mxu0 0.0
      %2182 = vmatpush1.msra.mxu0 0.0
      %2183 = vmatprep.subr.mxu0 0.0
      %2184 = vmatpush1.msra.mxu0 0.0
      %2185 = vmatprep.subr.mxu0 0.0
      %2186 = vmatpush1.msra.mxu0 0.0
      %2187 = vmatprep.subr.mxu0 0.0
      %2188 = vmatpush1.msra.mxu0 0.0
      %2189 = vmatprep.subr.mxu0 0.0
      %2190 = vmatpush1.msra.mxu0 0.0
      %2191 = vmatprep.subr.mxu0 0.0
      %2192 = vmatpush1.msra.mxu0 0.0
      %2193 = vmatprep.subr.mxu0 0.0
      %2194 = vmatpush1.msra.mxu0 0.0
      %2195 = vmatprep.subr.mxu0 0.0
      %2196 = vmatpush1.msra.mxu0 0.0
      %2197 = vmatprep.mubr.f32.mxu0 0.0
      %2198 = vmatmul.mubr.f32.gmra.mrb[0].mxu0 %v2128
      %v2199 = vpop.f32.mrb[0].mxu0
      %v2200 = vadd.f32 0.0, %v2199
      %v2201 = vpop.f32.mrb[0].mxu0
      %2202 = vmatprep.mubr.f32.mxu0 0.0
      %2203 = vmatmul.mubr.f32.gmra.mrb[0].mxu0 %v2131
      %v2204 = vpop.f32.mrb[0].mxu0
      %v2205 = vadd.f32 0.0, %v2204
      %v2206 = vpop.f32.mrb[0].mxu0
      %2207 = vdwg.mxu0
      %2208 = vrot.lane.b32.xlu0 %v840, 104
      %v2209 = vpop.permute.xlu0 %2208
      %2210 = vrot.lane.b32.xlu0 %v845, 104
      %v2211 = vpop.permute.xlu0 %2210
      %2214 = vmatprep.subr.mxu0 0.0
      %2215 = vmatpush1.msra.mxu0 %v2209
      %2216 = vmatprep.subr.mxu0 0.0
      %2217 = vmatpush1.msra.mxu0 %v2211
      %2218 = vmatprep.subr.mxu0 0.0
      %2219 = vmatpush1.msra.mxu0 0.0
      %2220 = vmatprep.subr.mxu0 0.0
      %2221 = vmatpush1.msra.mxu0 0.0
      %2222 = vmatprep.subr.mxu0 0.0
      %2223 = vmatpush1.msra.mxu0 0.0
      %2224 = vmatprep.subr.mxu0 0.0
      %2225 = vmatpush1.msra.mxu0 0.0
      %2226 = vmatprep.subr.mxu0 0.0
      %2227 = vmatpush1.msra.mxu0 0.0
      %2228 = vmatprep.subr.mxu0 0.0
      %2229 = vmatpush1.msra.mxu0 0.0
      %2230 = vmatprep.subr.mxu0 0.0
      %2231 = vmatpush1.msra.mxu0 0.0
      %2232 = vmatprep.subr.mxu0 0.0
      %2233 = vmatpush1.msra.mxu0 0.0
      %2234 = vmatprep.subr.mxu0 0.0
      %2235 = vmatpush1.msra.mxu0 0.0
      %2236 = vmatprep.subr.mxu0 0.0
      %2237 = vmatpush1.msra.mxu0 0.0
      %2238 = vmatprep.subr.mxu0 0.0
      %2239 = vmatpush1.msra.mxu0 0.0
      %2240 = vmatprep.subr.mxu0 0.0
      %2241 = vmatpush1.msra.mxu0 0.0
      %2242 = vmatprep.subr.mxu0 0.0
      %2243 = vmatpush1.msra.mxu0 0.0
      %2244 = vmatprep.subr.mxu0 0.0
      %2245 = vmatpush1.msra.mxu0 0.0
      %2246 = vmatprep.subr.mxu0 0.0
      %2247 = vmatpush1.msra.mxu0 0.0
      %2248 = vmatprep.subr.mxu0 0.0
      %2249 = vmatpush1.msra.mxu0 0.0
      %2250 = vmatprep.subr.mxu0 0.0
      %2251 = vmatpush1.msra.mxu0 0.0
      %2252 = vmatprep.subr.mxu0 0.0
      %2253 = vmatpush1.msra.mxu0 0.0
      %2254 = vmatprep.subr.mxu0 0.0
      %2255 = vmatpush1.msra.mxu0 0.0
      %2256 = vmatprep.subr.mxu0 0.0
      %2257 = vmatpush1.msra.mxu0 0.0
      %2258 = vmatprep.subr.mxu0 0.0
      %2259 = vmatpush1.msra.mxu0 0.0
      %2260 = vmatprep.subr.mxu0 0.0
      %2261 = vmatpush1.msra.mxu0 0.0
      %2262 = vmatprep.subr.mxu0 0.0
      %2263 = vmatpush1.msra.mxu0 0.0
      %2264 = vmatprep.subr.mxu0 0.0
      %2265 = vmatpush1.msra.mxu0 0.0
      %2266 = vmatprep.subr.mxu0 0.0
      %2267 = vmatpush1.msra.mxu0 0.0
      %2268 = vmatprep.subr.mxu0 0.0
      %2269 = vmatpush1.msra.mxu0 0.0
      %2270 = vmatprep.subr.mxu0 0.0
      %2271 = vmatpush1.msra.mxu0 0.0
      %2272 = vmatprep.subr.mxu0 0.0
      %2273 = vmatpush1.msra.mxu0 0.0
      %2274 = vmatprep.subr.mxu0 0.0
      %2275 = vmatpush1.msra.mxu0 0.0
      %2276 = vmatprep.subr.mxu0 0.0
      %2277 = vmatpush1.msra.mxu0 0.0
      %2278 = vmatprep.mubr.f32.mxu0 0.0
      %2279 = vmatmul.mubr.f32.gmra.mrb[0].mxu0 %v2128
      %v2280 = vpop.f32.mrb[0].mxu0
      %v2281 = vadd.f32 0.0, %v2280
      %v2282 = vpop.f32.mrb[0].mxu0
      %2283 = vmatprep.mubr.f32.mxu0 0.0
      %2284 = vmatmul.mubr.f32.gmra.mrb[0].mxu0 %v2131
      %v2285 = vpop.f32.mrb[0].mxu0
      %v2286 = vadd.f32 0.0, %v2285
      %v2287 = vpop.f32.mrb[0].mxu0
      %2288 = vdwg.mxu0
      %2289 = vrot.lane.b32.xlu0 %v921, 104
      %v2290 = vpop.permute.xlu0 %2289
      %2291 = vrot.lane.b32.xlu0 %v926, 104
      %v2292 = vpop.permute.xlu0 %2291
      %2295 = vmatprep.subr.mxu0 0.0
      %2296 = vmatpush1.msra.mxu0 %v2290
      %2297 = vmatprep.subr.mxu0 0.0
      %2298 = vmatpush1.msra.mxu0 %v2292
      %2299 = vmatprep.subr.mxu0 0.0
      %2300 = vmatpush1.msra.mxu0 0.0
      %2301 = vmatprep.subr.mxu0 0.0
      %2302 = vmatpush1.msra.mxu0 0.0
      %2303 = vmatprep.subr.mxu0 0.0
      %2304 = vmatpush1.msra.mxu0 0.0
      %2305 = vmatprep.subr.mxu0 0.0
      %2306 = vmatpush1.msra.mxu0 0.0
      %2307 = vmatprep.subr.mxu0 0.0
      %2308 = vmatpush1.msra.mxu0 0.0
      %2309 = vmatprep.subr.mxu0 0.0
      %2310 = vmatpush1.msra.mxu0 0.0
      %2311 = vmatprep.subr.mxu0 0.0
      %2312 = vmatpush1.msra.mxu0 0.0
      %2313 = vmatprep.subr.mxu0 0.0
      %2314 = vmatpush1.msra.mxu0 0.0
      %2315 = vmatprep.subr.mxu0 0.0
      %2316 = vmatpush1.msra.mxu0 0.0
      %2317 = vmatprep.subr.mxu0 0.0
      %2318 = vmatpush1.msra.mxu0 0.0
      %2319 = vmatprep.subr.mxu0 0.0
      %2320 = vmatpush1.msra.mxu0 0.0
      %2321 = vmatprep.subr.mxu0 0.0
      %2322 = vmatpush1.msra.mxu0 0.0
      %2323 = vmatprep.subr.mxu0 0.0
      %2324 = vmatpush1.msra.mxu0 0.0
      %2325 = vmatprep.subr.mxu0 0.0
      %2326 = vmatpush1.msra.mxu0 0.0
      %2327 = vmatprep.subr.mxu0 0.0
      %2328 = vmatpush1.msra.mxu0 0.0
      %2329 = vmatprep.subr.mxu0 0.0
      %2330 = vmatpush1.msra.mxu0 0.0
      %2331 = vmatprep.subr.mxu0 0.0
      %2332 = vmatpush1.msra.mxu0 0.0
      %2333 = vmatprep.subr.mxu0 0.0
      %2334 = vmatpush1.msra.mxu0 0.0
      %2335 = vmatprep.subr.mxu0 0.0
      %2336 = vmatpush1.msra.mxu0 0.0
      %2337 = vmatprep.subr.mxu0 0.0
      %2338 = vmatpush1.msra.mxu0 0.0
      %2339 = vmatprep.subr.mxu0 0.0
      %2340 = vmatpush1.msra.mxu0 0.0
      %2341 = vmatprep.subr.mxu0 0.0
      %2342 = vmatpush1.msra.mxu0 0.0
      %2343 = vmatprep.subr.mxu0 0.0
      %2344 = vmatpush1.msra.mxu0 0.0
      %2345 = vmatprep.subr.mxu0 0.0
      %2346 = vmatpush1.msra.mxu0 0.0
      %2347 = vmatprep.subr.mxu0 0.0
      %2348 = vmatpush1.msra.mxu0 0.0
      %2349 = vmatprep.subr.mxu0 0.0
      %2350 = vmatpush1.msra.mxu0 0.0
      %2351 = vmatprep.subr.mxu0 0.0
      %2352 = vmatpush1.msra.mxu0 0.0
      %2353 = vmatprep.subr.mxu0 0.0
      %2354 = vmatpush1.msra.mxu0 0.0
      %2355 = vmatprep.subr.mxu0 0.0
      %2356 = vmatpush1.msra.mxu0 0.0
      %2357 = vmatprep.subr.mxu0 0.0
      %2358 = vmatpush1.msra.mxu0 0.0
      %2359 = vmatprep.mubr.f32.mxu0 0.0
      %2360 = vmatmul.mubr.f32.gmra.mrb[0].mxu0 %v2128
      %v2361 = vpop.f32.mrb[0].mxu0
      %v2362 = vadd.f32 0.0, %v2361
      %v2363 = vpop.f32.mrb[0].mxu0
      %2364 = vmatprep.mubr.f32.mxu0 0.0
      %2365 = vmatmul.mubr.f32.gmra.mrb[0].mxu0 %v2131
      %v2366 = vpop.f32.mrb[0].mxu0
      %v2367 = vadd.f32 0.0, %v2366
      %v2368 = vpop.f32.mrb[0].mxu0
      %2369 = vdwg.mxu0
      %2370 = vrot.lane.b32.xlu0 %v662, 64
      %v2371 = vpop.permute.xlu0 %2370
      %2372 = vrot.lane.b32.xlu0 %v668, 64
      %v2373 = vpop.permute.xlu0 %2372
      %2374 = vrot.lane.b32.xlu0 %v664, 64
      %v2375 = vpop.permute.xlu0 %2374
      %2376 = vrot.lane.b32.xlu0 %v670, 64
      %v2377 = vpop.permute.xlu0 %2376
      %v2378 = vsel %vm929, %v2371, 0
      %v2380 = vsel %vm929, %v2373, 0
      %v2382 = vsel %vm929, %v2375, 0
      %v2384 = vsel %vm929, %v2377, 0
      %2386 = vmatprep.subr.mxu0 0.0
      %2387 = vmatpush1.xpose.msra.mxu0 %v2382
      %2388 = vmatprep.subr.mxu0 0.0
      %2389 = vmatpush1.xpose.msra.mxu0 %v2384
      %2390 = vmatprep.subr.mxu0 0.0
      %2391 = vmatpush1.xpose.msra.mxu0 0.0
      %2392 = vmatprep.subr.mxu0 0.0
      %2393 = vmatpush1.xpose.msra.mxu0 0.0
      %2394 = vmatprep.subr.mxu0 0.0
      %2395 = vmatpush1.xpose.msra.mxu0 0.0
      %2396 = vmatprep.subr.mxu0 0.0
      %2397 = vmatpush1.xpose.msra.mxu0 0.0
      %2398 = vmatprep.subr.mxu0 0.0
      %2399 = vmatpush1.xpose.msra.mxu0 0.0
      %2400 = vmatprep.subr.mxu0 0.0
      %2401 = vmatpush1.xpose.msra.mxu0 0.0
      %2402 = vmatprep.subr.mxu0 0.0
      %2403 = vmatpush1.xpose.msra.mxu0 0.0
      %2404 = vmatprep.subr.mxu0 0.0
      %2405 = vmatpush1.xpose.msra.mxu0 0.0
      %2406 = vmatprep.subr.mxu0 0.0
      %2407 = vmatpush1.xpose.msra.mxu0 0.0
      %2408 = vmatprep.subr.mxu0 0.0
      %2409 = vmatpush1.xpose.msra.mxu0 0.0
      %2410 = vmatprep.subr.mxu0 0.0
      %2411 = vmatpush1.xpose.msra.mxu0 0.0
      %2412 = vmatprep.subr.mxu0 0.0
      %2413 = vmatpush1.xpose.msra.mxu0 0.0
      %2414 = vmatprep.subr.mxu0 0.0
      %2415 = vmatpush1.xpose.msra.mxu0 0.0
      %2416 = vmatprep.subr.mxu0 0.0
      %2417 = vmatpush1.xpose.msra.mxu0 0.0
      %2418 = vmatprep.subr.mxu0 0.0
      %2419 = vmatpush1.xpose.msra.mxu0 0.0
      %2420 = vmatprep.subr.mxu0 0.0
      %2421 = vmatpush1.xpose.msra.mxu0 0.0
      %2422 = vmatprep.subr.mxu0 0.0
      %2423 = vmatpush1.xpose.msra.mxu0 0.0
      %2424 = vmatprep.subr.mxu0 0.0
      %2425 = vmatpush1.xpose.msra.mxu0 0.0
      %2426 = vmatprep.subr.mxu0 0.0
      %2427 = vmatpush1.xpose.msra.mxu0 0.0
      %2428 = vmatprep.subr.mxu0 0.0
      %2429 = vmatpush1.xpose.msra.mxu0 0.0
      %2430 = vmatprep.subr.mxu0 0.0
      %2431 = vmatpush1.xpose.msra.mxu0 0.0
      %2432 = vmatprep.subr.mxu0 0.0
      %2433 = vmatpush1.xpose.msra.mxu0 0.0
      %2434 = vmatprep.subr.mxu0 0.0
      %2435 = vmatpush1.xpose.msra.mxu0 0.0
      %2436 = vmatprep.subr.mxu0 0.0
      %2437 = vmatpush1.xpose.msra.mxu0 0.0
      %2438 = vmatprep.subr.mxu0 0.0
      %2439 = vmatpush1.xpose.msra.mxu0 0.0
      %2440 = vmatprep.subr.mxu0 0.0
      %2441 = vmatpush1.xpose.msra.mxu0 0.0
      %2442 = vmatprep.subr.mxu0 0.0
      %2443 = vmatpush1.xpose.msra.mxu0 0.0
      %2444 = vmatprep.subr.mxu0 0.0
      %2445 = vmatpush1.xpose.msra.mxu0 0.0
      %2446 = vmatprep.subr.mxu0 0.0
      %2447 = vmatpush1.xpose.msra.mxu0 0.0
      %2448 = vmatprep.subr.mxu0 0.0
      %2449 = vmatpush1.xpose.msra.mxu0 0.0
      %2450 = vmatprep.mubr.f32.mxu0 0.0
      %2451 = vmatmul.mubr.f32.gmra.mrb[0].mxu0 %v2378
      %v2452 = vpop.f32.mrb[0].mxu0
      %v2453 = vadd.f32 0.0, %v2452
      %v2454 = vpop.f32.mrb[0].mxu0
      %2455 = vmatprep.mubr.f32.mxu0 0.0
      %2456 = vmatmul.mubr.f32.gmra.mrb[0].mxu0 %v2380
      %v2457 = vpop.f32.mrb[0].mxu0
      %v2458 = vadd.f32 0.0, %v2457
      %v2459 = vpop.f32.mrb[0].mxu0
      %2460 = vdwg.mxu0
      %v2461 = vmul.f32 %v2453, 0.25
      %v2462 = vmul.f32 %v2458, 0.25
      %v2463 = vsel %vm929, %v2461, -inf
      %2464 = vmax.xlane.f32.xlu0 %v2463
      %v2465 = vpop.xlane.xlu0 %2464
      %v2466 = vsel %vm929, %v2462, -inf
      %2467 = vmax.xlane.f32.xlu0 %v2466
      %v2468 = vpop.xlane.xlu0 %2467
      %v2469 = vsub.f32 %v2461, %v2465
      %v2470 = vsub.f32 %v2462, %v2468
      %v2471 = vmul.f32 %v2469, 1.442695
      %v2472 = vpow.pop %v2471
      %v2473 = vmul.f32 %v2470, 1.442695
      %v2474 = vpow.pop %v2473
      %v2475 = vsel %vm929, %v2472, 0.0
      %2476 = vadd.xlane.f32.xlu0 %v2475
      %v2477 = vpop.xlane.xlu0 %2476
      %v2478 = vsel %vm929, %v2474, 0.0
      %2479 = vadd.xlane.f32.xlu0 %v2478
      %v2480 = vpop.xlane.xlu0 %2479
      %v2481 = vrcp.pop %v2477
      %v2482 = vrcp.pop %v2480
      %v2483 = vmul.f32 %v2472, %v2481
      %v2484 = vmul.f32 %v2474, %v2482
      %2485 = vrot.lane.b32.xlu0 %v739, 64
      %v2486 = vpop.permute.xlu0 %2485
      %2487 = vrot.lane.b32.xlu0 %v744, 64
      %v2488 = vpop.permute.xlu0 %2487
      %v2492 = vsel %vm929, %v2483, 0
      %v2495 = vsel %vm929, %v2484, 0
      %2497 = vmatprep.subr.mxu0 0.0
      %2498 = vmatpush1.msra.mxu0 %v2486
      %2499 = vmatprep.subr.mxu0 0.0
      %2500 = vmatpush1.msra.mxu0 %v2488
      %2501 = vmatprep.subr.mxu0 0.0
      %2502 = vmatpush1.msra.mxu0 0.0
      %2503 = vmatprep.subr.mxu0 0.0
      %2504 = vmatpush1.msra.mxu0 0.0
      %2505 = vmatprep.subr.mxu0 0.0
      %2506 = vmatpush1.msra.mxu0 0.0
      %2507 = vmatprep.subr.mxu0 0.0
      %2508 = vmatpush1.msra.mxu0 0.0
      %2509 = vmatprep.subr.mxu0 0.0
      %2510 = vmatpush1.msra.mxu0 0.0
      %2511 = vmatprep.subr.mxu0 0.0
      %2512 = vmatpush1.msra.mxu0 0.0
      %2513 = vmatprep.subr.mxu0 0.0
      %2514 = vmatpush1.msra.mxu0 0.0
      %2515 = vmatprep.subr.mxu0 0.0
      %2516 = vmatpush1.msra.mxu0 0.0
      %2517 = vmatprep.subr.mxu0 0.0
      %2518 = vmatpush1.msra.mxu0 0.0
      %2519 = vmatprep.subr.mxu0 0.0
      %2520 = vmatpush1.msra.mxu0 0.0
      %2521 = vmatprep.subr.mxu0 0.0
      %2522 = vmatpush1.msra.mxu0 0.0
      %2523 = vmatprep.subr.mxu0 0.0
      %2524 = vmatpush1.msra.mxu0 0.0
      %2525 = vmatprep.subr.mxu0 0.0
      %2526 = vmatpush1.msra.mxu0 0.0
      %2527 = vmatprep.subr.mxu0 0.0
      %2528 = vmatpush1.msra.mxu0 0.0
      %2529 = vmatprep.subr.mxu0 0.0
      %2530 = vmatpush1.msra.mxu0 0.0
      %2531 = vmatprep.subr.mxu0 0.0
      %2532 = vmatpush1.msra.mxu0 0.0
      %2533 = vmatprep.subr.mxu0 0.0
      %2534 = vmatpush1.msra.mxu0 0.0
      %2535 = vmatprep.subr.mxu0 0.0
      %2536 = vmatpush1.msra.mxu0 0.0
      %2537 = vmatprep.subr.mxu0 0.0
      %2538 = vmatpush1.msra.mxu0 0.0
      %2539 = vmatprep.subr.mxu0 0.0
      %2540 = vmatpush1.msra.mxu0 0.0
      %2541 = vmatprep.subr.mxu0 0.0
      %2542 = vmatpush1.msra.mxu0 0.0
      %2543 = vmatprep.subr.mxu0 0.0
      %2544 = vmatpush1.msra.mxu0 0.0
      %2545 = vmatprep.subr.mxu0 0.0
      %2546 = vmatpush1.msra.mxu0 0.0
      %2547 = vmatprep.subr.mxu0 0.0
      %2548 = vmatpush1.msra.mxu0 0.0
      %2549 = vmatprep.subr.mxu0 0.0
      %2550 = vmatpush1.msra.mxu0 0.0
      %2551 = vmatprep.subr.mxu0 0.0
      %2552 = vmatpush1.msra.mxu0 0.0
      %2553 = vmatprep.subr.mxu0 0.0
      %2554 = vmatpush1.msra.mxu0 0.0
      %2555 = vmatprep.subr.mxu0 0.0
      %2556 = vmatpush1.msra.mxu0 0.0
      %2557 = vmatprep.subr.mxu0 0.0
      %2558 = vmatpush1.msra.mxu0 0.0
      %2559 = vmatprep.subr.mxu0 0.0
      %2560 = vmatpush1.msra.mxu0 0.0
      %2561 = vmatprep.mubr.f32.mxu0 0.0
      %2562 = vmatmul.mubr.f32.gmra.mrb[0].mxu0 %v2492
      %v2563 = vpop.f32.mrb[0].mxu0
      %v2564 = vadd.f32 0.0, %v2563
      %v2565 = vpop.f32.mrb[0].mxu0
      %2566 = vmatprep.mubr.f32.mxu0 0.0
      %2567 = vmatmul.mubr.f32.gmra.mrb[0].mxu0 %v2495
      %v2568 = vpop.f32.mrb[0].mxu0
      %v2569 = vadd.f32 0.0, %v2568
      %v2570 = vpop.f32.mrb[0].mxu0
      %2571 = vdwg.mxu0
      %2572 = vrot.lane.b32.xlu0 %v840, 96
      %v2573 = vpop.permute.xlu0 %2572
      %2574 = vrot.lane.b32.xlu0 %v845, 96
      %v2575 = vpop.permute.xlu0 %2574
      %2578 = vmatprep.subr.mxu0 0.0
      %2579 = vmatpush1.msra.mxu0 %v2573
      %2580 = vmatprep.subr.mxu0 0.0
      %2581 = vmatpush1.msra.mxu0 %v2575
      %2582 = vmatprep.subr.mxu0 0.0
      %2583 = vmatpush1.msra.mxu0 0.0
      %2584 = vmatprep.subr.mxu0 0.0
      %2585 = vmatpush1.msra.mxu0 0.0
      %2586 = vmatprep.subr.mxu0 0.0
      %2587 = vmatpush1.msra.mxu0 0.0
      %2588 = vmatprep.subr.mxu0 0.0
      %2589 = vmatpush1.msra.mxu0 0.0
      %2590 = vmatprep.subr.mxu0 0.0
      %2591 = vmatpush1.msra.mxu0 0.0
      %2592 = vmatprep.subr.mxu0 0.0
      %2593 = vmatpush1.msra.mxu0 0.0
      %2594 = vmatprep.subr.mxu0 0.0
      %2595 = vmatpush1.msra.mxu0 0.0
      %2596 = vmatprep.subr.mxu0 0.0
      %2597 = vmatpush1.msra.mxu0 0.0
      %2598 = vmatprep.subr.mxu0 0.0
      %2599 = vmatpush1.msra.mxu0 0.0
      %2600 = vmatprep.subr.mxu0 0.0
      %2601 = vmatpush1.msra.mxu0 0.0
      %2602 = vmatprep.subr.mxu0 0.0
      %2603 = vmatpush1.msra.mxu0 0.0
      %2604 = vmatprep.subr.mxu0 0.0
      %2605 = vmatpush1.msra.mxu0 0.0
      %2606 = vmatprep.subr.mxu0 0.0
      %2607 = vmatpush1.msra.mxu0 0.0
      %2608 = vmatprep.subr.mxu0 0.0
      %2609 = vmatpush1.msra.mxu0 0.0
      %2610 = vmatprep.subr.mxu0 0.0
      %2611 = vmatpush1.msra.mxu0 0.0
      %2612 = vmatprep.subr.mxu0 0.0
      %2613 = vmatpush1.msra.mxu0 0.0
      %2614 = vmatprep.subr.mxu0 0.0
      %2615 = vmatpush1.msra.mxu0 0.0
      %2616 = vmatprep.subr.mxu0 0.0
      %2617 = vmatpush1.msra.mxu0 0.0
      %2618 = vmatprep.subr.mxu0 0.0
      %2619 = vmatpush1.msra.mxu0 0.0
      %2620 = vmatprep.subr.mxu0 0.0
      %2621 = vmatpush1.msra.mxu0 0.0
      %2622 = vmatprep.subr.mxu0 0.0
      %2623 = vmatpush1.msra.mxu0 0.0
      %2624 = vmatprep.subr.mxu0 0.0
      %2625 = vmatpush1.msra.mxu0 0.0
      %2626 = vmatprep.subr.mxu0 0.0
      %2627 = vmatpush1.msra.mxu0 0.0
      %2628 = vmatprep.subr.mxu0 0.0
      %2629 = vmatpush1.msra.mxu0 0.0
      %2630 = vmatprep.subr.mxu0 0.0
      %2631 = vmatpush1.msra.mxu0 0.0
      %2632 = vmatprep.subr.mxu0 0.0
      %2633 = vmatpush1.msra.mxu0 0.0
      %2634 = vmatprep.subr.mxu0 0.0
      %2635 = vmatpush1.msra.mxu0 0.0
      %2636 = vmatprep.subr.mxu0 0.0
      %2637 = vmatpush1.msra.mxu0 0.0
      %2638 = vmatprep.subr.mxu0 0.0
      %2639 = vmatpush1.msra.mxu0 0.0
      %2640 = vmatprep.subr.mxu0 0.0
      %2641 = vmatpush1.msra.mxu0 0.0
      %2642 = vmatprep.mubr.f32.mxu0 0.0
      %2643 = vmatmul.mubr.f32.gmra.mrb[0].mxu0 %v2492
      %v2644 = vpop.f32.mrb[0].mxu0
      %v2645 = vadd.f32 0.0, %v2644
      %v2646 = vpop.f32.mrb[0].mxu0
      %2647 = vmatprep.mubr.f32.mxu0 0.0
      %2648 = vmatmul.mubr.f32.gmra.mrb[0].mxu0 %v2495
      %v2649 = vpop.f32.mrb[0].mxu0
      %v2650 = vadd.f32 0.0, %v2649
      %v2651 = vpop.f32.mrb[0].mxu0
      %2652 = vdwg.mxu0
      %2653 = vrot.lane.b32.xlu0 %v921, 96
      %v2654 = vpop.permute.xlu0 %2653
      %2655 = vrot.lane.b32.xlu0 %v926, 96
      %v2656 = vpop.permute.xlu0 %2655
      %2659 = vmatprep.subr.mxu0 0.0
      %2660 = vmatpush1.msra.mxu0 %v2654
      %2661 = vmatprep.subr.mxu0 0.0
      %2662 = vmatpush1.msra.mxu0 %v2656
      %2663 = vmatprep.subr.mxu0 0.0
      %2664 = vmatpush1.msra.mxu0 0.0
      %2665 = vmatprep.subr.mxu0 0.0
      %2666 = vmatpush1.msra.mxu0 0.0
      %2667 = vmatprep.subr.mxu0 0.0
      %2668 = vmatpush1.msra.mxu0 0.0
      %2669 = vmatprep.subr.mxu0 0.0
      %2670 = vmatpush1.msra.mxu0 0.0
      %2671 = vmatprep.subr.mxu0 0.0
      %2672 = vmatpush1.msra.mxu0 0.0
      %2673 = vmatprep.subr.mxu0 0.0
      %2674 = vmatpush1.msra.mxu0 0.0
      %2675 = vmatprep.subr.mxu0 0.0
      %2676 = vmatpush1.msra.mxu0 0.0
      %2677 = vmatprep.subr.mxu0 0.0
      %2678 = vmatpush1.msra.mxu0 0.0
      %2679 = vmatprep.subr.mxu0 0.0
      %2680 = vmatpush1.msra.mxu0 0.0
      %2681 = vmatprep.subr.mxu0 0.0
      %2682 = vmatpush1.msra.mxu0 0.0
      %2683 = vmatprep.subr.mxu0 0.0
      %2684 = vmatpush1.msra.mxu0 0.0
      %2685 = vmatprep.subr.mxu0 0.0
      %2686 = vmatpush1.msra.mxu0 0.0
      %2687 = vmatprep.subr.mxu0 0.0
      %2688 = vmatpush1.msra.mxu0 0.0
      %2689 = vmatprep.subr.mxu0 0.0
      %2690 = vmatpush1.msra.mxu0 0.0
      %2691 = vmatprep.subr.mxu0 0.0
      %2692 = vmatpush1.msra.mxu0 0.0
      %2693 = vmatprep.subr.mxu0 0.0
      %2694 = vmatpush1.msra.mxu0 0.0
      %2695 = vmatprep.subr.mxu0 0.0
      %2696 = vmatpush1.msra.mxu0 0.0
      %2697 = vmatprep.subr.mxu0 0.0
      %2698 = vmatpush1.msra.mxu0 0.0
      %2699 = vmatprep.subr.mxu0 0.0
      %2700 = vmatpush1.msra.mxu0 0.0
      %2701 = vmatprep.subr.mxu0 0.0
      %2702 = vmatpush1.msra.mxu0 0.0
      %2703 = vmatprep.subr.mxu0 0.0
      %2704 = vmatpush1.msra.mxu0 0.0
      %2705 = vmatprep.subr.mxu0 0.0
      %2706 = vmatpush1.msra.mxu0 0.0
      %2707 = vmatprep.subr.mxu0 0.0
      %2708 = vmatpush1.msra.mxu0 0.0
      %2709 = vmatprep.subr.mxu0 0.0
      %2710 = vmatpush1.msra.mxu0 0.0
      %2711 = vmatprep.subr.mxu0 0.0
      %2712 = vmatpush1.msra.mxu0 0.0
      %2713 = vmatprep.subr.mxu0 0.0
      %2714 = vmatpush1.msra.mxu0 0.0
      %2715 = vmatprep.subr.mxu0 0.0
      %2716 = vmatpush1.msra.mxu0 0.0
      %2717 = vmatprep.subr.mxu0 0.0
      %2718 = vmatpush1.msra.mxu0 0.0
      %2719 = vmatprep.subr.mxu0 0.0
      %2720 = vmatpush1.msra.mxu0 0.0
      %2721 = vmatprep.subr.mxu0 0.0
      %2722 = vmatpush1.msra.mxu0 0.0
      %2723 = vmatprep.mubr.f32.mxu0 0.0
      %2724 = vmatmul.mubr.f32.gmra.mrb[0].mxu0 %v2492
      %v2725 = vpop.f32.mrb[0].mxu0
      %v2726 = vadd.f32 0.0, %v2725
      %v2727 = vpop.f32.mrb[0].mxu0
      %2728 = vmatprep.mubr.f32.mxu0 0.0
      %2729 = vmatmul.mubr.f32.gmra.mrb[0].mxu0 %v2495
      %v2730 = vpop.f32.mrb[0].mxu0
      %v2731 = vadd.f32 0.0, %v2730
      %v2732 = vpop.f32.mrb[0].mxu0
      %2733 = vdwg.mxu0
      %2734 = vrot.lane.b32.xlu0 %v662, 48
      %v2735 = vpop.permute.xlu0 %2734
      %2736 = vrot.lane.b32.xlu0 %v668, 48
      %v2737 = vpop.permute.xlu0 %2736
      %2738 = vrot.lane.b32.xlu0 %v664, 48
      %v2739 = vpop.permute.xlu0 %2738
      %2740 = vrot.lane.b32.xlu0 %v670, 48
      %v2741 = vpop.permute.xlu0 %2740
      %v2742 = vsel %vm929, %v2735, 0
      %v2744 = vsel %vm929, %v2737, 0
      %v2746 = vsel %vm929, %v2739, 0
      %v2748 = vsel %vm929, %v2741, 0
      %2750 = vmatprep.subr.mxu0 0.0
      %2751 = vmatpush1.xpose.msra.mxu0 %v2746
      %2752 = vmatprep.subr.mxu0 0.0
      %2753 = vmatpush1.xpose.msra.mxu0 %v2748
      %2754 = vmatprep.subr.mxu0 0.0
      %2755 = vmatpush1.xpose.msra.mxu0 0.0
      %2756 = vmatprep.subr.mxu0 0.0
      %2757 = vmatpush1.xpose.msra.mxu0 0.0
      %2758 = vmatprep.subr.mxu0 0.0
      %2759 = vmatpush1.xpose.msra.mxu0 0.0
      %2760 = vmatprep.subr.mxu0 0.0
      %2761 = vmatpush1.xpose.msra.mxu0 0.0
      %2762 = vmatprep.subr.mxu0 0.0
      %2763 = vmatpush1.xpose.msra.mxu0 0.0
      %2764 = vmatprep.subr.mxu0 0.0
      %2765 = vmatpush1.xpose.msra.mxu0 0.0
      %2766 = vmatprep.subr.mxu0 0.0
      %2767 = vmatpush1.xpose.msra.mxu0 0.0
      %2768 = vmatprep.subr.mxu0 0.0
      %2769 = vmatpush1.xpose.msra.mxu0 0.0
      %2770 = vmatprep.subr.mxu0 0.0
      %2771 = vmatpush1.xpose.msra.mxu0 0.0
      %2772 = vmatprep.subr.mxu0 0.0
      %2773 = vmatpush1.xpose.msra.mxu0 0.0
      %2774 = vmatprep.subr.mxu0 0.0
      %2775 = vmatpush1.xpose.msra.mxu0 0.0
      %2776 = vmatprep.subr.mxu0 0.0
      %2777 = vmatpush1.xpose.msra.mxu0 0.0
      %2778 = vmatprep.subr.mxu0 0.0
      %2779 = vmatpush1.xpose.msra.mxu0 0.0
      %2780 = vmatprep.subr.mxu0 0.0
      %2781 = vmatpush1.xpose.msra.mxu0 0.0
      %2782 = vmatprep.subr.mxu0 0.0
      %2783 = vmatpush1.xpose.msra.mxu0 0.0
      %2784 = vmatprep.subr.mxu0 0.0
      %2785 = vmatpush1.xpose.msra.mxu0 0.0
      %2786 = vmatprep.subr.mxu0 0.0
      %2787 = vmatpush1.xpose.msra.mxu0 0.0
      %2788 = vmatprep.subr.mxu0 0.0
      %2789 = vmatpush1.xpose.msra.mxu0 0.0
      %2790 = vmatprep.subr.mxu0 0.0
      %2791 = vmatpush1.xpose.msra.mxu0 0.0
      %2792 = vmatprep.subr.mxu0 0.0
      %2793 = vmatpush1.xpose.msra.mxu0 0.0
      %2794 = vmatprep.subr.mxu0 0.0
      %2795 = vmatpush1.xpose.msra.mxu0 0.0
      %2796 = vmatprep.subr.mxu0 0.0
      %2797 = vmatpush1.xpose.msra.mxu0 0.0
      %2798 = vmatprep.subr.mxu0 0.0
      %2799 = vmatpush1.xpose.msra.mxu0 0.0
      %2800 = vmatprep.subr.mxu0 0.0
      %2801 = vmatpush1.xpose.msra.mxu0 0.0
      %2802 = vmatprep.subr.mxu0 0.0
      %2803 = vmatpush1.xpose.msra.mxu0 0.0
      %2804 = vmatprep.subr.mxu0 0.0
      %2805 = vmatpush1.xpose.msra.mxu0 0.0
      %2806 = vmatprep.subr.mxu0 0.0
      %2807 = vmatpush1.xpose.msra.mxu0 0.0
      %2808 = vmatprep.subr.mxu0 0.0
      %2809 = vmatpush1.xpose.msra.mxu0 0.0
      %2810 = vmatprep.subr.mxu0 0.0
      %2811 = vmatpush1.xpose.msra.mxu0 0.0
      %2812 = vmatprep.subr.mxu0 0.0
      %2813 = vmatpush1.xpose.msra.mxu0 0.0
      %2814 = vmatprep.mubr.f32.mxu0 0.0
      %2815 = vmatmul.mubr.f32.gmra.mrb[0].mxu0 %v2742
      %v2816 = vpop.f32.mrb[0].mxu0
      %v2817 = vadd.f32 0.0, %v2816
      %v2818 = vpop.f32.mrb[0].mxu0
      %2819 = vmatprep.mubr.f32.mxu0 0.0
      %2820 = vmatmul.mubr.f32.gmra.mrb[0].mxu0 %v2744
      %v2821 = vpop.f32.mrb[0].mxu0
      %v2822 = vadd.f32 0.0, %v2821
      %v2823 = vpop.f32.mrb[0].mxu0
      %2824 = vdwg.mxu0
      %v2825 = vmul.f32 %v2817, 0.25
      %v2826 = vmul.f32 %v2822, 0.25
      %v2827 = vsel %vm929, %v2825, -inf
      %2828 = vmax.xlane.f32.xlu0 %v2827
      %v2829 = vpop.xlane.xlu0 %2828
      %v2830 = vsel %vm929, %v2826, -inf
      %2831 = vmax.xlane.f32.xlu0 %v2830
      %v2832 = vpop.xlane.xlu0 %2831
      %v2833 = vsub.f32 %v2825, %v2829
      %v2834 = vsub.f32 %v2826, %v2832
      %v2835 = vmul.f32 %v2833, 1.442695
      %v2836 = vpow.pop %v2835
      %v2837 = vmul.f32 %v2834, 1.442695
      %v2838 = vpow.pop %v2837
      %v2839 = vsel %vm929, %v2836, 0.0
      %2840 = vadd.xlane.f32.xlu0 %v2839
      %v2841 = vpop.xlane.xlu0 %2840
      %v2842 = vsel %vm929, %v2838, 0.0
      %2843 = vadd.xlane.f32.xlu0 %v2842
      %v2844 = vpop.xlane.xlu0 %2843
      %v2845 = vrcp.pop %v2841
      %v2846 = vrcp.pop %v2844
      %v2847 = vmul.f32 %v2836, %v2845
      %v2848 = vmul.f32 %v2838, %v2846
      %2849 = vrot.lane.b32.xlu0 %v739, 48
      %v2850 = vpop.permute.xlu0 %2849
      %2851 = vrot.lane.b32.xlu0 %v744, 48
      %v2852 = vpop.permute.xlu0 %2851
      %v2856 = vsel %vm929, %v2847, 0
      %v2859 = vsel %vm929, %v2848, 0
      %2861 = vmatprep.subr.mxu0 0.0
      %2862 = vmatpush1.msra.mxu0 %v2850
      %2863 = vmatprep.subr.mxu0 0.0
      %2864 = vmatpush1.msra.mxu0 %v2852
      %2865 = vmatprep.subr.mxu0 0.0
      %2866 = vmatpush1.msra.mxu0 0.0
      %2867 = vmatprep.subr.mxu0 0.0
      %2868 = vmatpush1.msra.mxu0 0.0
      %2869 = vmatprep.subr.mxu0 0.0
      %2870 = vmatpush1.msra.mxu0 0.0
      %2871 = vmatprep.subr.mxu0 0.0
      %2872 = vmatpush1.msra.mxu0 0.0
      %2873 = vmatprep.subr.mxu0 0.0
      %2874 = vmatpush1.msra.mxu0 0.0
      %2875 = vmatprep.subr.mxu0 0.0
      %2876 = vmatpush1.msra.mxu0 0.0
      %2877 = vmatprep.subr.mxu0 0.0
      %2878 = vmatpush1.msra.mxu0 0.0
      %2879 = vmatprep.subr.mxu0 0.0
      %2880 = vmatpush1.msra.mxu0 0.0
      %2881 = vmatprep.subr.mxu0 0.0
      %2882 = vmatpush1.msra.mxu0 0.0
      %2883 = vmatprep.subr.mxu0 0.0
      %2884 = vmatpush1.msra.mxu0 0.0
      %2885 = vmatprep.subr.mxu0 0.0
      %2886 = vmatpush1.msra.mxu0 0.0
      %2887 = vmatprep.subr.mxu0 0.0
      %2888 = vmatpush1.msra.mxu0 0.0
      %2889 = vmatprep.subr.mxu0 0.0
      %2890 = vmatpush1.msra.mxu0 0.0
      %2891 = vmatprep.subr.mxu0 0.0
      %2892 = vmatpush1.msra.mxu0 0.0
      %2893 = vmatprep.subr.mxu0 0.0
      %2894 = vmatpush1.msra.mxu0 0.0
      %2895 = vmatprep.subr.mxu0 0.0
      %2896 = vmatpush1.msra.mxu0 0.0
      %2897 = vmatprep.subr.mxu0 0.0
      %2898 = vmatpush1.msra.mxu0 0.0
      %2899 = vmatprep.subr.mxu0 0.0
      %2900 = vmatpush1.msra.mxu0 0.0
      %2901 = vmatprep.subr.mxu0 0.0
      %2902 = vmatpush1.msra.mxu0 0.0
      %2903 = vmatprep.subr.mxu0 0.0
      %2904 = vmatpush1.msra.mxu0 0.0
      %2905 = vmatprep.subr.mxu0 0.0
      %2906 = vmatpush1.msra.mxu0 0.0
      %2907 = vmatprep.subr.mxu0 0.0
      %2908 = vmatpush1.msra.mxu0 0.0
      %2909 = vmatprep.subr.mxu0 0.0
      %2910 = vmatpush1.msra.mxu0 0.0
      %2911 = vmatprep.subr.mxu0 0.0
      %2912 = vmatpush1.msra.mxu0 0.0
      %2913 = vmatprep.subr.mxu0 0.0
      %2914 = vmatpush1.msra.mxu0 0.0
      %2915 = vmatprep.subr.mxu0 0.0
      %2916 = vmatpush1.msra.mxu0 0.0
      %2917 = vmatprep.subr.mxu0 0.0
      %2918 = vmatpush1.msra.mxu0 0.0
      %2919 = vmatprep.subr.mxu0 0.0
      %2920 = vmatpush1.msra.mxu0 0.0
      %2921 = vmatprep.subr.mxu0 0.0
      %2922 = vmatpush1.msra.mxu0 0.0
      %2923 = vmatprep.subr.mxu0 0.0
      %2924 = vmatpush1.msra.mxu0 0.0
      %2925 = vmatprep.mubr.f32.mxu0 0.0
      %2926 = vmatmul.mubr.f32.gmra.mrb[0].mxu0 %v2856
      %v2927 = vpop.f32.mrb[0].mxu0
      %v2928 = vadd.f32 0.0, %v2927
      %v2929 = vpop.f32.mrb[0].mxu0
      %2930 = vmatprep.mubr.f32.mxu0 0.0
      %2931 = vmatmul.mubr.f32.gmra.mrb[0].mxu0 %v2859
      %v2932 = vpop.f32.mrb[0].mxu0
      %v2933 = vadd.f32 0.0, %v2932
      %v2934 = vpop.f32.mrb[0].mxu0
      %2935 = vdwg.mxu0
      %2936 = vrot.lane.b32.xlu0 %v840, 88
      %v2937 = vpop.permute.xlu0 %2936
      %2938 = vrot.lane.b32.xlu0 %v845, 88
      %v2939 = vpop.permute.xlu0 %2938
      %2942 = vmatprep.subr.mxu0 0.0
      %2943 = vmatpush1.msra.mxu0 %v2937
      %2944 = vmatprep.subr.mxu0 0.0
      %2945 = vmatpush1.msra.mxu0 %v2939
      %2946 = vmatprep.subr.mxu0 0.0
      %2947 = vmatpush1.msra.mxu0 0.0
      %2948 = vmatprep.subr.mxu0 0.0
      %2949 = vmatpush1.msra.mxu0 0.0
      %2950 = vmatprep.subr.mxu0 0.0
      %2951 = vmatpush1.msra.mxu0 0.0
      %2952 = vmatprep.subr.mxu0 0.0
      %2953 = vmatpush1.msra.mxu0 0.0
      %2954 = vmatprep.subr.mxu0 0.0
      %2955 = vmatpush1.msra.mxu0 0.0
      %2956 = vmatprep.subr.mxu0 0.0
      %2957 = vmatpush1.msra.mxu0 0.0
      %2958 = vmatprep.subr.mxu0 0.0
      %2959 = vmatpush1.msra.mxu0 0.0
      %2960 = vmatprep.subr.mxu0 0.0
      %2961 = vmatpush1.msra.mxu0 0.0
      %2962 = vmatprep.subr.mxu0 0.0
      %2963 = vmatpush1.msra.mxu0 0.0
      %2964 = vmatprep.subr.mxu0 0.0
      %2965 = vmatpush1.msra.mxu0 0.0
      %2966 = vmatprep.subr.mxu0 0.0
      %2967 = vmatpush1.msra.mxu0 0.0
      %2968 = vmatprep.subr.mxu0 0.0
      %2969 = vmatpush1.msra.mxu0 0.0
      %2970 = vmatprep.subr.mxu0 0.0
      %2971 = vmatpush1.msra.mxu0 0.0
      %2972 = vmatprep.subr.mxu0 0.0
      %2973 = vmatpush1.msra.mxu0 0.0
      %2974 = vmatprep.subr.mxu0 0.0
      %2975 = vmatpush1.msra.mxu0 0.0
      %2976 = vmatprep.subr.mxu0 0.0
      %2977 = vmatpush1.msra.mxu0 0.0
      %2978 = vmatprep.subr.mxu0 0.0
      %2979 = vmatpush1.msra.mxu0 0.0
      %2980 = vmatprep.subr.mxu0 0.0
      %2981 = vmatpush1.msra.mxu0 0.0
      %2982 = vmatprep.subr.mxu0 0.0
      %2983 = vmatpush1.msra.mxu0 0.0
      %2984 = vmatprep.subr.mxu0 0.0
      %2985 = vmatpush1.msra.mxu0 0.0
      %2986 = vmatprep.subr.mxu0 0.0
      %2987 = vmatpush1.msra.mxu0 0.0
      %2988 = vmatprep.subr.mxu0 0.0
      %2989 = vmatpush1.msra.mxu0 0.0
      %2990 = vmatprep.subr.mxu0 0.0
      %2991 = vmatpush1.msra.mxu0 0.0
      %2992 = vmatprep.subr.mxu0 0.0
      %2993 = vmatpush1.msra.mxu0 0.0
      %2994 = vmatprep.subr.mxu0 0.0
      %2995 = vmatpush1.msra.mxu0 0.0
      %2996 = vmatprep.subr.mxu0 0.0
      %2997 = vmatpush1.msra.mxu0 0.0
      %2998 = vmatprep.subr.mxu0 0.0
      %2999 = vmatpush1.msra.mxu0 0.0
      %3000 = vmatprep.subr.mxu0 0.0
      %3001 = vmatpush1.msra.mxu0 0.0
      %3002 = vmatprep.subr.mxu0 0.0
      %3003 = vmatpush1.msra.mxu0 0.0
      %3004 = vmatprep.subr.mxu0 0.0
      %3005 = vmatpush1.msra.mxu0 0.0
      %3006 = vmatprep.mubr.f32.mxu0 0.0
      %3007 = vmatmul.mubr.f32.gmra.mrb[0].mxu0 %v2856
      %v3008 = vpop.f32.mrb[0].mxu0
      %v3009 = vadd.f32 0.0, %v3008
      %v3010 = vpop.f32.mrb[0].mxu0
      %3011 = vmatprep.mubr.f32.mxu0 0.0
      %3012 = vmatmul.mubr.f32.gmra.mrb[0].mxu0 %v2859
      %v3013 = vpop.f32.mrb[0].mxu0
      %v3014 = vadd.f32 0.0, %v3013
      %v3015 = vpop.f32.mrb[0].mxu0
      %3016 = vdwg.mxu0
      %3017 = vrot.lane.b32.xlu0 %v921, 88
      %v3018 = vpop.permute.xlu0 %3017
      %3019 = vrot.lane.b32.xlu0 %v926, 88
      %v3020 = vpop.permute.xlu0 %3019
      %3023 = vmatprep.subr.mxu0 0.0
      %3024 = vmatpush1.msra.mxu0 %v3018
      %3025 = vmatprep.subr.mxu0 0.0
      %3026 = vmatpush1.msra.mxu0 %v3020
      %3027 = vmatprep.subr.mxu0 0.0
      %3028 = vmatpush1.msra.mxu0 0.0
      %3029 = vmatprep.subr.mxu0 0.0
      %3030 = vmatpush1.msra.mxu0 0.0
      %3031 = vmatprep.subr.mxu0 0.0
      %3032 = vmatpush1.msra.mxu0 0.0
      %3033 = vmatprep.subr.mxu0 0.0
      %3034 = vmatpush1.msra.mxu0 0.0
      %3035 = vmatprep.subr.mxu0 0.0
      %3036 = vmatpush1.msra.mxu0 0.0
      %3037 = vmatprep.subr.mxu0 0.0
      %3038 = vmatpush1.msra.mxu0 0.0
      %3039 = vmatprep.subr.mxu0 0.0
      %3040 = vmatpush1.msra.mxu0 0.0
      %3041 = vmatprep.subr.mxu0 0.0
      %3042 = vmatpush1.msra.mxu0 0.0
      %3043 = vmatprep.subr.mxu0 0.0
      %3044 = vmatpush1.msra.mxu0 0.0
      %3045 = vmatprep.subr.mxu0 0.0
      %3046 = vmatpush1.msra.mxu0 0.0
      %3047 = vmatprep.subr.mxu0 0.0
      %3048 = vmatpush1.msra.mxu0 0.0
      %3049 = vmatprep.subr.mxu0 0.0
      %3050 = vmatpush1.msra.mxu0 0.0
      %3051 = vmatprep.subr.mxu0 0.0
      %3052 = vmatpush1.msra.mxu0 0.0
      %3053 = vmatprep.subr.mxu0 0.0
      %3054 = vmatpush1.msra.mxu0 0.0
      %3055 = vmatprep.subr.mxu0 0.0
      %3056 = vmatpush1.msra.mxu0 0.0
      %3057 = vmatprep.subr.mxu0 0.0
      %3058 = vmatpush1.msra.mxu0 0.0
      %3059 = vmatprep.subr.mxu0 0.0
      %3060 = vmatpush1.msra.mxu0 0.0
      %3061 = vmatprep.subr.mxu0 0.0
      %3062 = vmatpush1.msra.mxu0 0.0
      %3063 = vmatprep.subr.mxu0 0.0
      %3064 = vmatpush1.msra.mxu0 0.0
      %3065 = vmatprep.subr.mxu0 0.0
      %3066 = vmatpush1.msra.mxu0 0.0
      %3067 = vmatprep.subr.mxu0 0.0
      %3068 = vmatpush1.msra.mxu0 0.0
      %3069 = vmatprep.subr.mxu0 0.0
      %3070 = vmatpush1.msra.mxu0 0.0
      %3071 = vmatprep.subr.mxu0 0.0
      %3072 = vmatpush1.msra.mxu0 0.0
      %3073 = vmatprep.subr.mxu0 0.0
      %3074 = vmatpush1.msra.mxu0 0.0
      %3075 = vmatprep.subr.mxu0 0.0
      %3076 = vmatpush1.msra.mxu0 0.0
      %3077 = vmatprep.subr.mxu0 0.0
      %3078 = vmatpush1.msra.mxu0 0.0
      %3079 = vmatprep.subr.mxu0 0.0
      %3080 = vmatpush1.msra.mxu0 0.0
      %3081 = vmatprep.subr.mxu0 0.0
      %3082 = vmatpush1.msra.mxu0 0.0
      %3083 = vmatprep.subr.mxu0 0.0
      %3084 = vmatpush1.msra.mxu0 0.0
      %3085 = vmatprep.subr.mxu0 0.0
      %3086 = vmatpush1.msra.mxu0 0.0
      %3087 = vmatprep.mubr.f32.mxu0 0.0
      %3088 = vmatmul.mubr.f32.gmra.mrb[0].mxu0 %v2856
      %v3089 = vpop.f32.mrb[0].mxu0
      %v3090 = vadd.f32 0.0, %v3089
      %v3091 = vpop.f32.mrb[0].mxu0
      %3092 = vmatprep.mubr.f32.mxu0 0.0
      %3093 = vmatmul.mubr.f32.gmra.mrb[0].mxu0 %v2859
      %v3094 = vpop.f32.mrb[0].mxu0
      %v3095 = vadd.f32 0.0, %v3094
      %v3096 = vpop.f32.mrb[0].mxu0
      %3097 = vdwg.mxu0
      %3098 = vrot.lane.b32.xlu0 %v662, 32
      %v3099 = vpop.permute.xlu0 %3098
      %3100 = vrot.lane.b32.xlu0 %v668, 32
      %v3101 = vpop.permute.xlu0 %3100
      %3102 = vrot.lane.b32.xlu0 %v664, 32
      %v3103 = vpop.permute.xlu0 %3102
      %3104 = vrot.lane.b32.xlu0 %v670, 32
      %v3105 = vpop.permute.xlu0 %3104
      %v3106 = vsel %vm929, %v3099, 0
      %v3108 = vsel %vm929, %v3101, 0
      %v3110 = vsel %vm929, %v3103, 0
      %v3112 = vsel %vm929, %v3105, 0
      %3114 = vmatprep.subr.mxu0 0.0
      %3115 = vmatpush1.xpose.msra.mxu0 %v3110
      %3116 = vmatprep.subr.mxu0 0.0
      %3117 = vmatpush1.xpose.msra.mxu0 %v3112
      %3118 = vmatprep.subr.mxu0 0.0
      %3119 = vmatpush1.xpose.msra.mxu0 0.0
      %3120 = vmatprep.subr.mxu0 0.0
      %3121 = vmatpush1.xpose.msra.mxu0 0.0
      %3122 = vmatprep.subr.mxu0 0.0
      %3123 = vmatpush1.xpose.msra.mxu0 0.0
      %3124 = vmatprep.subr.mxu0 0.0
      %3125 = vmatpush1.xpose.msra.mxu0 0.0
      %3126 = vmatprep.subr.mxu0 0.0
      %3127 = vmatpush1.xpose.msra.mxu0 0.0
      %3128 = vmatprep.subr.mxu0 0.0
      %3129 = vmatpush1.xpose.msra.mxu0 0.0
      %3130 = vmatprep.subr.mxu0 0.0
      %3131 = vmatpush1.xpose.msra.mxu0 0.0
      %3132 = vmatprep.subr.mxu0 0.0
      %3133 = vmatpush1.xpose.msra.mxu0 0.0
      %3134 = vmatprep.subr.mxu0 0.0
      %3135 = vmatpush1.xpose.msra.mxu0 0.0
      %3136 = vmatprep.subr.mxu0 0.0
      %3137 = vmatpush1.xpose.msra.mxu0 0.0
      %3138 = vmatprep.subr.mxu0 0.0
      %3139 = vmatpush1.xpose.msra.mxu0 0.0
      %3140 = vmatprep.subr.mxu0 0.0
      %3141 = vmatpush1.xpose.msra.mxu0 0.0
      %3142 = vmatprep.subr.mxu0 0.0
      %3143 = vmatpush1.xpose.msra.mxu0 0.0
      %3144 = vmatprep.subr.mxu0 0.0
      %3145 = vmatpush1.xpose.msra.mxu0 0.0
      %3146 = vmatprep.subr.mxu0 0.0
      %3147 = vmatpush1.xpose.msra.mxu0 0.0
      %3148 = vmatprep.subr.mxu0 0.0
      %3149 = vmatpush1.xpose.msra.mxu0 0.0
      %3150 = vmatprep.subr.mxu0 0.0
      %3151 = vmatpush1.xpose.msra.mxu0 0.0
      %3152 = vmatprep.subr.mxu0 0.0
      %3153 = vmatpush1.xpose.msra.mxu0 0.0
      %3154 = vmatprep.subr.mxu0 0.0
      %3155 = vmatpush1.xpose.msra.mxu0 0.0
      %3156 = vmatprep.subr.mxu0 0.0
      %3157 = vmatpush1.xpose.msra.mxu0 0.0
      %3158 = vmatprep.subr.mxu0 0.0
      %3159 = vmatpush1.xpose.msra.mxu0 0.0
      %3160 = vmatprep.subr.mxu0 0.0
      %3161 = vmatpush1.xpose.msra.mxu0 0.0
      %3162 = vmatprep.subr.mxu0 0.0
      %3163 = vmatpush1.xpose.msra.mxu0 0.0
      %3164 = vmatprep.subr.mxu0 0.0
      %3165 = vmatpush1.xpose.msra.mxu0 0.0
      %3166 = vmatprep.subr.mxu0 0.0
      %3167 = vmatpush1.xpose.msra.mxu0 0.0
      %3168 = vmatprep.subr.mxu0 0.0
      %3169 = vmatpush1.xpose.msra.mxu0 0.0
      %3170 = vmatprep.subr.mxu0 0.0
      %3171 = vmatpush1.xpose.msra.mxu0 0.0
      %3172 = vmatprep.subr.mxu0 0.0
      %3173 = vmatpush1.xpose.msra.mxu0 0.0
      %3174 = vmatprep.subr.mxu0 0.0
      %3175 = vmatpush1.xpose.msra.mxu0 0.0
      %3176 = vmatprep.subr.mxu0 0.0
      %3177 = vmatpush1.xpose.msra.mxu0 0.0
      %3178 = vmatprep.mubr.f32.mxu0 0.0
      %3179 = vmatmul.mubr.f32.gmra.mrb[0].mxu0 %v3106
      %v3180 = vpop.f32.mrb[0].mxu0
      %v3181 = vadd.f32 0.0, %v3180
      %v3182 = vpop.f32.mrb[0].mxu0
      %3183 = vmatprep.mubr.f32.mxu0 0.0
      %3184 = vmatmul.mubr.f32.gmra.mrb[0].mxu0 %v3108
      %v3185 = vpop.f32.mrb[0].mxu0
      %v3186 = vadd.f32 0.0, %v3185
      %v3187 = vpop.f32.mrb[0].mxu0
      %3188 = vdwg.mxu0
      %v3189 = vmul.f32 %v3181, 0.25
      %v3190 = vmul.f32 %v3186, 0.25
      %v3191 = vsel %vm929, %v3189, -inf
      %3192 = vmax.xlane.f32.xlu0 %v3191
      %v3193 = vpop.xlane.xlu0 %3192
      %v3194 = vsel %vm929, %v3190, -inf
      %3195 = vmax.xlane.f32.xlu0 %v3194
      %v3196 = vpop.xlane.xlu0 %3195
      %v3197 = vsub.f32 %v3189, %v3193
      %v3198 = vsub.f32 %v3190, %v3196
      %v3199 = vmul.f32 %v3197, 1.442695
      %v3200 = vpow.pop %v3199
      %v3201 = vmul.f32 %v3198, 1.442695
      %v3202 = vpow.pop %v3201
      %v3203 = vsel %vm929, %v3200, 0.0
      %3204 = vadd.xlane.f32.xlu0 %v3203
      %v3205 = vpop.xlane.xlu0 %3204
      %v3206 = vsel %vm929, %v3202, 0.0
      %3207 = vadd.xlane.f32.xlu0 %v3206
      %v3208 = vpop.xlane.xlu0 %3207
      %v3209 = vrcp.pop %v3205
      %v3210 = vrcp.pop %v3208
      %v3211 = vmul.f32 %v3200, %v3209
      %v3212 = vmul.f32 %v3202, %v3210
      %3213 = vrot.lane.b32.xlu0 %v739, 32
      %v3214 = vpop.permute.xlu0 %3213
      %3215 = vrot.lane.b32.xlu0 %v744, 32
      %v3216 = vpop.permute.xlu0 %3215
      %v3220 = vsel %vm929, %v3211, 0
      %v3223 = vsel %vm929, %v3212, 0
      %3225 = vmatprep.subr.mxu0 0.0
      %3226 = vmatpush1.msra.mxu0 %v3214
      %3227 = vmatprep.subr.mxu0 0.0
      %3228 = vmatpush1.msra.mxu0 %v3216
      %3229 = vmatprep.subr.mxu0 0.0
      %3230 = vmatpush1.msra.mxu0 0.0
      %3231 = vmatprep.subr.mxu0 0.0
      %3232 = vmatpush1.msra.mxu0 0.0
      %3233 = vmatprep.subr.mxu0 0.0
      %3234 = vmatpush1.msra.mxu0 0.0
      %3235 = vmatprep.subr.mxu0 0.0
      %3236 = vmatpush1.msra.mxu0 0.0
      %3237 = vmatprep.subr.mxu0 0.0
      %3238 = vmatpush1.msra.mxu0 0.0
      %3239 = vmatprep.subr.mxu0 0.0
      %3240 = vmatpush1.msra.mxu0 0.0
      %3241 = vmatprep.subr.mxu0 0.0
      %3242 = vmatpush1.msra.mxu0 0.0
      %3243 = vmatprep.subr.mxu0 0.0
      %3244 = vmatpush1.msra.mxu0 0.0
      %3245 = vmatprep.subr.mxu0 0.0
      %3246 = vmatpush1.msra.mxu0 0.0
      %3247 = vmatprep.subr.mxu0 0.0
      %3248 = vmatpush1.msra.mxu0 0.0
      %3249 = vmatprep.subr.mxu0 0.0
      %3250 = vmatpush1.msra.mxu0 0.0
      %3251 = vmatprep.subr.mxu0 0.0
      %3252 = vmatpush1.msra.mxu0 0.0
      %3253 = vmatprep.subr.mxu0 0.0
      %3254 = vmatpush1.msra.mxu0 0.0
      %3255 = vmatprep.subr.mxu0 0.0
      %3256 = vmatpush1.msra.mxu0 0.0
      %3257 = vmatprep.subr.mxu0 0.0
      %3258 = vmatpush1.msra.mxu0 0.0
      %3259 = vmatprep.subr.mxu0 0.0
      %3260 = vmatpush1.msra.mxu0 0.0
      %3261 = vmatprep.subr.mxu0 0.0
      %3262 = vmatpush1.msra.mxu0 0.0
      %3263 = vmatprep.subr.mxu0 0.0
      %3264 = vmatpush1.msra.mxu0 0.0
      %3265 = vmatprep.subr.mxu0 0.0
      %3266 = vmatpush1.msra.mxu0 0.0
      %3267 = vmatprep.subr.mxu0 0.0
      %3268 = vmatpush1.msra.mxu0 0.0
      %3269 = vmatprep.subr.mxu0 0.0
      %3270 = vmatpush1.msra.mxu0 0.0
      %3271 = vmatprep.subr.mxu0 0.0
      %3272 = vmatpush1.msra.mxu0 0.0
      %3273 = vmatprep.subr.mxu0 0.0
      %3274 = vmatpush1.msra.mxu0 0.0
      %3275 = vmatprep.subr.mxu0 0.0
      %3276 = vmatpush1.msra.mxu0 0.0
      %3277 = vmatprep.subr.mxu0 0.0
      %3278 = vmatpush1.msra.mxu0 0.0
      %3279 = vmatprep.subr.mxu0 0.0
      %3280 = vmatpush1.msra.mxu0 0.0
      %3281 = vmatprep.subr.mxu0 0.0
      %3282 = vmatpush1.msra.mxu0 0.0
      %3283 = vmatprep.subr.mxu0 0.0
      %3284 = vmatpush1.msra.mxu0 0.0
      %3285 = vmatprep.subr.mxu0 0.0
      %3286 = vmatpush1.msra.mxu0 0.0
      %3287 = vmatprep.subr.mxu0 0.0
      %3288 = vmatpush1.msra.mxu0 0.0
      %3289 = vmatprep.mubr.f32.mxu0 0.0
      %3290 = vmatmul.mubr.f32.gmra.mrb[0].mxu0 %v3220
      %v3291 = vpop.f32.mrb[0].mxu0
      %v3292 = vadd.f32 0.0, %v3291
      %v3293 = vpop.f32.mrb[0].mxu0
      %3294 = vmatprep.mubr.f32.mxu0 0.0
      %3295 = vmatmul.mubr.f32.gmra.mrb[0].mxu0 %v3223
      %v3296 = vpop.f32.mrb[0].mxu0
      %v3297 = vadd.f32 0.0, %v3296
      %v3298 = vpop.f32.mrb[0].mxu0
      %3299 = vdwg.mxu0
      %3300 = vrot.lane.b32.xlu0 %v840, 80
      %v3301 = vpop.permute.xlu0 %3300
      %3302 = vrot.lane.b32.xlu0 %v845, 80
      %v3303 = vpop.permute.xlu0 %3302
      %3306 = vmatprep.subr.mxu0 0.0
      %3307 = vmatpush1.msra.mxu0 %v3301
      %3308 = vmatprep.subr.mxu0 0.0
      %3309 = vmatpush1.msra.mxu0 %v3303
      %3310 = vmatprep.subr.mxu0 0.0
      %3311 = vmatpush1.msra.mxu0 0.0
      %3312 = vmatprep.subr.mxu0 0.0
      %3313 = vmatpush1.msra.mxu0 0.0
      %3314 = vmatprep.subr.mxu0 0.0
      %3315 = vmatpush1.msra.mxu0 0.0
      %3316 = vmatprep.subr.mxu0 0.0
      %3317 = vmatpush1.msra.mxu0 0.0
      %3318 = vmatprep.subr.mxu0 0.0
      %3319 = vmatpush1.msra.mxu0 0.0
      %3320 = vmatprep.subr.mxu0 0.0
      %3321 = vmatpush1.msra.mxu0 0.0
      %3322 = vmatprep.subr.mxu0 0.0
      %3323 = vmatpush1.msra.mxu0 0.0
      %3324 = vmatprep.subr.mxu0 0.0
      %3325 = vmatpush1.msra.mxu0 0.0
      %3326 = vmatprep.subr.mxu0 0.0
      %3327 = vmatpush1.msra.mxu0 0.0
      %3328 = vmatprep.subr.mxu0 0.0
      %3329 = vmatpush1.msra.mxu0 0.0
      %3330 = vmatprep.subr.mxu0 0.0
      %3331 = vmatpush1.msra.mxu0 0.0
      %3332 = vmatprep.subr.mxu0 0.0
      %3333 = vmatpush1.msra.mxu0 0.0
      %3334 = vmatprep.subr.mxu0 0.0
      %3335 = vmatpush1.msra.mxu0 0.0
      %3336 = vmatprep.subr.mxu0 0.0
      %3337 = vmatpush1.msra.mxu0 0.0
      %3338 = vmatprep.subr.mxu0 0.0
      %3339 = vmatpush1.msra.mxu0 0.0
      %3340 = vmatprep.subr.mxu0 0.0
      %3341 = vmatpush1.msra.mxu0 0.0
      %3342 = vmatprep.subr.mxu0 0.0
      %3343 = vmatpush1.msra.mxu0 0.0
      %3344 = vmatprep.subr.mxu0 0.0
      %3345 = vmatpush1.msra.mxu0 0.0
      %3346 = vmatprep.subr.mxu0 0.0
      %3347 = vmatpush1.msra.mxu0 0.0
      %3348 = vmatprep.subr.mxu0 0.0
      %3349 = vmatpush1.msra.mxu0 0.0
      %3350 = vmatprep.subr.mxu0 0.0
      %3351 = vmatpush1.msra.mxu0 0.0
      %3352 = vmatprep.subr.mxu0 0.0
      %3353 = vmatpush1.msra.mxu0 0.0
      %3354 = vmatprep.subr.mxu0 0.0
      %3355 = vmatpush1.msra.mxu0 0.0
      %3356 = vmatprep.subr.mxu0 0.0
      %3357 = vmatpush1.msra.mxu0 0.0
      %3358 = vmatprep.subr.mxu0 0.0
      %3359 = vmatpush1.msra.mxu0 0.0
      %3360 = vmatprep.subr.mxu0 0.0
      %3361 = vmatpush1.msra.mxu0 0.0
      %3362 = vmatprep.subr.mxu0 0.0
      %3363 = vmatpush1.msra.mxu0 0.0
      %3364 = vmatprep.subr.mxu0 0.0
      %3365 = vmatpush1.msra.mxu0 0.0
      %3366 = vmatprep.subr.mxu0 0.0
      %3367 = vmatpush1.msra.mxu0 0.0
      %3368 = vmatprep.subr.mxu0 0.0
      %3369 = vmatpush1.msra.mxu0 0.0
      %3370 = vmatprep.mubr.f32.mxu0 0.0
      %3371 = vmatmul.mubr.f32.gmra.mrb[0].mxu0 %v3220
      %v3372 = vpop.f32.mrb[0].mxu0
      %v3373 = vadd.f32 0.0, %v3372
      %v3374 = vpop.f32.mrb[0].mxu0
      %3375 = vmatprep.mubr.f32.mxu0 0.0
      %3376 = vmatmul.mubr.f32.gmra.mrb[0].mxu0 %v3223
      %v3377 = vpop.f32.mrb[0].mxu0
      %v3378 = vadd.f32 0.0, %v3377
      %v3379 = vpop.f32.mrb[0].mxu0
      %3380 = vdwg.mxu0
      %3381 = vrot.lane.b32.xlu0 %v921, 80
      %v3382 = vpop.permute.xlu0 %3381
      %3383 = vrot.lane.b32.xlu0 %v926, 80
      %v3384 = vpop.permute.xlu0 %3383
      %3387 = vmatprep.subr.mxu0 0.0
      %3388 = vmatpush1.msra.mxu0 %v3382
      %3389 = vmatprep.subr.mxu0 0.0
      %3390 = vmatpush1.msra.mxu0 %v3384
      %3391 = vmatprep.subr.mxu0 0.0
      %3392 = vmatpush1.msra.mxu0 0.0
      %3393 = vmatprep.subr.mxu0 0.0
      %3394 = vmatpush1.msra.mxu0 0.0
      %3395 = vmatprep.subr.mxu0 0.0
      %3396 = vmatpush1.msra.mxu0 0.0
      %3397 = vmatprep.subr.mxu0 0.0
      %3398 = vmatpush1.msra.mxu0 0.0
      %3399 = vmatprep.subr.mxu0 0.0
      %3400 = vmatpush1.msra.mxu0 0.0
      %3401 = vmatprep.subr.mxu0 0.0
      %3402 = vmatpush1.msra.mxu0 0.0
      %3403 = vmatprep.subr.mxu0 0.0
      %3404 = vmatpush1.msra.mxu0 0.0
      %3405 = vmatprep.subr.mxu0 0.0
      %3406 = vmatpush1.msra.mxu0 0.0
      %3407 = vmatprep.subr.mxu0 0.0
      %3408 = vmatpush1.msra.mxu0 0.0
      %3409 = vmatprep.subr.mxu0 0.0
      %3410 = vmatpush1.msra.mxu0 0.0
      %3411 = vmatprep.subr.mxu0 0.0
      %3412 = vmatpush1.msra.mxu0 0.0
      %3413 = vmatprep.subr.mxu0 0.0
      %3414 = vmatpush1.msra.mxu0 0.0
      %3415 = vmatprep.subr.mxu0 0.0
      %3416 = vmatpush1.msra.mxu0 0.0
      %3417 = vmatprep.subr.mxu0 0.0
      %3418 = vmatpush1.msra.mxu0 0.0
      %3419 = vmatprep.subr.mxu0 0.0
      %3420 = vmatpush1.msra.mxu0 0.0
      %3421 = vmatprep.subr.mxu0 0.0
      %3422 = vmatpush1.msra.mxu0 0.0
      %3423 = vmatprep.subr.mxu0 0.0
      %3424 = vmatpush1.msra.mxu0 0.0
      %3425 = vmatprep.subr.mxu0 0.0
      %3426 = vmatpush1.msra.mxu0 0.0
      %3427 = vmatprep.subr.mxu0 0.0
      %3428 = vmatpush1.msra.mxu0 0.0
      %3429 = vmatprep.subr.mxu0 0.0
      %3430 = vmatpush1.msra.mxu0 0.0
      %3431 = vmatprep.subr.mxu0 0.0
      %3432 = vmatpush1.msra.mxu0 0.0
      %3433 = vmatprep.subr.mxu0 0.0
      %3434 = vmatpush1.msra.mxu0 0.0
      %3435 = vmatprep.subr.mxu0 0.0
      %3436 = vmatpush1.msra.mxu0 0.0
      %3437 = vmatprep.subr.mxu0 0.0
      %3438 = vmatpush1.msra.mxu0 0.0
      %3439 = vmatprep.subr.mxu0 0.0
      %3440 = vmatpush1.msra.mxu0 0.0
      %3441 = vmatprep.subr.mxu0 0.0
      %3442 = vmatpush1.msra.mxu0 0.0
      %3443 = vmatprep.subr.mxu0 0.0
      %3444 = vmatpush1.msra.mxu0 0.0
      %3445 = vmatprep.subr.mxu0 0.0
      %3446 = vmatpush1.msra.mxu0 0.0
      %3447 = vmatprep.subr.mxu0 0.0
      %3448 = vmatpush1.msra.mxu0 0.0
      %3449 = vmatprep.subr.mxu0 0.0
      %3450 = vmatpush1.msra.mxu0 0.0
      %3451 = vmatprep.mubr.f32.mxu0 0.0
      %3452 = vmatmul.mubr.f32.gmra.mrb[0].mxu0 %v3220
      %v3453 = vpop.f32.mrb[0].mxu0
      %v3454 = vadd.f32 0.0, %v3453
      %v3455 = vpop.f32.mrb[0].mxu0
      %3456 = vmatprep.mubr.f32.mxu0 0.0
      %3457 = vmatmul.mubr.f32.gmra.mrb[0].mxu0 %v3223
      %v3458 = vpop.f32.mrb[0].mxu0
      %v3459 = vadd.f32 0.0, %v3458
      %v3460 = vpop.f32.mrb[0].mxu0
      %3461 = vdwg.mxu0
      %3462 = vrot.lane.b32.xlu0 %v662, 16
      %v3463 = vpop.permute.xlu0 %3462
      %3464 = vrot.lane.b32.xlu0 %v668, 16
      %v3465 = vpop.permute.xlu0 %3464
      %3466 = vrot.lane.b32.xlu0 %v664, 16
      %v3467 = vpop.permute.xlu0 %3466
      %3468 = vrot.lane.b32.xlu0 %v670, 16
      %v3469 = vpop.permute.xlu0 %3468
      %v3470 = vsel %vm929, %v3463, 0
      %v3472 = vsel %vm929, %v3465, 0
      %v3474 = vsel %vm929, %v3467, 0
      %v3476 = vsel %vm929, %v3469, 0
      %3478 = vmatprep.subr.mxu0 0.0
      %3479 = vmatpush1.xpose.msra.mxu0 %v3474
      %3480 = vmatprep.subr.mxu0 0.0
      %3481 = vmatpush1.xpose.msra.mxu0 %v3476
      %3482 = vmatprep.subr.mxu0 0.0
      %3483 = vmatpush1.xpose.msra.mxu0 0.0
      %3484 = vmatprep.subr.mxu0 0.0
      %3485 = vmatpush1.xpose.msra.mxu0 0.0
      %3486 = vmatprep.subr.mxu0 0.0
      %3487 = vmatpush1.xpose.msra.mxu0 0.0
      %3488 = vmatprep.subr.mxu0 0.0
      %3489 = vmatpush1.xpose.msra.mxu0 0.0
      %3490 = vmatprep.subr.mxu0 0.0
      %3491 = vmatpush1.xpose.msra.mxu0 0.0
      %3492 = vmatprep.subr.mxu0 0.0
      %3493 = vmatpush1.xpose.msra.mxu0 0.0
      %3494 = vmatprep.subr.mxu0 0.0
      %3495 = vmatpush1.xpose.msra.mxu0 0.0
      %3496 = vmatprep.subr.mxu0 0.0
      %3497 = vmatpush1.xpose.msra.mxu0 0.0
      %3498 = vmatprep.subr.mxu0 0.0
      %3499 = vmatpush1.xpose.msra.mxu0 0.0
      %3500 = vmatprep.subr.mxu0 0.0
      %3501 = vmatpush1.xpose.msra.mxu0 0.0
      %3502 = vmatprep.subr.mxu0 0.0
      %3503 = vmatpush1.xpose.msra.mxu0 0.0
      %3504 = vmatprep.subr.mxu0 0.0
      %3505 = vmatpush1.xpose.msra.mxu0 0.0
      %3506 = vmatprep.subr.mxu0 0.0
      %3507 = vmatpush1.xpose.msra.mxu0 0.0
      %3508 = vmatprep.subr.mxu0 0.0
      %3509 = vmatpush1.xpose.msra.mxu0 0.0
      %3510 = vmatprep.subr.mxu0 0.0
      %3511 = vmatpush1.xpose.msra.mxu0 0.0
      %3512 = vmatprep.subr.mxu0 0.0
      %3513 = vmatpush1.xpose.msra.mxu0 0.0
      %3514 = vmatprep.subr.mxu0 0.0
      %3515 = vmatpush1.xpose.msra.mxu0 0.0
      %3516 = vmatprep.subr.mxu0 0.0
      %3517 = vmatpush1.xpose.msra.mxu0 0.0
      %3518 = vmatprep.subr.mxu0 0.0
      %3519 = vmatpush1.xpose.msra.mxu0 0.0
      %3520 = vmatprep.subr.mxu0 0.0
      %3521 = vmatpush1.xpose.msra.mxu0 0.0
      %3522 = vmatprep.subr.mxu0 0.0
      %3523 = vmatpush1.xpose.msra.mxu0 0.0
      %3524 = vmatprep.subr.mxu0 0.0
      %3525 = vmatpush1.xpose.msra.mxu0 0.0
      %3526 = vmatprep.subr.mxu0 0.0
      %3527 = vmatpush1.xpose.msra.mxu0 0.0
      %3528 = vmatprep.subr.mxu0 0.0
      %3529 = vmatpush1.xpose.msra.mxu0 0.0
      %3530 = vmatprep.subr.mxu0 0.0
      %3531 = vmatpush1.xpose.msra.mxu0 0.0
      %3532 = vmatprep.subr.mxu0 0.0
      %3533 = vmatpush1.xpose.msra.mxu0 0.0
      %3534 = vmatprep.subr.mxu0 0.0
      %3535 = vmatpush1.xpose.msra.mxu0 0.0
      %3536 = vmatprep.subr.mxu0 0.0
      %3537 = vmatpush1.xpose.msra.mxu0 0.0
      %3538 = vmatprep.subr.mxu0 0.0
      %3539 = vmatpush1.xpose.msra.mxu0 0.0
      %3540 = vmatprep.subr.mxu0 0.0
      %3541 = vmatpush1.xpose.msra.mxu0 0.0
      %3542 = vmatprep.mubr.f32.mxu0 0.0
      %3543 = vmatmul.mubr.f32.gmra.mrb[0].mxu0 %v3470
      %v3544 = vpop.f32.mrb[0].mxu0
      %v3545 = vadd.f32 0.0, %v3544
      %v3546 = vpop.f32.mrb[0].mxu0
      %3547 = vmatprep.mubr.f32.mxu0 0.0
      %3548 = vmatmul.mubr.f32.gmra.mrb[0].mxu0 %v3472
      %v3549 = vpop.f32.mrb[0].mxu0
      %v3550 = vadd.f32 0.0, %v3549
      %v3551 = vpop.f32.mrb[0].mxu0
      %3552 = vdwg.mxu0
      %v3553 = vmul.f32 %v3545, 0.25
      %v3554 = vmul.f32 %v3550, 0.25
      %v3555 = vsel %vm929, %v3553, -inf
      %3556 = vmax.xlane.f32.xlu0 %v3555
      %v3557 = vpop.xlane.xlu0 %3556
      %v3558 = vsel %vm929, %v3554, -inf
      %3559 = vmax.xlane.f32.xlu0 %v3558
      %v3560 = vpop.xlane.xlu0 %3559
      %v3561 = vsub.f32 %v3553, %v3557
      %v3562 = vsub.f32 %v3554, %v3560
      %v3563 = vmul.f32 %v3561, 1.442695
      %v3564 = vpow.pop %v3563
      %v3565 = vmul.f32 %v3562, 1.442695
      %v3566 = vpow.pop %v3565
      %v3567 = vsel %vm929, %v3564, 0.0
      %3568 = vadd.xlane.f32.xlu0 %v3567
      %v3569 = vpop.xlane.xlu0 %3568
      %v3570 = vsel %vm929, %v3566, 0.0
      %3571 = vadd.xlane.f32.xlu0 %v3570
      %v3572 = vpop.xlane.xlu0 %3571
      %v3573 = vrcp.pop %v3569
      %v3574 = vrcp.pop %v3572
      %v3575 = vmul.f32 %v3564, %v3573
      %v3576 = vmul.f32 %v3566, %v3574
      %3577 = vrot.lane.b32.xlu0 %v739, 16
      %v3578 = vpop.permute.xlu0 %3577
      %3579 = vrot.lane.b32.xlu0 %v744, 16
      %v3580 = vpop.permute.xlu0 %3579
      %v3584 = vsel %vm929, %v3575, 0
      %v3587 = vsel %vm929, %v3576, 0
      %3589 = vmatprep.subr.mxu0 0.0
      %3590 = vmatpush1.msra.mxu0 %v3578
      %3591 = vmatprep.subr.mxu0 0.0
      %3592 = vmatpush1.msra.mxu0 %v3580
      %3593 = vmatprep.subr.mxu0 0.0
      %3594 = vmatpush1.msra.mxu0 0.0
      %3595 = vmatprep.subr.mxu0 0.0
      %3596 = vmatpush1.msra.mxu0 0.0
      %3597 = vmatprep.subr.mxu0 0.0
      %3598 = vmatpush1.msra.mxu0 0.0
      %3599 = vmatprep.subr.mxu0 0.0
      %3600 = vmatpush1.msra.mxu0 0.0
      %3601 = vmatprep.subr.mxu0 0.0
      %3602 = vmatpush1.msra.mxu0 0.0
      %3603 = vmatprep.subr.mxu0 0.0
      %3604 = vmatpush1.msra.mxu0 0.0
      %3605 = vmatprep.subr.mxu0 0.0
      %3606 = vmatpush1.msra.mxu0 0.0
      %3607 = vmatprep.subr.mxu0 0.0
      %3608 = vmatpush1.msra.mxu0 0.0
      %3609 = vmatprep.subr.mxu0 0.0
      %3610 = vmatpush1.msra.mxu0 0.0
      %3611 = vmatprep.subr.mxu0 0.0
      %3612 = vmatpush1.msra.mxu0 0.0
      %3613 = vmatprep.subr.mxu0 0.0
      %3614 = vmatpush1.msra.mxu0 0.0
      %3615 = vmatprep.subr.mxu0 0.0
      %3616 = vmatpush1.msra.mxu0 0.0
      %3617 = vmatprep.subr.mxu0 0.0
      %3618 = vmatpush1.msra.mxu0 0.0
      %3619 = vmatprep.subr.mxu0 0.0
      %3620 = vmatpush1.msra.mxu0 0.0
      %3621 = vmatprep.subr.mxu0 0.0
      %3622 = vmatpush1.msra.mxu0 0.0
      %3623 = vmatprep.subr.mxu0 0.0
      %3624 = vmatpush1.msra.mxu0 0.0
      %3625 = vmatprep.subr.mxu0 0.0
      %3626 = vmatpush1.msra.mxu0 0.0
      %3627 = vmatprep.subr.mxu0 0.0
      %3628 = vmatpush1.msra.mxu0 0.0
      %3629 = vmatprep.subr.mxu0 0.0
      %3630 = vmatpush1.msra.mxu0 0.0
      %3631 = vmatprep.subr.mxu0 0.0
      %3632 = vmatpush1.msra.mxu0 0.0
      %3633 = vmatprep.subr.mxu0 0.0
      %3634 = vmatpush1.msra.mxu0 0.0
      %3635 = vmatprep.subr.mxu0 0.0
      %3636 = vmatpush1.msra.mxu0 0.0
      %3637 = vmatprep.subr.mxu0 0.0
      %3638 = vmatpush1.msra.mxu0 0.0
      %3639 = vmatprep.subr.mxu0 0.0
      %3640 = vmatpush1.msra.mxu0 0.0
      %3641 = vmatprep.subr.mxu0 0.0
      %3642 = vmatpush1.msra.mxu0 0.0
      %3643 = vmatprep.subr.mxu0 0.0
      %3644 = vmatpush1.msra.mxu0 0.0
      %3645 = vmatprep.subr.mxu0 0.0
      %3646 = vmatpush1.msra.mxu0 0.0
      %3647 = vmatprep.subr.mxu0 0.0
      %3648 = vmatpush1.msra.mxu0 0.0
      %3649 = vmatprep.subr.mxu0 0.0
      %3650 = vmatpush1.msra.mxu0 0.0
      %3651 = vmatprep.subr.mxu0 0.0
      %3652 = vmatpush1.msra.mxu0 0.0
      %3653 = vmatprep.mubr.f32.mxu0 0.0
      %3654 = vmatmul.mubr.f32.gmra.mrb[0].mxu0 %v3584
      %v3655 = vpop.f32.mrb[0].mxu0
      %v3656 = vadd.f32 0.0, %v3655
      %v3657 = vpop.f32.mrb[0].mxu0
      %3658 = vmatprep.mubr.f32.mxu0 0.0
      %3659 = vmatmul.mubr.f32.gmra.mrb[0].mxu0 %v3587
      %v3660 = vpop.f32.mrb[0].mxu0
      %v3661 = vadd.f32 0.0, %v3660
      %v3662 = vpop.f32.mrb[0].mxu0
      %3663 = vdwg.mxu0
      %3664 = vrot.lane.b32.xlu0 %v840, 72
      %v3665 = vpop.permute.xlu0 %3664
      %3666 = vrot.lane.b32.xlu0 %v845, 72
      %v3667 = vpop.permute.xlu0 %3666
      %3670 = vmatprep.subr.mxu0 0.0
      %3671 = vmatpush1.msra.mxu0 %v3665
      %3672 = vmatprep.subr.mxu0 0.0
      %3673 = vmatpush1.msra.mxu0 %v3667
      %3674 = vmatprep.subr.mxu0 0.0
      %3675 = vmatpush1.msra.mxu0 0.0
      %3676 = vmatprep.subr.mxu0 0.0
      %3677 = vmatpush1.msra.mxu0 0.0
      %3678 = vmatprep.subr.mxu0 0.0
      %3679 = vmatpush1.msra.mxu0 0.0
      %3680 = vmatprep.subr.mxu0 0.0
      %3681 = vmatpush1.msra.mxu0 0.0
      %3682 = vmatprep.subr.mxu0 0.0
      %3683 = vmatpush1.msra.mxu0 0.0
      %3684 = vmatprep.subr.mxu0 0.0
      %3685 = vmatpush1.msra.mxu0 0.0
      %3686 = vmatprep.subr.mxu0 0.0
      %3687 = vmatpush1.msra.mxu0 0.0
      %3688 = vmatprep.subr.mxu0 0.0
      %3689 = vmatpush1.msra.mxu0 0.0
      %3690 = vmatprep.subr.mxu0 0.0
      %3691 = vmatpush1.msra.mxu0 0.0
      %3692 = vmatprep.subr.mxu0 0.0
      %3693 = vmatpush1.msra.mxu0 0.0
      %3694 = vmatprep.subr.mxu0 0.0
      %3695 = vmatpush1.msra.mxu0 0.0
      %3696 = vmatprep.subr.mxu0 0.0
      %3697 = vmatpush1.msra.mxu0 0.0
      %3698 = vmatprep.subr.mxu0 0.0
      %3699 = vmatpush1.msra.mxu0 0.0
      %3700 = vmatprep.subr.mxu0 0.0
      %3701 = vmatpush1.msra.mxu0 0.0
      %3702 = vmatprep.subr.mxu0 0.0
      %3703 = vmatpush1.msra.mxu0 0.0
      %3704 = vmatprep.subr.mxu0 0.0
      %3705 = vmatpush1.msra.mxu0 0.0
      %3706 = vmatprep.subr.mxu0 0.0
      %3707 = vmatpush1.msra.mxu0 0.0
      %3708 = vmatprep.subr.mxu0 0.0
      %3709 = vmatpush1.msra.mxu0 0.0
      %3710 = vmatprep.subr.mxu0 0.0
      %3711 = vmatpush1.msra.mxu0 0.0
      %3712 = vmatprep.subr.mxu0 0.0
      %3713 = vmatpush1.msra.mxu0 0.0
      %3714 = vmatprep.subr.mxu0 0.0
      %3715 = vmatpush1.msra.mxu0 0.0
      %3716 = vmatprep.subr.mxu0 0.0
      %3717 = vmatpush1.msra.mxu0 0.0
      %3718 = vmatprep.subr.mxu0 0.0
      %3719 = vmatpush1.msra.mxu0 0.0
      %3720 = vmatprep.subr.mxu0 0.0
      %3721 = vmatpush1.msra.mxu0 0.0
      %3722 = vmatprep.subr.mxu0 0.0
      %3723 = vmatpush1.msra.mxu0 0.0
      %3724 = vmatprep.subr.mxu0 0.0
      %3725 = vmatpush1.msra.mxu0 0.0
      %3726 = vmatprep.subr.mxu0 0.0
      %3727 = vmatpush1.msra.mxu0 0.0
      %3728 = vmatprep.subr.mxu0 0.0
      %3729 = vmatpush1.msra.mxu0 0.0
      %3730 = vmatprep.subr.mxu0 0.0
      %3731 = vmatpush1.msra.mxu0 0.0
      %3732 = vmatprep.subr.mxu0 0.0
      %3733 = vmatpush1.msra.mxu0 0.0
      %3734 = vmatprep.mubr.f32.mxu0 0.0
      %3735 = vmatmul.mubr.f32.gmra.mrb[0].mxu0 %v3584
      %v3736 = vpop.f32.mrb[0].mxu0
      %v3737 = vadd.f32 0.0, %v3736
      %v3738 = vpop.f32.mrb[0].mxu0
      %3739 = vmatprep.mubr.f32.mxu0 0.0
      %3740 = vmatmul.mubr.f32.gmra.mrb[0].mxu0 %v3587
      %v3741 = vpop.f32.mrb[0].mxu0
      %v3742 = vadd.f32 0.0, %v3741
      %v3743 = vpop.f32.mrb[0].mxu0
      %3744 = vdwg.mxu0
      %3745 = vrot.lane.b32.xlu0 %v921, 72
      %v3746 = vpop.permute.xlu0 %3745
      %3747 = vrot.lane.b32.xlu0 %v926, 72
      %v3748 = vpop.permute.xlu0 %3747
      %3751 = vmatprep.subr.mxu0 0.0
      %3752 = vmatpush1.msra.mxu0 %v3746
      %3753 = vmatprep.subr.mxu0 0.0
      %3754 = vmatpush1.msra.mxu0 %v3748
      %3755 = vmatprep.subr.mxu0 0.0
      %3756 = vmatpush1.msra.mxu0 0.0
      %3757 = vmatprep.subr.mxu0 0.0
      %3758 = vmatpush1.msra.mxu0 0.0
      %3759 = vmatprep.subr.mxu0 0.0
      %3760 = vmatpush1.msra.mxu0 0.0
      %3761 = vmatprep.subr.mxu0 0.0
      %3762 = vmatpush1.msra.mxu0 0.0
      %3763 = vmatprep.subr.mxu0 0.0
      %3764 = vmatpush1.msra.mxu0 0.0
      %3765 = vmatprep.subr.mxu0 0.0
      %3766 = vmatpush1.msra.mxu0 0.0
      %3767 = vmatprep.subr.mxu0 0.0
      %3768 = vmatpush1.msra.mxu0 0.0
      %3769 = vmatprep.subr.mxu0 0.0
      %3770 = vmatpush1.msra.mxu0 0.0
      %3771 = vmatprep.subr.mxu0 0.0
      %3772 = vmatpush1.msra.mxu0 0.0
      %3773 = vmatprep.subr.mxu0 0.0
      %3774 = vmatpush1.msra.mxu0 0.0
      %3775 = vmatprep.subr.mxu0 0.0
      %3776 = vmatpush1.msra.mxu0 0.0
      %3777 = vmatprep.subr.mxu0 0.0
      %3778 = vmatpush1.msra.mxu0 0.0
      %3779 = vmatprep.subr.mxu0 0.0
      %3780 = vmatpush1.msra.mxu0 0.0
      %3781 = vmatprep.subr.mxu0 0.0
      %3782 = vmatpush1.msra.mxu0 0.0
      %3783 = vmatprep.subr.mxu0 0.0
      %3784 = vmatpush1.msra.mxu0 0.0
      %3785 = vmatprep.subr.mxu0 0.0
      %3786 = vmatpush1.msra.mxu0 0.0
      %3787 = vmatprep.subr.mxu0 0.0
      %3788 = vmatpush1.msra.mxu0 0.0
      %3789 = vmatprep.subr.mxu0 0.0
      %3790 = vmatpush1.msra.mxu0 0.0
      %3791 = vmatprep.subr.mxu0 0.0
      %3792 = vmatpush1.msra.mxu0 0.0
      %3793 = vmatprep.subr.mxu0 0.0
      %3794 = vmatpush1.msra.mxu0 0.0
      %3795 = vmatprep.subr.mxu0 0.0
      %3796 = vmatpush1.msra.mxu0 0.0
      %3797 = vmatprep.subr.mxu0 0.0
      %3798 = vmatpush1.msra.mxu0 0.0
      %3799 = vmatprep.subr.mxu0 0.0
      %3800 = vmatpush1.msra.mxu0 0.0
      %3801 = vmatprep.subr.mxu0 0.0
      %3802 = vmatpush1.msra.mxu0 0.0
      %3803 = vmatprep.subr.mxu0 0.0
      %3804 = vmatpush1.msra.mxu0 0.0
      %3805 = vmatprep.subr.mxu0 0.0
      %3806 = vmatpush1.msra.mxu0 0.0
      %3807 = vmatprep.subr.mxu0 0.0
      %3808 = vmatpush1.msra.mxu0 0.0
      %3809 = vmatprep.subr.mxu0 0.0
      %3810 = vmatpush1.msra.mxu0 0.0
      %3811 = vmatprep.subr.mxu0 0.0
      %3812 = vmatpush1.msra.mxu0 0.0
      %3813 = vmatprep.subr.mxu0 0.0
      %3814 = vmatpush1.msra.mxu0 0.0
      %3815 = vmatprep.mubr.f32.mxu0 0.0
      %3816 = vmatmul.mubr.f32.gmra.mrb[0].mxu0 %v3584
      %v3817 = vpop.f32.mrb[0].mxu0
      %v3818 = vadd.f32 0.0, %v3817
      %v3819 = vpop.f32.mrb[0].mxu0
      %3820 = vmatprep.mubr.f32.mxu0 0.0
      %3821 = vmatmul.mubr.f32.gmra.mrb[0].mxu0 %v3587
      %v3822 = vpop.f32.mrb[0].mxu0
      %v3823 = vadd.f32 0.0, %v3822
      %v3824 = vpop.f32.mrb[0].mxu0
      %3825 = vdwg.mxu0
      %3828 = vrot.lane.b32.xlu0 %v1468, 16
      %v3829 = vpop.permute.xlu0 %3828
      %3830 = vrot.lane.b32.xlu0 %v1473, 16
      %v3831 = vpop.permute.xlu0 %3830
      %3836 = vrot.lane.b32.xlu0 %v1836, 32
      %v3837 = vpop.permute.xlu0 %3836
      %3838 = vrot.lane.b32.xlu0 %v1841, 32
      %v3839 = vpop.permute.xlu0 %3838
      %3844 = vrot.lane.b32.xlu0 %v2200, 48
      %v3845 = vpop.permute.xlu0 %3844
      %3846 = vrot.lane.b32.xlu0 %v2205, 48
      %v3847 = vpop.permute.xlu0 %3846
      %3852 = vrot.lane.b32.xlu0 %v2564, 64
      %v3853 = vpop.permute.xlu0 %3852
      %3854 = vrot.lane.b32.xlu0 %v2569, 64
      %v3855 = vpop.permute.xlu0 %3854
      %3860 = vrot.lane.b32.xlu0 %v2928, 80
      %v3861 = vpop.permute.xlu0 %3860
      %3862 = vrot.lane.b32.xlu0 %v2933, 80
      %v3863 = vpop.permute.xlu0 %3862
      %3868 = vrot.lane.b32.xlu0 %v3292, 96
      %v3869 = vpop.permute.xlu0 %3868
      %3870 = vrot.lane.b32.xlu0 %v3297, 96
      %v3871 = vpop.permute.xlu0 %3870
      %3876 = vrot.lane.b32.xlu0 %v3656, 112
      %v3877 = vpop.permute.xlu0 %3876
      %3878 = vrot.lane.b32.xlu0 %v3661, 112
      %v3879 = vpop.permute.xlu0 %3878
      %v3882 = vsel %vm929, %v1114, %v3829
      %v3883 = vsel %vm929, %v1119, %v3831
      %vm3884 = vcmask 261120
      %v3885 = vsel %vm3884, %v3882, %v3837
      %v3886 = vsel %vm3884, %v3883, %v3839
      %vm3887 = vcmask 392192
      %v3888 = vsel %vm3887, %v3885, %v3845
      %v3889 = vsel %vm3887, %v3886, %v3847
      %v3890 = vsel %vm766, %v3888, %v3853
      %v3891 = vsel %vm766, %v3889, %v3855
      %vm3892 = vcmask 654336
      %v3893 = vsel %vm3892, %v3890, %v3861
      %v3894 = vsel %vm3892, %v3891, %v3863
      %vm3895 = vcmask 785408
      %v3896 = vsel %vm3895, %v3893, %v3869
      %v3897 = vsel %vm3895, %v3894, %v3871
      %vm3898 = vcmask 916480
      %v3899 = vsel %vm3898, %v3896, %v3877
      %v3900 = vsel %vm3898, %v3897, %v3879
      %v3901 = vld [vmem:[%s6] sm:$0xff]
      %v3902 = vld [vmem:[%s6 + $0x8] sm:$0xff]
      %v3903 = vld [vmem:[%s6 + $0x10] sm:$0xff]
      %v3904 = vld [vmem:[%s6 + $0x18] sm:$0xff]
      %v3905 = vld [vmem:[%s6 + $0x20] sm:$0xff]
      %v3906 = vld [vmem:[%s6 + $0x28] sm:$0xff]
      %v3907 = vld [vmem:[%s6 + $0x30] sm:$0xff]
      %v3908 = vld [vmem:[%s6 + $0x38] sm:$0xff]
      %v3909 = vld [vmem:[%s6 + $0x40] sm:$0xff]
      %v3910 = vld [vmem:[%s6 + $0x48] sm:$0xff]
      %v3911 = vld [vmem:[%s6 + $0x50] sm:$0xff]
      %v3912 = vld [vmem:[%s6 + $0x58] sm:$0xff]
      %v3913 = vld [vmem:[%s6 + $0x60] sm:$0xff]
      %v3914 = vld [vmem:[%s6 + $0x68] sm:$0xff]
      %v3915 = vld [vmem:[%s6 + $0x70] sm:$0xff]
      %v3916 = vld [vmem:[%s6 + $0x78] sm:$0xff]
      %v3917 = vld [vmem:[%s7] sm:$0x1]
      %v3919 = vlaneseq
      %v3920 = vshrl.u32 %v3919, 7
      %v3921 = vsub.s32 0, %v3920
      %v3922 = vrot.slane %v3917, %v3921
      %3924 = vmatprep.subr.mxu0 0.0
      %3925 = vmatpush1.msra.mxu0 %v3901
      %3926 = vmatprep.subr.mxu0 0.0
      %3927 = vmatpush1.msra.mxu0 %v3902
      %3928 = vmatprep.subr.mxu0 0.0
      %3929 = vmatpush1.msra.mxu0 %v3903
      %3930 = vmatprep.subr.mxu0 0.0
      %3931 = vmatpush1.msra.mxu0 %v3904
      %3932 = vmatprep.subr.mxu0 0.0
      %3933 = vmatpush1.msra.mxu0 %v3905
      %3934 = vmatprep.subr.mxu0 0.0
      %3935 = vmatpush1.msra.mxu0 %v3906
      %3936 = vmatprep.subr.mxu0 0.0
      %3937 = vmatpush1.msra.mxu0 %v3907
      %3938 = vmatprep.subr.mxu0 0.0
      %3939 = vmatpush1.msra.mxu0 %v3908
      %3940 = vmatprep.subr.mxu0 0.0
      %3941 = vmatpush1.msra.mxu0 %v3909
      %3942 = vmatprep.subr.mxu0 0.0
      %3943 = vmatpush1.msra.mxu0 %v3910
      %3944 = vmatprep.subr.mxu0 0.0
      %3945 = vmatpush1.msra.mxu0 %v3911
      %3946 = vmatprep.subr.mxu0 0.0
      %3947 = vmatpush1.msra.mxu0 %v3912
      %3948 = vmatprep.subr.mxu0 0.0
      %3949 = vmatpush1.msra.mxu0 %v3913
      %3950 = vmatprep.subr.mxu0 0.0
      %3951 = vmatpush1.msra.mxu0 %v3914
      %3952 = vmatprep.subr.mxu0 0.0
      %3953 = vmatpush1.msra.mxu0 %v3915
      %3954 = vmatprep.subr.mxu0 0.0
      %3955 = vmatpush1.msra.mxu0 %v3916
      %3956 = vmatprep.subr.mxu0 0.0
      %3957 = vmatpush1.msra.mxu0 0.0
      %3958 = vmatprep.subr.mxu0 0.0
      %3959 = vmatpush1.msra.mxu0 0.0
      %3960 = vmatprep.subr.mxu0 0.0
      %3961 = vmatpush1.msra.mxu0 0.0
      %3962 = vmatprep.subr.mxu0 0.0
      %3963 = vmatpush1.msra.mxu0 0.0
      %3964 = vmatprep.subr.mxu0 0.0
      %3965 = vmatpush1.msra.mxu0 0.0
      %3966 = vmatprep.subr.mxu0 0.0
      %3967 = vmatpush1.msra.mxu0 0.0
      %3968 = vmatprep.subr.mxu0 0.0
      %3969 = vmatpush1.msra.mxu0 0.0
      %3970 = vmatprep.subr.mxu0 0.0
      %3971 = vmatpush1.msra.mxu0 0.0
      %3972 = vmatprep.subr.mxu0 0.0
      %3973 = vmatpush1.msra.mxu0 0.0
      %3974 = vmatprep.subr.mxu0 0.0
      %3975 = vmatpush1.msra.mxu0 0.0
      %3976 = vmatprep.subr.mxu0 0.0
      %3977 = vmatpush1.msra.mxu0 0.0
      %3978 = vmatprep.subr.mxu0 0.0
      %3979 = vmatpush1.msra.mxu0 0.0
      %3980 = vmatprep.subr.mxu0 0.0
      %3981 = vmatpush1.msra.mxu0 0.0
      %3982 = vmatprep.subr.mxu0 0.0
      %3983 = vmatpush1.msra.mxu0 0.0
      %3984 = vmatprep.subr.mxu0 0.0
      %3985 = vmatpush1.msra.mxu0 0.0
      %3986 = vmatprep.subr.mxu0 0.0
      %3987 = vmatpush1.msra.mxu0 0.0
      %3988 = vmatprep.mubr.f32.mxu0 0.0
      %3989 = vmatmul.mubr.f32.gmra.mrb[0].mxu0 %v3899
      %v3990 = vpop.f32.mrb[0].mxu0
      %v3991 = vadd.f32 %v3922, %v3990
      %v3992 = vpop.f32.mrb[0].mxu0
      %3993 = vmatprep.mubr.f32.mxu0 0.0
      %3994 = vmatmul.mubr.f32.gmra.mrb[0].mxu0 %v3900
      %v3995 = vpop.f32.mrb[0].mxu0
      %v3996 = vadd.f32 %v3922, %v3995
      %v3997 = vpop.f32.mrb[0].mxu0
      %3998 = vdwg.mxu0
      %v3999 = vadd.f32 %v3991, %v528
      %v4000 = vadd.f32 %v3996, %v529
      %v4001 = vld [vmem:[%s10] sm:$0x1]
      %v4002 = vld [vmem:[%s11] sm:$0x1]
      %4003 = vadd.xlane.f32.xlu0 %v3999
      %v4004 = vpop.xlane.xlu0 %4003
      %4005 = vadd.xlane.f32.xlu0 %v4000
      %v4006 = vpop.xlane.xlu0 %4005
      %v4007 = vrcp.pop 128.0
      %v4008 = vmul.f32 %v4004, %v4007
      %v4009 = vmul.f32 %v4006, %v4007
      %v4010 = vsub.f32 %v3999, %v4008
      %v4011 = vsub.f32 %v4000, %v4009
      %v4012 = vmul.f32 %v4010, %v4010
      %v4013 = vmul.f32 %v4011, %v4011
      %4014 = vadd.xlane.f32.xlu0 %v4012
      %v4015 = vpop.xlane.xlu0 %4014
      %4016 = vadd.xlane.f32.xlu0 %v4013
      %v4017 = vpop.xlane.xlu0 %4016
      %v4018 = vmul.f32 %v4015, %v4007
      %v4019 = vmul.f32 %v4017, %v4007
      %v4020 = vadd.f32 %v4018, 1e-05
      %v4021 = vadd.f32 %v4019, 1e-05
      %v4022 = vrsqrt.pop %v4020
      %v4023 = vrsqrt.pop %v4021
      %v4024 = vmul.f32 %v4010, %v4022
      %v4025 = vmul.f32 %v4011, %v4023
      %v4027 = vlaneseq
      %v4028 = vshrl.u32 %v4027, 7
      %v4029 = vsub.s32 0, %v4028
      %v4030 = vrot.slane %v4001, %v4029
      %v4032 = vmul.f32 %v4024, %v4030
      %v4033 = vmul.f32 %v4025, %v4030
      %v4035 = vlaneseq
      %v4036 = vshrl.u32 %v4035, 7
      %v4037 = vsub.s32 0, %v4036
      %v4038 = vrot.slane %v4002, %v4037
      %v4040 = vadd.f32 %v4032, %v4038
      %v4041 = vadd.f32 %v4033, %v4038
      %4042 = vst [vmem:[%s522] sm:$0xff] %v4040
      %4043 = vst [vmem:[%s522 + $0x8] sm:$0xff] %v4041
      %4046 = vrot.lane.b32.xlu0 %v1551, 8
      %v4047 = vpop.permute.xlu0 %4046
      %4048 = vrot.lane.b32.xlu0 %v1556, 8
      %v4049 = vpop.permute.xlu0 %4048
      %4054 = vrot.lane.b32.xlu0 %v1917, 16
      %v4055 = vpop.permute.xlu0 %4054
      %4056 = vrot.lane.b32.xlu0 %v1922, 16
      %v4057 = vpop.permute.xlu0 %4056
      %4062 = vrot.lane.b32.xlu0 %v2281, 24
      %v4063 = vpop.permute.xlu0 %4062
      %4064 = vrot.lane.b32.xlu0 %v2286, 24
      %v4065 = vpop.permute.xlu0 %4064
      %4070 = vrot.lane.b32.xlu0 %v2645, 32
      %v4071 = vpop.permute.xlu0 %4070
      %4072 = vrot.lane.b32.xlu0 %v2650, 32
      %v4073 = vpop.permute.xlu0 %4072
      %4078 = vrot.lane.b32.xlu0 %v3009, 40
      %v4079 = vpop.permute.xlu0 %4078
      %4080 = vrot.lane.b32.xlu0 %v3014, 40
      %v4081 = vpop.permute.xlu0 %4080
      %4086 = vrot.lane.b32.xlu0 %v3373, 48
      %v4087 = vpop.permute.xlu0 %4086
      %4088 = vrot.lane.b32.xlu0 %v3378, 48
      %v4089 = vpop.permute.xlu0 %4088
      %4094 = vrot.lane.b32.xlu0 %v3737, 56
      %v4095 = vpop.permute.xlu0 %4094
      %4096 = vrot.lane.b32.xlu0 %v3742, 56
      %v4097 = vpop.permute.xlu0 %4096
      %vm4100 = vcmask 64512
      %v4101 = vsel %vm4100, %v1189, %v4047
      %v4102 = vsel %vm4100, %v1194, %v4049
      %v4103 = vsel %vm929, %v4101, %v4055
      %v4104 = vsel %vm929, %v4102, %v4057
      %vm4105 = vcmask 195584
      %v4106 = vsel %vm4105, %v4103, %v4063
      %v4107 = vsel %vm4105, %v4104, %v4065
      %v4108 = vsel %vm3884, %v4106, %v4071
      %v4109 = vsel %vm3884, %v4107, %v4073
      %vm4110 = vcmask 326656
      %v4111 = vsel %vm4110, %v4108, %v4079
      %v4112 = vsel %vm4110, %v4109, %v4081
      %v4113 = vsel %vm3887, %v4111, %v4087
      %v4114 = vsel %vm3887, %v4112, %v4089
      %vm4115 = vcmask 457728
      %v4116 = vsel %vm4115, %v4113, %v4095
      %v4117 = vsel %vm4115, %v4114, %v4097
      %v4118 = vld [vmem:[%s8] sm:$0xff]
      %v4119 = vld [vmem:[%s8 + $0x8] sm:$0xff]
      %v4120 = vld [vmem:[%s8 + $0x10] sm:$0xff]
      %v4121 = vld [vmem:[%s8 + $0x18] sm:$0xff]
      %v4122 = vld [vmem:[%s8 + $0x20] sm:$0xff]
      %v4123 = vld [vmem:[%s8 + $0x28] sm:$0xff]
      %v4124 = vld [vmem:[%s8 + $0x30] sm:$0xff]
      %v4125 = vld [vmem:[%s8 + $0x38] sm:$0xff]
      %v4126 = vld [vmem:[%s9] sm:$0x1]
      %v4128 = vlaneseq
      %v4129 = vshrl.u32 %v4128, 7
      %v4130 = vsub.s32 0, %v4129
      %v4131 = vrot.slane %v4126, %v4130
      %v4134 = vsel %vm766, %v4116, 0
      %v4137 = vsel %vm766, %v4117, 0
      %4139 = vmatprep.subr.mxu0 0.0
      %4140 = vmatpush1.msra.mxu0 %v4118
      %4141 = vmatprep.subr.mxu0 0.0
      %4142 = vmatpush1.msra.mxu0 %v4119
      %4143 = vmatprep.subr.mxu0 0.0
      %4144 = vmatpush1.msra.mxu0 %v4120
      %4145 = vmatprep.subr.mxu0 0.0
      %4146 = vmatpush1.msra.mxu0 %v4121
      %4147 = vmatprep.subr.mxu0 0.0
      %4148 = vmatpush1.msra.mxu0 %v4122
      %4149 = vmatprep.subr.mxu0 0.0
      %4150 = vmatpush1.msra.mxu0 %v4123
      %4151 = vmatprep.subr.mxu0 0.0
      %4152 = vmatpush1.msra.mxu0 %v4124
      %4153 = vmatprep.subr.mxu0 0.0
      %4154 = vmatpush1.msra.mxu0 %v4125
      %4155 = vmatprep.subr.mxu0 0.0
      %4156 = vmatpush1.msra.mxu0 0.0
      %4157 = vmatprep.subr.mxu0 0.0
      %4158 = vmatpush1.msra.mxu0 0.0
      %4159 = vmatprep.subr.mxu0 0.0
      %4160 = vmatpush1.msra.mxu0 0.0
      %4161 = vmatprep.subr.mxu0 0.0
      %4162 = vmatpush1.msra.mxu0 0.0
      %4163 = vmatprep.subr.mxu0 0.0
      %4164 = vmatpush1.msra.mxu0 0.0
      %4165 = vmatprep.subr.mxu0 0.0
      %4166 = vmatpush1.msra.mxu0 0.0
      %4167 = vmatprep.subr.mxu0 0.0
      %4168 = vmatpush1.msra.mxu0 0.0
      %4169 = vmatprep.subr.mxu0 0.0
      %4170 = vmatpush1.msra.mxu0 0.0
      %4171 = vmatprep.subr.mxu0 0.0
      %4172 = vmatpush1.msra.mxu0 0.0
      %4173 = vmatprep.subr.mxu0 0.0
      %4174 = vmatpush1.msra.mxu0 0.0
      %4175 = vmatprep.subr.mxu0 0.0
      %4176 = vmatpush1.msra.mxu0 0.0
      %4177 = vmatprep.subr.mxu0 0.0
      %4178 = vmatpush1.msra.mxu0 0.0
      %4179 = vmatprep.subr.mxu0 0.0
      %4180 = vmatpush1.msra.mxu0 0.0
      %4181 = vmatprep.subr.mxu0 0.0
      %4182 = vmatpush1.msra.mxu0 0.0
      %4183 = vmatprep.subr.mxu0 0.0
      %4184 = vmatpush1.msra.mxu0 0.0
      %4185 = vmatprep.subr.mxu0 0.0
      %4186 = vmatpush1.msra.mxu0 0.0
      %4187 = vmatprep.subr.mxu0 0.0
      %4188 = vmatpush1.msra.mxu0 0.0
      %4189 = vmatprep.subr.mxu0 0.0
      %4190 = vmatpush1.msra.mxu0 0.0
      %4191 = vmatprep.subr.mxu0 0.0
      %4192 = vmatpush1.msra.mxu0 0.0
      %4193 = vmatprep.subr.mxu0 0.0
      %4194 = vmatpush1.msra.mxu0 0.0
      %4195 = vmatprep.subr.mxu0 0.0
      %4196 = vmatpush1.msra.mxu0 0.0
      %4197 = vmatprep.subr.mxu0 0.0
      %4198 = vmatpush1.msra.mxu0 0.0
      %4199 = vmatprep.subr.mxu0 0.0
      %4200 = vmatpush1.msra.mxu0 0.0
      %4201 = vmatprep.subr.mxu0 0.0
      %4202 = vmatpush1.msra.mxu0 0.0
      %4203 = vmatprep.mubr.f32.mxu0 0.0
      %4204 = vmatmul.mubr.f32.gmra.mrb[0].mxu0 %v4134
      %v4205 = vpop.f32.mrb[0].mxu0
      %v4206 = vadd.f32 %v4131, %v4205
      %v4207 = vpop.f32.mrb[0].mxu0
      %4208 = vmatprep.mubr.f32.mxu0 0.0
      %4209 = vmatmul.mubr.f32.gmra.mrb[0].mxu0 %v4137
      %v4210 = vpop.f32.mrb[0].mxu0
      %v4211 = vadd.f32 %v4131, %v4210
      %v4212 = vpop.f32.mrb[0].mxu0
      %4213 = vdwg.mxu0
      %v4214 = vadd.f32 %v4206, %v747
      %v4215 = vadd.f32 %v4211, %v748
      %v4216 = vld [vmem:[%s12] sm:$0x1]
      %v4217 = vld [vmem:[%s13] sm:$0x1]
      %v4218 = vsel %vm766, %v4214, 0.0
      %4219 = vadd.xlane.f32.xlu0 %v4218
      %v4220 = vpop.xlane.xlu0 %4219
      %v4221 = vsel %vm766, %v4215, 0.0
      %4222 = vadd.xlane.f32.xlu0 %v4221
      %v4223 = vpop.xlane.xlu0 %4222
      %v4224 = vrcp.pop 64.0
      %v4225 = vmul.f32 %v4220, %v4224
      %v4226 = vmul.f32 %v4223, %v4224
      %v4227 = vsub.f32 %v4214, %v4225
      %v4228 = vsub.f32 %v4215, %v4226
      %v4229 = vmul.f32 %v4227, %v4227
      %v4230 = vmul.f32 %v4228, %v4228
      %v4231 = vsel %vm766, %v4229, 0.0
      %4232 = vadd.xlane.f32.xlu0 %v4231
      %v4233 = vpop.xlane.xlu0 %4232
      %v4234 = vsel %vm766, %v4230, 0.0
      %4235 = vadd.xlane.f32.xlu0 %v4234
      %v4236 = vpop.xlane.xlu0 %4235
      %v4237 = vmul.f32 %v4233, %v4224
      %v4238 = vmul.f32 %v4236, %v4224
      %v4239 = vadd.f32 %v4237, 1e-05
      %v4240 = vadd.f32 %v4238, 1e-05
      %v4241 = vrsqrt.pop %v4239
      %v4242 = vrsqrt.pop %v4240
      %v4243 = vmul.f32 %v4227, %v4241
      %v4244 = vmul.f32 %v4228, %v4242
      %v4246 = vlaneseq
      %v4247 = vshrl.u32 %v4246, 7
      %v4248 = vsub.s32 0, %v4247
      %v4249 = vrot.slane %v4216, %v4248
      %v4251 = vmul.f32 %v4243, %v4249
      %v4252 = vmul.f32 %v4244, %v4249
      %v4254 = vlaneseq
      %v4255 = vshrl.u32 %v4254, 7
      %v4256 = vsub.s32 0, %v4255
      %v4257 = vrot.slane %v4217, %v4256
      %v4259 = vadd.f32 %v4251, %v4257
      %v4260 = vadd.f32 %v4252, %v4257
      %4261 = vst.msk [vmem:[%s527] sm:$0xff] %vm766, %v4259
      %4262 = vst.msk [vmem:[%s527 + $0x8] sm:$0xff] %vm766, %v4260
      %4265 = vrot.lane.b32.xlu0 %v1634, 8
      %v4266 = vpop.permute.xlu0 %4265
      %4267 = vrot.lane.b32.xlu0 %v1639, 8
      %v4268 = vpop.permute.xlu0 %4267
      %4273 = vrot.lane.b32.xlu0 %v1998, 16
      %v4274 = vpop.permute.xlu0 %4273
      %4275 = vrot.lane.b32.xlu0 %v2003, 16
      %v4276 = vpop.permute.xlu0 %4275
      %4281 = vrot.lane.b32.xlu0 %v2362, 24
      %v4282 = vpop.permute.xlu0 %4281
      %4283 = vrot.lane.b32.xlu0 %v2367, 24
      %v4284 = vpop.permute.xlu0 %4283
      %4289 = vrot.lane.b32.xlu0 %v2726, 32
      %v4290 = vpop.permute.xlu0 %4289
      %4291 = vrot.lane.b32.xlu0 %v2731, 32
      %v4292 = vpop.permute.xlu0 %4291
      %4297 = vrot.lane.b32.xlu0 %v3090, 40
      %v4298 = vpop.permute.xlu0 %4297
      %4299 = vrot.lane.b32.xlu0 %v3095, 40
      %v4300 = vpop.permute.xlu0 %4299
      %4305 = vrot.lane.b32.xlu0 %v3454, 48
      %v4306 = vpop.permute.xlu0 %4305
      %4307 = vrot.lane.b32.xlu0 %v3459, 48
      %v4308 = vpop.permute.xlu0 %4307
      %4313 = vrot.lane.b32.xlu0 %v3818, 56
      %v4314 = vpop.permute.xlu0 %4313
      %4315 = vrot.lane.b32.xlu0 %v3823, 56
      %v4316 = vpop.permute.xlu0 %4315
      %v4319 = vsel %vm4100, %v1264, %v4266
      %v4320 = vsel %vm4100, %v1269, %v4268
      %v4321 = vsel %vm929, %v4319, %v4274
      %v4322 = vsel %vm929, %v4320, %v4276
      %v4323 = vsel %vm4105, %v4321, %v4282
      %v4324 = vsel %vm4105, %v4322, %v4284
      %v4325 = vsel %vm3884, %v4323, %v4290
      %v4326 = vsel %vm3884, %v4324, %v4292
      %v4327 = vsel %vm4110, %v4325, %v4298
      %v4328 = vsel %vm4110, %v4326, %v4300
      %v4329 = vsel %vm3887, %v4327, %v4306
      %v4330 = vsel %vm3887, %v4328, %v4308
      %v4331 = vsel %vm4115, %v4329, %v4314
      %v4332 = vsel %vm4115, %v4330, %v4316
      %v4333 = vld [vmem:[%s8] sm:$0xff]
      %v4334 = vld [vmem:[%s8 + $0x8] sm:$0xff]
      %v4335 = vld [vmem:[%s8 + $0x10] sm:$0xff]
      %v4336 = vld [vmem:[%s8 + $0x18] sm:$0xff]
      %v4337 = vld [vmem:[%s8 + $0x20] sm:$0xff]
      %v4338 = vld [vmem:[%s8 + $0x28] sm:$0xff]
      %v4339 = vld [vmem:[%s8 + $0x30] sm:$0xff]
      %v4340 = vld [vmem:[%s8 + $0x38] sm:$0xff]
      %v4341 = vld [vmem:[%s9] sm:$0x1]
      %v4343 = vlaneseq
      %v4344 = vshrl.u32 %v4343, 7
      %v4345 = vsub.s32 0, %v4344
      %v4346 = vrot.slane %v4341, %v4345
      %v4349 = vsel %vm766, %v4331, 0
      %v4352 = vsel %vm766, %v4332, 0
      %4354 = vmatprep.subr.mxu0 0.0
      %4355 = vmatpush1.msra.mxu0 %v4333
      %4356 = vmatprep.subr.mxu0 0.0
      %4357 = vmatpush1.msra.mxu0 %v4334
      %4358 = vmatprep.subr.mxu0 0.0
      %4359 = vmatpush1.msra.mxu0 %v4335
      %4360 = vmatprep.subr.mxu0 0.0
      %4361 = vmatpush1.msra.mxu0 %v4336
      %4362 = vmatprep.subr.mxu0 0.0
      %4363 = vmatpush1.msra.mxu0 %v4337
      %4364 = vmatprep.subr.mxu0 0.0
      %4365 = vmatpush1.msra.mxu0 %v4338
      %4366 = vmatprep.subr.mxu0 0.0
      %4367 = vmatpush1.msra.mxu0 %v4339
      %4368 = vmatprep.subr.mxu0 0.0
      %4369 = vmatpush1.msra.mxu0 %v4340
      %4370 = vmatprep.subr.mxu0 0.0
      %4371 = vmatpush1.msra.mxu0 0.0
      %4372 = vmatprep.subr.mxu0 0.0
      %4373 = vmatpush1.msra.mxu0 0.0
      %4374 = vmatprep.subr.mxu0 0.0
      %4375 = vmatpush1.msra.mxu0 0.0
      %4376 = vmatprep.subr.mxu0 0.0
      %4377 = vmatpush1.msra.mxu0 0.0
      %4378 = vmatprep.subr.mxu0 0.0
      %4379 = vmatpush1.msra.mxu0 0.0
      %4380 = vmatprep.subr.mxu0 0.0
      %4381 = vmatpush1.msra.mxu0 0.0
      %4382 = vmatprep.subr.mxu0 0.0
      %4383 = vmatpush1.msra.mxu0 0.0
      %4384 = vmatprep.subr.mxu0 0.0
      %4385 = vmatpush1.msra.mxu0 0.0
      %4386 = vmatprep.subr.mxu0 0.0
      %4387 = vmatpush1.msra.mxu0 0.0
      %4388 = vmatprep.subr.mxu0 0.0
      %4389 = vmatpush1.msra.mxu0 0.0
      %4390 = vmatprep.subr.mxu0 0.0
      %4391 = vmatpush1.msra.mxu0 0.0
      %4392 = vmatprep.subr.mxu0 0.0
      %4393 = vmatpush1.msra.mxu0 0.0
      %4394 = vmatprep.subr.mxu0 0.0
      %4395 = vmatpush1.msra.mxu0 0.0
      %4396 = vmatprep.subr.mxu0 0.0
      %4397 = vmatpush1.msra.mxu0 0.0
      %4398 = vmatprep.subr.mxu0 0.0
      %4399 = vmatpush1.msra.mxu0 0.0
      %4400 = vmatprep.subr.mxu0 0.0
      %4401 = vmatpush1.msra.mxu0 0.0
      %4402 = vmatprep.subr.mxu0 0.0
      %4403 = vmatpush1.msra.mxu0 0.0
      %4404 = vmatprep.subr.mxu0 0.0
      %4405 = vmatpush1.msra.mxu0 0.0
      %4406 = vmatprep.subr.mxu0 0.0
      %4407 = vmatpush1.msra.mxu0 0.0
      %4408 = vmatprep.subr.mxu0 0.0
      %4409 = vmatpush1.msra.mxu0 0.0
      %4410 = vmatprep.subr.mxu0 0.0
      %4411 = vmatpush1.msra.mxu0 0.0
      %4412 = vmatprep.subr.mxu0 0.0
      %4413 = vmatpush1.msra.mxu0 0.0
      %4414 = vmatprep.subr.mxu0 0.0
      %4415 = vmatpush1.msra.mxu0 0.0
      %4416 = vmatprep.subr.mxu0 0.0
      %4417 = vmatpush1.msra.mxu0 0.0
      %4418 = vmatprep.mubr.f32.mxu0 0.0
      %4419 = vmatmul.mubr.f32.gmra.mrb[0].mxu0 %v4349
      %v4420 = vpop.f32.mrb[0].mxu0
      %v4421 = vadd.f32 %v4346, %v4420
      %v4422 = vpop.f32.mrb[0].mxu0
      %4423 = vmatprep.mubr.f32.mxu0 0.0
      %4424 = vmatmul.mubr.f32.gmra.mrb[0].mxu0 %v4352
      %v4425 = vpop.f32.mrb[0].mxu0
      %v4426 = vadd.f32 %v4346, %v4425
      %v4427 = vpop.f32.mrb[0].mxu0
      %4428 = vdwg.mxu0
      %v4429 = vadd.f32 %v4421, %v749
      %v4430 = vadd.f32 %v4426, %v750
      %v4431 = vld [vmem:[%s12] sm:$0x1]
      %v4432 = vld [vmem:[%s13] sm:$0x1]
      %v4433 = vsel %vm766, %v4429, 0.0
      %4434 = vadd.xlane.f32.xlu0 %v4433
      %v4435 = vpop.xlane.xlu0 %4434
      %v4436 = vsel %vm766, %v4430, 0.0
      %4437 = vadd.xlane.f32.xlu0 %v4436
      %v4438 = vpop.xlane.xlu0 %4437
      %v4439 = vmul.f32 %v4435, %v4224
      %v4440 = vmul.f32 %v4438, %v4224
      %v4441 = vsub.f32 %v4429, %v4439
      %v4442 = vsub.f32 %v4430, %v4440
      %v4443 = vmul.f32 %v4441, %v4441
      %v4444 = vmul.f32 %v4442, %v4442
      %v4445 = vsel %vm766, %v4443, 0.0
      %4446 = vadd.xlane.f32.xlu0 %v4445
      %v4447 = vpop.xlane.xlu0 %4446
      %v4448 = vsel %vm766, %v4444, 0.0
      %4449 = vadd.xlane.f32.xlu0 %v4448
      %v4450 = vpop.xlane.xlu0 %4449
      %v4451 = vmul.f32 %v4447, %v4224
      %v4452 = vmul.f32 %v4450, %v4224
      %v4453 = vadd.f32 %v4451, 1e-05
      %v4454 = vadd.f32 %v4452, 1e-05
      %v4455 = vrsqrt.pop %v4453
      %v4456 = vrsqrt.pop %v4454
      %v4457 = vmul.f32 %v4441, %v4455
      %v4458 = vmul.f32 %v4442, %v4456
      %v4460 = vlaneseq
      %v4461 = vshrl.u32 %v4460, 7
      %v4462 = vsub.s32 0, %v4461
      %v4463 = vrot.slane %v4431, %v4462
      %v4465 = vmul.f32 %v4457, %v4463
      %v4466 = vmul.f32 %v4458, %v4463
      %v4468 = vlaneseq
      %v4469 = vshrl.u32 %v4468, 7
      %v4470 = vsub.s32 0, %v4469
      %v4471 = vrot.slane %v4432, %v4470
      %v4473 = vadd.f32 %v4465, %v4471
      %v4474 = vadd.f32 %v4466, %v4471
      %s4475 = scalar_lea.vmem %s527, 16
      %4476 = vst.msk [vmem:[%s4475] sm:$0xff] %vm766, %v4473
      %4477 = vst.msk [vmem:[%s4475 + $0x8] sm:$0xff] %vm766, %v4474
      %p4478 = scmp.lt.s32.totalorder %s27, 1
      %s4479 = scalar_select %p4478, %s27, 1
      %s4480 = smul.addr %s4479, 2
      %s4481 = smul.addr %s4480, 8
      %s4482 = scalar_lea.vmem %s14, %s4481
      %p4483 = scmp.lt.s32.totalorder %s27, 1
      %s4484 = scalar_select %p4483, %s27, 1
      %s4485 = smul.addr %s4484, 4
      %s4486 = smul.addr %s4485, 8
      %s4487 = scalar_lea.vmem %s15, %s4486
      // Predicated region
      $region77: #{interaction_forward.12} parent=75 // pred_check
        %p4488 = pneg %p349
      $region78: #{interaction_forward.12} parent=75 // pred_check_branch
        %4490 = sbr.rel (%p4488) target = $region80
      $region79: #{interaction_forward.12} parent=75 // pred_region
        _
      $region80: #{interaction_forward.12} parent=75 // pred_fallthru
        _
      // Predicated region
      $region81: #{interaction_forward.12} parent=75 // pred_check
        %p4491 = pneg %p375
      $region82: #{interaction_forward.12} parent=75 // pred_check_branch
        %4493 = sbr.rel (%p4491) target = $region84
      $region83: #{interaction_forward.12} parent=75 // pred_region
        _
      $region84: #{interaction_forward.12} parent=75 // pred_fallthru
        _
    $region76: #{interaction_forward.12} parent=5 // pred_fallthru
      _
    %p4494 = scmp.le.s32.totalorder 2, %s22
    // Predicated region
    $region85: #{interaction_forward.12} parent=5 // pred_check
      %p4495 = pneg %p4494
    $region86: #{interaction_forward.12} parent=5 // pred_check_branch
      %4497 = sbr.rel (%p4495) target = $region88
    $region87: #{interaction_forward.12} parent=5 // pred_region
      %s4498 = ssub.s32 %s22, 2
      // Predicated region
      $region89: #{interaction_forward.12} parent=87 // pred_check
        %p4499 = pneg %p355
      $region90: #{interaction_forward.12} parent=87 // pred_check_branch
        %4501 = sbr.rel (%p4499) target = $region92
      $region91: #{interaction_forward.12} parent=87 // pred_region
        %p4502 = scmp.lt.s32.totalorder %s28, 1
        %s4503 = scalar_select %p4502, %s28, 1
        %s4504 = smul.addr %s4503, 2
        %s4505 = smul.addr %s4504, 8
        %s4506 = scalar_lea.vmem %s14, %s4505
      $region92: #{interaction_forward.12} parent=87 // pred_fallthru
        _
      // Predicated region
      $region93: #{interaction_forward.12} parent=87 // pred_check
        %p4507 = pneg %p381
      $region94: #{interaction_forward.12} parent=87 // pred_check_branch
        %4509 = sbr.rel (%p4507) target = $region96
      $region95: #{interaction_forward.12} parent=87 // pred_region
        %p4510 = scmp.lt.s32.totalorder %s28, 1
        %s4511 = scalar_select %p4510, %s28, 1
        %s4512 = smul.addr %s4511, 4
        %s4513 = smul.addr %s4512, 8
        %s4514 = scalar_lea.vmem %s15, %s4513
      $region96: #{interaction_forward.12} parent=87 // pred_fallthru
        _
    $region88: #{interaction_forward.12} parent=5 // pred_fallthru
      _
  $region6: #{interaction_forward.12} parent=0 // loop_footer
    %s26 = sadd.s32 1, %s22
  $region7: #{interaction_forward.12} parent=0 // loop_footer_branch
    %21 = sbr.rel target = $region3
  $region8: #{interaction_forward.12} parent=0 // loop_exit
    _

</llo_original>
